<compile_context>
chip_gen: v6e
topology: v6e:2x2x1
jax: 0.10.0
libtpu: 0.0.40
codegen_flags: <defaults>
</compile_context>

<pallas_src>
import jax
import jax.numpy as jnp
import numpy as np
from jax import lax
from jax.experimental import pallas as pl
from jax.experimental.pallas import tpu as pltpu  # noqa: F401  (TPU backend)

# ---------------- configuration (synthetic, small) ----------------
SEQ_LEN = 16           # configs.seq_len
PRED_LEN = 8           # configs.pred_len
N_VARS = 4             # variates in x_enc
N_MARK = 3             # time-mark features in x_mark_enc
N_TOKENS = N_VARS + N_MARK
D_MODEL = 32           # configs.d_model
N_HEADS = 4            # configs.n_heads
HEAD_DIM = D_MODEL // N_HEADS
D_FF = 64              # configs.d_ff
E_LAYERS = 2           # configs.e_layers
EPS = 1e-5


# ---------------- shared math helper (kernel & reference) ----------------
def _layernorm(x, gamma, beta):
    mu = jnp.mean(x, axis=-1, keepdims=True)
    xc = x - mu
    var = jnp.mean(xc * xc, axis=-1, keepdims=True)
    return xc * lax.rsqrt(var + EPS) * gamma + beta


# ---------------- fused Pallas kernel (whole forward, whole batch) ----------------
def _fused_forward_kernel(x_ref, wemb_ref, bemb_ref, wqkv_ref, bqkv_ref,
                          wo_ref, bo_ref, wff1_ref, bff1_ref, wff2_ref,
                          bff2_ref, ln_ref, wproj_ref, bproj_ref, out_ref):
    B = x_ref.shape[0]

    # ---- non-stationary normalization (stats over the lane/time axis) ------
    x = x_ref[...]                                         # [B, T, L]
    mean = jnp.mean(x, axis=-1, keepdims=True)             # [B, T, 1]
    xc = x - mean
    var = jnp.mean(xc * xc, axis=-1, keepdims=True)
    std = jnp.sqrt(var + EPS)                              # [B, T, 1]
    # Only the first N_VARS token rows (the variates) are normalized; marks stay raw.
    is_var = lax.broadcasted_iota(jnp.int32, x.shape, 1) < N_VARS
    xn = jnp.where(is_var, xc / std, x)                    # [B, T, L]

    # ---- inverted embedding: Linear(seq_len -> d_model) on all token rows ---
    h = lax.dot_general(xn, wemb_ref[...], (((2,), (0,)), ((), ())),
                        preferred_element_type=jnp.float32) + bemb_ref[...]   # [B, T, D]

    ln = ln_ref[...]                                       # [4*E_LAYERS + 2, D]

    # ---- encoder layers (static unrolled; weights loaded once per layer) ----
    for l in range(E_LAYERS):
        wqkv = wqkv_ref[l]                                 # [H, D, 3E] (q pre-scaled)
        bqkv = bqkv_ref[l]                                 # [H, 1, 3E]
        wo = wo_ref[l]                                     # [D, D]
        bo = bo_ref[l]                                     # [1, D]
        g1, be1 = ln[4 * l:4 * l + 1], ln[4 * l + 1:4 * l + 2]
        g2, be2 = ln[4 * l + 2:4 * l + 3], ln[4 * l + 3:4 * l + 4]

        attn_rows = []
        for b in range(B):                                 # B is tiny; fully unrolled
            hb = jnp.broadcast_to(h[b], (N_HEADS, N_TOKENS, D_MODEL))   # [H, T, D]
            qkv = lax.dot_general(hb, wqkv, (((2,), (1,)), ((0,), (0,))),
                                  preferred_element_type=jnp.float32) + bqkv  # [H, T, 3E]
            q = qkv[..., 0:HEAD_DIM]                       # already scaled by 1/sqrt(E)
            k = qkv[..., HEAD_DIM:2 * HEAD_DIM]
            v = qkv[..., 2 * HEAD_DIM:3 * HEAD_DIM]

            s = lax.dot_general(q, k, (((2,), (2,)), ((0,), (0,))),
                                preferred_element_type=jnp.float32)    # [H, T, T]
            s = s - jnp.max(s, axis=-1, keepdims=True)
            p = jnp.exp(s)
            a = p * pl.reciprocal(jnp.sum(p, axis=-1, keepdims=True), approx=True)

            ctx = lax.dot_general(a, v, (((2,), (1,)), ((0,), (0,))),
                                  preferred_element_type=jnp.float32)  # [H, T, E]
            # [H, T, E] -> [T, H*E]: lane-axis concat of head contexts.
            ctx2 = jnp.concatenate([ctx[hh] for hh in range(N_HEADS)], axis=-1)
            attn_rows.append(
                jnp.dot(ctx2, wo, preferred_element_type=jnp.float32) + bo)   # [T, D]
        attn = jnp.stack(attn_rows, axis=0)                # [B, T, D]

        x1 = _layernorm(h + attn, g1, be1)

        # FFN (Conv1d k=1 == Linear), activation = relu.
        y = lax.dot_general(x1, wff1_ref[l], (((2,), (0,)), ((), ())),
                            preferred_element_type=jnp.float32) + bff1_ref[l]
        y = jnp.maximum(y, 0.0)
        y = lax.dot_general(y, wff2_ref[l], (((2,), (0,)), ((), ())),
                            preferred_element_type=jnp.float32) + bff2_ref[l]
        h = _layernorm(x1 + y, g2, be2)

    # ---- encoder final LayerNorm + projection + de-normalization ------------
    g_f = ln[4 * E_LAYERS:4 * E_LAYERS + 1]
    be_f = ln[4 * E_LAYERS + 1:4 * E_LAYERS + 2]
    hn = _layernorm(h, g_f, be_f)                          # [B, T, D]
    hn_vars = hn[:, 0:N_VARS, :]                           # [B, N, D] (variate tokens)
    proj = lax.dot_general(hn_vars, wproj_ref[...], (((2,), (0,)), ((), ())),
                           precision=lax.Precision.HIGHEST,
                           preferred_element_type=jnp.float32) + bproj_ref[...]  # [B, N, P]
    out_ref[...] = proj * std[:, 0:N_VARS, :] + mean[:, 0:N_VARS, :]   # [B, N, P]


# ---------------- pallas_call wrapper ----------------
@jax.jit
def itransformer_forward(x_enc, x_mark_enc, kernel_args):
    B = x_enc.shape[0]
    # Single layout-prep HLO on the RAW inputs: token-major slab [B, T, L].
    x_tok = jnp.concatenate([jnp.transpose(x_enc, (0, 2, 1)),
                             jnp.transpose(x_mark_enc, (0, 2, 1))], axis=1)
    out_nv = pl.pallas_call(
        _fused_forward_kernel,
        out_shape=jax.ShapeDtypeStruct((B, N_VARS, PRED_LEN), jnp.float32),
    )(x_tok, *kernel_args)
    return jnp.transpose(out_nv, (0, 2, 1))                # [B, pred_len, N]


def prepare_kernel_args(params):
    """Host-side (one-time) stacking of weights into the kernel layout."""
    H, E, D = N_HEADS, HEAD_DIM, D_MODEL
    scale = 1.0 / (float(E) ** 0.5)

    def head_w(w):   # [D, H*E] -> [H, D, E]
        return jnp.transpose(w.reshape(D, H, E), (1, 0, 2))

    def head_b(b):   # [1, H*E] -> [H, 1, E]
        return b.reshape(H, 1, E)

    wqkv, bqkv, wo, bo = [], [], [], []
    wff1, bff1, wff2, bff2 = [], [], [], []
    ln_rows = []
    for lp in params['layers']:
        wqkv.append(jnp.concatenate(
            [head_w(lp['wq']) * scale, head_w(lp['wk']), head_w(lp['wv'])], axis=-1))
        bqkv.append(jnp.concatenate(
            [head_b(lp['bq']) * scale, head_b(lp['bk']), head_b(lp['bv'])], axis=-1))
        wo.append(lp['wo'])
        bo.append(lp['bo'])
        wff1.append(lp['w1']); bff1.append(lp['b1'])
        wff2.append(lp['w2']); bff2.append(lp['b2'])
        ln_rows += [lp['g1'][0], lp['be1'][0], lp['g2'][0], lp['be2'][0]]
    ln_rows += [params['g_f'][0], params['be_f'][0]]

    return (params['w_emb'],                 # [L, D]
            params['b_emb'],                 # [1, D]
            jnp.stack(wqkv, 0),              # [E_LAYERS, H, D, 3E]
            jnp.stack(bqkv, 0),              # [E_LAYERS, H, 1, 3E]
            jnp.stack(wo, 0),                # [E_LAYERS, D, D]
            jnp.stack(bo, 0),                # [E_LAYERS, 1, D]
            jnp.stack(wff1, 0),              # [E_LAYERS, D, D_FF]
            jnp.stack(bff1, 0),              # [E_LAYERS, 1, D_FF]
            jnp.stack(wff2, 0),              # [E_LAYERS, D_FF, D]
            jnp.stack(bff2, 0),              # [E_LAYERS, 1, D]
            jnp.stack(ln_rows, 0),           # [4*E_LAYERS + 2, D]
            params['w_proj'],                # [D, P]
            params['b_proj'])                # [1, P]


# ---------------- pure-JAX reference (numerical check) ----------------
def reference_forward(x_enc, x_mark_enc, params):
    means = jnp.mean(x_enc, axis=1, keepdims=True)
    xc = x_enc - means
    std = jnp.sqrt(jnp.var(xc, axis=1, keepdims=True) + EPS)
    xn = xc / std
    x_inv = jnp.concatenate([jnp.transpose(xn, (0, 2, 1)),
                             jnp.transpose(x_mark_enc, (0, 2, 1))], axis=1)
    h = x_inv @ params['w_emb'] + params['b_emb']
    B, T, D = h.shape
    E = D // N_HEADS
    for lp in params['layers']:
        q = (h @ lp['wq'] + lp['bq']).reshape(B, T, N_HEADS, E)
        k = (h @ lp['wk'] + lp['bk']).reshape(B, T, N_HEADS, E)
        v = (h @ lp['wv'] + lp['bv']).reshape(B, T, N_HEADS, E)
        s = jnp.einsum('blhe,bshe->bhls', q, k) / jnp.sqrt(float(E))
        a = jax.nn.softmax(s, axis=-1)
        ctx = jnp.einsum('bhls,bshe->blhe', a, v).reshape(B, T, D)
        x1 = _layernorm(h + ctx @ lp['wo'] + lp['bo'], lp['g1'], lp['be1'])
        y = jnp.maximum(x1 @ lp['w1'] + lp['b1'], 0.0) @ lp['w2'] + lp['b2']
        h = _layernorm(x1 + y, lp['g2'], lp['be2'])
    hn = _layernorm(h, params['g_f'], params['be_f'])
    dec = jnp.transpose(hn @ params['w_proj'] + params['b_proj'], (0, 2, 1))[:, :, :N_VARS]
    return dec * std + means


# ---------------- deterministic parameter init ----------------
def init_params(key):
    def dense(k, shape, scale=0.05):
        return (scale * jax.random.normal(k, shape)).astype(jnp.float32)

    keys = iter(jax.random.split(key, 4 + 12 * E_LAYERS))
    params = {
        'w_emb': dense(next(keys), (SEQ_LEN, D_MODEL)),
        'b_emb': dense(next(keys), (1, D_MODEL)),
        'g_f': jnp.ones((1, D_MODEL), jnp.float32),
        'be_f': jnp.zeros((1, D_MODEL), jnp.float32),
        'w_proj': dense(next(keys), (D_MODEL, PRED_LEN)),
        'b_proj': dense(next(keys), (1, PRED_LEN)),
        'layers': [],
    }
    for _ in range(E_LAYERS):
        params['layers'].append(dict(
            wq=dense(next(keys), (D_MODEL, D_MODEL)), bq=dense(next(keys), (1, D_MODEL)),
            wk=dense(next(keys), (D_MODEL, D_MODEL)), bk=dense(next(keys), (1, D_MODEL)),
            wv=dense(next(keys), (D_MODEL, D_MODEL)), bv=dense(next(keys), (1, D_MODEL)),
            wo=dense(next(keys), (D_MODEL, D_MODEL)), bo=dense(next(keys), (1, D_MODEL)),
            g1=jnp.ones((1, D_MODEL), jnp.float32), be1=jnp.zeros((1, D_MODEL), jnp.float32),
            w1=dense(next(keys), (D_MODEL, D_FF)), b1=dense(next(keys), (1, D_FF)),
            w2=dense(next(keys), (D_FF, D_MODEL)), b2=dense(next(keys), (1, D_MODEL)),
            g2=jnp.ones((1, D_MODEL), jnp.float32), be2=jnp.zeros((1, D_MODEL), jnp.float32),
        ))
    return params


if __name__ == "__main__":
    B = 2
    key = jax.random.PRNGKey(0)
    k1, k2, k3 = jax.random.split(key, 3)
    x_enc = jax.random.normal(k1, (B, SEQ_LEN, N_VARS), dtype=jnp.float32)
    x_mark_enc = jax.random.normal(k2, (B, SEQ_LEN, N_MARK), dtype=jnp.float32)
    x_dec = jnp.zeros((B, PRED_LEN, N_VARS), jnp.float32)        # unused by forward
    x_mark_dec = jnp.zeros((B, PRED_LEN, N_MARK), jnp.float32)   # unused by forward
    params = init_params(k3)
    kernel_args = prepare_kernel_args(params)

    out = itransformer_forward(x_enc, x_mark_enc, kernel_args)
    out = jax.block_until_ready(out)

    ref = reference_forward(x_enc, x_mark_enc, params)
    # Default MXU precision everywhere except the final (error-amplifying)
    # projection, which runs at HIGHEST; approx reciprocal in the softmax.
    np.testing.assert_allclose(np.asarray(out), np.asarray(ref), rtol=1e-2, atol=1e-2)
    assert out.shape == (B, PRED_LEN, N_VARS)
    print("KERNEL_OK")
</pallas_src>

<mosaic_0001>
module attributes {stable_mosaic.version = 11 : i64} {
  func.func @_fused_forward_kernel(%arg0: memref<2x7x16xf32, #tpu.memory_space<vmem>>, %arg1: memref<16x32xf32, #tpu.memory_space<vmem>>, %arg2: memref<1x32xf32, #tpu.memory_space<vmem>>, %arg3: memref<2x4x32x24xf32, #tpu.memory_space<vmem>>, %arg4: memref<2x4x1x24xf32, #tpu.memory_space<vmem>>, %arg5: memref<2x32x32xf32, #tpu.memory_space<vmem>>, %arg6: memref<2x1x32xf32, #tpu.memory_space<vmem>>, %arg7: memref<2x32x64xf32, #tpu.memory_space<vmem>>, %arg8: memref<2x1x64xf32, #tpu.memory_space<vmem>>, %arg9: memref<2x64x32xf32, #tpu.memory_space<vmem>>, %arg10: memref<2x1x32xf32, #tpu.memory_space<vmem>>, %arg11: memref<10x32xf32, #tpu.memory_space<vmem>>, %arg12: memref<32x8xf32, #tpu.memory_space<vmem>>, %arg13: memref<1x8xf32, #tpu.memory_space<vmem>>, %arg14: memref<2x4x8xf32, #tpu.memory_space<vmem>>) attributes {dimension_semantics = [], scalar_prefetch = 0 : i64, scratch_operands = 0 : i64, tpu.core_type = #tpu.core_type<tc>} {
    %c0 = arith.constant 0 : index
    %c0_0 = arith.constant 0 : index
    %c0_1 = arith.constant 0 : index
    %0 = vector.load %arg0[%c0, %c0_0, %c0_1] : memref<2x7x16xf32, #tpu.memory_space<vmem>>, vector<2x7x16xf32>
    %cst = arith.constant dense<0.000000e+00> : vector<2x7xf32>
    %1 = vector.multi_reduction <add>, %0, %cst [2] : vector<2x7x16xf32> to vector<2x7xf32>
    %2 = vector.shape_cast %1 : vector<2x7xf32> to vector<2x7x1xf32>
    %cst_2 = arith.constant 1.600000e+01 : f32
    %3 = vector.broadcast %cst_2 : f32 to vector<2x7x1xf32>
    %4 = arith.divf %2, %3 : vector<2x7x1xf32>
    %5 = vector.broadcast %4 : vector<2x7x1xf32> to vector<2x7x16xf32>
    %6 = arith.subf %0, %5 : vector<2x7x16xf32>
    %7 = arith.mulf %6, %6 : vector<2x7x16xf32>
    %cst_3 = arith.constant dense<0.000000e+00> : vector<2x7xf32>
    %8 = vector.multi_reduction <add>, %7, %cst_3 [2] : vector<2x7x16xf32> to vector<2x7xf32>
    %9 = vector.shape_cast %8 : vector<2x7xf32> to vector<2x7x1xf32>
    %cst_4 = arith.constant 1.600000e+01 : f32
    %10 = vector.broadcast %cst_4 : f32 to vector<2x7x1xf32>
    %11 = arith.divf %9, %10 : vector<2x7x1xf32>
    %cst_5 = arith.constant 9.99999974E-6 : f32
    %12 = vector.broadcast %cst_5 : f32 to vector<2x7x1xf32>
    %13 = arith.addf %11, %12 : vector<2x7x1xf32>
    %14 = math.sqrt %13 : vector<2x7x1xf32>
    %15 = tpu.iota {dimensions = array<i32: 1>} : vector<2x7x16xi32>
    %c4_i32 = arith.constant 4 : i32
    %16 = vector.broadcast %c4_i32 : i32 to vector<2x7x16xi32>
    %17 = arith.cmpi slt, %15, %16 : vector<2x7x16xi32>
    %18 = vector.broadcast %14 : vector<2x7x1xf32> to vector<2x7x16xf32>
    %19 = arith.divf %6, %18 : vector<2x7x16xf32>
    %20 = arith.select %17, %19, %0 : vector<2x7x16xi1>, vector<2x7x16xf32>
    %c0_6 = arith.constant 0 : index
    %c0_7 = arith.constant 0 : index
    %21 = vector.load %arg1[%c0_6, %c0_7] : memref<16x32xf32, #tpu.memory_space<vmem>>, vector<16x32xf32>
    %cst_8 = arith.constant dense<0.000000e+00> : vector<2x7x32xf32>
    %22 = tpu.matmul %20, %21, %cst_8 {dimension_numbers = #tpu.dot_dimension_numbers<[2], [0], [0, 1], [1], [0, 0, 0, 1, 1, 1], [], []>} : vector<2x7x16xf32>, vector<16x32xf32>, vector<2x7x32xf32> -> vector<2x7x32xf32>
    %c0_9 = arith.constant 0 : index
    %c0_10 = arith.constant 0 : index
    %23 = vector.load %arg2[%c0_9, %c0_10] : memref<1x32xf32, #tpu.memory_space<vmem>>, vector<1x32xf32>
    %24 = vector.shape_cast %23 : vector<1x32xf32> to vector<1x1x32xf32>
    %25 = vector.broadcast %24 : vector<1x1x32xf32> to vector<2x7x32xf32>
    %26 = arith.addf %22, %25 : vector<2x7x32xf32>
    %c0_11 = arith.constant 0 : index
    %c0_12 = arith.constant 0 : index
    %27 = vector.load %arg11[%c0_11, %c0_12] : memref<10x32xf32, #tpu.memory_space<vmem>>, vector<10x32xf32>
    %c0_13 = arith.constant 0 : index
    %c0_14 = arith.constant 0 : index
    %c0_15 = arith.constant 0 : index
    %c0_16 = arith.constant 0 : index
    %28 = vector.load %arg3[%c0_13, %c0_14, %c0_15, %c0_16] : memref<2x4x32x24xf32, #tpu.memory_space<vmem>>, vector<1x4x32x24xf32>
    %29 = vector.shape_cast %28 : vector<1x4x32x24xf32> to vector<4x32x24xf32>
    %c0_17 = arith.constant 0 : index
    %c0_18 = arith.constant 0 : index
    %c0_19 = arith.constant 0 : index
    %c0_20 = arith.constant 0 : index
    %30 = vector.load %arg4[%c0_17, %c0_18, %c0_19, %c0_20] : memref<2x4x1x24xf32, #tpu.memory_space<vmem>>, vector<1x4x1x24xf32>
    %31 = vector.shape_cast %30 : vector<1x4x1x24xf32> to vector<4x1x24xf32>
    %c0_21 = arith.constant 0 : index
    %c0_22 = arith.constant 0 : index
    %c0_23 = arith.constant 0 : index
    %32 = vector.load %arg5[%c0_21, %c0_22, %c0_23] : memref<2x32x32xf32, #tpu.memory_space<vmem>>, vector<1x32x32xf32>
    %33 = vector.shape_cast %32 : vector<1x32x32xf32> to vector<32x32xf32>
    %c0_24 = arith.constant 0 : index
    %c0_25 = arith.constant 0 : index
    %c0_26 = arith.constant 0 : index
    %34 = vector.load %arg6[%c0_24, %c0_25, %c0_26] : memref<2x1x32xf32, #tpu.memory_space<vmem>>, vector<1x1x32xf32>
    %35 = vector.shape_cast %34 : vector<1x1x32xf32> to vector<1x32xf32>
    %36 = vector.extract_strided_slice %27 {offsets = [0, 0], sizes = [1, 32], strides = [1, 1]} : vector<10x32xf32> to vector<1x32xf32>
    %37 = vector.extract_strided_slice %27 {offsets = [1, 0], sizes = [1, 32], strides = [1, 1]} : vector<10x32xf32> to vector<1x32xf32>
    %38 = vector.extract_strided_slice %27 {offsets = [2, 0], sizes = [1, 32], strides = [1, 1]} : vector<10x32xf32> to vector<1x32xf32>
    %39 = vector.extract_strided_slice %27 {offsets = [3, 0], sizes = [1, 32], strides = [1, 1]} : vector<10x32xf32> to vector<1x32xf32>
    %40 = vector.extract_strided_slice %26 {offsets = [0, 0, 0], sizes = [1, 7, 32], strides = [1, 1, 1]} : vector<2x7x32xf32> to vector<1x7x32xf32>
    %41 = vector.shape_cast %40 : vector<1x7x32xf32> to vector<7x32xf32>
    %42 = vector.shape_cast %41 : vector<7x32xf32> to vector<1x7x32xf32>
    %43 = vector.broadcast %42 : vector<1x7x32xf32> to vector<4x7x32xf32>
    %cst_27 = arith.constant dense<0.000000e+00> : vector<4x7x24xf32>
    %44 = tpu.matmul %43, %29, %cst_27 {dimension_numbers = #tpu.dot_dimension_numbers<[2], [1], [1], [2], [0, 0, 0, 1, 1, 2], [0], [0]>} : vector<4x7x32xf32>, vector<4x32x24xf32>, vector<4x7x24xf32> -> vector<4x7x24xf32>
    %45 = vector.broadcast %31 : vector<4x1x24xf32> to vector<4x7x24xf32>
    %46 = arith.addf %44, %45 : vector<4x7x24xf32>
    %47 = vector.extract_strided_slice %46 {offsets = [0, 0, 0], sizes = [4, 7, 8], strides = [1, 1, 1]} : vector<4x7x24xf32> to vector<4x7x8xf32>
    %48 = vector.extract_strided_slice %46 {offsets = [0, 0, 8], sizes = [4, 7, 8], strides = [1, 1, 1]} : vector<4x7x24xf32> to vector<4x7x8xf32>
    %49 = vector.extract_strided_slice %46 {offsets = [0, 0, 16], sizes = [4, 7, 8], strides = [1, 1, 1]} : vector<4x7x24xf32> to vector<4x7x8xf32>
    %cst_28 = arith.constant dense<0.000000e+00> : vector<4x7x7xf32>
    %50 = tpu.matmul %47, %48, %cst_28 {dimension_numbers = #tpu.dot_dimension_numbers<[2], [2], [1], [1], [0, 0, 0, 1, 1, 1], [0], [0]>} : vector<4x7x8xf32>, vector<4x7x8xf32>, vector<4x7x7xf32> -> vector<4x7x7xf32>
    %cst_29 = arith.constant dense<0xFF800000> : vector<4x7xf32>
    %51 = vector.multi_reduction <maximumf>, %50, %cst_29 [2] : vector<4x7x7xf32> to vector<4x7xf32>
    %52 = vector.shape_cast %51 : vector<4x7xf32> to vector<4x7x1xf32>
    %53 = vector.broadcast %52 : vector<4x7x1xf32> to vector<4x7x7xf32>
    %54 = arith.subf %50, %53 : vector<4x7x7xf32>
    %55 = math.exp %54 : vector<4x7x7xf32>
    %cst_30 = arith.constant dense<0.000000e+00> : vector<4x7xf32>
    %56 = vector.multi_reduction <add>, %55, %cst_30 [2] : vector<4x7x7xf32> to vector<4x7xf32>
    %57 = vector.shape_cast %56 : vector<4x7xf32> to vector<4x7x1xf32>
    %58 = tpu.reciprocal %57 {approx = true} : vector<4x7x1xf32> -> vector<4x7x1xf32>
    %59 = vector.broadcast %58 : vector<4x7x1xf32> to vector<4x7x7xf32>
    %60 = arith.mulf %55, %59 : vector<4x7x7xf32>
    %cst_31 = arith.constant dense<0.000000e+00> : vector<4x7x8xf32>
    %61 = tpu.matmul %60, %49, %cst_31 {dimension_numbers = #tpu.dot_dimension_numbers<[2], [1], [1], [2], [0, 0, 0, 1, 1, 2], [0], [0]>} : vector<4x7x7xf32>, vector<4x7x8xf32>, vector<4x7x8xf32> -> vector<4x7x8xf32>
    %62 = vector.extract_strided_slice %61 {offsets = [0, 0, 0], sizes = [1, 7, 8], strides = [1, 1, 1]} : vector<4x7x8xf32> to vector<1x7x8xf32>
    %63 = vector.shape_cast %62 : vector<1x7x8xf32> to vector<7x8xf32>
    %64 = vector.extract_strided_slice %61 {offsets = [1, 0, 0], sizes = [1, 7, 8], strides = [1, 1, 1]} : vector<4x7x8xf32> to vector<1x7x8xf32>
    %65 = vector.shape_cast %64 : vector<1x7x8xf32> to vector<7x8xf32>
    %66 = vector.extract_strided_slice %61 {offsets = [2, 0, 0], sizes = [1, 7, 8], strides = [1, 1, 1]} : vector<4x7x8xf32> to vector<1x7x8xf32>
    %67 = vector.shape_cast %66 : vector<1x7x8xf32> to vector<7x8xf32>
    %68 = vector.extract_strided_slice %61 {offsets = [3, 0, 0], sizes = [1, 7, 8], strides = [1, 1, 1]} : vector<4x7x8xf32> to vector<1x7x8xf32>
    %69 = vector.shape_cast %68 : vector<1x7x8xf32> to vector<7x8xf32>
    %70 = tpu.concatenate %63, %65, %67, %69 in 1 : vector<7x8xf32>, vector<7x8xf32>, vector<7x8xf32>, vector<7x8xf32> -> vector<7x32xf32>
    %cst_32 = arith.constant dense<0.000000e+00> : vector<7x32xf32>
    %71 = tpu.matmul %70, %33, %cst_32 {dimension_numbers = #tpu.dot_dimension_numbers<[1], [0], [0], [1], [0, 0, 1, 1], [], []>} : vector<7x32xf32>, vector<32x32xf32>, vector<7x32xf32> -> vector<7x32xf32>
    %72 = vector.broadcast %35 : vector<1x32xf32> to vector<7x32xf32>
    %73 = arith.addf %71, %72 : vector<7x32xf32>
    %74 = vector.extract_strided_slice %26 {offsets = [1, 0, 0], sizes = [1, 7, 32], strides = [1, 1, 1]} : vector<2x7x32xf32> to vector<1x7x32xf32>
    %75 = vector.shape_cast %74 : vector<1x7x32xf32> to vector<7x32xf32>
    %76 = vector.shape_cast %75 : vector<7x32xf32> to vector<1x7x32xf32>
    %77 = vector.broadcast %76 : vector<1x7x32xf32> to vector<4x7x32xf32>
    %cst_33 = arith.constant dense<0.000000e+00> : vector<4x7x24xf32>
    %78 = tpu.matmul %77, %29, %cst_33 {dimension_numbers = #tpu.dot_dimension_numbers<[2], [1], [1], [2], [0, 0, 0, 1, 1, 2], [0], [0]>} : vector<4x7x32xf32>, vector<4x32x24xf32>, vector<4x7x24xf32> -> vector<4x7x24xf32>
    %79 = vector.broadcast %31 : vector<4x1x24xf32> to vector<4x7x24xf32>
    %80 = arith.addf %78, %79 : vector<4x7x24xf32>
    %81 = vector.extract_strided_slice %80 {offsets = [0, 0, 0], sizes = [4, 7, 8], strides = [1, 1, 1]} : vector<4x7x24xf32> to vector<4x7x8xf32>
    %82 = vector.extract_strided_slice %80 {offsets = [0, 0, 8], sizes = [4, 7, 8], strides = [1, 1, 1]} : vector<4x7x24xf32> to vector<4x7x8xf32>
    %83 = vector.extract_strided_slice %80 {offsets = [0, 0, 16], sizes = [4, 7, 8], strides = [1, 1, 1]} : vector<4x7x24xf32> to vector<4x7x8xf32>
    %cst_34 = arith.constant dense<0.000000e+00> : vector<4x7x7xf32>
    %84 = tpu.matmul %81, %82, %cst_34 {dimension_numbers = #tpu.dot_dimension_numbers<[2], [2], [1], [1], [0, 0, 0, 1, 1, 1], [0], [0]>} : vector<4x7x8xf32>, vector<4x7x8xf32>, vector<4x7x7xf32> -> vector<4x7x7xf32>
    %cst_35 = arith.constant dense<0xFF800000> : vector<4x7xf32>
    %85 = vector.multi_reduction <maximumf>, %84, %cst_35 [2] : vector<4x7x7xf32> to vector<4x7xf32>
    %86 = vector.shape_cast %85 : vector<4x7xf32> to vector<4x7x1xf32>
    %87 = vector.broadcast %86 : vector<4x7x1xf32> to vector<4x7x7xf32>
    %88 = arith.subf %84, %87 : vector<4x7x7xf32>
    %89 = math.exp %88 : vector<4x7x7xf32>
    %cst_36 = arith.constant dense<0.000000e+00> : vector<4x7xf32>
    %90 = vector.multi_reduction <add>, %89, %cst_36 [2] : vector<4x7x7xf32> to vector<4x7xf32>
    %91 = vector.shape_cast %90 : vector<4x7xf32> to vector<4x7x1xf32>
    %92 = tpu.reciprocal %91 {approx = true} : vector<4x7x1xf32> -> vector<4x7x1xf32>
    %93 = vector.broadcast %92 : vector<4x7x1xf32> to vector<4x7x7xf32>
    %94 = arith.mulf %89, %93 : vector<4x7x7xf32>
    %cst_37 = arith.constant dense<0.000000e+00> : vector<4x7x8xf32>
    %95 = tpu.matmul %94, %83, %cst_37 {dimension_numbers = #tpu.dot_dimension_numbers<[2], [1], [1], [2], [0, 0, 0, 1, 1, 2], [0], [0]>} : vector<4x7x7xf32>, vector<4x7x8xf32>, vector<4x7x8xf32> -> vector<4x7x8xf32>
    %96 = vector.extract_strided_slice %95 {offsets = [0, 0, 0], sizes = [1, 7, 8], strides = [1, 1, 1]} : vector<4x7x8xf32> to vector<1x7x8xf32>
    %97 = vector.shape_cast %96 : vector<1x7x8xf32> to vector<7x8xf32>
    %98 = vector.extract_strided_slice %95 {offsets = [1, 0, 0], sizes = [1, 7, 8], strides = [1, 1, 1]} : vector<4x7x8xf32> to vector<1x7x8xf32>
    %99 = vector.shape_cast %98 : vector<1x7x8xf32> to vector<7x8xf32>
    %100 = vector.extract_strided_slice %95 {offsets = [2, 0, 0], sizes = [1, 7, 8], strides = [1, 1, 1]} : vector<4x7x8xf32> to vector<1x7x8xf32>
    %101 = vector.shape_cast %100 : vector<1x7x8xf32> to vector<7x8xf32>
    %102 = vector.extract_strided_slice %95 {offsets = [3, 0, 0], sizes = [1, 7, 8], strides = [1, 1, 1]} : vector<4x7x8xf32> to vector<1x7x8xf32>
    %103 = vector.shape_cast %102 : vector<1x7x8xf32> to vector<7x8xf32>
    %104 = tpu.concatenate %97, %99, %101, %103 in 1 : vector<7x8xf32>, vector<7x8xf32>, vector<7x8xf32>, vector<7x8xf32> -> vector<7x32xf32>
    %cst_38 = arith.constant dense<0.000000e+00> : vector<7x32xf32>
    %105 = tpu.matmul %104, %33, %cst_38 {dimension_numbers = #tpu.dot_dimension_numbers<[1], [0], [0], [1], [0, 0, 1, 1], [], []>} : vector<7x32xf32>, vector<32x32xf32>, vector<7x32xf32> -> vector<7x32xf32>
    %106 = vector.broadcast %35 : vector<1x32xf32> to vector<7x32xf32>
    %107 = arith.addf %105, %106 : vector<7x32xf32>
    %108 = vector.shape_cast %73 : vector<7x32xf32> to vector<1x7x32xf32>
    %109 = vector.shape_cast %107 : vector<7x32xf32> to vector<1x7x32xf32>
    %110 = tpu.concatenate %108, %109 in 0 : vector<1x7x32xf32>, vector<1x7x32xf32> -> vector<2x7x32xf32>
    %111 = arith.addf %26, %110 : vector<2x7x32xf32>
    %cst_39 = arith.constant dense<0.000000e+00> : vector<2x7xf32>
    %112 = vector.multi_reduction <add>, %111, %cst_39 [2] : vector<2x7x32xf32> to vector<2x7xf32>
    %113 = vector.shape_cast %112 : vector<2x7xf32> to vector<2x7x1xf32>
    %cst_40 = arith.constant 3.200000e+01 : f32
    %114 = vector.broadcast %cst_40 : f32 to vector<2x7x1xf32>
    %115 = arith.divf %113, %114 : vector<2x7x1xf32>
    %116 = vector.broadcast %115 : vector<2x7x1xf32> to vector<2x7x32xf32>
    %117 = arith.subf %111, %116 : vector<2x7x32xf32>
    %118 = arith.mulf %117, %117 : vector<2x7x32xf32>
    %cst_41 = arith.constant dense<0.000000e+00> : vector<2x7xf32>
    %119 = vector.multi_reduction <add>, %118, %cst_41 [2] : vector<2x7x32xf32> to vector<2x7xf32>
    %120 = vector.shape_cast %119 : vector<2x7xf32> to vector<2x7x1xf32>
    %cst_42 = arith.constant 3.200000e+01 : f32
    %121 = vector.broadcast %cst_42 : f32 to vector<2x7x1xf32>
    %122 = arith.divf %120, %121 : vector<2x7x1xf32>
    %cst_43 = arith.constant 9.99999974E-6 : f32
    %123 = vector.broadcast %cst_43 : f32 to vector<2x7x1xf32>
    %124 = arith.addf %122, %123 : vector<2x7x1xf32>
    %125 = math.rsqrt %124 : vector<2x7x1xf32>
    %126 = vector.broadcast %125 : vector<2x7x1xf32> to vector<2x7x32xf32>
    %127 = arith.mulf %117, %126 : vector<2x7x32xf32>
    %128 = vector.shape_cast %36 : vector<1x32xf32> to vector<1x1x32xf32>
    %129 = vector.broadcast %128 : vector<1x1x32xf32> to vector<2x7x32xf32>
    %130 = arith.mulf %127, %129 : vector<2x7x32xf32>
    %131 = vector.shape_cast %37 : vector<1x32xf32> to vector<1x1x32xf32>
    %132 = vector.broadcast %131 : vector<1x1x32xf32> to vector<2x7x32xf32>
    %133 = arith.addf %130, %132 : vector<2x7x32xf32>
    %c0_44 = arith.constant 0 : index
    %c0_45 = arith.constant 0 : index
    %c0_46 = arith.constant 0 : index
    %134 = vector.load %arg7[%c0_44, %c0_45, %c0_46] : memref<2x32x64xf32, #tpu.memory_space<vmem>>, vector<1x32x64xf32>
    %135 = vector.shape_cast %134 : vector<1x32x64xf32> to vector<32x64xf32>
    %cst_47 = arith.constant dense<0.000000e+00> : vector<2x7x64xf32>
    %136 = tpu.matmul %133, %135, %cst_47 {dimension_numbers = #tpu.dot_dimension_numbers<[2], [0], [0, 1], [1], [0, 0, 0, 1, 1, 1], [], []>} : vector<2x7x32xf32>, vector<32x64xf32>, vector<2x7x64xf32> -> vector<2x7x64xf32>
    %c0_48 = arith.constant 0 : index
    %c0_49 = arith.constant 0 : index
    %c0_50 = arith.constant 0 : index
    %137 = vector.load %arg8[%c0_48, %c0_49, %c0_50] : memref<2x1x64xf32, #tpu.memory_space<vmem>>, vector<1x1x64xf32>
    %138 = vector.shape_cast %137 : vector<1x1x64xf32> to vector<1x64xf32>
    %139 = vector.shape_cast %138 : vector<1x64xf32> to vector<1x1x64xf32>
    %140 = vector.broadcast %139 : vector<1x1x64xf32> to vector<2x7x64xf32>
    %141 = arith.addf %136, %140 : vector<2x7x64xf32>
    %cst_51 = arith.constant 0.000000e+00 : f32
    %142 = vector.broadcast %cst_51 : f32 to vector<2x7x64xf32>
    %143 = arith.maximumf %141, %142 : vector<2x7x64xf32>
    %c0_52 = arith.constant 0 : index
    %c0_53 = arith.constant 0 : index
    %c0_54 = arith.constant 0 : index
    %144 = vector.load %arg9[%c0_52, %c0_53, %c0_54] : memref<2x64x32xf32, #tpu.memory_space<vmem>>, vector<1x64x32xf32>
    %145 = vector.shape_cast %144 : vector<1x64x32xf32> to vector<64x32xf32>
    %cst_55 = arith.constant dense<0.000000e+00> : vector<2x7x32xf32>
    %146 = tpu.matmul %143, %145, %cst_55 {dimension_numbers = #tpu.dot_dimension_numbers<[2], [0], [0, 1], [1], [0, 0, 0, 1, 1, 1], [], []>} : vector<2x7x64xf32>, vector<64x32xf32>, vector<2x7x32xf32> -> vector<2x7x32xf32>
    %c0_56 = arith.constant 0 : index
    %c0_57 = arith.constant 0 : index
    %c0_58 = arith.constant 0 : index
    %147 = vector.load %arg10[%c0_56, %c0_57, %c0_58] : memref<2x1x32xf32, #tpu.memory_space<vmem>>, vector<1x1x32xf32>
    %148 = vector.shape_cast %147 : vector<1x1x32xf32> to vector<1x32xf32>
    %149 = vector.shape_cast %148 : vector<1x32xf32> to vector<1x1x32xf32>
    %150 = vector.broadcast %149 : vector<1x1x32xf32> to vector<2x7x32xf32>
    %151 = arith.addf %146, %150 : vector<2x7x32xf32>
    %152 = arith.addf %133, %151 : vector<2x7x32xf32>
    %cst_59 = arith.constant dense<0.000000e+00> : vector<2x7xf32>
    %153 = vector.multi_reduction <add>, %152, %cst_59 [2] : vector<2x7x32xf32> to vector<2x7xf32>
    %154 = vector.shape_cast %153 : vector<2x7xf32> to vector<2x7x1xf32>
    %cst_60 = arith.constant 3.200000e+01 : f32
    %155 = vector.broadcast %cst_60 : f32 to vector<2x7x1xf32>
    %156 = arith.divf %154, %155 : vector<2x7x1xf32>
    %157 = vector.broadcast %156 : vector<2x7x1xf32> to vector<2x7x32xf32>
    %158 = arith.subf %152, %157 : vector<2x7x32xf32>
    %159 = arith.mulf %158, %158 : vector<2x7x32xf32>
    %cst_61 = arith.constant dense<0.000000e+00> : vector<2x7xf32>
    %160 = vector.multi_reduction <add>, %159, %cst_61 [2] : vector<2x7x32xf32> to vector<2x7xf32>
    %161 = vector.shape_cast %160 : vector<2x7xf32> to vector<2x7x1xf32>
    %cst_62 = arith.constant 3.200000e+01 : f32
    %162 = vector.broadcast %cst_62 : f32 to vector<2x7x1xf32>
    %163 = arith.divf %161, %162 : vector<2x7x1xf32>
    %cst_63 = arith.constant 9.99999974E-6 : f32
    %164 = vector.broadcast %cst_63 : f32 to vector<2x7x1xf32>
    %165 = arith.addf %163, %164 : vector<2x7x1xf32>
    %166 = math.rsqrt %165 : vector<2x7x1xf32>
    %167 = vector.broadcast %166 : vector<2x7x1xf32> to vector<2x7x32xf32>
    %168 = arith.mulf %158, %167 : vector<2x7x32xf32>
    %169 = vector.shape_cast %38 : vector<1x32xf32> to vector<1x1x32xf32>
    %170 = vector.broadcast %169 : vector<1x1x32xf32> to vector<2x7x32xf32>
    %171 = arith.mulf %168, %170 : vector<2x7x32xf32>
    %172 = vector.shape_cast %39 : vector<1x32xf32> to vector<1x1x32xf32>
    %173 = vector.broadcast %172 : vector<1x1x32xf32> to vector<2x7x32xf32>
    %174 = arith.addf %171, %173 : vector<2x7x32xf32>
    %c1 = arith.constant 1 : index
    %c0_64 = arith.constant 0 : index
    %c0_65 = arith.constant 0 : index
    %c0_66 = arith.constant 0 : index
    %175 = vector.load %arg3[%c1, %c0_64, %c0_65, %c0_66] : memref<2x4x32x24xf32, #tpu.memory_space<vmem>>, vector<1x4x32x24xf32>
    %176 = vector.shape_cast %175 : vector<1x4x32x24xf32> to vector<4x32x24xf32>
    %c1_67 = arith.constant 1 : index
    %c0_68 = arith.constant 0 : index
    %c0_69 = arith.constant 0 : index
    %c0_70 = arith.constant 0 : index
    %177 = vector.load %arg4[%c1_67, %c0_68, %c0_69, %c0_70] : memref<2x4x1x24xf32, #tpu.memory_space<vmem>>, vector<1x4x1x24xf32>
    %178 = vector.shape_cast %177 : vector<1x4x1x24xf32> to vector<4x1x24xf32>
    %c1_71 = arith.constant 1 : index
    %c0_72 = arith.constant 0 : index
    %c0_73 = arith.constant 0 : index
    %179 = vector.load %arg5[%c1_71, %c0_72, %c0_73] : memref<2x32x32xf32, #tpu.memory_space<vmem>>, vector<1x32x32xf32>
    %180 = vector.shape_cast %179 : vector<1x32x32xf32> to vector<32x32xf32>
    %c1_74 = arith.constant 1 : index
    %c0_75 = arith.constant 0 : index
    %c0_76 = arith.constant 0 : index
    %181 = vector.load %arg6[%c1_74, %c0_75, %c0_76] : memref<2x1x32xf32, #tpu.memory_space<vmem>>, vector<1x1x32xf32>
    %182 = vector.shape_cast %181 : vector<1x1x32xf32> to vector<1x32xf32>
    %183 = vector.extract_strided_slice %27 {offsets = [4, 0], sizes = [1, 32], strides = [1, 1]} : vector<10x32xf32> to vector<1x32xf32>
    %184 = vector.extract_strided_slice %27 {offsets = [5, 0], sizes = [1, 32], strides = [1, 1]} : vector<10x32xf32> to vector<1x32xf32>
    %185 = vector.extract_strided_slice %27 {offsets = [6, 0], sizes = [1, 32], strides = [1, 1]} : vector<10x32xf32> to vector<1x32xf32>
    %186 = vector.extract_strided_slice %27 {offsets = [7, 0], sizes = [1, 32], strides = [1, 1]} : vector<10x32xf32> to vector<1x32xf32>
    %187 = vector.extract_strided_slice %174 {offsets = [0, 0, 0], sizes = [1, 7, 32], strides = [1, 1, 1]} : vector<2x7x32xf32> to vector<1x7x32xf32>
    %188 = vector.shape_cast %187 : vector<1x7x32xf32> to vector<7x32xf32>
    %189 = vector.shape_cast %188 : vector<7x32xf32> to vector<1x7x32xf32>
    %190 = vector.broadcast %189 : vector<1x7x32xf32> to vector<4x7x32xf32>
    %cst_77 = arith.constant dense<0.000000e+00> : vector<4x7x24xf32>
    %191 = tpu.matmul %190, %176, %cst_77 {dimension_numbers = #tpu.dot_dimension_numbers<[2], [1], [1], [2], [0, 0, 0, 1, 1, 2], [0], [0]>} : vector<4x7x32xf32>, vector<4x32x24xf32>, vector<4x7x24xf32> -> vector<4x7x24xf32>
    %192 = vector.broadcast %178 : vector<4x1x24xf32> to vector<4x7x24xf32>
    %193 = arith.addf %191, %192 : vector<4x7x24xf32>
    %194 = vector.extract_strided_slice %193 {offsets = [0, 0, 0], sizes = [4, 7, 8], strides = [1, 1, 1]} : vector<4x7x24xf32> to vector<4x7x8xf32>
    %195 = vector.extract_strided_slice %193 {offsets = [0, 0, 8], sizes = [4, 7, 8], strides = [1, 1, 1]} : vector<4x7x24xf32> to vector<4x7x8xf32>
    %196 = vector.extract_strided_slice %193 {offsets = [0, 0, 16], sizes = [4, 7, 8], strides = [1, 1, 1]} : vector<4x7x24xf32> to vector<4x7x8xf32>
    %cst_78 = arith.constant dense<0.000000e+00> : vector<4x7x7xf32>
    %197 = tpu.matmul %194, %195, %cst_78 {dimension_numbers = #tpu.dot_dimension_numbers<[2], [2], [1], [1], [0, 0, 0, 1, 1, 1], [0], [0]>} : vector<4x7x8xf32>, vector<4x7x8xf32>, vector<4x7x7xf32> -> vector<4x7x7xf32>
    %cst_79 = arith.constant dense<0xFF800000> : vector<4x7xf32>
    %198 = vector.multi_reduction <maximumf>, %197, %cst_79 [2] : vector<4x7x7xf32> to vector<4x7xf32>
    %199 = vector.shape_cast %198 : vector<4x7xf32> to vector<4x7x1xf32>
    %200 = vector.broadcast %199 : vector<4x7x1xf32> to vector<4x7x7xf32>
    %201 = arith.subf %197, %200 : vector<4x7x7xf32>
    %202 = math.exp %201 : vector<4x7x7xf32>
    %cst_80 = arith.constant dense<0.000000e+00> : vector<4x7xf32>
    %203 = vector.multi_reduction <add>, %202, %cst_80 [2] : vector<4x7x7xf32> to vector<4x7xf32>
    %204 = vector.shape_cast %203 : vector<4x7xf32> to vector<4x7x1xf32>
    %205 = tpu.reciprocal %204 {approx = true} : vector<4x7x1xf32> -> vector<4x7x1xf32>
    %206 = vector.broadcast %205 : vector<4x7x1xf32> to vector<4x7x7xf32>
    %207 = arith.mulf %202, %206 : vector<4x7x7xf32>
    %cst_81 = arith.constant dense<0.000000e+00> : vector<4x7x8xf32>
    %208 = tpu.matmul %207, %196, %cst_81 {dimension_numbers = #tpu.dot_dimension_numbers<[2], [1], [1], [2], [0, 0, 0, 1, 1, 2], [0], [0]>} : vector<4x7x7xf32>, vector<4x7x8xf32>, vector<4x7x8xf32> -> vector<4x7x8xf32>
    %209 = vector.extract_strided_slice %208 {offsets = [0, 0, 0], sizes = [1, 7, 8], strides = [1, 1, 1]} : vector<4x7x8xf32> to vector<1x7x8xf32>
    %210 = vector.shape_cast %209 : vector<1x7x8xf32> to vector<7x8xf32>
    %211 = vector.extract_strided_slice %208 {offsets = [1, 0, 0], sizes = [1, 7, 8], strides = [1, 1, 1]} : vector<4x7x8xf32> to vector<1x7x8xf32>
    %212 = vector.shape_cast %211 : vector<1x7x8xf32> to vector<7x8xf32>
    %213 = vector.extract_strided_slice %208 {offsets = [2, 0, 0], sizes = [1, 7, 8], strides = [1, 1, 1]} : vector<4x7x8xf32> to vector<1x7x8xf32>
    %214 = vector.shape_cast %213 : vector<1x7x8xf32> to vector<7x8xf32>
    %215 = vector.extract_strided_slice %208 {offsets = [3, 0, 0], sizes = [1, 7, 8], strides = [1, 1, 1]} : vector<4x7x8xf32> to vector<1x7x8xf32>
    %216 = vector.shape_cast %215 : vector<1x7x8xf32> to vector<7x8xf32>
    %217 = tpu.concatenate %210, %212, %214, %216 in 1 : vector<7x8xf32>, vector<7x8xf32>, vector<7x8xf32>, vector<7x8xf32> -> vector<7x32xf32>
    %cst_82 = arith.constant dense<0.000000e+00> : vector<7x32xf32>
    %218 = tpu.matmul %217, %180, %cst_82 {dimension_numbers = #tpu.dot_dimension_numbers<[1], [0], [0], [1], [0, 0, 1, 1], [], []>} : vector<7x32xf32>, vector<32x32xf32>, vector<7x32xf32> -> vector<7x32xf32>
    %219 = vector.broadcast %182 : vector<1x32xf32> to vector<7x32xf32>
    %220 = arith.addf %218, %219 : vector<7x32xf32>
    %221 = vector.extract_strided_slice %174 {offsets = [1, 0, 0], sizes = [1, 7, 32], strides = [1, 1, 1]} : vector<2x7x32xf32> to vector<1x7x32xf32>
    %222 = vector.shape_cast %221 : vector<1x7x32xf32> to vector<7x32xf32>
    %223 = vector.shape_cast %222 : vector<7x32xf32> to vector<1x7x32xf32>
    %224 = vector.broadcast %223 : vector<1x7x32xf32> to vector<4x7x32xf32>
    %cst_83 = arith.constant dense<0.000000e+00> : vector<4x7x24xf32>
    %225 = tpu.matmul %224, %176, %cst_83 {dimension_numbers = #tpu.dot_dimension_numbers<[2], [1], [1], [2], [0, 0, 0, 1, 1, 2], [0], [0]>} : vector<4x7x32xf32>, vector<4x32x24xf32>, vector<4x7x24xf32> -> vector<4x7x24xf32>
    %226 = vector.broadcast %178 : vector<4x1x24xf32> to vector<4x7x24xf32>
    %227 = arith.addf %225, %226 : vector<4x7x24xf32>
    %228 = vector.extract_strided_slice %227 {offsets = [0, 0, 0], sizes = [4, 7, 8], strides = [1, 1, 1]} : vector<4x7x24xf32> to vector<4x7x8xf32>
    %229 = vector.extract_strided_slice %227 {offsets = [0, 0, 8], sizes = [4, 7, 8], strides = [1, 1, 1]} : vector<4x7x24xf32> to vector<4x7x8xf32>
    %230 = vector.extract_strided_slice %227 {offsets = [0, 0, 16], sizes = [4, 7, 8], strides = [1, 1, 1]} : vector<4x7x24xf32> to vector<4x7x8xf32>
    %cst_84 = arith.constant dense<0.000000e+00> : vector<4x7x7xf32>
    %231 = tpu.matmul %228, %229, %cst_84 {dimension_numbers = #tpu.dot_dimension_numbers<[2], [2], [1], [1], [0, 0, 0, 1, 1, 1], [0], [0]>} : vector<4x7x8xf32>, vector<4x7x8xf32>, vector<4x7x7xf32> -> vector<4x7x7xf32>
    %cst_85 = arith.constant dense<0xFF800000> : vector<4x7xf32>
    %232 = vector.multi_reduction <maximumf>, %231, %cst_85 [2] : vector<4x7x7xf32> to vector<4x7xf32>
    %233 = vector.shape_cast %232 : vector<4x7xf32> to vector<4x7x1xf32>
    %234 = vector.broadcast %233 : vector<4x7x1xf32> to vector<4x7x7xf32>
    %235 = arith.subf %231, %234 : vector<4x7x7xf32>
    %236 = math.exp %235 : vector<4x7x7xf32>
    %cst_86 = arith.constant dense<0.000000e+00> : vector<4x7xf32>
    %237 = vector.multi_reduction <add>, %236, %cst_86 [2] : vector<4x7x7xf32> to vector<4x7xf32>
    %238 = vector.shape_cast %237 : vector<4x7xf32> to vector<4x7x1xf32>
    %239 = tpu.reciprocal %238 {approx = true} : vector<4x7x1xf32> -> vector<4x7x1xf32>
    %240 = vector.broadcast %239 : vector<4x7x1xf32> to vector<4x7x7xf32>
    %241 = arith.mulf %236, %240 : vector<4x7x7xf32>
    %cst_87 = arith.constant dense<0.000000e+00> : vector<4x7x8xf32>
    %242 = tpu.matmul %241, %230, %cst_87 {dimension_numbers = #tpu.dot_dimension_numbers<[2], [1], [1], [2], [0, 0, 0, 1, 1, 2], [0], [0]>} : vector<4x7x7xf32>, vector<4x7x8xf32>, vector<4x7x8xf32> -> vector<4x7x8xf32>
    %243 = vector.extract_strided_slice %242 {offsets = [0, 0, 0], sizes = [1, 7, 8], strides = [1, 1, 1]} : vector<4x7x8xf32> to vector<1x7x8xf32>
    %244 = vector.shape_cast %243 : vector<1x7x8xf32> to vector<7x8xf32>
    %245 = vector.extract_strided_slice %242 {offsets = [1, 0, 0], sizes = [1, 7, 8], strides = [1, 1, 1]} : vector<4x7x8xf32> to vector<1x7x8xf32>
    %246 = vector.shape_cast %245 : vector<1x7x8xf32> to vector<7x8xf32>
    %247 = vector.extract_strided_slice %242 {offsets = [2, 0, 0], sizes = [1, 7, 8], strides = [1, 1, 1]} : vector<4x7x8xf32> to vector<1x7x8xf32>
    %248 = vector.shape_cast %247 : vector<1x7x8xf32> to vector<7x8xf32>
    %249 = vector.extract_strided_slice %242 {offsets = [3, 0, 0], sizes = [1, 7, 8], strides = [1, 1, 1]} : vector<4x7x8xf32> to vector<1x7x8xf32>
    %250 = vector.shape_cast %249 : vector<1x7x8xf32> to vector<7x8xf32>
    %251 = tpu.concatenate %244, %246, %248, %250 in 1 : vector<7x8xf32>, vector<7x8xf32>, vector<7x8xf32>, vector<7x8xf32> -> vector<7x32xf32>
    %cst_88 = arith.constant dense<0.000000e+00> : vector<7x32xf32>
    %252 = tpu.matmul %251, %180, %cst_88 {dimension_numbers = #tpu.dot_dimension_numbers<[1], [0], [0], [1], [0, 0, 1, 1], [], []>} : vector<7x32xf32>, vector<32x32xf32>, vector<7x32xf32> -> vector<7x32xf32>
    %253 = vector.broadcast %182 : vector<1x32xf32> to vector<7x32xf32>
    %254 = arith.addf %252, %253 : vector<7x32xf32>
    %255 = vector.shape_cast %220 : vector<7x32xf32> to vector<1x7x32xf32>
    %256 = vector.shape_cast %254 : vector<7x32xf32> to vector<1x7x32xf32>
    %257 = tpu.concatenate %255, %256 in 0 : vector<1x7x32xf32>, vector<1x7x32xf32> -> vector<2x7x32xf32>
    %258 = arith.addf %174, %257 : vector<2x7x32xf32>
    %cst_89 = arith.constant dense<0.000000e+00> : vector<2x7xf32>
    %259 = vector.multi_reduction <add>, %258, %cst_89 [2] : vector<2x7x32xf32> to vector<2x7xf32>
    %260 = vector.shape_cast %259 : vector<2x7xf32> to vector<2x7x1xf32>
    %cst_90 = arith.constant 3.200000e+01 : f32
    %261 = vector.broadcast %cst_90 : f32 to vector<2x7x1xf32>
    %262 = arith.divf %260, %261 : vector<2x7x1xf32>
    %263 = vector.broadcast %262 : vector<2x7x1xf32> to vector<2x7x32xf32>
    %264 = arith.subf %258, %263 : vector<2x7x32xf32>
    %265 = arith.mulf %264, %264 : vector<2x7x32xf32>
    %cst_91 = arith.constant dense<0.000000e+00> : vector<2x7xf32>
    %266 = vector.multi_reduction <add>, %265, %cst_91 [2] : vector<2x7x32xf32> to vector<2x7xf32>
    %267 = vector.shape_cast %266 : vector<2x7xf32> to vector<2x7x1xf32>
    %cst_92 = arith.constant 3.200000e+01 : f32
    %268 = vector.broadcast %cst_92 : f32 to vector<2x7x1xf32>
    %269 = arith.divf %267, %268 : vector<2x7x1xf32>
    %cst_93 = arith.constant 9.99999974E-6 : f32
    %270 = vector.broadcast %cst_93 : f32 to vector<2x7x1xf32>
    %271 = arith.addf %269, %270 : vector<2x7x1xf32>
    %272 = math.rsqrt %271 : vector<2x7x1xf32>
    %273 = vector.broadcast %272 : vector<2x7x1xf32> to vector<2x7x32xf32>
    %274 = arith.mulf %264, %273 : vector<2x7x32xf32>
    %275 = vector.shape_cast %183 : vector<1x32xf32> to vector<1x1x32xf32>
    %276 = vector.broadcast %275 : vector<1x1x32xf32> to vector<2x7x32xf32>
    %277 = arith.mulf %274, %276 : vector<2x7x32xf32>
    %278 = vector.shape_cast %184 : vector<1x32xf32> to vector<1x1x32xf32>
    %279 = vector.broadcast %278 : vector<1x1x32xf32> to vector<2x7x32xf32>
    %280 = arith.addf %277, %279 : vector<2x7x32xf32>
    %c1_94 = arith.constant 1 : index
    %c0_95 = arith.constant 0 : index
    %c0_96 = arith.constant 0 : index
    %281 = vector.load %arg7[%c1_94, %c0_95, %c0_96] : memref<2x32x64xf32, #tpu.memory_space<vmem>>, vector<1x32x64xf32>
    %282 = vector.shape_cast %281 : vector<1x32x64xf32> to vector<32x64xf32>
    %cst_97 = arith.constant dense<0.000000e+00> : vector<2x7x64xf32>
    %283 = tpu.matmul %280, %282, %cst_97 {dimension_numbers = #tpu.dot_dimension_numbers<[2], [0], [0, 1], [1], [0, 0, 0, 1, 1, 1], [], []>} : vector<2x7x32xf32>, vector<32x64xf32>, vector<2x7x64xf32> -> vector<2x7x64xf32>
    %c1_98 = arith.constant 1 : index
    %c0_99 = arith.constant 0 : index
    %c0_100 = arith.constant 0 : index
    %284 = vector.load %arg8[%c1_98, %c0_99, %c0_100] : memref<2x1x64xf32, #tpu.memory_space<vmem>>, vector<1x1x64xf32>
    %285 = vector.shape_cast %284 : vector<1x1x64xf32> to vector<1x64xf32>
    %286 = vector.shape_cast %285 : vector<1x64xf32> to vector<1x1x64xf32>
    %287 = vector.broadcast %286 : vector<1x1x64xf32> to vector<2x7x64xf32>
    %288 = arith.addf %283, %287 : vector<2x7x64xf32>
    %cst_101 = arith.constant 0.000000e+00 : f32
    %289 = vector.broadcast %cst_101 : f32 to vector<2x7x64xf32>
    %290 = arith.maximumf %288, %289 : vector<2x7x64xf32>
    %c1_102 = arith.constant 1 : index
    %c0_103 = arith.constant 0 : index
    %c0_104 = arith.constant 0 : index
    %291 = vector.load %arg9[%c1_102, %c0_103, %c0_104] : memref<2x64x32xf32, #tpu.memory_space<vmem>>, vector<1x64x32xf32>
    %292 = vector.shape_cast %291 : vector<1x64x32xf32> to vector<64x32xf32>
    %cst_105 = arith.constant dense<0.000000e+00> : vector<2x7x32xf32>
    %293 = tpu.matmul %290, %292, %cst_105 {dimension_numbers = #tpu.dot_dimension_numbers<[2], [0], [0, 1], [1], [0, 0, 0, 1, 1, 1], [], []>} : vector<2x7x64xf32>, vector<64x32xf32>, vector<2x7x32xf32> -> vector<2x7x32xf32>
    %c1_106 = arith.constant 1 : index
    %c0_107 = arith.constant 0 : index
    %c0_108 = arith.constant 0 : index
    %294 = vector.load %arg10[%c1_106, %c0_107, %c0_108] : memref<2x1x32xf32, #tpu.memory_space<vmem>>, vector<1x1x32xf32>
    %295 = vector.shape_cast %294 : vector<1x1x32xf32> to vector<1x32xf32>
    %296 = vector.shape_cast %295 : vector<1x32xf32> to vector<1x1x32xf32>
    %297 = vector.broadcast %296 : vector<1x1x32xf32> to vector<2x7x32xf32>
    %298 = arith.addf %293, %297 : vector<2x7x32xf32>
    %299 = arith.addf %280, %298 : vector<2x7x32xf32>
    %cst_109 = arith.constant dense<0.000000e+00> : vector<2x7xf32>
    %300 = vector.multi_reduction <add>, %299, %cst_109 [2] : vector<2x7x32xf32> to vector<2x7xf32>
    %301 = vector.shape_cast %300 : vector<2x7xf32> to vector<2x7x1xf32>
    %cst_110 = arith.constant 3.200000e+01 : f32
    %302 = vector.broadcast %cst_110 : f32 to vector<2x7x1xf32>
    %303 = arith.divf %301, %302 : vector<2x7x1xf32>
    %304 = vector.broadcast %303 : vector<2x7x1xf32> to vector<2x7x32xf32>
    %305 = arith.subf %299, %304 : vector<2x7x32xf32>
    %306 = arith.mulf %305, %305 : vector<2x7x32xf32>
    %cst_111 = arith.constant dense<0.000000e+00> : vector<2x7xf32>
    %307 = vector.multi_reduction <add>, %306, %cst_111 [2] : vector<2x7x32xf32> to vector<2x7xf32>
    %308 = vector.shape_cast %307 : vector<2x7xf32> to vector<2x7x1xf32>
    %cst_112 = arith.constant 3.200000e+01 : f32
    %309 = vector.broadcast %cst_112 : f32 to vector<2x7x1xf32>
    %310 = arith.divf %308, %309 : vector<2x7x1xf32>
    %cst_113 = arith.constant 9.99999974E-6 : f32
    %311 = vector.broadcast %cst_113 : f32 to vector<2x7x1xf32>
    %312 = arith.addf %310, %311 : vector<2x7x1xf32>
    %313 = math.rsqrt %312 : vector<2x7x1xf32>
    %314 = vector.broadcast %313 : vector<2x7x1xf32> to vector<2x7x32xf32>
    %315 = arith.mulf %305, %314 : vector<2x7x32xf32>
    %316 = vector.shape_cast %185 : vector<1x32xf32> to vector<1x1x32xf32>
    %317 = vector.broadcast %316 : vector<1x1x32xf32> to vector<2x7x32xf32>
    %318 = arith.mulf %315, %317 : vector<2x7x32xf32>
    %319 = vector.shape_cast %186 : vector<1x32xf32> to vector<1x1x32xf32>
    %320 = vector.broadcast %319 : vector<1x1x32xf32> to vector<2x7x32xf32>
    %321 = arith.addf %318, %320 : vector<2x7x32xf32>
    %322 = vector.extract_strided_slice %27 {offsets = [8, 0], sizes = [1, 32], strides = [1, 1]} : vector<10x32xf32> to vector<1x32xf32>
    %323 = vector.extract_strided_slice %27 {offsets = [9, 0], sizes = [1, 32], strides = [1, 1]} : vector<10x32xf32> to vector<1x32xf32>
    %cst_114 = arith.constant dense<0.000000e+00> : vector<2x7xf32>
    %324 = vector.multi_reduction <add>, %321, %cst_114 [2] : vector<2x7x32xf32> to vector<2x7xf32>
    %325 = vector.shape_cast %324 : vector<2x7xf32> to vector<2x7x1xf32>
    %cst_115 = arith.constant 3.200000e+01 : f32
    %326 = vector.broadcast %cst_115 : f32 to vector<2x7x1xf32>
    %327 = arith.divf %325, %326 : vector<2x7x1xf32>
    %328 = vector.broadcast %327 : vector<2x7x1xf32> to vector<2x7x32xf32>
    %329 = arith.subf %321, %328 : vector<2x7x32xf32>
    %330 = arith.mulf %329, %329 : vector<2x7x32xf32>
    %cst_116 = arith.constant dense<0.000000e+00> : vector<2x7xf32>
    %331 = vector.multi_reduction <add>, %330, %cst_116 [2] : vector<2x7x32xf32> to vector<2x7xf32>
    %332 = vector.shape_cast %331 : vector<2x7xf32> to vector<2x7x1xf32>
    %cst_117 = arith.constant 3.200000e+01 : f32
    %333 = vector.broadcast %cst_117 : f32 to vector<2x7x1xf32>
    %334 = arith.divf %332, %333 : vector<2x7x1xf32>
    %cst_118 = arith.constant 9.99999974E-6 : f32
    %335 = vector.broadcast %cst_118 : f32 to vector<2x7x1xf32>
    %336 = arith.addf %334, %335 : vector<2x7x1xf32>
    %337 = math.rsqrt %336 : vector<2x7x1xf32>
    %338 = vector.broadcast %337 : vector<2x7x1xf32> to vector<2x7x32xf32>
    %339 = arith.mulf %329, %338 : vector<2x7x32xf32>
    %340 = vector.shape_cast %322 : vector<1x32xf32> to vector<1x1x32xf32>
    %341 = vector.broadcast %340 : vector<1x1x32xf32> to vector<2x7x32xf32>
    %342 = arith.mulf %339, %341 : vector<2x7x32xf32>
    %343 = vector.shape_cast %323 : vector<1x32xf32> to vector<1x1x32xf32>
    %344 = vector.broadcast %343 : vector<1x1x32xf32> to vector<2x7x32xf32>
    %345 = arith.addf %342, %344 : vector<2x7x32xf32>
    %346 = vector.extract_strided_slice %345 {offsets = [0, 0, 0], sizes = [2, 4, 32], strides = [1, 1, 1]} : vector<2x7x32xf32> to vector<2x4x32xf32>
    %c0_119 = arith.constant 0 : index
    %c0_120 = arith.constant 0 : index
    %347 = vector.load %arg12[%c0_119, %c0_120] : memref<32x8xf32, #tpu.memory_space<vmem>>, vector<32x8xf32>
    %cst_121 = arith.constant dense<0.000000e+00> : vector<2x4x8xf32>
    %348 = tpu.matmul %346, %347, %cst_121 {dimension_numbers = #tpu.dot_dimension_numbers<[2], [0], [0, 1], [1], [0, 0, 0, 1, 1, 1], [], []>, precision = #tpu.contract_precision<fp32>} : vector<2x4x32xf32>, vector<32x8xf32>, vector<2x4x8xf32> -> vector<2x4x8xf32>
    %c0_122 = arith.constant 0 : index
    %c0_123 = arith.constant 0 : index
    %349 = vector.load %arg13[%c0_122, %c0_123] : memref<1x8xf32, #tpu.memory_space<vmem>>, vector<1x8xf32>
    %350 = vector.shape_cast %349 : vector<1x8xf32> to vector<1x1x8xf32>
    %351 = vector.broadcast %350 : vector<1x1x8xf32> to vector<2x4x8xf32>
    %352 = arith.addf %348, %351 : vector<2x4x8xf32>
    %353 = vector.extract_strided_slice %14 {offsets = [0, 0, 0], sizes = [2, 4, 1], strides = [1, 1, 1]} : vector<2x7x1xf32> to vector<2x4x1xf32>
    %354 = vector.broadcast %353 : vector<2x4x1xf32> to vector<2x4x8xf32>
    %355 = arith.mulf %352, %354 : vector<2x4x8xf32>
    %356 = vector.extract_strided_slice %4 {offsets = [0, 0, 0], sizes = [2, 4, 1], strides = [1, 1, 1]} : vector<2x7x1xf32> to vector<2x4x1xf32>
    %357 = vector.broadcast %356 : vector<2x4x1xf32> to vector<2x4x8xf32>
    %358 = arith.addf %355, %357 : vector<2x4x8xf32>
    %c0_124 = arith.constant 0 : index
    %c0_125 = arith.constant 0 : index
    %c0_126 = arith.constant 0 : index
    %359 = vector.load %arg14[%c0_124, %c0_125, %c0_126] : memref<2x4x8xf32, #tpu.memory_space<vmem>>, vector<2x4x8xf32>
    tpu.vector_store %arg14[%c0_124, %c0_125, %c0_126], %358 {strides = array<i32>} : memref<2x4x8xf32, #tpu.memory_space<vmem>>, vector<2x4x8xf32>,
    return
  }
}

</mosaic_0001>

<llo_original>
// kernel: itransformer_forward.1
$region0: #{itransformer_forward.1}
  #allocation0 [shape = 'u32[]', space=smem, size = 0x4, offset = 0x4, fixed_abs, tag = 'smem constant byte address 0x4 - core index']
  #allocation1 [shape = 'u32[144,128]{1,0:T(1,128)}', space=vmem, size = 0x12000, scoped, tag = 'internal scratch']
  %s0 = inlined_call_operand.vmem [shape: f32[2,7,16], index: 0, kind: input, shape index: {}]
  %s1 = inlined_call_operand.vmem [shape: f32[16,32], index: 1, kind: input, shape index: {}]
  %s2 = inlined_call_operand.vmem [shape: f32[1,32], index: 2, kind: input, shape index: {}]
  %s3 = inlined_call_operand.vmem [shape: f32[2,4,32,24], index: 3, kind: input, shape index: {}]
  %s4 = inlined_call_operand.vmem [shape: f32[2,4,1,24], index: 4, kind: input, shape index: {}]
  %s5 = inlined_call_operand.vmem [shape: f32[2,32,32], index: 5, kind: input, shape index: {}]
  %s6 = inlined_call_operand.vmem [shape: f32[2,1,32], index: 6, kind: input, shape index: {}]
  %s7 = inlined_call_operand.vmem [shape: f32[2,32,64], index: 7, kind: input, shape index: {}]
  %s8 = inlined_call_operand.vmem [shape: f32[2,1,64], index: 8, kind: input, shape index: {}]
  %s9 = inlined_call_operand.vmem [shape: f32[2,64,32], index: 9, kind: input, shape index: {}]
  %s10 = inlined_call_operand.vmem [shape: f32[2,1,32], index: 10, kind: input, shape index: {}]
  %s11 = inlined_call_operand.vmem [shape: f32[10,32], index: 11, kind: input, shape index: {}]
  %s12 = inlined_call_operand.vmem [shape: f32[32,8], index: 12, kind: input, shape index: {}]
  %s13 = inlined_call_operand.vmem [shape: f32[1,8], index: 13, kind: input, shape index: {}]
  %s14 = inlined_call_operand.hbm [shape: f32[2,4,8], index: 14, kind: output, shape index: {}]
  %s15 = sld [smem:[#allocation0]]
  $region66: #{itransformer_forward.1} parent=0
    _
  %s17 = ssub.s32 1, %s15
  %s18 = scalar_select 0, %s17, %s15
  $region1: #{itransformer_forward.1} parent=0
    #allocation2 [shape = 'u8[4096]{0}', space=vmem, size = 0x1000, scoped, tag = 'output window, operand 0, single buffered']
    #allocation3 [shape = 's32[1]{0}', space=sflag, size = 0x4, scoped, tag = 'scoped memory for itransformer_forward.1']
    %19 = vsyncpa [#allocation3], 0
    // Predicated region
    $region2: #{itransformer_forward.1} parent=1 // pred_check
      _
    $region3: #{itransformer_forward.1} parent=1 // pred_check_branch
      %21 = sbr.rel (0) target = $region5
    $region4: #{itransformer_forward.1} parent=1 // pred_region
      _
    $region5: #{itransformer_forward.1} parent=1 // pred_fallthru
      _
    // Predicated region
    $region6: #{itransformer_forward.1} parent=1 // pred_check
      _
    $region7: #{itransformer_forward.1} parent=1 // pred_check_branch
      %23 = sbr.rel (0) target = $region9
    $region8: #{itransformer_forward.1} parent=1 // pred_region
      _
    $region9: #{itransformer_forward.1} parent=1 // pred_fallthru
      _
    // Predicated region
    $region10: #{itransformer_forward.1} parent=1 // pred_check
      _
    $region11: #{itransformer_forward.1} parent=1 // pred_check_branch
      %25 = sbr.rel (0) target = $region13
    $region12: #{itransformer_forward.1} parent=1 // pred_region
      _
    $region13: #{itransformer_forward.1} parent=1 // pred_fallthru
      _
    // Predicated region
    $region14: #{itransformer_forward.1} parent=1 // pred_check
      _
    $region15: #{itransformer_forward.1} parent=1 // pred_check_branch
      %27 = sbr.rel (0) target = $region17
    $region16: #{itransformer_forward.1} parent=1 // pred_region
      _
    $region17: #{itransformer_forward.1} parent=1 // pred_fallthru
      _
    // Predicated region
    $region18: #{itransformer_forward.1} parent=1 // pred_check
      _
    $region19: #{itransformer_forward.1} parent=1 // pred_check_branch
      %29 = sbr.rel (0) target = $region21
    $region20: #{itransformer_forward.1} parent=1 // pred_region
      _
    $region21: #{itransformer_forward.1} parent=1 // pred_fallthru
      _
    // Predicated region
    $region22: #{itransformer_forward.1} parent=1 // pred_check
      _
    $region23: #{itransformer_forward.1} parent=1 // pred_check_branch
      %31 = sbr.rel (0) target = $region25
    $region24: #{itransformer_forward.1} parent=1 // pred_region
      _
    $region25: #{itransformer_forward.1} parent=1 // pred_fallthru
      _
    // Predicated region
    $region26: #{itransformer_forward.1} parent=1 // pred_check
      _
    $region27: #{itransformer_forward.1} parent=1 // pred_check_branch
      %33 = sbr.rel (0) target = $region29
    $region28: #{itransformer_forward.1} parent=1 // pred_region
      _
    $region29: #{itransformer_forward.1} parent=1 // pred_fallthru
      _
    // Predicated region
    $region30: #{itransformer_forward.1} parent=1 // pred_check
      _
    $region31: #{itransformer_forward.1} parent=1 // pred_check_branch
      %35 = sbr.rel (0) target = $region33
    $region32: #{itransformer_forward.1} parent=1 // pred_region
      _
    $region33: #{itransformer_forward.1} parent=1 // pred_fallthru
      _
    // Predicated region
    $region34: #{itransformer_forward.1} parent=1 // pred_check
      _
    $region35: #{itransformer_forward.1} parent=1 // pred_check_branch
      %37 = sbr.rel (0) target = $region37
    $region36: #{itransformer_forward.1} parent=1 // pred_region
      _
    $region37: #{itransformer_forward.1} parent=1 // pred_fallthru
      _
    // Predicated region
    $region38: #{itransformer_forward.1} parent=1 // pred_check
      _
    $region39: #{itransformer_forward.1} parent=1 // pred_check_branch
      %39 = sbr.rel (0) target = $region41
    $region40: #{itransformer_forward.1} parent=1 // pred_region
      _
    $region41: #{itransformer_forward.1} parent=1 // pred_fallthru
      _
    // Predicated region
    $region42: #{itransformer_forward.1} parent=1 // pred_check
      _
    $region43: #{itransformer_forward.1} parent=1 // pred_check_branch
      %41 = sbr.rel (0) target = $region45
    $region44: #{itransformer_forward.1} parent=1 // pred_region
      _
    $region45: #{itransformer_forward.1} parent=1 // pred_fallthru
      _
    // Predicated region
    $region46: #{itransformer_forward.1} parent=1 // pred_check
      _
    $region47: #{itransformer_forward.1} parent=1 // pred_check_branch
      %43 = sbr.rel (0) target = $region49
    $region48: #{itransformer_forward.1} parent=1 // pred_region
      _
    $region49: #{itransformer_forward.1} parent=1 // pred_fallthru
      _
    // Predicated region
    $region50: #{itransformer_forward.1} parent=1 // pred_check
      _
    $region51: #{itransformer_forward.1} parent=1 // pred_check_branch
      %45 = sbr.rel (0) target = $region53
    $region52: #{itransformer_forward.1} parent=1 // pred_region
      _
    $region53: #{itransformer_forward.1} parent=1 // pred_fallthru
      _
    // Predicated region
    $region54: #{itransformer_forward.1} parent=1 // pred_check
      _
    $region55: #{itransformer_forward.1} parent=1 // pred_check_branch
      %47 = sbr.rel (0) target = $region57
    $region56: #{itransformer_forward.1} parent=1 // pred_region
      _
    $region57: #{itransformer_forward.1} parent=1 // pred_fallthru
      _
    %v48 = vld [vmem:[%s0] sm:$0x7f]
    %v49 = vld [vmem:[%s0 + $0x8] sm:$0x7f]
    %vm50 = vcmask 129024
    %v51 = vsel %vm50, %v48, 0.0
    %52 = vadd.xlane.f32.xlu0 %v51
    %v53 = vpop.xlane.xlu0 %52
    %v54 = vsel %vm50, %v49, 0.0
    %55 = vadd.xlane.f32.xlu0 %v54
    %v56 = vpop.xlane.xlu0 %55
    %v57 = vrcp.pop 16.0
    %v58 = vmul.f32 %v53, %v57
    %v59 = vmul.f32 %v56, %v57
    %v60 = vsub.f32 %v48, %v58
    %v61 = vsub.f32 %v49, %v59
    %v62 = vmul.f32 %v60, %v60
    %v63 = vmul.f32 %v61, %v61
    %v64 = vsel %vm50, %v62, 0.0
    %65 = vadd.xlane.f32.xlu0 %v64
    %v66 = vpop.xlane.xlu0 %65
    %v67 = vsel %vm50, %v63, 0.0
    %68 = vadd.xlane.f32.xlu0 %v67
    %v69 = vpop.xlane.xlu0 %68
    %v70 = vmul.f32 %v66, %v57
    %v71 = vmul.f32 %v69, %v57
    %v72 = vadd.f32 %v70, 1e-05
    %v73 = vadd.f32 %v71, 1e-05
    %v74 = vrsqrt.pop %v72
    %v75 = vmul.f32 %v72, %v74
    %vm76 = vcmp.eq.f32.partialorder %v72, inf
    %v77 = vsel %vm76, %v72, %v75
    %vm78 = vcmp.eq.f32.partialorder %v72, 0.0
    %v79 = vand.u32 %v72, 2147483648
    %v80 = vsel %vm78, %v79, %v77
    %v81 = vrsqrt.pop %v73
    %v82 = vmul.f32 %v73, %v81
    %vm83 = vcmp.eq.f32.partialorder %v73, inf
    %v84 = vsel %vm83, %v73, %v82
    %vm85 = vcmp.eq.f32.partialorder %v73, 0.0
    %v86 = vand.u32 %v73, 2147483648
    %v87 = vsel %vm85, %v86, %v84
    %v88 = vlaneseq
    %v89 = vshrl.u32 %v88, 7
    %vm90 = vcmp.lt.s32.totalorder %v89, 4
    %v91 = vrcp.pop %v80
    %v92 = vmul.f32 %v60, %v91
    %v93 = vrcp.pop %v87
    %v94 = vmul.f32 %v61, %v93
    %v95 = vsel %vm90, %v92, %v48
    %v96 = vsel %vm90, %v94, %v49
    %v97 = vld [vmem:[%s1] sm:$0xff]
    %v98 = vld [vmem:[%s1 + $0x8] sm:$0xff]
    %v99 = vld [vmem:[%s2] sm:$0x1]
    %v101 = vlaneseq
    %v102 = vshrl.u32 %v101, 7
    %v103 = vsub.s32 0, %v102
    %v104 = vrot.slane %v99, %v103
    %v107 = vcombine.high %v95, %v95
    %v109 = vunpack.c.l.s4 1966171168
    %v110 = vunpack.c.0.s8 %v109
    %v111 = vlaneseq
    %v112 = vshrl.u32 %v111, 7
    %v113 = vsub.s32 %v110, %v112
    %v114 = vrot.slane %v95, %v113
    %v116 = vunpack.c.l.s4 1966171168
    %v117 = vunpack.c.0.s8 %v116
    %v118 = vlaneseq
    %v119 = vshrl.u32 %v118, 7
    %v120 = vsub.s32 %v117, %v119
    %v121 = vrot.slane %v107, %v120
    %v122 = vcombine.high %v114, %v114
    %v123 = vcombine.high %v121, %v121
    %v125 = vunpack.c.l.s4 1966171168
    %v126 = vunpack.c.0.s8 %v125
    %v127 = vlaneseq
    %v128 = vshrl.u32 %v127, 7
    %v129 = vsub.s32 %v126, %v128
    %v130 = vrot.slane %v114, %v129
    %v132 = vunpack.c.l.s4 1966171168
    %v133 = vunpack.c.0.s8 %v132
    %v134 = vlaneseq
    %v135 = vshrl.u32 %v134, 7
    %v136 = vsub.s32 %v133, %v135
    %v137 = vrot.slane %v121, %v136
    %v139 = vunpack.c.l.s4 1966171168
    %v140 = vunpack.c.0.s8 %v139
    %v141 = vlaneseq
    %v142 = vshrl.u32 %v141, 7
    %v143 = vsub.s32 %v140, %v142
    %v144 = vrot.slane %v122, %v143
    %v146 = vunpack.c.l.s4 1966171168
    %v147 = vunpack.c.0.s8 %v146
    %v148 = vlaneseq
    %v149 = vshrl.u32 %v148, 7
    %v150 = vsub.s32 %v147, %v149
    %v151 = vrot.slane %v123, %v150
    %v152 = vcombine.high %v130, %v130
    %v153 = vcombine.high %v137, %v137
    %v154 = vcombine.high %v144, %v144
    %v155 = vcombine.high %v96, %v96
    %v157 = vunpack.c.l.s4 1966171168
    %v158 = vunpack.c.0.s8 %v157
    %v159 = vlaneseq
    %v160 = vshrl.u32 %v159, 7
    %v161 = vsub.s32 %v158, %v160
    %v162 = vrot.slane %v96, %v161
    %v164 = vunpack.c.l.s4 1966171168
    %v165 = vunpack.c.0.s8 %v164
    %v166 = vlaneseq
    %v167 = vshrl.u32 %v166, 7
    %v168 = vsub.s32 %v165, %v167
    %v169 = vrot.slane %v155, %v168
    %v170 = vcombine.high %v162, %v162
    %v171 = vcombine.high %v169, %v169
    %v173 = vunpack.c.l.s4 1966171168
    %v174 = vunpack.c.0.s8 %v173
    %v175 = vlaneseq
    %v176 = vshrl.u32 %v175, 7
    %v177 = vsub.s32 %v174, %v176
    %v178 = vrot.slane %v162, %v177
    %v180 = vunpack.c.l.s4 1966171168
    %v181 = vunpack.c.0.s8 %v180
    %v182 = vlaneseq
    %v183 = vshrl.u32 %v182, 7
    %v184 = vsub.s32 %v181, %v183
    %v185 = vrot.slane %v169, %v184
    %v187 = vunpack.c.l.s4 1966171168
    %v188 = vunpack.c.0.s8 %v187
    %v189 = vlaneseq
    %v190 = vshrl.u32 %v189, 7
    %v191 = vsub.s32 %v188, %v190
    %v192 = vrot.slane %v170, %v191
    %v194 = vunpack.c.l.s4 1966171168
    %v195 = vunpack.c.0.s8 %v194
    %v196 = vlaneseq
    %v197 = vshrl.u32 %v196, 7
    %v198 = vsub.s32 %v195, %v197
    %v199 = vrot.slane %v171, %v198
    %v200 = vcombine.high %v178, %v178
    %v201 = vcombine.high %v185, %v185
    %v202 = vcombine.high %v192, %v192
    %v203 = vcombine.high %v104, %v104
    %v205 = vunpack.c.l.s4 1966171168
    %v206 = vunpack.c.0.s8 %v205
    %v207 = vlaneseq
    %v208 = vshrl.u32 %v207, 7
    %v209 = vsub.s32 %v206, %v208
    %v210 = vrot.slane %v104, %v209
    %v212 = vunpack.c.l.s4 1966171168
    %v213 = vunpack.c.0.s8 %v212
    %v214 = vlaneseq
    %v215 = vshrl.u32 %v214, 7
    %v216 = vsub.s32 %v213, %v215
    %v217 = vrot.slane %v203, %v216
    %v218 = vcombine.high %v210, %v210
    %v219 = vcombine.high %v217, %v217
    %v221 = vunpack.c.l.s4 1966171168
    %v222 = vunpack.c.0.s8 %v221
    %v223 = vlaneseq
    %v224 = vshrl.u32 %v223, 7
    %v225 = vsub.s32 %v222, %v224
    %v226 = vrot.slane %v210, %v225
    %v228 = vunpack.c.l.s4 1966171168
    %v229 = vunpack.c.0.s8 %v228
    %v230 = vlaneseq
    %v231 = vshrl.u32 %v230, 7
    %v232 = vsub.s32 %v229, %v231
    %v233 = vrot.slane %v217, %v232
    %v235 = vunpack.c.l.s4 1966171168
    %v236 = vunpack.c.0.s8 %v235
    %v237 = vlaneseq
    %v238 = vshrl.u32 %v237, 7
    %v239 = vsub.s32 %v236, %v238
    %v240 = vrot.slane %v218, %v239
    %v242 = vunpack.c.l.s4 1966171168
    %v243 = vunpack.c.0.s8 %v242
    %v244 = vlaneseq
    %v245 = vshrl.u32 %v244, 7
    %v246 = vsub.s32 %v243, %v245
    %v247 = vrot.slane %v219, %v246
    %v248 = vcombine.high %v226, %v226
    %v249 = vcombine.high %v233, %v233
    %v250 = vcombine.high %v240, %v240
    %v251 = vcombine.low %v130, %v144
    %v252 = vcombine.low %v152, %v154
    %v253 = vcombine.low %v137, %v151
    %v254 = vcombine.low %v153, %v178
    %v256 = vunpack.c.l.s4 1966171168
    %v257 = vunpack.c.0.s8 %v256
    %v258 = vlaneseq
    %v259 = vshrl.u32 %v258, 7
    %v260 = vsub.s32 %v257, %v259
    %v261 = vrot.slane %v251, %v260
    %v263 = vunpack.c.l.s4 1966171168
    %v264 = vunpack.c.0.s8 %v263
    %v265 = vlaneseq
    %v266 = vshrl.u32 %v265, 7
    %v267 = vsub.s32 %v264, %v266
    %v268 = vrot.slane %v252, %v267
    %v270 = vunpack.c.l.s4 1966171168
    %v271 = vunpack.c.0.s8 %v270
    %v272 = vlaneseq
    %v273 = vshrl.u32 %v272, 7
    %v274 = vsub.s32 %v271, %v273
    %v275 = vrot.slane %v253, %v274
    %v277 = vunpack.c.l.s4 1966171168
    %v278 = vunpack.c.0.s8 %v277
    %v279 = vlaneseq
    %v280 = vshrl.u32 %v279, 7
    %v281 = vsub.s32 %v278, %v280
    %v282 = vrot.slane %v254, %v281
    %v283 = vcombine.low %v261, %v268
    %v284 = vcombine.low %v275, %v282
    %v286 = vunpack.c.l.s4 1966171168
    %v287 = vunpack.c.0.s8 %v286
    %v288 = vlaneseq
    %v289 = vshrl.u32 %v288, 7
    %v290 = vsub.s32 %v287, %v289
    %v291 = vrot.slane %v283, %v290
    %v293 = vunpack.c.l.s4 1966171168
    %v294 = vunpack.c.0.s8 %v293
    %v295 = vlaneseq
    %v296 = vshrl.u32 %v295, 7
    %v297 = vsub.s32 %v294, %v296
    %v298 = vrot.slane %v284, %v297
    %v299 = vcombine.low %v291, %v298
    %v300 = vcombine.low %v192, %v200
    %v301 = vcombine.low %v202, %v185
    %v302 = vcombine.low %v199, %v201
    %v304 = vunpack.c.l.s4 1966171168
    %v305 = vunpack.c.0.s8 %v304
    %v306 = vlaneseq
    %v307 = vshrl.u32 %v306, 7
    %v308 = vsub.s32 %v305, %v307
    %v309 = vrot.slane %v300, %v308
    %v311 = vunpack.c.l.s4 1966171168
    %v312 = vunpack.c.0.s8 %v311
    %v313 = vlaneseq
    %v314 = vshrl.u32 %v313, 7
    %v315 = vsub.s32 %v312, %v314
    %v316 = vrot.slane %v301, %v315
    %v318 = vunpack.c.l.s4 1966171168
    %v319 = vunpack.c.0.s8 %v318
    %v320 = vlaneseq
    %v321 = vshrl.u32 %v320, 7
    %v322 = vsub.s32 %v319, %v321
    %v323 = vrot.slane %v302, %v322
    %v324 = vcombine.low %v309, %v316
    %v326 = vunpack.c.l.s4 1966171168
    %v327 = vunpack.c.0.s8 %v326
    %v328 = vlaneseq
    %v329 = vshrl.u32 %v328, 7
    %v330 = vsub.s32 %v327, %v329
    %v331 = vrot.slane %v324, %v330
    %v333 = vunpack.c.l.s4 1966171168
    %v334 = vunpack.c.0.s8 %v333
    %v335 = vlaneseq
    %v336 = vshrl.u32 %v335, 7
    %v337 = vsub.s32 %v334, %v336
    %v338 = vrot.slane %v323, %v337
    %v339 = vcombine.low %v331, %v338
    %v340 = vcombine.low %v226, %v240
    %v341 = vcombine.low %v248, %v250
    %v342 = vcombine.low %v233, %v247
    %v343 = vcombine.low %v249, %v226
    %v345 = vunpack.c.l.s4 1966171168
    %v346 = vunpack.c.0.s8 %v345
    %v347 = vlaneseq
    %v348 = vshrl.u32 %v347, 7
    %v349 = vsub.s32 %v346, %v348
    %v350 = vrot.slane %v340, %v349
    %v352 = vunpack.c.l.s4 1966171168
    %v353 = vunpack.c.0.s8 %v352
    %v354 = vlaneseq
    %v355 = vshrl.u32 %v354, 7
    %v356 = vsub.s32 %v353, %v355
    %v357 = vrot.slane %v341, %v356
    %v359 = vunpack.c.l.s4 1966171168
    %v360 = vunpack.c.0.s8 %v359
    %v361 = vlaneseq
    %v362 = vshrl.u32 %v361, 7
    %v363 = vsub.s32 %v360, %v362
    %v364 = vrot.slane %v342, %v363
    %v366 = vunpack.c.l.s4 1966171168
    %v367 = vunpack.c.0.s8 %v366
    %v368 = vlaneseq
    %v369 = vshrl.u32 %v368, 7
    %v370 = vsub.s32 %v367, %v369
    %v371 = vrot.slane %v343, %v370
    %v372 = vcombine.low %v350, %v357
    %v373 = vcombine.low %v364, %v371
    %v375 = vunpack.c.l.s4 1966171168
    %v376 = vunpack.c.0.s8 %v375
    %v377 = vlaneseq
    %v378 = vshrl.u32 %v377, 7
    %v379 = vsub.s32 %v376, %v378
    %v380 = vrot.slane %v372, %v379
    %v382 = vunpack.c.l.s4 1966171168
    %v383 = vunpack.c.0.s8 %v382
    %v384 = vlaneseq
    %v385 = vshrl.u32 %v384, 7
    %v386 = vsub.s32 %v383, %v385
    %v387 = vrot.slane %v373, %v386
    %v388 = vcombine.low %v380, %v387
    %v389 = vcombine.low %v240, %v248
    %v390 = vcombine.low %v250, %v233
    %v391 = vcombine.low %v247, %v249
    %v393 = vunpack.c.l.s4 1966171168
    %v394 = vunpack.c.0.s8 %v393
    %v395 = vlaneseq
    %v396 = vshrl.u32 %v395, 7
    %v397 = vsub.s32 %v394, %v396
    %v398 = vrot.slane %v389, %v397
    %v400 = vunpack.c.l.s4 1966171168
    %v401 = vunpack.c.0.s8 %v400
    %v402 = vlaneseq
    %v403 = vshrl.u32 %v402, 7
    %v404 = vsub.s32 %v401, %v403
    %v405 = vrot.slane %v390, %v404
    %v407 = vunpack.c.l.s4 1966171168
    %v408 = vunpack.c.0.s8 %v407
    %v409 = vlaneseq
    %v410 = vshrl.u32 %v409, 7
    %v411 = vsub.s32 %v408, %v410
    %v412 = vrot.slane %v391, %v411
    %v413 = vcombine.low %v398, %v405
    %v415 = vunpack.c.l.s4 1966171168
    %v416 = vunpack.c.0.s8 %v415
    %v417 = vlaneseq
    %v418 = vshrl.u32 %v417, 7
    %v419 = vsub.s32 %v416, %v418
    %v420 = vrot.slane %v413, %v419
    %v422 = vunpack.c.l.s4 1966171168
    %v423 = vunpack.c.0.s8 %v422
    %v424 = vlaneseq
    %v425 = vshrl.u32 %v424, 7
    %v426 = vsub.s32 %v423, %v425
    %v427 = vrot.slane %v412, %v426
    %v428 = vcombine.low %v420, %v427
    %vm431 = vcmask 130048
    %v432 = vsel %vm431, %v299, 0
    %v434 = vsel %vm431, %v339, 0
    %436 = vmatprep.subr.mxu0 0.0
    %437 = vmatpush1.msra.mxu0 0.0
    %438 = vmatprep.subr.mxu0 0.0
    %439 = vmatpush1.msra.mxu0 0.0
    %440 = vmatprep.subr.mxu0 0.0
    %441 = vmatpush1.msra.mxu0 0.0
    %442 = vmatprep.subr.mxu0 0.0
    %443 = vmatpush1.msra.mxu0 0.0
    %444 = vmatprep.subr.mxu0 0.0
    %445 = vmatpush1.msra.mxu0 0.0
    %446 = vmatprep.subr.mxu0 0.0
    %447 = vmatpush1.msra.mxu0 0.0
    %448 = vmatprep.subr.mxu0 0.0
    %449 = vmatpush1.msra.mxu0 0.0
    %450 = vmatprep.subr.mxu0 0.0
    %451 = vmatpush1.msra.mxu0 0.0
    %452 = vmatprep.subr.mxu0 0.0
    %453 = vmatpush1.msra.mxu0 0.0
    %454 = vmatprep.subr.mxu0 0.0
    %455 = vmatpush1.msra.mxu0 0.0
    %456 = vmatprep.subr.mxu0 0.0
    %457 = vmatpush1.msra.mxu0 0.0
    %458 = vmatprep.subr.mxu0 0.0
    %459 = vmatpush1.msra.mxu0 0.0
    %460 = vmatprep.subr.mxu0 0.0
    %461 = vmatpush1.msra.mxu0 0.0
    %462 = vmatprep.subr.mxu0 0.0
    %463 = vmatpush1.msra.mxu0 0.0
    %464 = vmatprep.subr.mxu0 0.0
    %465 = vmatpush1.msra.mxu0 %v98
    %466 = vmatprep.subr.mxu0 0.0
    %467 = vmatpush1.msra.mxu0 %v97
    %468 = vmatprep.subr.mxu0 0.0
    %469 = vmatpush2.msra.mxu0 0.0
    %470 = vmatprep.subr.mxu0 0.0
    %471 = vmatpush2.msra.mxu0 0.0
    %472 = vmatprep.subr.mxu0 0.0
    %473 = vmatpush2.msra.mxu0 0.0
    %474 = vmatprep.subr.mxu0 0.0
    %475 = vmatpush2.msra.mxu0 0.0
    %476 = vmatprep.subr.mxu0 0.0
    %477 = vmatpush2.msra.mxu0 0.0
    %478 = vmatprep.subr.mxu0 0.0
    %479 = vmatpush2.msra.mxu0 0.0
    %480 = vmatprep.subr.mxu0 0.0
    %481 = vmatpush2.msra.mxu0 0.0
    %482 = vmatprep.subr.mxu0 0.0
    %483 = vmatpush2.msra.mxu0 0.0
    %484 = vmatprep.subr.mxu0 0.0
    %485 = vmatpush2.msra.mxu0 0.0
    %486 = vmatprep.subr.mxu0 0.0
    %487 = vmatpush2.msra.mxu0 0.0
    %488 = vmatprep.subr.mxu0 0.0
    %489 = vmatpush2.msra.mxu0 0.0
    %490 = vmatprep.subr.mxu0 0.0
    %491 = vmatpush2.msra.mxu0 0.0
    %492 = vmatprep.subr.mxu0 0.0
    %493 = vmatpush2.msra.mxu0 0.0
    %494 = vmatprep.subr.mxu0 0.0
    %495 = vmatpush2.msra.mxu0 0.0
    %496 = vmatprep.subr.mxu0 0.0
    %497 = vmatpush2.msra.mxu0 0.0
    %498 = vmatprep.subr.mxu0 0.0
    %499 = vmatpush2.msra.mxu0 0.0
    %500 = vmatprep.mubr.f32.mxu0 0.0
    %501 = vmatmul.mubr.f32.gmra.mxu0 %v432
    %v502 = vpop.f32.mrf.mxu0
    %v503 = vadd.f32 %v388, %v502
    %v504 = vpop.f32.mrf.mxu0
    %505 = vmatprep.mubr.f32.mxu0 0.0
    %506 = vmatmul.mubr.f32.gmra.mxu0 %v434
    %v507 = vpop.f32.mrf.mxu0
    %v508 = vadd.f32 %v428, %v507
    %v509 = vpop.f32.mrf.mxu0
    %510 = vdwg.mxu0
    %v513 = vcombine.high %v503, %v503
    %v515 = vunpack.c.l.s4 1966171168
    %v516 = vunpack.c.0.s8 %v515
    %v517 = vlaneseq
    %v518 = vshrl.u32 %v517, 7
    %v519 = vsub.s32 %v516, %v518
    %v520 = vrot.slane %v503, %v519
    %v522 = vunpack.c.l.s4 1966171168
    %v523 = vunpack.c.0.s8 %v522
    %v524 = vlaneseq
    %v525 = vshrl.u32 %v524, 7
    %v526 = vsub.s32 %v523, %v525
    %v527 = vrot.slane %v513, %v526
    %v528 = vcombine.high %v520, %v520
    %v529 = vcombine.high %v527, %v527
    %v531 = vunpack.c.l.s4 1966171168
    %v532 = vunpack.c.0.s8 %v531
    %v533 = vlaneseq
    %v534 = vshrl.u32 %v533, 7
    %v535 = vsub.s32 %v532, %v534
    %v536 = vrot.slane %v520, %v535
    %v538 = vunpack.c.l.s4 1966171168
    %v539 = vunpack.c.0.s8 %v538
    %v540 = vlaneseq
    %v541 = vshrl.u32 %v540, 7
    %v542 = vsub.s32 %v539, %v541
    %v543 = vrot.slane %v527, %v542
    %v545 = vunpack.c.l.s4 1966171168
    %v546 = vunpack.c.0.s8 %v545
    %v547 = vlaneseq
    %v548 = vshrl.u32 %v547, 7
    %v549 = vsub.s32 %v546, %v548
    %v550 = vrot.slane %v528, %v549
    %v552 = vunpack.c.l.s4 1966171168
    %v553 = vunpack.c.0.s8 %v552
    %v554 = vlaneseq
    %v555 = vshrl.u32 %v554, 7
    %v556 = vsub.s32 %v553, %v555
    %v557 = vrot.slane %v529, %v556
    %v558 = vcombine.high %v536, %v536
    %v559 = vcombine.high %v543, %v543
    %v560 = vcombine.high %v550, %v550
    %v561 = vcombine.high %v557, %v557
    %v562 = vcombine.high %v508, %v508
    %v564 = vunpack.c.l.s4 1966171168
    %v565 = vunpack.c.0.s8 %v564
    %v566 = vlaneseq
    %v567 = vshrl.u32 %v566, 7
    %v568 = vsub.s32 %v565, %v567
    %v569 = vrot.slane %v508, %v568
    %v571 = vunpack.c.l.s4 1966171168
    %v572 = vunpack.c.0.s8 %v571
    %v573 = vlaneseq
    %v574 = vshrl.u32 %v573, 7
    %v575 = vsub.s32 %v572, %v574
    %v576 = vrot.slane %v562, %v575
    %v577 = vcombine.high %v569, %v569
    %v578 = vcombine.high %v576, %v576
    %v580 = vunpack.c.l.s4 1966171168
    %v581 = vunpack.c.0.s8 %v580
    %v582 = vlaneseq
    %v583 = vshrl.u32 %v582, 7
    %v584 = vsub.s32 %v581, %v583
    %v585 = vrot.slane %v569, %v584
    %v587 = vunpack.c.l.s4 1966171168
    %v588 = vunpack.c.0.s8 %v587
    %v589 = vlaneseq
    %v590 = vshrl.u32 %v589, 7
    %v591 = vsub.s32 %v588, %v590
    %v592 = vrot.slane %v576, %v591
    %v594 = vunpack.c.l.s4 1966171168
    %v595 = vunpack.c.0.s8 %v594
    %v596 = vlaneseq
    %v597 = vshrl.u32 %v596, 7
    %v598 = vsub.s32 %v595, %v597
    %v599 = vrot.slane %v577, %v598
    %v601 = vunpack.c.l.s4 1966171168
    %v602 = vunpack.c.0.s8 %v601
    %v603 = vlaneseq
    %v604 = vshrl.u32 %v603, 7
    %v605 = vsub.s32 %v602, %v604
    %v606 = vrot.slane %v578, %v605
    %v607 = vcombine.high %v585, %v585
    %v608 = vcombine.high %v599, %v599
    %v623 = vld [vmem:[%s11] sm:$0xff]
    %v624 = vld [vmem:[%s11 + $0x8] sm:$0x3]
    %v625 = vld [vmem:[%s3] sm:$0xff]
    %v626 = vld [vmem:[%s3 + $0x8] sm:$0xff]
    %v627 = vld [vmem:[%s3 + $0x10] sm:$0xff]
    %v628 = vld [vmem:[%s3 + $0x18] sm:$0xff]
    %v629 = vld [vmem:[%s3 + $0x20] sm:$0xff]
    %v630 = vld [vmem:[%s3 + $0x28] sm:$0xff]
    %v631 = vld [vmem:[%s3 + $0x30] sm:$0xff]
    %v632 = vld [vmem:[%s3 + $0x38] sm:$0xff]
    %v633 = vld [vmem:[%s3 + $0x40] sm:$0xff]
    %v634 = vld [vmem:[%s3 + $0x48] sm:$0xff]
    %v635 = vld [vmem:[%s3 + $0x50] sm:$0xff]
    %v636 = vld [vmem:[%s3 + $0x58] sm:$0xff]
    %v637 = vld [vmem:[%s3 + $0x60] sm:$0xff]
    %v638 = vld [vmem:[%s3 + $0x68] sm:$0xff]
    %v639 = vld [vmem:[%s3 + $0x70] sm:$0xff]
    %v640 = vld [vmem:[%s3 + $0x78] sm:$0xff]
    %v641 = vld [vmem:[%s4] sm:$0x1]
    %v642 = vld [vmem:[%s4 + $0x1] sm:$0x1]
    %v643 = vld [vmem:[%s4 + $0x2] sm:$0x1]
    %v644 = vld [vmem:[%s4 + $0x3] sm:$0x1]
    %v645 = vld [vmem:[%s5] sm:$0xff]
    %v646 = vld [vmem:[%s5 + $0x8] sm:$0xff]
    %v647 = vld [vmem:[%s5 + $0x10] sm:$0xff]
    %v648 = vld [vmem:[%s5 + $0x18] sm:$0xff]
    %v649 = vld [vmem:[%s6] sm:$0x1]
    %v654 = vlaneseq
    %v655 = vshrl.u32 %v654, 7
    %v656 = vsub.s32 0, %v655
    %v657 = vrot.slane %v641, %v656
    %v658 = vlaneseq
    %v659 = vshrl.u32 %v658, 7
    %v660 = vsub.s32 0, %v659
    %v661 = vrot.slane %v642, %v660
    %v662 = vlaneseq
    %v663 = vshrl.u32 %v662, 7
    %v664 = vsub.s32 0, %v663
    %v665 = vrot.slane %v643, %v664
    %v666 = vlaneseq
    %v667 = vshrl.u32 %v666, 7
    %v668 = vsub.s32 0, %v667
    %v669 = vrot.slane %v644, %v668
    %v674 = vcombine.low %v536, %v550
    %v675 = vcombine.low %v558, %v560
    %v676 = vcombine.low %v543, %v557
    %v678 = vunpack.c.l.s4 1966171168
    %v679 = vunpack.c.0.s8 %v678
    %v680 = vlaneseq
    %v681 = vshrl.u32 %v680, 7
    %v682 = vsub.s32 %v679, %v681
    %v683 = vrot.slane %v674, %v682
    %v685 = vunpack.c.l.s4 1966171168
    %v686 = vunpack.c.0.s8 %v685
    %v687 = vlaneseq
    %v688 = vshrl.u32 %v687, 7
    %v689 = vsub.s32 %v686, %v688
    %v690 = vrot.slane %v675, %v689
    %v692 = vunpack.c.l.s4 1966171168
    %v693 = vunpack.c.0.s8 %v692
    %v694 = vlaneseq
    %v695 = vshrl.u32 %v694, 7
    %v696 = vsub.s32 %v693, %v695
    %v697 = vrot.slane %v676, %v696
    %v699 = vunpack.c.l.s4 1966171168
    %v700 = vunpack.c.0.s8 %v699
    %v701 = vlaneseq
    %v702 = vshrl.u32 %v701, 7
    %v703 = vsub.s32 %v700, %v702
    %v704 = vrot.slane %v559, %v703
    %v705 = vcombine.low %v683, %v690
    %v706 = vcombine.low %v697, %v704
    %v708 = vunpack.c.l.s4 1966171168
    %v709 = vunpack.c.0.s8 %v708
    %v710 = vlaneseq
    %v711 = vshrl.u32 %v710, 7
    %v712 = vsub.s32 %v709, %v711
    %v713 = vrot.slane %v705, %v712
    %v715 = vunpack.c.l.s4 1966171168
    %v716 = vunpack.c.0.s8 %v715
    %v717 = vlaneseq
    %v718 = vshrl.u32 %v717, 7
    %v719 = vsub.s32 %v716, %v718
    %v720 = vrot.slane %v706, %v719
    %v721 = vcombine.low %v713, %v720
    %vm722 = vcmask 261120
    %v723 = vsel %vm722, %v721, 0
    %725 = vmatprep.subr.mxu0 0.0
    %726 = vmatpush1.msra.mxu0 0.0
    %727 = vmatprep.subr.mxu0 0.0
    %728 = vmatpush1.msra.mxu0 0.0
    %729 = vmatprep.subr.mxu0 0.0
    %730 = vmatpush1.msra.mxu0 0.0
    %731 = vmatprep.subr.mxu0 0.0
    %732 = vmatpush1.msra.mxu0 0.0
    %733 = vmatprep.subr.mxu0 0.0
    %734 = vmatpush1.msra.mxu0 0.0
    %735 = vmatprep.subr.mxu0 0.0
    %736 = vmatpush1.msra.mxu0 0.0
    %737 = vmatprep.subr.mxu0 0.0
    %738 = vmatpush1.msra.mxu0 0.0
    %739 = vmatprep.subr.mxu0 0.0
    %740 = vmatpush1.msra.mxu0 0.0
    %741 = vmatprep.subr.mxu0 0.0
    %742 = vmatpush1.msra.mxu0 0.0
    %743 = vmatprep.subr.mxu0 0.0
    %744 = vmatpush1.msra.mxu0 0.0
    %745 = vmatprep.subr.mxu0 0.0
    %746 = vmatpush1.msra.mxu0 0.0
    %747 = vmatprep.subr.mxu0 0.0
    %748 = vmatpush1.msra.mxu0 0.0
    %749 = vmatprep.subr.mxu0 0.0
    %750 = vmatpush1.msra.mxu0 %v628
    %751 = vmatprep.subr.mxu0 0.0
    %752 = vmatpush1.msra.mxu0 %v627
    %753 = vmatprep.subr.mxu0 0.0
    %754 = vmatpush1.msra.mxu0 %v626
    %755 = vmatprep.subr.mxu0 0.0
    %756 = vmatpush1.msra.mxu0 %v625
    %757 = vmatprep.subr.mxu0 0.0
    %758 = vmatpush2.msra.mxu0 0.0
    %759 = vmatprep.subr.mxu0 0.0
    %760 = vmatpush2.msra.mxu0 0.0
    %761 = vmatprep.subr.mxu0 0.0
    %762 = vmatpush2.msra.mxu0 0.0
    %763 = vmatprep.subr.mxu0 0.0
    %764 = vmatpush2.msra.mxu0 0.0
    %765 = vmatprep.subr.mxu0 0.0
    %766 = vmatpush2.msra.mxu0 0.0
    %767 = vmatprep.subr.mxu0 0.0
    %768 = vmatpush2.msra.mxu0 0.0
    %769 = vmatprep.subr.mxu0 0.0
    %770 = vmatpush2.msra.mxu0 0.0
    %771 = vmatprep.subr.mxu0 0.0
    %772 = vmatpush2.msra.mxu0 0.0
    %773 = vmatprep.subr.mxu0 0.0
    %774 = vmatpush2.msra.mxu0 0.0
    %775 = vmatprep.subr.mxu0 0.0
    %776 = vmatpush2.msra.mxu0 0.0
    %777 = vmatprep.subr.mxu0 0.0
    %778 = vmatpush2.msra.mxu0 0.0
    %779 = vmatprep.subr.mxu0 0.0
    %780 = vmatpush2.msra.mxu0 0.0
    %781 = vmatprep.subr.mxu0 0.0
    %782 = vmatpush2.msra.mxu0 0.0
    %783 = vmatprep.subr.mxu0 0.0
    %784 = vmatpush2.msra.mxu0 0.0
    %785 = vmatprep.subr.mxu0 0.0
    %786 = vmatpush2.msra.mxu0 0.0
    %787 = vmatprep.subr.mxu0 0.0
    %788 = vmatpush2.msra.mxu0 0.0
    %789 = vmatprep.mubr.f32.mxu0 0.0
    %790 = vmatmul.mubr.f32.gmra.mxu0 %v723
    %v791 = vpop.f32.mrf.mxu0
    %v792 = vadd.f32 %v657, %v791
    %v793 = vpop.f32.mrf.mxu0
    %794 = vdwg.mxu0
    %795 = vmatprep.subr.mxu0 0.0
    %796 = vmatpush1.msra.mxu0 0.0
    %797 = vmatprep.subr.mxu0 0.0
    %798 = vmatpush1.msra.mxu0 0.0
    %799 = vmatprep.subr.mxu0 0.0
    %800 = vmatpush1.msra.mxu0 0.0
    %801 = vmatprep.subr.mxu0 0.0
    %802 = vmatpush1.msra.mxu0 0.0
    %803 = vmatprep.subr.mxu0 0.0
    %804 = vmatpush1.msra.mxu0 0.0
    %805 = vmatprep.subr.mxu0 0.0
    %806 = vmatpush1.msra.mxu0 0.0
    %807 = vmatprep.subr.mxu0 0.0
    %808 = vmatpush1.msra.mxu0 0.0
    %809 = vmatprep.subr.mxu0 0.0
    %810 = vmatpush1.msra.mxu0 0.0
    %811 = vmatprep.subr.mxu0 0.0
    %812 = vmatpush1.msra.mxu0 0.0
    %813 = vmatprep.subr.mxu0 0.0
    %814 = vmatpush1.msra.mxu0 0.0
    %815 = vmatprep.subr.mxu0 0.0
    %816 = vmatpush1.msra.mxu0 0.0
    %817 = vmatprep.subr.mxu0 0.0
    %818 = vmatpush1.msra.mxu0 0.0
    %819 = vmatprep.subr.mxu0 0.0
    %820 = vmatpush1.msra.mxu0 %v632
    %821 = vmatprep.subr.mxu0 0.0
    %822 = vmatpush1.msra.mxu0 %v631
    %823 = vmatprep.subr.mxu0 0.0
    %824 = vmatpush1.msra.mxu0 %v630
    %825 = vmatprep.subr.mxu0 0.0
    %826 = vmatpush1.msra.mxu0 %v629
    %827 = vmatprep.subr.mxu0 0.0
    %828 = vmatpush2.msra.mxu0 0.0
    %829 = vmatprep.subr.mxu0 0.0
    %830 = vmatpush2.msra.mxu0 0.0
    %831 = vmatprep.subr.mxu0 0.0
    %832 = vmatpush2.msra.mxu0 0.0
    %833 = vmatprep.subr.mxu0 0.0
    %834 = vmatpush2.msra.mxu0 0.0
    %835 = vmatprep.subr.mxu0 0.0
    %836 = vmatpush2.msra.mxu0 0.0
    %837 = vmatprep.subr.mxu0 0.0
    %838 = vmatpush2.msra.mxu0 0.0
    %839 = vmatprep.subr.mxu0 0.0
    %840 = vmatpush2.msra.mxu0 0.0
    %841 = vmatprep.subr.mxu0 0.0
    %842 = vmatpush2.msra.mxu0 0.0
    %843 = vmatprep.subr.mxu0 0.0
    %844 = vmatpush2.msra.mxu0 0.0
    %845 = vmatprep.subr.mxu0 0.0
    %846 = vmatpush2.msra.mxu0 0.0
    %847 = vmatprep.subr.mxu0 0.0
    %848 = vmatpush2.msra.mxu0 0.0
    %849 = vmatprep.subr.mxu0 0.0
    %850 = vmatpush2.msra.mxu0 0.0
    %851 = vmatprep.subr.mxu0 0.0
    %852 = vmatpush2.msra.mxu0 0.0
    %853 = vmatprep.subr.mxu0 0.0
    %854 = vmatpush2.msra.mxu0 0.0
    %855 = vmatprep.subr.mxu0 0.0
    %856 = vmatpush2.msra.mxu0 0.0
    %857 = vmatprep.subr.mxu0 0.0
    %858 = vmatpush2.msra.mxu0 0.0
    %859 = vmatprep.mubr.f32.mxu0 0.0
    %860 = vmatmul.mubr.f32.gmra.mxu0 %v723
    %v861 = vpop.f32.mrf.mxu0
    %v862 = vadd.f32 %v661, %v861
    %v863 = vpop.f32.mrf.mxu0
    %864 = vdwg.mxu0
    %865 = vmatprep.subr.mxu0 0.0
    %866 = vmatpush1.msra.mxu0 0.0
    %867 = vmatprep.subr.mxu0 0.0
    %868 = vmatpush1.msra.mxu0 0.0
    %869 = vmatprep.subr.mxu0 0.0
    %870 = vmatpush1.msra.mxu0 0.0
    %871 = vmatprep.subr.mxu0 0.0
    %872 = vmatpush1.msra.mxu0 0.0
    %873 = vmatprep.subr.mxu0 0.0
    %874 = vmatpush1.msra.mxu0 0.0
    %875 = vmatprep.subr.mxu0 0.0
    %876 = vmatpush1.msra.mxu0 0.0
    %877 = vmatprep.subr.mxu0 0.0
    %878 = vmatpush1.msra.mxu0 0.0
    %879 = vmatprep.subr.mxu0 0.0
    %880 = vmatpush1.msra.mxu0 0.0
    %881 = vmatprep.subr.mxu0 0.0
    %882 = vmatpush1.msra.mxu0 0.0
    %883 = vmatprep.subr.mxu0 0.0
    %884 = vmatpush1.msra.mxu0 0.0
    %885 = vmatprep.subr.mxu0 0.0
    %886 = vmatpush1.msra.mxu0 0.0
    %887 = vmatprep.subr.mxu0 0.0
    %888 = vmatpush1.msra.mxu0 0.0
    %889 = vmatprep.subr.mxu0 0.0
    %890 = vmatpush1.msra.mxu0 %v636
    %891 = vmatprep.subr.mxu0 0.0
    %892 = vmatpush1.msra.mxu0 %v635
    %893 = vmatprep.subr.mxu0 0.0
    %894 = vmatpush1.msra.mxu0 %v634
    %895 = vmatprep.subr.mxu0 0.0
    %896 = vmatpush1.msra.mxu0 %v633
    %897 = vmatprep.subr.mxu0 0.0
    %898 = vmatpush2.msra.mxu0 0.0
    %899 = vmatprep.subr.mxu0 0.0
    %900 = vmatpush2.msra.mxu0 0.0
    %901 = vmatprep.subr.mxu0 0.0
    %902 = vmatpush2.msra.mxu0 0.0
    %903 = vmatprep.subr.mxu0 0.0
    %904 = vmatpush2.msra.mxu0 0.0
    %905 = vmatprep.subr.mxu0 0.0
    %906 = vmatpush2.msra.mxu0 0.0
    %907 = vmatprep.subr.mxu0 0.0
    %908 = vmatpush2.msra.mxu0 0.0
    %909 = vmatprep.subr.mxu0 0.0
    %910 = vmatpush2.msra.mxu0 0.0
    %911 = vmatprep.subr.mxu0 0.0
    %912 = vmatpush2.msra.mxu0 0.0
    %913 = vmatprep.subr.mxu0 0.0
    %914 = vmatpush2.msra.mxu0 0.0
    %915 = vmatprep.subr.mxu0 0.0
    %916 = vmatpush2.msra.mxu0 0.0
    %917 = vmatprep.subr.mxu0 0.0
    %918 = vmatpush2.msra.mxu0 0.0
    %919 = vmatprep.subr.mxu0 0.0
    %920 = vmatpush2.msra.mxu0 0.0
    %921 = vmatprep.subr.mxu0 0.0
    %922 = vmatpush2.msra.mxu0 0.0
    %923 = vmatprep.subr.mxu0 0.0
    %924 = vmatpush2.msra.mxu0 0.0
    %925 = vmatprep.subr.mxu0 0.0
    %926 = vmatpush2.msra.mxu0 0.0
    %927 = vmatprep.subr.mxu0 0.0
    %928 = vmatpush2.msra.mxu0 0.0
    %929 = vmatprep.mubr.f32.mxu0 0.0
    %930 = vmatmul.mubr.f32.gmra.mxu0 %v723
    %v931 = vpop.f32.mrf.mxu0
    %v932 = vadd.f32 %v665, %v931
    %v933 = vpop.f32.mrf.mxu0
    %934 = vdwg.mxu0
    %935 = vmatprep.subr.mxu0 0.0
    %936 = vmatpush1.msra.mxu0 0.0
    %937 = vmatprep.subr.mxu0 0.0
    %938 = vmatpush1.msra.mxu0 0.0
    %939 = vmatprep.subr.mxu0 0.0
    %940 = vmatpush1.msra.mxu0 0.0
    %941 = vmatprep.subr.mxu0 0.0
    %942 = vmatpush1.msra.mxu0 0.0
    %943 = vmatprep.subr.mxu0 0.0
    %944 = vmatpush1.msra.mxu0 0.0
    %945 = vmatprep.subr.mxu0 0.0
    %946 = vmatpush1.msra.mxu0 0.0
    %947 = vmatprep.subr.mxu0 0.0
    %948 = vmatpush1.msra.mxu0 0.0
    %949 = vmatprep.subr.mxu0 0.0
    %950 = vmatpush1.msra.mxu0 0.0
    %951 = vmatprep.subr.mxu0 0.0
    %952 = vmatpush1.msra.mxu0 0.0
    %953 = vmatprep.subr.mxu0 0.0
    %954 = vmatpush1.msra.mxu0 0.0
    %955 = vmatprep.subr.mxu0 0.0
    %956 = vmatpush1.msra.mxu0 0.0
    %957 = vmatprep.subr.mxu0 0.0
    %958 = vmatpush1.msra.mxu0 0.0
    %959 = vmatprep.subr.mxu0 0.0
    %960 = vmatpush1.msra.mxu0 %v640
    %961 = vmatprep.subr.mxu0 0.0
    %962 = vmatpush1.msra.mxu0 %v639
    %963 = vmatprep.subr.mxu0 0.0
    %964 = vmatpush1.msra.mxu0 %v638
    %965 = vmatprep.subr.mxu0 0.0
    %966 = vmatpush1.msra.mxu0 %v637
    %967 = vmatprep.subr.mxu0 0.0
    %968 = vmatpush2.msra.mxu0 0.0
    %969 = vmatprep.subr.mxu0 0.0
    %970 = vmatpush2.msra.mxu0 0.0
    %971 = vmatprep.subr.mxu0 0.0
    %972 = vmatpush2.msra.mxu0 0.0
    %973 = vmatprep.subr.mxu0 0.0
    %974 = vmatpush2.msra.mxu0 0.0
    %975 = vmatprep.subr.mxu0 0.0
    %976 = vmatpush2.msra.mxu0 0.0
    %977 = vmatprep.subr.mxu0 0.0
    %978 = vmatpush2.msra.mxu0 0.0
    %979 = vmatprep.subr.mxu0 0.0
    %980 = vmatpush2.msra.mxu0 0.0
    %981 = vmatprep.subr.mxu0 0.0
    %982 = vmatpush2.msra.mxu0 0.0
    %983 = vmatprep.subr.mxu0 0.0
    %984 = vmatpush2.msra.mxu0 0.0
    %985 = vmatprep.subr.mxu0 0.0
    %986 = vmatpush2.msra.mxu0 0.0
    %987 = vmatprep.subr.mxu0 0.0
    %988 = vmatpush2.msra.mxu0 0.0
    %989 = vmatprep.subr.mxu0 0.0
    %990 = vmatpush2.msra.mxu0 0.0
    %991 = vmatprep.subr.mxu0 0.0
    %992 = vmatpush2.msra.mxu0 0.0
    %993 = vmatprep.subr.mxu0 0.0
    %994 = vmatpush2.msra.mxu0 0.0
    %995 = vmatprep.subr.mxu0 0.0
    %996 = vmatpush2.msra.mxu0 0.0
    %997 = vmatprep.subr.mxu0 0.0
    %998 = vmatpush2.msra.mxu0 0.0
    %999 = vmatprep.mubr.f32.mxu0 0.0
    %1000 = vmatmul.mubr.f32.gmra.mxu0 %v723
    %v1001 = vpop.f32.mrf.mxu0
    %v1002 = vadd.f32 %v669, %v1001
    %v1003 = vpop.f32.mrf.mxu0
    %1004 = vdwg.mxu0
    %1006 = vrot.lane.b32.xlu0 %v792, 120
    %v1007 = vpop.permute.xlu0 %1006
    %vm1008 = vcmask 64512
    %v1009 = vsel %vm1008, %v792, 0
    %v1011 = vsel %vm1008, %v1007, 0
    %1013 = vmatprep.subr.mxu0 0.0
    %1014 = vmatpush1.xpose.msra.mxu0 0.0
    %1015 = vmatprep.subr.mxu0 0.0
    %1016 = vmatpush1.xpose.msra.mxu0 0.0
    %1017 = vmatprep.subr.mxu0 0.0
    %1018 = vmatpush1.xpose.msra.mxu0 0.0
    %1019 = vmatprep.subr.mxu0 0.0
    %1020 = vmatpush1.xpose.msra.mxu0 0.0
    %1021 = vmatprep.subr.mxu0 0.0
    %1022 = vmatpush1.xpose.msra.mxu0 0.0
    %1023 = vmatprep.subr.mxu0 0.0
    %1024 = vmatpush1.xpose.msra.mxu0 0.0
    %1025 = vmatprep.subr.mxu0 0.0
    %1026 = vmatpush1.xpose.msra.mxu0 0.0
    %1027 = vmatprep.subr.mxu0 0.0
    %1028 = vmatpush1.xpose.msra.mxu0 0.0
    %1029 = vmatprep.subr.mxu0 0.0
    %1030 = vmatpush1.xpose.msra.mxu0 0.0
    %1031 = vmatprep.subr.mxu0 0.0
    %1032 = vmatpush1.xpose.msra.mxu0 0.0
    %1033 = vmatprep.subr.mxu0 0.0
    %1034 = vmatpush1.xpose.msra.mxu0 0.0
    %1035 = vmatprep.subr.mxu0 0.0
    %1036 = vmatpush1.xpose.msra.mxu0 0.0
    %1037 = vmatprep.subr.mxu0 0.0
    %1038 = vmatpush1.xpose.msra.mxu0 0.0
    %1039 = vmatprep.subr.mxu0 0.0
    %1040 = vmatpush1.xpose.msra.mxu0 0.0
    %1041 = vmatprep.subr.mxu0 0.0
    %1042 = vmatpush1.xpose.msra.mxu0 0.0
    %1043 = vmatprep.subr.mxu0 0.0
    %1044 = vmatpush1.xpose.msra.mxu0 %v1011
    %1045 = vmatprep.subr.mxu0 0.0
    %1046 = vmatpush2.xpose.msra.mxu0 0.0
    %1047 = vmatprep.subr.mxu0 0.0
    %1048 = vmatpush2.xpose.msra.mxu0 0.0
    %1049 = vmatprep.subr.mxu0 0.0
    %1050 = vmatpush2.xpose.msra.mxu0 0.0
    %1051 = vmatprep.subr.mxu0 0.0
    %1052 = vmatpush2.xpose.msra.mxu0 0.0
    %1053 = vmatprep.subr.mxu0 0.0
    %1054 = vmatpush2.xpose.msra.mxu0 0.0
    %1055 = vmatprep.subr.mxu0 0.0
    %1056 = vmatpush2.xpose.msra.mxu0 0.0
    %1057 = vmatprep.subr.mxu0 0.0
    %1058 = vmatpush2.xpose.msra.mxu0 0.0
    %1059 = vmatprep.subr.mxu0 0.0
    %1060 = vmatpush2.xpose.msra.mxu0 0.0
    %1061 = vmatprep.subr.mxu0 0.0
    %1062 = vmatpush2.xpose.msra.mxu0 0.0
    %1063 = vmatprep.subr.mxu0 0.0
    %1064 = vmatpush2.xpose.msra.mxu0 0.0
    %1065 = vmatprep.subr.mxu0 0.0
    %1066 = vmatpush2.xpose.msra.mxu0 0.0
    %1067 = vmatprep.subr.mxu0 0.0
    %1068 = vmatpush2.xpose.msra.mxu0 0.0
    %1069 = vmatprep.subr.mxu0 0.0
    %1070 = vmatpush2.xpose.msra.mxu0 0.0
    %1071 = vmatprep.subr.mxu0 0.0
    %1072 = vmatpush2.xpose.msra.mxu0 0.0
    %1073 = vmatprep.subr.mxu0 0.0
    %1074 = vmatpush2.xpose.msra.mxu0 0.0
    %1075 = vmatprep.subr.mxu0 0.0
    %1076 = vmatpush2.xpose.msra.mxu0 0.0
    %1077 = vmatprep.mubr.f32.mxu0 0.0
    %1078 = vmatmul.mubr.f32.gmra.mxu0 %v1009
    %v1079 = vpop.f32.mrf.mxu0
    %v1080 = vadd.f32 0.0, %v1079
    %v1081 = vpop.f32.mrf.mxu0
    %1082 = vdwg.mxu0
    %1084 = vrot.lane.b32.xlu0 %v862, 120
    %v1085 = vpop.permute.xlu0 %1084
    %v1086 = vsel %vm1008, %v862, 0
    %v1088 = vsel %vm1008, %v1085, 0
    %1090 = vmatprep.subr.mxu0 0.0
    %1091 = vmatpush1.xpose.msra.mxu0 0.0
    %1092 = vmatprep.subr.mxu0 0.0
    %1093 = vmatpush1.xpose.msra.mxu0 0.0
    %1094 = vmatprep.subr.mxu0 0.0
    %1095 = vmatpush1.xpose.msra.mxu0 0.0
    %1096 = vmatprep.subr.mxu0 0.0
    %1097 = vmatpush1.xpose.msra.mxu0 0.0
    %1098 = vmatprep.subr.mxu0 0.0
    %1099 = vmatpush1.xpose.msra.mxu0 0.0
    %1100 = vmatprep.subr.mxu0 0.0
    %1101 = vmatpush1.xpose.msra.mxu0 0.0
    %1102 = vmatprep.subr.mxu0 0.0
    %1103 = vmatpush1.xpose.msra.mxu0 0.0
    %1104 = vmatprep.subr.mxu0 0.0
    %1105 = vmatpush1.xpose.msra.mxu0 0.0
    %1106 = vmatprep.subr.mxu0 0.0
    %1107 = vmatpush1.xpose.msra.mxu0 0.0
    %1108 = vmatprep.subr.mxu0 0.0
    %1109 = vmatpush1.xpose.msra.mxu0 0.0
    %1110 = vmatprep.subr.mxu0 0.0
    %1111 = vmatpush1.xpose.msra.mxu0 0.0
    %1112 = vmatprep.subr.mxu0 0.0
    %1113 = vmatpush1.xpose.msra.mxu0 0.0
    %1114 = vmatprep.subr.mxu0 0.0
    %1115 = vmatpush1.xpose.msra.mxu0 0.0
    %1116 = vmatprep.subr.mxu0 0.0
    %1117 = vmatpush1.xpose.msra.mxu0 0.0
    %1118 = vmatprep.subr.mxu0 0.0
    %1119 = vmatpush1.xpose.msra.mxu0 0.0
    %1120 = vmatprep.subr.mxu0 0.0
    %1121 = vmatpush1.xpose.msra.mxu0 %v1088
    %1122 = vmatprep.subr.mxu0 0.0
    %1123 = vmatpush2.xpose.msra.mxu0 0.0
    %1124 = vmatprep.subr.mxu0 0.0
    %1125 = vmatpush2.xpose.msra.mxu0 0.0
    %1126 = vmatprep.subr.mxu0 0.0
    %1127 = vmatpush2.xpose.msra.mxu0 0.0
    %1128 = vmatprep.subr.mxu0 0.0
    %1129 = vmatpush2.xpose.msra.mxu0 0.0
    %1130 = vmatprep.subr.mxu0 0.0
    %1131 = vmatpush2.xpose.msra.mxu0 0.0
    %1132 = vmatprep.subr.mxu0 0.0
    %1133 = vmatpush2.xpose.msra.mxu0 0.0
    %1134 = vmatprep.subr.mxu0 0.0
    %1135 = vmatpush2.xpose.msra.mxu0 0.0
    %1136 = vmatprep.subr.mxu0 0.0
    %1137 = vmatpush2.xpose.msra.mxu0 0.0
    %1138 = vmatprep.subr.mxu0 0.0
    %1139 = vmatpush2.xpose.msra.mxu0 0.0
    %1140 = vmatprep.subr.mxu0 0.0
    %1141 = vmatpush2.xpose.msra.mxu0 0.0
    %1142 = vmatprep.subr.mxu0 0.0
    %1143 = vmatpush2.xpose.msra.mxu0 0.0
    %1144 = vmatprep.subr.mxu0 0.0
    %1145 = vmatpush2.xpose.msra.mxu0 0.0
    %1146 = vmatprep.subr.mxu0 0.0
    %1147 = vmatpush2.xpose.msra.mxu0 0.0
    %1148 = vmatprep.subr.mxu0 0.0
    %1149 = vmatpush2.xpose.msra.mxu0 0.0
    %1150 = vmatprep.subr.mxu0 0.0
    %1151 = vmatpush2.xpose.msra.mxu0 0.0
    %1152 = vmatprep.subr.mxu0 0.0
    %1153 = vmatpush2.xpose.msra.mxu0 0.0
    %1154 = vmatprep.mubr.f32.mxu0 0.0
    %1155 = vmatmul.mubr.f32.gmra.mxu0 %v1086
    %v1156 = vpop.f32.mrf.mxu0
    %v1157 = vadd.f32 0.0, %v1156
    %v1158 = vpop.f32.mrf.mxu0
    %1159 = vdwg.mxu0
    %1161 = vrot.lane.b32.xlu0 %v932, 120
    %v1162 = vpop.permute.xlu0 %1161
    %v1163 = vsel %vm1008, %v932, 0
    %v1165 = vsel %vm1008, %v1162, 0
    %1167 = vmatprep.subr.mxu0 0.0
    %1168 = vmatpush1.xpose.msra.mxu0 0.0
    %1169 = vmatprep.subr.mxu0 0.0
    %1170 = vmatpush1.xpose.msra.mxu0 0.0
    %1171 = vmatprep.subr.mxu0 0.0
    %1172 = vmatpush1.xpose.msra.mxu0 0.0
    %1173 = vmatprep.subr.mxu0 0.0
    %1174 = vmatpush1.xpose.msra.mxu0 0.0
    %1175 = vmatprep.subr.mxu0 0.0
    %1176 = vmatpush1.xpose.msra.mxu0 0.0
    %1177 = vmatprep.subr.mxu0 0.0
    %1178 = vmatpush1.xpose.msra.mxu0 0.0
    %1179 = vmatprep.subr.mxu0 0.0
    %1180 = vmatpush1.xpose.msra.mxu0 0.0
    %1181 = vmatprep.subr.mxu0 0.0
    %1182 = vmatpush1.xpose.msra.mxu0 0.0
    %1183 = vmatprep.subr.mxu0 0.0
    %1184 = vmatpush1.xpose.msra.mxu0 0.0
    %1185 = vmatprep.subr.mxu0 0.0
    %1186 = vmatpush1.xpose.msra.mxu0 0.0
    %1187 = vmatprep.subr.mxu0 0.0
    %1188 = vmatpush1.xpose.msra.mxu0 0.0
    %1189 = vmatprep.subr.mxu0 0.0
    %1190 = vmatpush1.xpose.msra.mxu0 0.0
    %1191 = vmatprep.subr.mxu0 0.0
    %1192 = vmatpush1.xpose.msra.mxu0 0.0
    %1193 = vmatprep.subr.mxu0 0.0
    %1194 = vmatpush1.xpose.msra.mxu0 0.0
    %1195 = vmatprep.subr.mxu0 0.0
    %1196 = vmatpush1.xpose.msra.mxu0 0.0
    %1197 = vmatprep.subr.mxu0 0.0
    %1198 = vmatpush1.xpose.msra.mxu0 %v1165
    %1199 = vmatprep.subr.mxu0 0.0
    %1200 = vmatpush2.xpose.msra.mxu0 0.0
    %1201 = vmatprep.subr.mxu0 0.0
    %1202 = vmatpush2.xpose.msra.mxu0 0.0
    %1203 = vmatprep.subr.mxu0 0.0
    %1204 = vmatpush2.xpose.msra.mxu0 0.0
    %1205 = vmatprep.subr.mxu0 0.0
    %1206 = vmatpush2.xpose.msra.mxu0 0.0
    %1207 = vmatprep.subr.mxu0 0.0
    %1208 = vmatpush2.xpose.msra.mxu0 0.0
    %1209 = vmatprep.subr.mxu0 0.0
    %1210 = vmatpush2.xpose.msra.mxu0 0.0
    %1211 = vmatprep.subr.mxu0 0.0
    %1212 = vmatpush2.xpose.msra.mxu0 0.0
    %1213 = vmatprep.subr.mxu0 0.0
    %1214 = vmatpush2.xpose.msra.mxu0 0.0
    %1215 = vmatprep.subr.mxu0 0.0
    %1216 = vmatpush2.xpose.msra.mxu0 0.0
    %1217 = vmatprep.subr.mxu0 0.0
    %1218 = vmatpush2.xpose.msra.mxu0 0.0
    %1219 = vmatprep.subr.mxu0 0.0
    %1220 = vmatpush2.xpose.msra.mxu0 0.0
    %1221 = vmatprep.subr.mxu0 0.0
    %1222 = vmatpush2.xpose.msra.mxu0 0.0
    %1223 = vmatprep.subr.mxu0 0.0
    %1224 = vmatpush2.xpose.msra.mxu0 0.0
    %1225 = vmatprep.subr.mxu0 0.0
    %1226 = vmatpush2.xpose.msra.mxu0 0.0
    %1227 = vmatprep.subr.mxu0 0.0
    %1228 = vmatpush2.xpose.msra.mxu0 0.0
    %1229 = vmatprep.subr.mxu0 0.0
    %1230 = vmatpush2.xpose.msra.mxu0 0.0
    %1231 = vmatprep.mubr.f32.mxu0 0.0
    %1232 = vmatmul.mubr.f32.gmra.mxu0 %v1163
    %v1233 = vpop.f32.mrf.mxu0
    %v1234 = vadd.f32 0.0, %v1233
    %v1235 = vpop.f32.mrf.mxu0
    %1236 = vdwg.mxu0
    %1238 = vrot.lane.b32.xlu0 %v1002, 120
    %v1239 = vpop.permute.xlu0 %1238
    %v1240 = vsel %vm1008, %v1002, 0
    %v1242 = vsel %vm1008, %v1239, 0
    %1244 = vmatprep.subr.mxu0 0.0
    %1245 = vmatpush1.xpose.msra.mxu0 0.0
    %1246 = vmatprep.subr.mxu0 0.0
    %1247 = vmatpush1.xpose.msra.mxu0 0.0
    %1248 = vmatprep.subr.mxu0 0.0
    %1249 = vmatpush1.xpose.msra.mxu0 0.0
    %1250 = vmatprep.subr.mxu0 0.0
    %1251 = vmatpush1.xpose.msra.mxu0 0.0
    %1252 = vmatprep.subr.mxu0 0.0
    %1253 = vmatpush1.xpose.msra.mxu0 0.0
    %1254 = vmatprep.subr.mxu0 0.0
    %1255 = vmatpush1.xpose.msra.mxu0 0.0
    %1256 = vmatprep.subr.mxu0 0.0
    %1257 = vmatpush1.xpose.msra.mxu0 0.0
    %1258 = vmatprep.subr.mxu0 0.0
    %1259 = vmatpush1.xpose.msra.mxu0 0.0
    %1260 = vmatprep.subr.mxu0 0.0
    %1261 = vmatpush1.xpose.msra.mxu0 0.0
    %1262 = vmatprep.subr.mxu0 0.0
    %1263 = vmatpush1.xpose.msra.mxu0 0.0
    %1264 = vmatprep.subr.mxu0 0.0
    %1265 = vmatpush1.xpose.msra.mxu0 0.0
    %1266 = vmatprep.subr.mxu0 0.0
    %1267 = vmatpush1.xpose.msra.mxu0 0.0
    %1268 = vmatprep.subr.mxu0 0.0
    %1269 = vmatpush1.xpose.msra.mxu0 0.0
    %1270 = vmatprep.subr.mxu0 0.0
    %1271 = vmatpush1.xpose.msra.mxu0 0.0
    %1272 = vmatprep.subr.mxu0 0.0
    %1273 = vmatpush1.xpose.msra.mxu0 0.0
    %1274 = vmatprep.subr.mxu0 0.0
    %1275 = vmatpush1.xpose.msra.mxu0 %v1242
    %1276 = vmatprep.subr.mxu0 0.0
    %1277 = vmatpush2.xpose.msra.mxu0 0.0
    %1278 = vmatprep.subr.mxu0 0.0
    %1279 = vmatpush2.xpose.msra.mxu0 0.0
    %1280 = vmatprep.subr.mxu0 0.0
    %1281 = vmatpush2.xpose.msra.mxu0 0.0
    %1282 = vmatprep.subr.mxu0 0.0
    %1283 = vmatpush2.xpose.msra.mxu0 0.0
    %1284 = vmatprep.subr.mxu0 0.0
    %1285 = vmatpush2.xpose.msra.mxu0 0.0
    %1286 = vmatprep.subr.mxu0 0.0
    %1287 = vmatpush2.xpose.msra.mxu0 0.0
    %1288 = vmatprep.subr.mxu0 0.0
    %1289 = vmatpush2.xpose.msra.mxu0 0.0
    %1290 = vmatprep.subr.mxu0 0.0
    %1291 = vmatpush2.xpose.msra.mxu0 0.0
    %1292 = vmatprep.subr.mxu0 0.0
    %1293 = vmatpush2.xpose.msra.mxu0 0.0
    %1294 = vmatprep.subr.mxu0 0.0
    %1295 = vmatpush2.xpose.msra.mxu0 0.0
    %1296 = vmatprep.subr.mxu0 0.0
    %1297 = vmatpush2.xpose.msra.mxu0 0.0
    %1298 = vmatprep.subr.mxu0 0.0
    %1299 = vmatpush2.xpose.msra.mxu0 0.0
    %1300 = vmatprep.subr.mxu0 0.0
    %1301 = vmatpush2.xpose.msra.mxu0 0.0
    %1302 = vmatprep.subr.mxu0 0.0
    %1303 = vmatpush2.xpose.msra.mxu0 0.0
    %1304 = vmatprep.subr.mxu0 0.0
    %1305 = vmatpush2.xpose.msra.mxu0 0.0
    %1306 = vmatprep.subr.mxu0 0.0
    %1307 = vmatpush2.xpose.msra.mxu0 0.0
    %1308 = vmatprep.mubr.f32.mxu0 0.0
    %1309 = vmatmul.mubr.f32.gmra.mxu0 %v1240
    %v1310 = vpop.f32.mrf.mxu0
    %v1311 = vadd.f32 0.0, %v1310
    %v1312 = vpop.f32.mrf.mxu0
    %1313 = vdwg.mxu0
    %vm1314 = vcmask 55296
    %v1315 = vsel %vm1314, %v1080, -inf
    %1316 = vmax.xlane.f32.xlu0 %v1315
    %v1317 = vpop.xlane.xlu0 %1316
    %v1318 = vsel %vm1314, %v1157, -inf
    %1319 = vmax.xlane.f32.xlu0 %v1318
    %v1320 = vpop.xlane.xlu0 %1319
    %v1321 = vsel %vm1314, %v1234, -inf
    %1322 = vmax.xlane.f32.xlu0 %v1321
    %v1323 = vpop.xlane.xlu0 %1322
    %v1324 = vsel %vm1314, %v1311, -inf
    %1325 = vmax.xlane.f32.xlu0 %v1324
    %v1326 = vpop.xlane.xlu0 %1325
    %v1327 = vsub.f32 %v1080, %v1317
    %v1328 = vsub.f32 %v1157, %v1320
    %v1329 = vsub.f32 %v1234, %v1323
    %v1330 = vsub.f32 %v1311, %v1326
    %v1331 = vmul.f32 %v1327, 1.442695
    %v1332 = vpow.pop %v1331
    %v1333 = vmul.f32 %v1328, 1.442695
    %v1334 = vpow.pop %v1333
    %v1335 = vmul.f32 %v1329, 1.442695
    %v1336 = vpow.pop %v1335
    %v1337 = vmul.f32 %v1330, 1.442695
    %v1338 = vpow.pop %v1337
    %v1339 = vsel %vm1314, %v1332, 0.0
    %1340 = vadd.xlane.f32.xlu0 %v1339
    %v1341 = vpop.xlane.xlu0 %1340
    %v1342 = vsel %vm1314, %v1334, 0.0
    %1343 = vadd.xlane.f32.xlu0 %v1342
    %v1344 = vpop.xlane.xlu0 %1343
    %v1345 = vsel %vm1314, %v1336, 0.0
    %1346 = vadd.xlane.f32.xlu0 %v1345
    %v1347 = vpop.xlane.xlu0 %1346
    %v1348 = vsel %vm1314, %v1338, 0.0
    %1349 = vadd.xlane.f32.xlu0 %v1348
    %v1350 = vpop.xlane.xlu0 %1349
    %v1351 = vrcp.pop %v1341
    %v1352 = vrcp.pop %v1344
    %v1353 = vrcp.pop %v1347
    %v1354 = vrcp.pop %v1350
    %v1355 = vmul.f32 %v1332, %v1351
    %v1356 = vmul.f32 %v1334, %v1352
    %v1357 = vmul.f32 %v1336, %v1353
    %v1358 = vmul.f32 %v1338, %v1354
    %1359 = vrot.lane.b32.xlu0 %v792, 112
    %v1360 = vpop.permute.xlu0 %1359
    %vm1361 = vcmask 56320
    %v1363 = vsel %vm1361, %v1355, 0
    %vm1365 = vcmask 1046528
    %v1366 = vsel %vm1365, %v1360, 0
    %1368 = vmatprep.subr.mxu0 0.0
    %1369 = vmatpush1.msra.mxu0 0.0
    %1370 = vmatprep.subr.mxu0 0.0
    %1371 = vmatpush1.msra.mxu0 0.0
    %1372 = vmatprep.subr.mxu0 0.0
    %1373 = vmatpush1.msra.mxu0 0.0
    %1374 = vmatprep.subr.mxu0 0.0
    %1375 = vmatpush1.msra.mxu0 0.0
    %1376 = vmatprep.subr.mxu0 0.0
    %1377 = vmatpush1.msra.mxu0 0.0
    %1378 = vmatprep.subr.mxu0 0.0
    %1379 = vmatpush1.msra.mxu0 0.0
    %1380 = vmatprep.subr.mxu0 0.0
    %1381 = vmatpush1.msra.mxu0 0.0
    %1382 = vmatprep.subr.mxu0 0.0
    %1383 = vmatpush1.msra.mxu0 0.0
    %1384 = vmatprep.subr.mxu0 0.0
    %1385 = vmatpush1.msra.mxu0 0.0
    %1386 = vmatprep.subr.mxu0 0.0
    %1387 = vmatpush1.msra.mxu0 0.0
    %1388 = vmatprep.subr.mxu0 0.0
    %1389 = vmatpush1.msra.mxu0 0.0
    %1390 = vmatprep.subr.mxu0 0.0
    %1391 = vmatpush1.msra.mxu0 0.0
    %1392 = vmatprep.subr.mxu0 0.0
    %1393 = vmatpush1.msra.mxu0 0.0
    %1394 = vmatprep.subr.mxu0 0.0
    %1395 = vmatpush1.msra.mxu0 0.0
    %1396 = vmatprep.subr.mxu0 0.0
    %1397 = vmatpush1.msra.mxu0 0.0
    %1398 = vmatprep.subr.mxu0 0.0
    %1399 = vmatpush1.msra.mxu0 %v1366
    %1400 = vmatprep.subr.mxu0 0.0
    %1401 = vmatpush2.msra.mxu0 0.0
    %1402 = vmatprep.subr.mxu0 0.0
    %1403 = vmatpush2.msra.mxu0 0.0
    %1404 = vmatprep.subr.mxu0 0.0
    %1405 = vmatpush2.msra.mxu0 0.0
    %1406 = vmatprep.subr.mxu0 0.0
    %1407 = vmatpush2.msra.mxu0 0.0
    %1408 = vmatprep.subr.mxu0 0.0
    %1409 = vmatpush2.msra.mxu0 0.0
    %1410 = vmatprep.subr.mxu0 0.0
    %1411 = vmatpush2.msra.mxu0 0.0
    %1412 = vmatprep.subr.mxu0 0.0
    %1413 = vmatpush2.msra.mxu0 0.0
    %1414 = vmatprep.subr.mxu0 0.0
    %1415 = vmatpush2.msra.mxu0 0.0
    %1416 = vmatprep.subr.mxu0 0.0
    %1417 = vmatpush2.msra.mxu0 0.0
    %1418 = vmatprep.subr.mxu0 0.0
    %1419 = vmatpush2.msra.mxu0 0.0
    %1420 = vmatprep.subr.mxu0 0.0
    %1421 = vmatpush2.msra.mxu0 0.0
    %1422 = vmatprep.subr.mxu0 0.0
    %1423 = vmatpush2.msra.mxu0 0.0
    %1424 = vmatprep.subr.mxu0 0.0
    %1425 = vmatpush2.msra.mxu0 0.0
    %1426 = vmatprep.subr.mxu0 0.0
    %1427 = vmatpush2.msra.mxu0 0.0
    %1428 = vmatprep.subr.mxu0 0.0
    %1429 = vmatpush2.msra.mxu0 0.0
    %1430 = vmatprep.subr.mxu0 0.0
    %1431 = vmatpush2.msra.mxu0 0.0
    %1432 = vmatprep.mubr.f32.mxu0 0.0
    %1433 = vmatmul.mubr.f32.gmra.mxu0 %v1363
    %v1434 = vpop.f32.mrf.mxu0
    %v1435 = vadd.f32 0.0, %v1434
    %v1436 = vpop.f32.mrf.mxu0
    %1437 = vdwg.mxu0
    %1438 = vrot.lane.b32.xlu0 %v862, 112
    %v1439 = vpop.permute.xlu0 %1438
    %v1441 = vsel %vm1361, %v1356, 0
    %v1443 = vsel %vm1365, %v1439, 0
    %1445 = vmatprep.subr.mxu0 0.0
    %1446 = vmatpush1.msra.mxu0 0.0
    %1447 = vmatprep.subr.mxu0 0.0
    %1448 = vmatpush1.msra.mxu0 0.0
    %1449 = vmatprep.subr.mxu0 0.0
    %1450 = vmatpush1.msra.mxu0 0.0
    %1451 = vmatprep.subr.mxu0 0.0
    %1452 = vmatpush1.msra.mxu0 0.0
    %1453 = vmatprep.subr.mxu0 0.0
    %1454 = vmatpush1.msra.mxu0 0.0
    %1455 = vmatprep.subr.mxu0 0.0
    %1456 = vmatpush1.msra.mxu0 0.0
    %1457 = vmatprep.subr.mxu0 0.0
    %1458 = vmatpush1.msra.mxu0 0.0
    %1459 = vmatprep.subr.mxu0 0.0
    %1460 = vmatpush1.msra.mxu0 0.0
    %1461 = vmatprep.subr.mxu0 0.0
    %1462 = vmatpush1.msra.mxu0 0.0
    %1463 = vmatprep.subr.mxu0 0.0
    %1464 = vmatpush1.msra.mxu0 0.0
    %1465 = vmatprep.subr.mxu0 0.0
    %1466 = vmatpush1.msra.mxu0 0.0
    %1467 = vmatprep.subr.mxu0 0.0
    %1468 = vmatpush1.msra.mxu0 0.0
    %1469 = vmatprep.subr.mxu0 0.0
    %1470 = vmatpush1.msra.mxu0 0.0
    %1471 = vmatprep.subr.mxu0 0.0
    %1472 = vmatpush1.msra.mxu0 0.0
    %1473 = vmatprep.subr.mxu0 0.0
    %1474 = vmatpush1.msra.mxu0 0.0
    %1475 = vmatprep.subr.mxu0 0.0
    %1476 = vmatpush1.msra.mxu0 %v1443
    %1477 = vmatprep.subr.mxu0 0.0
    %1478 = vmatpush2.msra.mxu0 0.0
    %1479 = vmatprep.subr.mxu0 0.0
    %1480 = vmatpush2.msra.mxu0 0.0
    %1481 = vmatprep.subr.mxu0 0.0
    %1482 = vmatpush2.msra.mxu0 0.0
    %1483 = vmatprep.subr.mxu0 0.0
    %1484 = vmatpush2.msra.mxu0 0.0
    %1485 = vmatprep.subr.mxu0 0.0
    %1486 = vmatpush2.msra.mxu0 0.0
    %1487 = vmatprep.subr.mxu0 0.0
    %1488 = vmatpush2.msra.mxu0 0.0
    %1489 = vmatprep.subr.mxu0 0.0
    %1490 = vmatpush2.msra.mxu0 0.0
    %1491 = vmatprep.subr.mxu0 0.0
    %1492 = vmatpush2.msra.mxu0 0.0
    %1493 = vmatprep.subr.mxu0 0.0
    %1494 = vmatpush2.msra.mxu0 0.0
    %1495 = vmatprep.subr.mxu0 0.0
    %1496 = vmatpush2.msra.mxu0 0.0
    %1497 = vmatprep.subr.mxu0 0.0
    %1498 = vmatpush2.msra.mxu0 0.0
    %1499 = vmatprep.subr.mxu0 0.0
    %1500 = vmatpush2.msra.mxu0 0.0
    %1501 = vmatprep.subr.mxu0 0.0
    %1502 = vmatpush2.msra.mxu0 0.0
    %1503 = vmatprep.subr.mxu0 0.0
    %1504 = vmatpush2.msra.mxu0 0.0
    %1505 = vmatprep.subr.mxu0 0.0
    %1506 = vmatpush2.msra.mxu0 0.0
    %1507 = vmatprep.subr.mxu0 0.0
    %1508 = vmatpush2.msra.mxu0 0.0
    %1509 = vmatprep.mubr.f32.mxu0 0.0
    %1510 = vmatmul.mubr.f32.gmra.mxu0 %v1441
    %v1511 = vpop.f32.mrf.mxu0
    %v1512 = vadd.f32 0.0, %v1511
    %v1513 = vpop.f32.mrf.mxu0
    %1514 = vdwg.mxu0
    %1515 = vrot.lane.b32.xlu0 %v932, 112
    %v1516 = vpop.permute.xlu0 %1515
    %v1518 = vsel %vm1361, %v1357, 0
    %v1520 = vsel %vm1365, %v1516, 0
    %1522 = vmatprep.subr.mxu0 0.0
    %1523 = vmatpush1.msra.mxu0 0.0
    %1524 = vmatprep.subr.mxu0 0.0
    %1525 = vmatpush1.msra.mxu0 0.0
    %1526 = vmatprep.subr.mxu0 0.0
    %1527 = vmatpush1.msra.mxu0 0.0
    %1528 = vmatprep.subr.mxu0 0.0
    %1529 = vmatpush1.msra.mxu0 0.0
    %1530 = vmatprep.subr.mxu0 0.0
    %1531 = vmatpush1.msra.mxu0 0.0
    %1532 = vmatprep.subr.mxu0 0.0
    %1533 = vmatpush1.msra.mxu0 0.0
    %1534 = vmatprep.subr.mxu0 0.0
    %1535 = vmatpush1.msra.mxu0 0.0
    %1536 = vmatprep.subr.mxu0 0.0
    %1537 = vmatpush1.msra.mxu0 0.0
    %1538 = vmatprep.subr.mxu0 0.0
    %1539 = vmatpush1.msra.mxu0 0.0
    %1540 = vmatprep.subr.mxu0 0.0
    %1541 = vmatpush1.msra.mxu0 0.0
    %1542 = vmatprep.subr.mxu0 0.0
    %1543 = vmatpush1.msra.mxu0 0.0
    %1544 = vmatprep.subr.mxu0 0.0
    %1545 = vmatpush1.msra.mxu0 0.0
    %1546 = vmatprep.subr.mxu0 0.0
    %1547 = vmatpush1.msra.mxu0 0.0
    %1548 = vmatprep.subr.mxu0 0.0
    %1549 = vmatpush1.msra.mxu0 0.0
    %1550 = vmatprep.subr.mxu0 0.0
    %1551 = vmatpush1.msra.mxu0 0.0
    %1552 = vmatprep.subr.mxu0 0.0
    %1553 = vmatpush1.msra.mxu0 %v1520
    %1554 = vmatprep.subr.mxu0 0.0
    %1555 = vmatpush2.msra.mxu0 0.0
    %1556 = vmatprep.subr.mxu0 0.0
    %1557 = vmatpush2.msra.mxu0 0.0
    %1558 = vmatprep.subr.mxu0 0.0
    %1559 = vmatpush2.msra.mxu0 0.0
    %1560 = vmatprep.subr.mxu0 0.0
    %1561 = vmatpush2.msra.mxu0 0.0
    %1562 = vmatprep.subr.mxu0 0.0
    %1563 = vmatpush2.msra.mxu0 0.0
    %1564 = vmatprep.subr.mxu0 0.0
    %1565 = vmatpush2.msra.mxu0 0.0
    %1566 = vmatprep.subr.mxu0 0.0
    %1567 = vmatpush2.msra.mxu0 0.0
    %1568 = vmatprep.subr.mxu0 0.0
    %1569 = vmatpush2.msra.mxu0 0.0
    %1570 = vmatprep.subr.mxu0 0.0
    %1571 = vmatpush2.msra.mxu0 0.0
    %1572 = vmatprep.subr.mxu0 0.0
    %1573 = vmatpush2.msra.mxu0 0.0
    %1574 = vmatprep.subr.mxu0 0.0
    %1575 = vmatpush2.msra.mxu0 0.0
    %1576 = vmatprep.subr.mxu0 0.0
    %1577 = vmatpush2.msra.mxu0 0.0
    %1578 = vmatprep.subr.mxu0 0.0
    %1579 = vmatpush2.msra.mxu0 0.0
    %1580 = vmatprep.subr.mxu0 0.0
    %1581 = vmatpush2.msra.mxu0 0.0
    %1582 = vmatprep.subr.mxu0 0.0
    %1583 = vmatpush2.msra.mxu0 0.0
    %1584 = vmatprep.subr.mxu0 0.0
    %1585 = vmatpush2.msra.mxu0 0.0
    %1586 = vmatprep.mubr.f32.mxu0 0.0
    %1587 = vmatmul.mubr.f32.gmra.mxu0 %v1518
    %v1588 = vpop.f32.mrf.mxu0
    %v1589 = vadd.f32 0.0, %v1588
    %v1590 = vpop.f32.mrf.mxu0
    %1591 = vdwg.mxu0
    %1592 = vrot.lane.b32.xlu0 %v1002, 112
    %v1593 = vpop.permute.xlu0 %1592
    %v1595 = vsel %vm1361, %v1358, 0
    %v1597 = vsel %vm1365, %v1593, 0
    %1599 = vmatprep.subr.mxu0 0.0
    %1600 = vmatpush1.msra.mxu0 0.0
    %1601 = vmatprep.subr.mxu0 0.0
    %1602 = vmatpush1.msra.mxu0 0.0
    %1603 = vmatprep.subr.mxu0 0.0
    %1604 = vmatpush1.msra.mxu0 0.0
    %1605 = vmatprep.subr.mxu0 0.0
    %1606 = vmatpush1.msra.mxu0 0.0
    %1607 = vmatprep.subr.mxu0 0.0
    %1608 = vmatpush1.msra.mxu0 0.0
    %1609 = vmatprep.subr.mxu0 0.0
    %1610 = vmatpush1.msra.mxu0 0.0
    %1611 = vmatprep.subr.mxu0 0.0
    %1612 = vmatpush1.msra.mxu0 0.0
    %1613 = vmatprep.subr.mxu0 0.0
    %1614 = vmatpush1.msra.mxu0 0.0
    %1615 = vmatprep.subr.mxu0 0.0
    %1616 = vmatpush1.msra.mxu0 0.0
    %1617 = vmatprep.subr.mxu0 0.0
    %1618 = vmatpush1.msra.mxu0 0.0
    %1619 = vmatprep.subr.mxu0 0.0
    %1620 = vmatpush1.msra.mxu0 0.0
    %1621 = vmatprep.subr.mxu0 0.0
    %1622 = vmatpush1.msra.mxu0 0.0
    %1623 = vmatprep.subr.mxu0 0.0
    %1624 = vmatpush1.msra.mxu0 0.0
    %1625 = vmatprep.subr.mxu0 0.0
    %1626 = vmatpush1.msra.mxu0 0.0
    %1627 = vmatprep.subr.mxu0 0.0
    %1628 = vmatpush1.msra.mxu0 0.0
    %1629 = vmatprep.subr.mxu0 0.0
    %1630 = vmatpush1.msra.mxu0 %v1597
    %1631 = vmatprep.subr.mxu0 0.0
    %1632 = vmatpush2.msra.mxu0 0.0
    %1633 = vmatprep.subr.mxu0 0.0
    %1634 = vmatpush2.msra.mxu0 0.0
    %1635 = vmatprep.subr.mxu0 0.0
    %1636 = vmatpush2.msra.mxu0 0.0
    %1637 = vmatprep.subr.mxu0 0.0
    %1638 = vmatpush2.msra.mxu0 0.0
    %1639 = vmatprep.subr.mxu0 0.0
    %1640 = vmatpush2.msra.mxu0 0.0
    %1641 = vmatprep.subr.mxu0 0.0
    %1642 = vmatpush2.msra.mxu0 0.0
    %1643 = vmatprep.subr.mxu0 0.0
    %1644 = vmatpush2.msra.mxu0 0.0
    %1645 = vmatprep.subr.mxu0 0.0
    %1646 = vmatpush2.msra.mxu0 0.0
    %1647 = vmatprep.subr.mxu0 0.0
    %1648 = vmatpush2.msra.mxu0 0.0
    %1649 = vmatprep.subr.mxu0 0.0
    %1650 = vmatpush2.msra.mxu0 0.0
    %1651 = vmatprep.subr.mxu0 0.0
    %1652 = vmatpush2.msra.mxu0 0.0
    %1653 = vmatprep.subr.mxu0 0.0
    %1654 = vmatpush2.msra.mxu0 0.0
    %1655 = vmatprep.subr.mxu0 0.0
    %1656 = vmatpush2.msra.mxu0 0.0
    %1657 = vmatprep.subr.mxu0 0.0
    %1658 = vmatpush2.msra.mxu0 0.0
    %1659 = vmatprep.subr.mxu0 0.0
    %1660 = vmatpush2.msra.mxu0 0.0
    %1661 = vmatprep.subr.mxu0 0.0
    %1662 = vmatpush2.msra.mxu0 0.0
    %1663 = vmatprep.mubr.f32.mxu0 0.0
    %1664 = vmatmul.mubr.f32.gmra.mxu0 %v1595
    %v1665 = vpop.f32.mrf.mxu0
    %v1666 = vadd.f32 0.0, %v1665
    %v1667 = vpop.f32.mrf.mxu0
    %1668 = vdwg.mxu0
    %1670 = vrot.lane.b32.xlu0 %v1512, 8
    %v1671 = vpop.permute.xlu0 %1670
    %1674 = vrot.lane.b32.xlu0 %v1589, 16
    %v1675 = vpop.permute.xlu0 %1674
    %1678 = vrot.lane.b32.xlu0 %v1666, 24
    %v1679 = vpop.permute.xlu0 %1678
    %v1681 = vsel %vm1008, %v1435, %v1671
    %v1682 = vsel %vm431, %v1681, %v1675
    %vm1683 = vcmask 195584
    %v1684 = vsel %vm1683, %v1682, %v1679
    %v1686 = vlaneseq
    %v1687 = vshrl.u32 %v1686, 7
    %v1688 = vsub.s32 0, %v1687
    %v1689 = vrot.slane %v649, %v1688
    %v1692 = vsel %vm722, %v1684, 0
    %1694 = vmatprep.subr.mxu0 0.0
    %1695 = vmatpush1.msra.mxu0 0.0
    %1696 = vmatprep.subr.mxu0 0.0
    %1697 = vmatpush1.msra.mxu0 0.0
    %1698 = vmatprep.subr.mxu0 0.0
    %1699 = vmatpush1.msra.mxu0 0.0
    %1700 = vmatprep.subr.mxu0 0.0
    %1701 = vmatpush1.msra.mxu0 0.0
    %1702 = vmatprep.subr.mxu0 0.0
    %1703 = vmatpush1.msra.mxu0 0.0
    %1704 = vmatprep.subr.mxu0 0.0
    %1705 = vmatpush1.msra.mxu0 0.0
    %1706 = vmatprep.subr.mxu0 0.0
    %1707 = vmatpush1.msra.mxu0 0.0
    %1708 = vmatprep.subr.mxu0 0.0
    %1709 = vmatpush1.msra.mxu0 0.0
    %1710 = vmatprep.subr.mxu0 0.0
    %1711 = vmatpush1.msra.mxu0 0.0
    %1712 = vmatprep.subr.mxu0 0.0
    %1713 = vmatpush1.msra.mxu0 0.0
    %1714 = vmatprep.subr.mxu0 0.0
    %1715 = vmatpush1.msra.mxu0 0.0
    %1716 = vmatprep.subr.mxu0 0.0
    %1717 = vmatpush1.msra.mxu0 0.0
    %1718 = vmatprep.subr.mxu0 0.0
    %1719 = vmatpush1.msra.mxu0 %v648
    %1720 = vmatprep.subr.mxu0 0.0
    %1721 = vmatpush1.msra.mxu0 %v647
    %1722 = vmatprep.subr.mxu0 0.0
    %1723 = vmatpush1.msra.mxu0 %v646
    %1724 = vmatprep.subr.mxu0 0.0
    %1725 = vmatpush1.msra.mxu0 %v645
    %1726 = vmatprep.subr.mxu0 0.0
    %1727 = vmatpush2.msra.mxu0 0.0
    %1728 = vmatprep.subr.mxu0 0.0
    %1729 = vmatpush2.msra.mxu0 0.0
    %1730 = vmatprep.subr.mxu0 0.0
    %1731 = vmatpush2.msra.mxu0 0.0
    %1732 = vmatprep.subr.mxu0 0.0
    %1733 = vmatpush2.msra.mxu0 0.0
    %1734 = vmatprep.subr.mxu0 0.0
    %1735 = vmatpush2.msra.mxu0 0.0
    %1736 = vmatprep.subr.mxu0 0.0
    %1737 = vmatpush2.msra.mxu0 0.0
    %1738 = vmatprep.subr.mxu0 0.0
    %1739 = vmatpush2.msra.mxu0 0.0
    %1740 = vmatprep.subr.mxu0 0.0
    %1741 = vmatpush2.msra.mxu0 0.0
    %1742 = vmatprep.subr.mxu0 0.0
    %1743 = vmatpush2.msra.mxu0 0.0
    %1744 = vmatprep.subr.mxu0 0.0
    %1745 = vmatpush2.msra.mxu0 0.0
    %1746 = vmatprep.subr.mxu0 0.0
    %1747 = vmatpush2.msra.mxu0 0.0
    %1748 = vmatprep.subr.mxu0 0.0
    %1749 = vmatpush2.msra.mxu0 0.0
    %1750 = vmatprep.subr.mxu0 0.0
    %1751 = vmatpush2.msra.mxu0 0.0
    %1752 = vmatprep.subr.mxu0 0.0
    %1753 = vmatpush2.msra.mxu0 0.0
    %1754 = vmatprep.subr.mxu0 0.0
    %1755 = vmatpush2.msra.mxu0 0.0
    %1756 = vmatprep.subr.mxu0 0.0
    %1757 = vmatpush2.msra.mxu0 0.0
    %1758 = vmatprep.mubr.f32.mxu0 0.0
    %1759 = vmatmul.mubr.f32.gmra.mxu0 %v1692
    %v1760 = vpop.f32.mrf.mxu0
    %v1761 = vadd.f32 %v1689, %v1760
    %v1762 = vpop.f32.mrf.mxu0
    %1763 = vdwg.mxu0
    %v1764 = vcombine.low %v561, %v585
    %v1765 = vcombine.low %v599, %v607
    %v1766 = vcombine.low %v608, %v592
    %v1768 = vunpack.c.l.s4 1966171168
    %v1769 = vunpack.c.0.s8 %v1768
    %v1770 = vlaneseq
    %v1771 = vshrl.u32 %v1770, 7
    %v1772 = vsub.s32 %v1769, %v1771
    %v1773 = vrot.slane %v1764, %v1772
    %v1775 = vunpack.c.l.s4 1966171168
    %v1776 = vunpack.c.0.s8 %v1775
    %v1777 = vlaneseq
    %v1778 = vshrl.u32 %v1777, 7
    %v1779 = vsub.s32 %v1776, %v1778
    %v1780 = vrot.slane %v1765, %v1779
    %v1782 = vunpack.c.l.s4 1966171168
    %v1783 = vunpack.c.0.s8 %v1782
    %v1784 = vlaneseq
    %v1785 = vshrl.u32 %v1784, 7
    %v1786 = vsub.s32 %v1783, %v1785
    %v1787 = vrot.slane %v1766, %v1786
    %v1789 = vunpack.c.l.s4 1966171168
    %v1790 = vunpack.c.0.s8 %v1789
    %v1791 = vlaneseq
    %v1792 = vshrl.u32 %v1791, 7
    %v1793 = vsub.s32 %v1790, %v1792
    %v1794 = vrot.slane %v606, %v1793
    %v1795 = vcombine.low %v1773, %v1780
    %v1796 = vcombine.low %v1787, %v1794
    %v1798 = vunpack.c.l.s4 1966171168
    %v1799 = vunpack.c.0.s8 %v1798
    %v1800 = vlaneseq
    %v1801 = vshrl.u32 %v1800, 7
    %v1802 = vsub.s32 %v1799, %v1801
    %v1803 = vrot.slane %v1795, %v1802
    %v1805 = vunpack.c.l.s4 1966171168
    %v1806 = vunpack.c.0.s8 %v1805
    %v1807 = vlaneseq
    %v1808 = vshrl.u32 %v1807, 7
    %v1809 = vsub.s32 %v1806, %v1808
    %v1810 = vrot.slane %v1796, %v1809
    %v1811 = vcombine.low %v1803, %v1810
    %v1812 = vsel %vm722, %v1811, 0
    %1814 = vmatprep.subr.mxu0 0.0
    %1815 = vmatpush1.msra.mxu0 0.0
    %1816 = vmatprep.subr.mxu0 0.0
    %1817 = vmatpush1.msra.mxu0 0.0
    %1818 = vmatprep.subr.mxu0 0.0
    %1819 = vmatpush1.msra.mxu0 0.0
    %1820 = vmatprep.subr.mxu0 0.0
    %1821 = vmatpush1.msra.mxu0 0.0
    %1822 = vmatprep.subr.mxu0 0.0
    %1823 = vmatpush1.msra.mxu0 0.0
    %1824 = vmatprep.subr.mxu0 0.0
    %1825 = vmatpush1.msra.mxu0 0.0
    %1826 = vmatprep.subr.mxu0 0.0
    %1827 = vmatpush1.msra.mxu0 0.0
    %1828 = vmatprep.subr.mxu0 0.0
    %1829 = vmatpush1.msra.mxu0 0.0
    %1830 = vmatprep.subr.mxu0 0.0
    %1831 = vmatpush1.msra.mxu0 0.0
    %1832 = vmatprep.subr.mxu0 0.0
    %1833 = vmatpush1.msra.mxu0 0.0
    %1834 = vmatprep.subr.mxu0 0.0
    %1835 = vmatpush1.msra.mxu0 0.0
    %1836 = vmatprep.subr.mxu0 0.0
    %1837 = vmatpush1.msra.mxu0 0.0
    %1838 = vmatprep.subr.mxu0 0.0
    %1839 = vmatpush1.msra.mxu0 %v628
    %1840 = vmatprep.subr.mxu0 0.0
    %1841 = vmatpush1.msra.mxu0 %v627
    %1842 = vmatprep.subr.mxu0 0.0
    %1843 = vmatpush1.msra.mxu0 %v626
    %1844 = vmatprep.subr.mxu0 0.0
    %1845 = vmatpush1.msra.mxu0 %v625
    %1846 = vmatprep.subr.mxu0 0.0
    %1847 = vmatpush2.msra.mxu0 0.0
    %1848 = vmatprep.subr.mxu0 0.0
    %1849 = vmatpush2.msra.mxu0 0.0
    %1850 = vmatprep.subr.mxu0 0.0
    %1851 = vmatpush2.msra.mxu0 0.0
    %1852 = vmatprep.subr.mxu0 0.0
    %1853 = vmatpush2.msra.mxu0 0.0
    %1854 = vmatprep.subr.mxu0 0.0
    %1855 = vmatpush2.msra.mxu0 0.0
    %1856 = vmatprep.subr.mxu0 0.0
    %1857 = vmatpush2.msra.mxu0 0.0
    %1858 = vmatprep.subr.mxu0 0.0
    %1859 = vmatpush2.msra.mxu0 0.0
    %1860 = vmatprep.subr.mxu0 0.0
    %1861 = vmatpush2.msra.mxu0 0.0
    %1862 = vmatprep.subr.mxu0 0.0
    %1863 = vmatpush2.msra.mxu0 0.0
    %1864 = vmatprep.subr.mxu0 0.0
    %1865 = vmatpush2.msra.mxu0 0.0
    %1866 = vmatprep.subr.mxu0 0.0
    %1867 = vmatpush2.msra.mxu0 0.0
    %1868 = vmatprep.subr.mxu0 0.0
    %1869 = vmatpush2.msra.mxu0 0.0
    %1870 = vmatprep.subr.mxu0 0.0
    %1871 = vmatpush2.msra.mxu0 0.0
    %1872 = vmatprep.subr.mxu0 0.0
    %1873 = vmatpush2.msra.mxu0 0.0
    %1874 = vmatprep.subr.mxu0 0.0
    %1875 = vmatpush2.msra.mxu0 0.0
    %1876 = vmatprep.subr.mxu0 0.0
    %1877 = vmatpush2.msra.mxu0 0.0
    %1878 = vmatprep.mubr.f32.mxu0 0.0
    %1879 = vmatmul.mubr.f32.gmra.mxu0 %v1812
    %v1880 = vpop.f32.mrf.mxu0
    %v1881 = vadd.f32 %v657, %v1880
    %v1882 = vpop.f32.mrf.mxu0
    %1883 = vdwg.mxu0
    %1884 = vmatprep.subr.mxu0 0.0
    %1885 = vmatpush1.msra.mxu0 0.0
    %1886 = vmatprep.subr.mxu0 0.0
    %1887 = vmatpush1.msra.mxu0 0.0
    %1888 = vmatprep.subr.mxu0 0.0
    %1889 = vmatpush1.msra.mxu0 0.0
    %1890 = vmatprep.subr.mxu0 0.0
    %1891 = vmatpush1.msra.mxu0 0.0
    %1892 = vmatprep.subr.mxu0 0.0
    %1893 = vmatpush1.msra.mxu0 0.0
    %1894 = vmatprep.subr.mxu0 0.0
    %1895 = vmatpush1.msra.mxu0 0.0
    %1896 = vmatprep.subr.mxu0 0.0
    %1897 = vmatpush1.msra.mxu0 0.0
    %1898 = vmatprep.subr.mxu0 0.0
    %1899 = vmatpush1.msra.mxu0 0.0
    %1900 = vmatprep.subr.mxu0 0.0
    %1901 = vmatpush1.msra.mxu0 0.0
    %1902 = vmatprep.subr.mxu0 0.0
    %1903 = vmatpush1.msra.mxu0 0.0
    %1904 = vmatprep.subr.mxu0 0.0
    %1905 = vmatpush1.msra.mxu0 0.0
    %1906 = vmatprep.subr.mxu0 0.0
    %1907 = vmatpush1.msra.mxu0 0.0
    %1908 = vmatprep.subr.mxu0 0.0
    %1909 = vmatpush1.msra.mxu0 %v632
    %1910 = vmatprep.subr.mxu0 0.0
    %1911 = vmatpush1.msra.mxu0 %v631
    %1912 = vmatprep.subr.mxu0 0.0
    %1913 = vmatpush1.msra.mxu0 %v630
    %1914 = vmatprep.subr.mxu0 0.0
    %1915 = vmatpush1.msra.mxu0 %v629
    %1916 = vmatprep.subr.mxu0 0.0
    %1917 = vmatpush2.msra.mxu0 0.0
    %1918 = vmatprep.subr.mxu0 0.0
    %1919 = vmatpush2.msra.mxu0 0.0
    %1920 = vmatprep.subr.mxu0 0.0
    %1921 = vmatpush2.msra.mxu0 0.0
    %1922 = vmatprep.subr.mxu0 0.0
    %1923 = vmatpush2.msra.mxu0 0.0
    %1924 = vmatprep.subr.mxu0 0.0
    %1925 = vmatpush2.msra.mxu0 0.0
    %1926 = vmatprep.subr.mxu0 0.0
    %1927 = vmatpush2.msra.mxu0 0.0
    %1928 = vmatprep.subr.mxu0 0.0
    %1929 = vmatpush2.msra.mxu0 0.0
    %1930 = vmatprep.subr.mxu0 0.0
    %1931 = vmatpush2.msra.mxu0 0.0
    %1932 = vmatprep.subr.mxu0 0.0
    %1933 = vmatpush2.msra.mxu0 0.0
    %1934 = vmatprep.subr.mxu0 0.0
    %1935 = vmatpush2.msra.mxu0 0.0
    %1936 = vmatprep.subr.mxu0 0.0
    %1937 = vmatpush2.msra.mxu0 0.0
    %1938 = vmatprep.subr.mxu0 0.0
    %1939 = vmatpush2.msra.mxu0 0.0
    %1940 = vmatprep.subr.mxu0 0.0
    %1941 = vmatpush2.msra.mxu0 0.0
    %1942 = vmatprep.subr.mxu0 0.0
    %1943 = vmatpush2.msra.mxu0 0.0
    %1944 = vmatprep.subr.mxu0 0.0
    %1945 = vmatpush2.msra.mxu0 0.0
    %1946 = vmatprep.subr.mxu0 0.0
    %1947 = vmatpush2.msra.mxu0 0.0
    %1948 = vmatprep.mubr.f32.mxu0 0.0
    %1949 = vmatmul.mubr.f32.gmra.mxu0 %v1812
    %v1950 = vpop.f32.mrf.mxu0
    %v1951 = vadd.f32 %v661, %v1950
    %v1952 = vpop.f32.mrf.mxu0
    %1953 = vdwg.mxu0
    %1954 = vmatprep.subr.mxu0 0.0
    %1955 = vmatpush1.msra.mxu0 0.0
    %1956 = vmatprep.subr.mxu0 0.0
    %1957 = vmatpush1.msra.mxu0 0.0
    %1958 = vmatprep.subr.mxu0 0.0
    %1959 = vmatpush1.msra.mxu0 0.0
    %1960 = vmatprep.subr.mxu0 0.0
    %1961 = vmatpush1.msra.mxu0 0.0
    %1962 = vmatprep.subr.mxu0 0.0
    %1963 = vmatpush1.msra.mxu0 0.0
    %1964 = vmatprep.subr.mxu0 0.0
    %1965 = vmatpush1.msra.mxu0 0.0
    %1966 = vmatprep.subr.mxu0 0.0
    %1967 = vmatpush1.msra.mxu0 0.0
    %1968 = vmatprep.subr.mxu0 0.0
    %1969 = vmatpush1.msra.mxu0 0.0
    %1970 = vmatprep.subr.mxu0 0.0
    %1971 = vmatpush1.msra.mxu0 0.0
    %1972 = vmatprep.subr.mxu0 0.0
    %1973 = vmatpush1.msra.mxu0 0.0
    %1974 = vmatprep.subr.mxu0 0.0
    %1975 = vmatpush1.msra.mxu0 0.0
    %1976 = vmatprep.subr.mxu0 0.0
    %1977 = vmatpush1.msra.mxu0 0.0
    %1978 = vmatprep.subr.mxu0 0.0
    %1979 = vmatpush1.msra.mxu0 %v636
    %1980 = vmatprep.subr.mxu0 0.0
    %1981 = vmatpush1.msra.mxu0 %v635
    %1982 = vmatprep.subr.mxu0 0.0
    %1983 = vmatpush1.msra.mxu0 %v634
    %1984 = vmatprep.subr.mxu0 0.0
    %1985 = vmatpush1.msra.mxu0 %v633
    %1986 = vmatprep.subr.mxu0 0.0
    %1987 = vmatpush2.msra.mxu0 0.0
    %1988 = vmatprep.subr.mxu0 0.0
    %1989 = vmatpush2.msra.mxu0 0.0
    %1990 = vmatprep.subr.mxu0 0.0
    %1991 = vmatpush2.msra.mxu0 0.0
    %1992 = vmatprep.subr.mxu0 0.0
    %1993 = vmatpush2.msra.mxu0 0.0
    %1994 = vmatprep.subr.mxu0 0.0
    %1995 = vmatpush2.msra.mxu0 0.0
    %1996 = vmatprep.subr.mxu0 0.0
    %1997 = vmatpush2.msra.mxu0 0.0
    %1998 = vmatprep.subr.mxu0 0.0
    %1999 = vmatpush2.msra.mxu0 0.0
    %2000 = vmatprep.subr.mxu0 0.0
    %2001 = vmatpush2.msra.mxu0 0.0
    %2002 = vmatprep.subr.mxu0 0.0
    %2003 = vmatpush2.msra.mxu0 0.0
    %2004 = vmatprep.subr.mxu0 0.0
    %2005 = vmatpush2.msra.mxu0 0.0
    %2006 = vmatprep.subr.mxu0 0.0
    %2007 = vmatpush2.msra.mxu0 0.0
    %2008 = vmatprep.subr.mxu0 0.0
    %2009 = vmatpush2.msra.mxu0 0.0
    %2010 = vmatprep.subr.mxu0 0.0
    %2011 = vmatpush2.msra.mxu0 0.0
    %2012 = vmatprep.subr.mxu0 0.0
    %2013 = vmatpush2.msra.mxu0 0.0
    %2014 = vmatprep.subr.mxu0 0.0
    %2015 = vmatpush2.msra.mxu0 0.0
    %2016 = vmatprep.subr.mxu0 0.0
    %2017 = vmatpush2.msra.mxu0 0.0
    %2018 = vmatprep.mubr.f32.mxu0 0.0
    %2019 = vmatmul.mubr.f32.gmra.mxu0 %v1812
    %v2020 = vpop.f32.mrf.mxu0
    %v2021 = vadd.f32 %v665, %v2020
    %v2022 = vpop.f32.mrf.mxu0
    %2023 = vdwg.mxu0
    %2024 = vmatprep.subr.mxu0 0.0
    %2025 = vmatpush1.msra.mxu0 0.0
    %2026 = vmatprep.subr.mxu0 0.0
    %2027 = vmatpush1.msra.mxu0 0.0
    %2028 = vmatprep.subr.mxu0 0.0
    %2029 = vmatpush1.msra.mxu0 0.0
    %2030 = vmatprep.subr.mxu0 0.0
    %2031 = vmatpush1.msra.mxu0 0.0
    %2032 = vmatprep.subr.mxu0 0.0
    %2033 = vmatpush1.msra.mxu0 0.0
    %2034 = vmatprep.subr.mxu0 0.0
    %2035 = vmatpush1.msra.mxu0 0.0
    %2036 = vmatprep.subr.mxu0 0.0
    %2037 = vmatpush1.msra.mxu0 0.0
    %2038 = vmatprep.subr.mxu0 0.0
    %2039 = vmatpush1.msra.mxu0 0.0
    %2040 = vmatprep.subr.mxu0 0.0
    %2041 = vmatpush1.msra.mxu0 0.0
    %2042 = vmatprep.subr.mxu0 0.0
    %2043 = vmatpush1.msra.mxu0 0.0
    %2044 = vmatprep.subr.mxu0 0.0
    %2045 = vmatpush1.msra.mxu0 0.0
    %2046 = vmatprep.subr.mxu0 0.0
    %2047 = vmatpush1.msra.mxu0 0.0
    %2048 = vmatprep.subr.mxu0 0.0
    %2049 = vmatpush1.msra.mxu0 %v640
    %2050 = vmatprep.subr.mxu0 0.0
    %2051 = vmatpush1.msra.mxu0 %v639
    %2052 = vmatprep.subr.mxu0 0.0
    %2053 = vmatpush1.msra.mxu0 %v638
    %2054 = vmatprep.subr.mxu0 0.0
    %2055 = vmatpush1.msra.mxu0 %v637
    %2056 = vmatprep.subr.mxu0 0.0
    %2057 = vmatpush2.msra.mxu0 0.0
    %2058 = vmatprep.subr.mxu0 0.0
    %2059 = vmatpush2.msra.mxu0 0.0
    %2060 = vmatprep.subr.mxu0 0.0
    %2061 = vmatpush2.msra.mxu0 0.0
    %2062 = vmatprep.subr.mxu0 0.0
    %2063 = vmatpush2.msra.mxu0 0.0
    %2064 = vmatprep.subr.mxu0 0.0
    %2065 = vmatpush2.msra.mxu0 0.0
    %2066 = vmatprep.subr.mxu0 0.0
    %2067 = vmatpush2.msra.mxu0 0.0
    %2068 = vmatprep.subr.mxu0 0.0
    %2069 = vmatpush2.msra.mxu0 0.0
    %2070 = vmatprep.subr.mxu0 0.0
    %2071 = vmatpush2.msra.mxu0 0.0
    %2072 = vmatprep.subr.mxu0 0.0
    %2073 = vmatpush2.msra.mxu0 0.0
    %2074 = vmatprep.subr.mxu0 0.0
    %2075 = vmatpush2.msra.mxu0 0.0
    %2076 = vmatprep.subr.mxu0 0.0
    %2077 = vmatpush2.msra.mxu0 0.0
    %2078 = vmatprep.subr.mxu0 0.0
    %2079 = vmatpush2.msra.mxu0 0.0
    %2080 = vmatprep.subr.mxu0 0.0
    %2081 = vmatpush2.msra.mxu0 0.0
    %2082 = vmatprep.subr.mxu0 0.0
    %2083 = vmatpush2.msra.mxu0 0.0
    %2084 = vmatprep.subr.mxu0 0.0
    %2085 = vmatpush2.msra.mxu0 0.0
    %2086 = vmatprep.subr.mxu0 0.0
    %2087 = vmatpush2.msra.mxu0 0.0
    %2088 = vmatprep.mubr.f32.mxu0 0.0
    %2089 = vmatmul.mubr.f32.gmra.mxu0 %v1812
    %v2090 = vpop.f32.mrf.mxu0
    %v2091 = vadd.f32 %v669, %v2090
    %v2092 = vpop.f32.mrf.mxu0
    %2093 = vdwg.mxu0
    %2095 = vrot.lane.b32.xlu0 %v1881, 120
    %v2096 = vpop.permute.xlu0 %2095
    %v2097 = vsel %vm1008, %v1881, 0
    %v2099 = vsel %vm1008, %v2096, 0
    %2101 = vmatprep.subr.mxu0 0.0
    %2102 = vmatpush1.xpose.msra.mxu0 0.0
    %2103 = vmatprep.subr.mxu0 0.0
    %2104 = vmatpush1.xpose.msra.mxu0 0.0
    %2105 = vmatprep.subr.mxu0 0.0
    %2106 = vmatpush1.xpose.msra.mxu0 0.0
    %2107 = vmatprep.subr.mxu0 0.0
    %2108 = vmatpush1.xpose.msra.mxu0 0.0
    %2109 = vmatprep.subr.mxu0 0.0
    %2110 = vmatpush1.xpose.msra.mxu0 0.0
    %2111 = vmatprep.subr.mxu0 0.0
    %2112 = vmatpush1.xpose.msra.mxu0 0.0
    %2113 = vmatprep.subr.mxu0 0.0
    %2114 = vmatpush1.xpose.msra.mxu0 0.0
    %2115 = vmatprep.subr.mxu0 0.0
    %2116 = vmatpush1.xpose.msra.mxu0 0.0
    %2117 = vmatprep.subr.mxu0 0.0
    %2118 = vmatpush1.xpose.msra.mxu0 0.0
    %2119 = vmatprep.subr.mxu0 0.0
    %2120 = vmatpush1.xpose.msra.mxu0 0.0
    %2121 = vmatprep.subr.mxu0 0.0
    %2122 = vmatpush1.xpose.msra.mxu0 0.0
    %2123 = vmatprep.subr.mxu0 0.0
    %2124 = vmatpush1.xpose.msra.mxu0 0.0
    %2125 = vmatprep.subr.mxu0 0.0
    %2126 = vmatpush1.xpose.msra.mxu0 0.0
    %2127 = vmatprep.subr.mxu0 0.0
    %2128 = vmatpush1.xpose.msra.mxu0 0.0
    %2129 = vmatprep.subr.mxu0 0.0
    %2130 = vmatpush1.xpose.msra.mxu0 0.0
    %2131 = vmatprep.subr.mxu0 0.0
    %2132 = vmatpush1.xpose.msra.mxu0 %v2099
    %2133 = vmatprep.subr.mxu0 0.0
    %2134 = vmatpush2.xpose.msra.mxu0 0.0
    %2135 = vmatprep.subr.mxu0 0.0
    %2136 = vmatpush2.xpose.msra.mxu0 0.0
    %2137 = vmatprep.subr.mxu0 0.0
    %2138 = vmatpush2.xpose.msra.mxu0 0.0
    %2139 = vmatprep.subr.mxu0 0.0
    %2140 = vmatpush2.xpose.msra.mxu0 0.0
    %2141 = vmatprep.subr.mxu0 0.0
    %2142 = vmatpush2.xpose.msra.mxu0 0.0
    %2143 = vmatprep.subr.mxu0 0.0
    %2144 = vmatpush2.xpose.msra.mxu0 0.0
    %2145 = vmatprep.subr.mxu0 0.0
    %2146 = vmatpush2.xpose.msra.mxu0 0.0
    %2147 = vmatprep.subr.mxu0 0.0
    %2148 = vmatpush2.xpose.msra.mxu0 0.0
    %2149 = vmatprep.subr.mxu0 0.0
    %2150 = vmatpush2.xpose.msra.mxu0 0.0
    %2151 = vmatprep.subr.mxu0 0.0
    %2152 = vmatpush2.xpose.msra.mxu0 0.0
    %2153 = vmatprep.subr.mxu0 0.0
    %2154 = vmatpush2.xpose.msra.mxu0 0.0
    %2155 = vmatprep.subr.mxu0 0.0
    %2156 = vmatpush2.xpose.msra.mxu0 0.0
    %2157 = vmatprep.subr.mxu0 0.0
    %2158 = vmatpush2.xpose.msra.mxu0 0.0
    %2159 = vmatprep.subr.mxu0 0.0
    %2160 = vmatpush2.xpose.msra.mxu0 0.0
    %2161 = vmatprep.subr.mxu0 0.0
    %2162 = vmatpush2.xpose.msra.mxu0 0.0
    %2163 = vmatprep.subr.mxu0 0.0
    %2164 = vmatpush2.xpose.msra.mxu0 0.0
    %2165 = vmatprep.mubr.f32.mxu0 0.0
    %2166 = vmatmul.mubr.f32.gmra.mxu0 %v2097
    %v2167 = vpop.f32.mrf.mxu0
    %v2168 = vadd.f32 0.0, %v2167
    %v2169 = vpop.f32.mrf.mxu0
    %2170 = vdwg.mxu0
    %2172 = vrot.lane.b32.xlu0 %v1951, 120
    %v2173 = vpop.permute.xlu0 %2172
    %v2174 = vsel %vm1008, %v1951, 0
    %v2176 = vsel %vm1008, %v2173, 0
    %2178 = vmatprep.subr.mxu0 0.0
    %2179 = vmatpush1.xpose.msra.mxu0 0.0
    %2180 = vmatprep.subr.mxu0 0.0
    %2181 = vmatpush1.xpose.msra.mxu0 0.0
    %2182 = vmatprep.subr.mxu0 0.0
    %2183 = vmatpush1.xpose.msra.mxu0 0.0
    %2184 = vmatprep.subr.mxu0 0.0
    %2185 = vmatpush1.xpose.msra.mxu0 0.0
    %2186 = vmatprep.subr.mxu0 0.0
    %2187 = vmatpush1.xpose.msra.mxu0 0.0
    %2188 = vmatprep.subr.mxu0 0.0
    %2189 = vmatpush1.xpose.msra.mxu0 0.0
    %2190 = vmatprep.subr.mxu0 0.0
    %2191 = vmatpush1.xpose.msra.mxu0 0.0
    %2192 = vmatprep.subr.mxu0 0.0
    %2193 = vmatpush1.xpose.msra.mxu0 0.0
    %2194 = vmatprep.subr.mxu0 0.0
    %2195 = vmatpush1.xpose.msra.mxu0 0.0
    %2196 = vmatprep.subr.mxu0 0.0
    %2197 = vmatpush1.xpose.msra.mxu0 0.0
    %2198 = vmatprep.subr.mxu0 0.0
    %2199 = vmatpush1.xpose.msra.mxu0 0.0
    %2200 = vmatprep.subr.mxu0 0.0
    %2201 = vmatpush1.xpose.msra.mxu0 0.0
    %2202 = vmatprep.subr.mxu0 0.0
    %2203 = vmatpush1.xpose.msra.mxu0 0.0
    %2204 = vmatprep.subr.mxu0 0.0
    %2205 = vmatpush1.xpose.msra.mxu0 0.0
    %2206 = vmatprep.subr.mxu0 0.0
    %2207 = vmatpush1.xpose.msra.mxu0 0.0
    %2208 = vmatprep.subr.mxu0 0.0
    %2209 = vmatpush1.xpose.msra.mxu0 %v2176
    %2210 = vmatprep.subr.mxu0 0.0
    %2211 = vmatpush2.xpose.msra.mxu0 0.0
    %2212 = vmatprep.subr.mxu0 0.0
    %2213 = vmatpush2.xpose.msra.mxu0 0.0
    %2214 = vmatprep.subr.mxu0 0.0
    %2215 = vmatpush2.xpose.msra.mxu0 0.0
    %2216 = vmatprep.subr.mxu0 0.0
    %2217 = vmatpush2.xpose.msra.mxu0 0.0
    %2218 = vmatprep.subr.mxu0 0.0
    %2219 = vmatpush2.xpose.msra.mxu0 0.0
    %2220 = vmatprep.subr.mxu0 0.0
    %2221 = vmatpush2.xpose.msra.mxu0 0.0
    %2222 = vmatprep.subr.mxu0 0.0
    %2223 = vmatpush2.xpose.msra.mxu0 0.0
    %2224 = vmatprep.subr.mxu0 0.0
    %2225 = vmatpush2.xpose.msra.mxu0 0.0
    %2226 = vmatprep.subr.mxu0 0.0
    %2227 = vmatpush2.xpose.msra.mxu0 0.0
    %2228 = vmatprep.subr.mxu0 0.0
    %2229 = vmatpush2.xpose.msra.mxu0 0.0
    %2230 = vmatprep.subr.mxu0 0.0
    %2231 = vmatpush2.xpose.msra.mxu0 0.0
    %2232 = vmatprep.subr.mxu0 0.0
    %2233 = vmatpush2.xpose.msra.mxu0 0.0
    %2234 = vmatprep.subr.mxu0 0.0
    %2235 = vmatpush2.xpose.msra.mxu0 0.0
    %2236 = vmatprep.subr.mxu0 0.0
    %2237 = vmatpush2.xpose.msra.mxu0 0.0
    %2238 = vmatprep.subr.mxu0 0.0
    %2239 = vmatpush2.xpose.msra.mxu0 0.0
    %2240 = vmatprep.subr.mxu0 0.0
    %2241 = vmatpush2.xpose.msra.mxu0 0.0
    %2242 = vmatprep.mubr.f32.mxu0 0.0
    %2243 = vmatmul.mubr.f32.gmra.mxu0 %v2174
    %v2244 = vpop.f32.mrf.mxu0
    %v2245 = vadd.f32 0.0, %v2244
    %v2246 = vpop.f32.mrf.mxu0
    %2247 = vdwg.mxu0
    %2249 = vrot.lane.b32.xlu0 %v2021, 120
    %v2250 = vpop.permute.xlu0 %2249
    %v2251 = vsel %vm1008, %v2021, 0
    %v2253 = vsel %vm1008, %v2250, 0
    %2255 = vmatprep.subr.mxu0 0.0
    %2256 = vmatpush1.xpose.msra.mxu0 0.0
    %2257 = vmatprep.subr.mxu0 0.0
    %2258 = vmatpush1.xpose.msra.mxu0 0.0
    %2259 = vmatprep.subr.mxu0 0.0
    %2260 = vmatpush1.xpose.msra.mxu0 0.0
    %2261 = vmatprep.subr.mxu0 0.0
    %2262 = vmatpush1.xpose.msra.mxu0 0.0
    %2263 = vmatprep.subr.mxu0 0.0
    %2264 = vmatpush1.xpose.msra.mxu0 0.0
    %2265 = vmatprep.subr.mxu0 0.0
    %2266 = vmatpush1.xpose.msra.mxu0 0.0
    %2267 = vmatprep.subr.mxu0 0.0
    %2268 = vmatpush1.xpose.msra.mxu0 0.0
    %2269 = vmatprep.subr.mxu0 0.0
    %2270 = vmatpush1.xpose.msra.mxu0 0.0
    %2271 = vmatprep.subr.mxu0 0.0
    %2272 = vmatpush1.xpose.msra.mxu0 0.0
    %2273 = vmatprep.subr.mxu0 0.0
    %2274 = vmatpush1.xpose.msra.mxu0 0.0
    %2275 = vmatprep.subr.mxu0 0.0
    %2276 = vmatpush1.xpose.msra.mxu0 0.0
    %2277 = vmatprep.subr.mxu0 0.0
    %2278 = vmatpush1.xpose.msra.mxu0 0.0
    %2279 = vmatprep.subr.mxu0 0.0
    %2280 = vmatpush1.xpose.msra.mxu0 0.0
    %2281 = vmatprep.subr.mxu0 0.0
    %2282 = vmatpush1.xpose.msra.mxu0 0.0
    %2283 = vmatprep.subr.mxu0 0.0
    %2284 = vmatpush1.xpose.msra.mxu0 0.0
    %2285 = vmatprep.subr.mxu0 0.0
    %2286 = vmatpush1.xpose.msra.mxu0 %v2253
    %2287 = vmatprep.subr.mxu0 0.0
    %2288 = vmatpush2.xpose.msra.mxu0 0.0
    %2289 = vmatprep.subr.mxu0 0.0
    %2290 = vmatpush2.xpose.msra.mxu0 0.0
    %2291 = vmatprep.subr.mxu0 0.0
    %2292 = vmatpush2.xpose.msra.mxu0 0.0
    %2293 = vmatprep.subr.mxu0 0.0
    %2294 = vmatpush2.xpose.msra.mxu0 0.0
    %2295 = vmatprep.subr.mxu0 0.0
    %2296 = vmatpush2.xpose.msra.mxu0 0.0
    %2297 = vmatprep.subr.mxu0 0.0
    %2298 = vmatpush2.xpose.msra.mxu0 0.0
    %2299 = vmatprep.subr.mxu0 0.0
    %2300 = vmatpush2.xpose.msra.mxu0 0.0
    %2301 = vmatprep.subr.mxu0 0.0
    %2302 = vmatpush2.xpose.msra.mxu0 0.0
    %2303 = vmatprep.subr.mxu0 0.0
    %2304 = vmatpush2.xpose.msra.mxu0 0.0
    %2305 = vmatprep.subr.mxu0 0.0
    %2306 = vmatpush2.xpose.msra.mxu0 0.0
    %2307 = vmatprep.subr.mxu0 0.0
    %2308 = vmatpush2.xpose.msra.mxu0 0.0
    %2309 = vmatprep.subr.mxu0 0.0
    %2310 = vmatpush2.xpose.msra.mxu0 0.0
    %2311 = vmatprep.subr.mxu0 0.0
    %2312 = vmatpush2.xpose.msra.mxu0 0.0
    %2313 = vmatprep.subr.mxu0 0.0
    %2314 = vmatpush2.xpose.msra.mxu0 0.0
    %2315 = vmatprep.subr.mxu0 0.0
    %2316 = vmatpush2.xpose.msra.mxu0 0.0
    %2317 = vmatprep.subr.mxu0 0.0
    %2318 = vmatpush2.xpose.msra.mxu0 0.0
    %2319 = vmatprep.mubr.f32.mxu0 0.0
    %2320 = vmatmul.mubr.f32.gmra.mxu0 %v2251
    %v2321 = vpop.f32.mrf.mxu0
    %v2322 = vadd.f32 0.0, %v2321
    %v2323 = vpop.f32.mrf.mxu0
    %2324 = vdwg.mxu0
    %2326 = vrot.lane.b32.xlu0 %v2091, 120
    %v2327 = vpop.permute.xlu0 %2326
    %v2328 = vsel %vm1008, %v2091, 0
    %v2330 = vsel %vm1008, %v2327, 0
    %2332 = vmatprep.subr.mxu0 0.0
    %2333 = vmatpush1.xpose.msra.mxu0 0.0
    %2334 = vmatprep.subr.mxu0 0.0
    %2335 = vmatpush1.xpose.msra.mxu0 0.0
    %2336 = vmatprep.subr.mxu0 0.0
    %2337 = vmatpush1.xpose.msra.mxu0 0.0
    %2338 = vmatprep.subr.mxu0 0.0
    %2339 = vmatpush1.xpose.msra.mxu0 0.0
    %2340 = vmatprep.subr.mxu0 0.0
    %2341 = vmatpush1.xpose.msra.mxu0 0.0
    %2342 = vmatprep.subr.mxu0 0.0
    %2343 = vmatpush1.xpose.msra.mxu0 0.0
    %2344 = vmatprep.subr.mxu0 0.0
    %2345 = vmatpush1.xpose.msra.mxu0 0.0
    %2346 = vmatprep.subr.mxu0 0.0
    %2347 = vmatpush1.xpose.msra.mxu0 0.0
    %2348 = vmatprep.subr.mxu0 0.0
    %2349 = vmatpush1.xpose.msra.mxu0 0.0
    %2350 = vmatprep.subr.mxu0 0.0
    %2351 = vmatpush1.xpose.msra.mxu0 0.0
    %2352 = vmatprep.subr.mxu0 0.0
    %2353 = vmatpush1.xpose.msra.mxu0 0.0
    %2354 = vmatprep.subr.mxu0 0.0
    %2355 = vmatpush1.xpose.msra.mxu0 0.0
    %2356 = vmatprep.subr.mxu0 0.0
    %2357 = vmatpush1.xpose.msra.mxu0 0.0
    %2358 = vmatprep.subr.mxu0 0.0
    %2359 = vmatpush1.xpose.msra.mxu0 0.0
    %2360 = vmatprep.subr.mxu0 0.0
    %2361 = vmatpush1.xpose.msra.mxu0 0.0
    %2362 = vmatprep.subr.mxu0 0.0
    %2363 = vmatpush1.xpose.msra.mxu0 %v2330
    %2364 = vmatprep.subr.mxu0 0.0
    %2365 = vmatpush2.xpose.msra.mxu0 0.0
    %2366 = vmatprep.subr.mxu0 0.0
    %2367 = vmatpush2.xpose.msra.mxu0 0.0
    %2368 = vmatprep.subr.mxu0 0.0
    %2369 = vmatpush2.xpose.msra.mxu0 0.0
    %2370 = vmatprep.subr.mxu0 0.0
    %2371 = vmatpush2.xpose.msra.mxu0 0.0
    %2372 = vmatprep.subr.mxu0 0.0
    %2373 = vmatpush2.xpose.msra.mxu0 0.0
    %2374 = vmatprep.subr.mxu0 0.0
    %2375 = vmatpush2.xpose.msra.mxu0 0.0
    %2376 = vmatprep.subr.mxu0 0.0
    %2377 = vmatpush2.xpose.msra.mxu0 0.0
    %2378 = vmatprep.subr.mxu0 0.0
    %2379 = vmatpush2.xpose.msra.mxu0 0.0
    %2380 = vmatprep.subr.mxu0 0.0
    %2381 = vmatpush2.xpose.msra.mxu0 0.0
    %2382 = vmatprep.subr.mxu0 0.0
    %2383 = vmatpush2.xpose.msra.mxu0 0.0
    %2384 = vmatprep.subr.mxu0 0.0
    %2385 = vmatpush2.xpose.msra.mxu0 0.0
    %2386 = vmatprep.subr.mxu0 0.0
    %2387 = vmatpush2.xpose.msra.mxu0 0.0
    %2388 = vmatprep.subr.mxu0 0.0
    %2389 = vmatpush2.xpose.msra.mxu0 0.0
    %2390 = vmatprep.subr.mxu0 0.0
    %2391 = vmatpush2.xpose.msra.mxu0 0.0
    %2392 = vmatprep.subr.mxu0 0.0
    %2393 = vmatpush2.xpose.msra.mxu0 0.0
    %2394 = vmatprep.subr.mxu0 0.0
    %2395 = vmatpush2.xpose.msra.mxu0 0.0
    %2396 = vmatprep.mubr.f32.mxu0 0.0
    %2397 = vmatmul.mubr.f32.gmra.mxu0 %v2328
    %v2398 = vpop.f32.mrf.mxu0
    %v2399 = vadd.f32 0.0, %v2398
    %v2400 = vpop.f32.mrf.mxu0
    %2401 = vdwg.mxu0
    %v2402 = vsel %vm1314, %v2168, -inf
    %2403 = vmax.xlane.f32.xlu0 %v2402
    %v2404 = vpop.xlane.xlu0 %2403
    %v2405 = vsel %vm1314, %v2245, -inf
    %2406 = vmax.xlane.f32.xlu0 %v2405
    %v2407 = vpop.xlane.xlu0 %2406
    %v2408 = vsel %vm1314, %v2322, -inf
    %2409 = vmax.xlane.f32.xlu0 %v2408
    %v2410 = vpop.xlane.xlu0 %2409
    %v2411 = vsel %vm1314, %v2399, -inf
    %2412 = vmax.xlane.f32.xlu0 %v2411
    %v2413 = vpop.xlane.xlu0 %2412
    %v2414 = vsub.f32 %v2168, %v2404
    %v2415 = vsub.f32 %v2245, %v2407
    %v2416 = vsub.f32 %v2322, %v2410
    %v2417 = vsub.f32 %v2399, %v2413
    %v2418 = vmul.f32 %v2414, 1.442695
    %v2419 = vpow.pop %v2418
    %v2420 = vmul.f32 %v2415, 1.442695
    %v2421 = vpow.pop %v2420
    %v2422 = vmul.f32 %v2416, 1.442695
    %v2423 = vpow.pop %v2422
    %v2424 = vmul.f32 %v2417, 1.442695
    %v2425 = vpow.pop %v2424
    %v2426 = vsel %vm1314, %v2419, 0.0
    %2427 = vadd.xlane.f32.xlu0 %v2426
    %v2428 = vpop.xlane.xlu0 %2427
    %v2429 = vsel %vm1314, %v2421, 0.0
    %2430 = vadd.xlane.f32.xlu0 %v2429
    %v2431 = vpop.xlane.xlu0 %2430
    %v2432 = vsel %vm1314, %v2423, 0.0
    %2433 = vadd.xlane.f32.xlu0 %v2432
    %v2434 = vpop.xlane.xlu0 %2433
    %v2435 = vsel %vm1314, %v2425, 0.0
    %2436 = vadd.xlane.f32.xlu0 %v2435
    %v2437 = vpop.xlane.xlu0 %2436
    %v2438 = vrcp.pop %v2428
    %v2439 = vrcp.pop %v2431
    %v2440 = vrcp.pop %v2434
    %v2441 = vrcp.pop %v2437
    %v2442 = vmul.f32 %v2419, %v2438
    %v2443 = vmul.f32 %v2421, %v2439
    %v2444 = vmul.f32 %v2423, %v2440
    %v2445 = vmul.f32 %v2425, %v2441
    %2446 = vrot.lane.b32.xlu0 %v1881, 112
    %v2447 = vpop.permute.xlu0 %2446
    %v2449 = vsel %vm1361, %v2442, 0
    %v2451 = vsel %vm1365, %v2447, 0
    %2453 = vmatprep.subr.mxu0 0.0
    %2454 = vmatpush1.msra.mxu0 0.0
    %2455 = vmatprep.subr.mxu0 0.0
    %2456 = vmatpush1.msra.mxu0 0.0
    %2457 = vmatprep.subr.mxu0 0.0
    %2458 = vmatpush1.msra.mxu0 0.0
    %2459 = vmatprep.subr.mxu0 0.0
    %2460 = vmatpush1.msra.mxu0 0.0
    %2461 = vmatprep.subr.mxu0 0.0
    %2462 = vmatpush1.msra.mxu0 0.0
    %2463 = vmatprep.subr.mxu0 0.0
    %2464 = vmatpush1.msra.mxu0 0.0
    %2465 = vmatprep.subr.mxu0 0.0
    %2466 = vmatpush1.msra.mxu0 0.0
    %2467 = vmatprep.subr.mxu0 0.0
    %2468 = vmatpush1.msra.mxu0 0.0
    %2469 = vmatprep.subr.mxu0 0.0
    %2470 = vmatpush1.msra.mxu0 0.0
    %2471 = vmatprep.subr.mxu0 0.0
    %2472 = vmatpush1.msra.mxu0 0.0
    %2473 = vmatprep.subr.mxu0 0.0
    %2474 = vmatpush1.msra.mxu0 0.0
    %2475 = vmatprep.subr.mxu0 0.0
    %2476 = vmatpush1.msra.mxu0 0.0
    %2477 = vmatprep.subr.mxu0 0.0
    %2478 = vmatpush1.msra.mxu0 0.0
    %2479 = vmatprep.subr.mxu0 0.0
    %2480 = vmatpush1.msra.mxu0 0.0
    %2481 = vmatprep.subr.mxu0 0.0
    %2482 = vmatpush1.msra.mxu0 0.0
    %2483 = vmatprep.subr.mxu0 0.0
    %2484 = vmatpush1.msra.mxu0 %v2451
    %2485 = vmatprep.subr.mxu0 0.0
    %2486 = vmatpush2.msra.mxu0 0.0
    %2487 = vmatprep.subr.mxu0 0.0
    %2488 = vmatpush2.msra.mxu0 0.0
    %2489 = vmatprep.subr.mxu0 0.0
    %2490 = vmatpush2.msra.mxu0 0.0
    %2491 = vmatprep.subr.mxu0 0.0
    %2492 = vmatpush2.msra.mxu0 0.0
    %2493 = vmatprep.subr.mxu0 0.0
    %2494 = vmatpush2.msra.mxu0 0.0
    %2495 = vmatprep.subr.mxu0 0.0
    %2496 = vmatpush2.msra.mxu0 0.0
    %2497 = vmatprep.subr.mxu0 0.0
    %2498 = vmatpush2.msra.mxu0 0.0
    %2499 = vmatprep.subr.mxu0 0.0
    %2500 = vmatpush2.msra.mxu0 0.0
    %2501 = vmatprep.subr.mxu0 0.0
    %2502 = vmatpush2.msra.mxu0 0.0
    %2503 = vmatprep.subr.mxu0 0.0
    %2504 = vmatpush2.msra.mxu0 0.0
    %2505 = vmatprep.subr.mxu0 0.0
    %2506 = vmatpush2.msra.mxu0 0.0
    %2507 = vmatprep.subr.mxu0 0.0
    %2508 = vmatpush2.msra.mxu0 0.0
    %2509 = vmatprep.subr.mxu0 0.0
    %2510 = vmatpush2.msra.mxu0 0.0
    %2511 = vmatprep.subr.mxu0 0.0
    %2512 = vmatpush2.msra.mxu0 0.0
    %2513 = vmatprep.subr.mxu0 0.0
    %2514 = vmatpush2.msra.mxu0 0.0
    %2515 = vmatprep.subr.mxu0 0.0
    %2516 = vmatpush2.msra.mxu0 0.0
    %2517 = vmatprep.mubr.f32.mxu0 0.0
    %2518 = vmatmul.mubr.f32.gmra.mxu0 %v2449
    %v2519 = vpop.f32.mrf.mxu0
    %v2520 = vadd.f32 0.0, %v2519
    %v2521 = vpop.f32.mrf.mxu0
    %2522 = vdwg.mxu0
    %2523 = vrot.lane.b32.xlu0 %v1951, 112
    %v2524 = vpop.permute.xlu0 %2523
    %v2526 = vsel %vm1361, %v2443, 0
    %v2528 = vsel %vm1365, %v2524, 0
    %2530 = vmatprep.subr.mxu0 0.0
    %2531 = vmatpush1.msra.mxu0 0.0
    %2532 = vmatprep.subr.mxu0 0.0
    %2533 = vmatpush1.msra.mxu0 0.0
    %2534 = vmatprep.subr.mxu0 0.0
    %2535 = vmatpush1.msra.mxu0 0.0
    %2536 = vmatprep.subr.mxu0 0.0
    %2537 = vmatpush1.msra.mxu0 0.0
    %2538 = vmatprep.subr.mxu0 0.0
    %2539 = vmatpush1.msra.mxu0 0.0
    %2540 = vmatprep.subr.mxu0 0.0
    %2541 = vmatpush1.msra.mxu0 0.0
    %2542 = vmatprep.subr.mxu0 0.0
    %2543 = vmatpush1.msra.mxu0 0.0
    %2544 = vmatprep.subr.mxu0 0.0
    %2545 = vmatpush1.msra.mxu0 0.0
    %2546 = vmatprep.subr.mxu0 0.0
    %2547 = vmatpush1.msra.mxu0 0.0
    %2548 = vmatprep.subr.mxu0 0.0
    %2549 = vmatpush1.msra.mxu0 0.0
    %2550 = vmatprep.subr.mxu0 0.0
    %2551 = vmatpush1.msra.mxu0 0.0
    %2552 = vmatprep.subr.mxu0 0.0
    %2553 = vmatpush1.msra.mxu0 0.0
    %2554 = vmatprep.subr.mxu0 0.0
    %2555 = vmatpush1.msra.mxu0 0.0
    %2556 = vmatprep.subr.mxu0 0.0
    %2557 = vmatpush1.msra.mxu0 0.0
    %2558 = vmatprep.subr.mxu0 0.0
    %2559 = vmatpush1.msra.mxu0 0.0
    %2560 = vmatprep.subr.mxu0 0.0
    %2561 = vmatpush1.msra.mxu0 %v2528
    %2562 = vmatprep.subr.mxu0 0.0
    %2563 = vmatpush2.msra.mxu0 0.0
    %2564 = vmatprep.subr.mxu0 0.0
    %2565 = vmatpush2.msra.mxu0 0.0
    %2566 = vmatprep.subr.mxu0 0.0
    %2567 = vmatpush2.msra.mxu0 0.0
    %2568 = vmatprep.subr.mxu0 0.0
    %2569 = vmatpush2.msra.mxu0 0.0
    %2570 = vmatprep.subr.mxu0 0.0
    %2571 = vmatpush2.msra.mxu0 0.0
    %2572 = vmatprep.subr.mxu0 0.0
    %2573 = vmatpush2.msra.mxu0 0.0
    %2574 = vmatprep.subr.mxu0 0.0
    %2575 = vmatpush2.msra.mxu0 0.0
    %2576 = vmatprep.subr.mxu0 0.0
    %2577 = vmatpush2.msra.mxu0 0.0
    %2578 = vmatprep.subr.mxu0 0.0
    %2579 = vmatpush2.msra.mxu0 0.0
    %2580 = vmatprep.subr.mxu0 0.0
    %2581 = vmatpush2.msra.mxu0 0.0
    %2582 = vmatprep.subr.mxu0 0.0
    %2583 = vmatpush2.msra.mxu0 0.0
    %2584 = vmatprep.subr.mxu0 0.0
    %2585 = vmatpush2.msra.mxu0 0.0
    %2586 = vmatprep.subr.mxu0 0.0
    %2587 = vmatpush2.msra.mxu0 0.0
    %2588 = vmatprep.subr.mxu0 0.0
    %2589 = vmatpush2.msra.mxu0 0.0
    %2590 = vmatprep.subr.mxu0 0.0
    %2591 = vmatpush2.msra.mxu0 0.0
    %2592 = vmatprep.subr.mxu0 0.0
    %2593 = vmatpush2.msra.mxu0 0.0
    %2594 = vmatprep.mubr.f32.mxu0 0.0
    %2595 = vmatmul.mubr.f32.gmra.mxu0 %v2526
    %v2596 = vpop.f32.mrf.mxu0
    %v2597 = vadd.f32 0.0, %v2596
    %v2598 = vpop.f32.mrf.mxu0
    %2599 = vdwg.mxu0
    %2600 = vrot.lane.b32.xlu0 %v2021, 112
    %v2601 = vpop.permute.xlu0 %2600
    %v2603 = vsel %vm1361, %v2444, 0
    %v2605 = vsel %vm1365, %v2601, 0
    %2607 = vmatprep.subr.mxu0 0.0
    %2608 = vmatpush1.msra.mxu0 0.0
    %2609 = vmatprep.subr.mxu0 0.0
    %2610 = vmatpush1.msra.mxu0 0.0
    %2611 = vmatprep.subr.mxu0 0.0
    %2612 = vmatpush1.msra.mxu0 0.0
    %2613 = vmatprep.subr.mxu0 0.0
    %2614 = vmatpush1.msra.mxu0 0.0
    %2615 = vmatprep.subr.mxu0 0.0
    %2616 = vmatpush1.msra.mxu0 0.0
    %2617 = vmatprep.subr.mxu0 0.0
    %2618 = vmatpush1.msra.mxu0 0.0
    %2619 = vmatprep.subr.mxu0 0.0
    %2620 = vmatpush1.msra.mxu0 0.0
    %2621 = vmatprep.subr.mxu0 0.0
    %2622 = vmatpush1.msra.mxu0 0.0
    %2623 = vmatprep.subr.mxu0 0.0
    %2624 = vmatpush1.msra.mxu0 0.0
    %2625 = vmatprep.subr.mxu0 0.0
    %2626 = vmatpush1.msra.mxu0 0.0
    %2627 = vmatprep.subr.mxu0 0.0
    %2628 = vmatpush1.msra.mxu0 0.0
    %2629 = vmatprep.subr.mxu0 0.0
    %2630 = vmatpush1.msra.mxu0 0.0
    %2631 = vmatprep.subr.mxu0 0.0
    %2632 = vmatpush1.msra.mxu0 0.0
    %2633 = vmatprep.subr.mxu0 0.0
    %2634 = vmatpush1.msra.mxu0 0.0
    %2635 = vmatprep.subr.mxu0 0.0
    %2636 = vmatpush1.msra.mxu0 0.0
    %2637 = vmatprep.subr.mxu0 0.0
    %2638 = vmatpush1.msra.mxu0 %v2605
    %2639 = vmatprep.subr.mxu0 0.0
    %2640 = vmatpush2.msra.mxu0 0.0
    %2641 = vmatprep.subr.mxu0 0.0
    %2642 = vmatpush2.msra.mxu0 0.0
    %2643 = vmatprep.subr.mxu0 0.0
    %2644 = vmatpush2.msra.mxu0 0.0
    %2645 = vmatprep.subr.mxu0 0.0
    %2646 = vmatpush2.msra.mxu0 0.0
    %2647 = vmatprep.subr.mxu0 0.0
    %2648 = vmatpush2.msra.mxu0 0.0
    %2649 = vmatprep.subr.mxu0 0.0
    %2650 = vmatpush2.msra.mxu0 0.0
    %2651 = vmatprep.subr.mxu0 0.0
    %2652 = vmatpush2.msra.mxu0 0.0
    %2653 = vmatprep.subr.mxu0 0.0
    %2654 = vmatpush2.msra.mxu0 0.0
    %2655 = vmatprep.subr.mxu0 0.0
    %2656 = vmatpush2.msra.mxu0 0.0
    %2657 = vmatprep.subr.mxu0 0.0
    %2658 = vmatpush2.msra.mxu0 0.0
    %2659 = vmatprep.subr.mxu0 0.0
    %2660 = vmatpush2.msra.mxu0 0.0
    %2661 = vmatprep.subr.mxu0 0.0
    %2662 = vmatpush2.msra.mxu0 0.0
    %2663 = vmatprep.subr.mxu0 0.0
    %2664 = vmatpush2.msra.mxu0 0.0
    %2665 = vmatprep.subr.mxu0 0.0
    %2666 = vmatpush2.msra.mxu0 0.0
    %2667 = vmatprep.subr.mxu0 0.0
    %2668 = vmatpush2.msra.mxu0 0.0
    %2669 = vmatprep.subr.mxu0 0.0
    %2670 = vmatpush2.msra.mxu0 0.0
    %2671 = vmatprep.mubr.f32.mxu0 0.0
    %2672 = vmatmul.mubr.f32.gmra.mxu0 %v2603
    %v2673 = vpop.f32.mrf.mxu0
    %v2674 = vadd.f32 0.0, %v2673
    %v2675 = vpop.f32.mrf.mxu0
    %2676 = vdwg.mxu0
    %2677 = vrot.lane.b32.xlu0 %v2091, 112
    %v2678 = vpop.permute.xlu0 %2677
    %v2680 = vsel %vm1361, %v2445, 0
    %v2682 = vsel %vm1365, %v2678, 0
    %2684 = vmatprep.subr.mxu0 0.0
    %2685 = vmatpush1.msra.mxu0 0.0
    %2686 = vmatprep.subr.mxu0 0.0
    %2687 = vmatpush1.msra.mxu0 0.0
    %2688 = vmatprep.subr.mxu0 0.0
    %2689 = vmatpush1.msra.mxu0 0.0
    %2690 = vmatprep.subr.mxu0 0.0
    %2691 = vmatpush1.msra.mxu0 0.0
    %2692 = vmatprep.subr.mxu0 0.0
    %2693 = vmatpush1.msra.mxu0 0.0
    %2694 = vmatprep.subr.mxu0 0.0
    %2695 = vmatpush1.msra.mxu0 0.0
    %2696 = vmatprep.subr.mxu0 0.0
    %2697 = vmatpush1.msra.mxu0 0.0
    %2698 = vmatprep.subr.mxu0 0.0
    %2699 = vmatpush1.msra.mxu0 0.0
    %2700 = vmatprep.subr.mxu0 0.0
    %2701 = vmatpush1.msra.mxu0 0.0
    %2702 = vmatprep.subr.mxu0 0.0
    %2703 = vmatpush1.msra.mxu0 0.0
    %2704 = vmatprep.subr.mxu0 0.0
    %2705 = vmatpush1.msra.mxu0 0.0
    %2706 = vmatprep.subr.mxu0 0.0
    %2707 = vmatpush1.msra.mxu0 0.0
    %2708 = vmatprep.subr.mxu0 0.0
    %2709 = vmatpush1.msra.mxu0 0.0
    %2710 = vmatprep.subr.mxu0 0.0
    %2711 = vmatpush1.msra.mxu0 0.0
    %2712 = vmatprep.subr.mxu0 0.0
    %2713 = vmatpush1.msra.mxu0 0.0
    %2714 = vmatprep.subr.mxu0 0.0
    %2715 = vmatpush1.msra.mxu0 %v2682
    %2716 = vmatprep.subr.mxu0 0.0
    %2717 = vmatpush2.msra.mxu0 0.0
    %2718 = vmatprep.subr.mxu0 0.0
    %2719 = vmatpush2.msra.mxu0 0.0
    %2720 = vmatprep.subr.mxu0 0.0
    %2721 = vmatpush2.msra.mxu0 0.0
    %2722 = vmatprep.subr.mxu0 0.0
    %2723 = vmatpush2.msra.mxu0 0.0
    %2724 = vmatprep.subr.mxu0 0.0
    %2725 = vmatpush2.msra.mxu0 0.0
    %2726 = vmatprep.subr.mxu0 0.0
    %2727 = vmatpush2.msra.mxu0 0.0
    %2728 = vmatprep.subr.mxu0 0.0
    %2729 = vmatpush2.msra.mxu0 0.0
    %2730 = vmatprep.subr.mxu0 0.0
    %2731 = vmatpush2.msra.mxu0 0.0
    %2732 = vmatprep.subr.mxu0 0.0
    %2733 = vmatpush2.msra.mxu0 0.0
    %2734 = vmatprep.subr.mxu0 0.0
    %2735 = vmatpush2.msra.mxu0 0.0
    %2736 = vmatprep.subr.mxu0 0.0
    %2737 = vmatpush2.msra.mxu0 0.0
    %2738 = vmatprep.subr.mxu0 0.0
    %2739 = vmatpush2.msra.mxu0 0.0
    %2740 = vmatprep.subr.mxu0 0.0
    %2741 = vmatpush2.msra.mxu0 0.0
    %2742 = vmatprep.subr.mxu0 0.0
    %2743 = vmatpush2.msra.mxu0 0.0
    %2744 = vmatprep.subr.mxu0 0.0
    %2745 = vmatpush2.msra.mxu0 0.0
    %2746 = vmatprep.subr.mxu0 0.0
    %2747 = vmatpush2.msra.mxu0 0.0
    %2748 = vmatprep.mubr.f32.mxu0 0.0
    %2749 = vmatmul.mubr.f32.gmra.mxu0 %v2680
    %v2750 = vpop.f32.mrf.mxu0
    %v2751 = vadd.f32 0.0, %v2750
    %v2752 = vpop.f32.mrf.mxu0
    %2753 = vdwg.mxu0
    %2755 = vrot.lane.b32.xlu0 %v2597, 8
    %v2756 = vpop.permute.xlu0 %2755
    %2759 = vrot.lane.b32.xlu0 %v2674, 16
    %v2760 = vpop.permute.xlu0 %2759
    %2763 = vrot.lane.b32.xlu0 %v2751, 24
    %v2764 = vpop.permute.xlu0 %2763
    %v2766 = vsel %vm1008, %v2520, %v2756
    %v2767 = vsel %vm431, %v2766, %v2760
    %v2768 = vsel %vm1683, %v2767, %v2764
    %v2770 = vsel %vm722, %v2768, 0
    %2772 = vmatprep.subr.mxu0 0.0
    %2773 = vmatpush1.msra.mxu0 0.0
    %2774 = vmatprep.subr.mxu0 0.0
    %2775 = vmatpush1.msra.mxu0 0.0
    %2776 = vmatprep.subr.mxu0 0.0
    %2777 = vmatpush1.msra.mxu0 0.0
    %2778 = vmatprep.subr.mxu0 0.0
    %2779 = vmatpush1.msra.mxu0 0.0
    %2780 = vmatprep.subr.mxu0 0.0
    %2781 = vmatpush1.msra.mxu0 0.0
    %2782 = vmatprep.subr.mxu0 0.0
    %2783 = vmatpush1.msra.mxu0 0.0
    %2784 = vmatprep.subr.mxu0 0.0
    %2785 = vmatpush1.msra.mxu0 0.0
    %2786 = vmatprep.subr.mxu0 0.0
    %2787 = vmatpush1.msra.mxu0 0.0
    %2788 = vmatprep.subr.mxu0 0.0
    %2789 = vmatpush1.msra.mxu0 0.0
    %2790 = vmatprep.subr.mxu0 0.0
    %2791 = vmatpush1.msra.mxu0 0.0
    %2792 = vmatprep.subr.mxu0 0.0
    %2793 = vmatpush1.msra.mxu0 0.0
    %2794 = vmatprep.subr.mxu0 0.0
    %2795 = vmatpush1.msra.mxu0 0.0
    %2796 = vmatprep.subr.mxu0 0.0
    %2797 = vmatpush1.msra.mxu0 %v648
    %2798 = vmatprep.subr.mxu0 0.0
    %2799 = vmatpush1.msra.mxu0 %v647
    %2800 = vmatprep.subr.mxu0 0.0
    %2801 = vmatpush1.msra.mxu0 %v646
    %2802 = vmatprep.subr.mxu0 0.0
    %2803 = vmatpush1.msra.mxu0 %v645
    %2804 = vmatprep.subr.mxu0 0.0
    %2805 = vmatpush2.msra.mxu0 0.0
    %2806 = vmatprep.subr.mxu0 0.0
    %2807 = vmatpush2.msra.mxu0 0.0
    %2808 = vmatprep.subr.mxu0 0.0
    %2809 = vmatpush2.msra.mxu0 0.0
    %2810 = vmatprep.subr.mxu0 0.0
    %2811 = vmatpush2.msra.mxu0 0.0
    %2812 = vmatprep.subr.mxu0 0.0
    %2813 = vmatpush2.msra.mxu0 0.0
    %2814 = vmatprep.subr.mxu0 0.0
    %2815 = vmatpush2.msra.mxu0 0.0
    %2816 = vmatprep.subr.mxu0 0.0
    %2817 = vmatpush2.msra.mxu0 0.0
    %2818 = vmatprep.subr.mxu0 0.0
    %2819 = vmatpush2.msra.mxu0 0.0
    %2820 = vmatprep.subr.mxu0 0.0
    %2821 = vmatpush2.msra.mxu0 0.0
    %2822 = vmatprep.subr.mxu0 0.0
    %2823 = vmatpush2.msra.mxu0 0.0
    %2824 = vmatprep.subr.mxu0 0.0
    %2825 = vmatpush2.msra.mxu0 0.0
    %2826 = vmatprep.subr.mxu0 0.0
    %2827 = vmatpush2.msra.mxu0 0.0
    %2828 = vmatprep.subr.mxu0 0.0
    %2829 = vmatpush2.msra.mxu0 0.0
    %2830 = vmatprep.subr.mxu0 0.0
    %2831 = vmatpush2.msra.mxu0 0.0
    %2832 = vmatprep.subr.mxu0 0.0
    %2833 = vmatpush2.msra.mxu0 0.0
    %2834 = vmatprep.subr.mxu0 0.0
    %2835 = vmatpush2.msra.mxu0 0.0
    %2836 = vmatprep.mubr.f32.mxu0 0.0
    %2837 = vmatmul.mubr.f32.gmra.mxu0 %v2770
    %v2838 = vpop.f32.mrf.mxu0
    %v2839 = vadd.f32 %v1689, %v2838
    %v2840 = vpop.f32.mrf.mxu0
    %2841 = vdwg.mxu0
    %v2844 = vcombine.high %v1761, %v1761
    %v2846 = vunpack.c.l.s4 1966171168
    %v2847 = vunpack.c.0.s8 %v2846
    %v2848 = vlaneseq
    %v2849 = vshrl.u32 %v2848, 7
    %v2850 = vsub.s32 %v2847, %v2849
    %v2851 = vrot.slane %v1761, %v2850
    %v2853 = vunpack.c.l.s4 1966171168
    %v2854 = vunpack.c.0.s8 %v2853
    %v2855 = vlaneseq
    %v2856 = vshrl.u32 %v2855, 7
    %v2857 = vsub.s32 %v2854, %v2856
    %v2858 = vrot.slane %v2844, %v2857
    %v2859 = vcombine.high %v2851, %v2851
    %v2860 = vcombine.high %v2858, %v2858
    %v2862 = vunpack.c.l.s4 1966171168
    %v2863 = vunpack.c.0.s8 %v2862
    %v2864 = vlaneseq
    %v2865 = vshrl.u32 %v2864, 7
    %v2866 = vsub.s32 %v2863, %v2865
    %v2867 = vrot.slane %v2851, %v2866
    %v2869 = vunpack.c.l.s4 1966171168
    %v2870 = vunpack.c.0.s8 %v2869
    %v2871 = vlaneseq
    %v2872 = vshrl.u32 %v2871, 7
    %v2873 = vsub.s32 %v2870, %v2872
    %v2874 = vrot.slane %v2858, %v2873
    %v2876 = vunpack.c.l.s4 1966171168
    %v2877 = vunpack.c.0.s8 %v2876
    %v2878 = vlaneseq
    %v2879 = vshrl.u32 %v2878, 7
    %v2880 = vsub.s32 %v2877, %v2879
    %v2881 = vrot.slane %v2859, %v2880
    %v2883 = vunpack.c.l.s4 1966171168
    %v2884 = vunpack.c.0.s8 %v2883
    %v2885 = vlaneseq
    %v2886 = vshrl.u32 %v2885, 7
    %v2887 = vsub.s32 %v2884, %v2886
    %v2888 = vrot.slane %v2860, %v2887
    %v2889 = vcombine.high %v2867, %v2867
    %v2890 = vcombine.high %v2874, %v2874
    %v2891 = vcombine.high %v2881, %v2881
    %v2892 = vcombine.high %v2839, %v2839
    %v2894 = vunpack.c.l.s4 1966171168
    %v2895 = vunpack.c.0.s8 %v2894
    %v2896 = vlaneseq
    %v2897 = vshrl.u32 %v2896, 7
    %v2898 = vsub.s32 %v2895, %v2897
    %v2899 = vrot.slane %v2839, %v2898
    %v2901 = vunpack.c.l.s4 1966171168
    %v2902 = vunpack.c.0.s8 %v2901
    %v2903 = vlaneseq
    %v2904 = vshrl.u32 %v2903, 7
    %v2905 = vsub.s32 %v2902, %v2904
    %v2906 = vrot.slane %v2892, %v2905
    %v2907 = vcombine.high %v2899, %v2899
    %v2908 = vcombine.high %v2906, %v2906
    %v2910 = vunpack.c.l.s4 1966171168
    %v2911 = vunpack.c.0.s8 %v2910
    %v2912 = vlaneseq
    %v2913 = vshrl.u32 %v2912, 7
    %v2914 = vsub.s32 %v2911, %v2913
    %v2915 = vrot.slane %v2899, %v2914
    %v2917 = vunpack.c.l.s4 1966171168
    %v2918 = vunpack.c.0.s8 %v2917
    %v2919 = vlaneseq
    %v2920 = vshrl.u32 %v2919, 7
    %v2921 = vsub.s32 %v2918, %v2920
    %v2922 = vrot.slane %v2906, %v2921
    %v2924 = vunpack.c.l.s4 1966171168
    %v2925 = vunpack.c.0.s8 %v2924
    %v2926 = vlaneseq
    %v2927 = vshrl.u32 %v2926, 7
    %v2928 = vsub.s32 %v2925, %v2927
    %v2929 = vrot.slane %v2907, %v2928
    %v2931 = vunpack.c.l.s4 1966171168
    %v2932 = vunpack.c.0.s8 %v2931
    %v2933 = vlaneseq
    %v2934 = vshrl.u32 %v2933, 7
    %v2935 = vsub.s32 %v2932, %v2934
    %v2936 = vrot.slane %v2908, %v2935
    %v2937 = vcombine.high %v2915, %v2915
    %v2938 = vcombine.high %v2922, %v2922
    %v2939 = vcombine.high %v2929, %v2929
    %v2954 = vadd.f32 %v536, %v2867
    %v2955 = vadd.f32 %v550, %v2881
    %v2956 = vadd.f32 %v558, %v2889
    %v2957 = vadd.f32 %v560, %v2891
    %v2958 = vadd.f32 %v543, %v2874
    %v2959 = vadd.f32 %v557, %v2888
    %v2960 = vadd.f32 %v559, %v2890
    %v2961 = vadd.f32 %v561, %v2915
    %v2962 = vadd.f32 %v585, %v2929
    %v2963 = vadd.f32 %v599, %v2937
    %v2964 = vadd.f32 %v607, %v2939
    %v2965 = vadd.f32 %v608, %v2922
    %v2966 = vadd.f32 %v592, %v2936
    %v2967 = vadd.f32 %v606, %v2938
    %v2982 = vcombine.low %v2954, %v2955
    %v2983 = vcombine.low %v2956, %v2957
    %v2984 = vcombine.low %v2958, %v2959
    %v2986 = vunpack.c.l.s4 1966171168
    %v2987 = vunpack.c.0.s8 %v2986
    %v2988 = vlaneseq
    %v2989 = vshrl.u32 %v2988, 7
    %v2990 = vsub.s32 %v2987, %v2989
    %v2991 = vrot.slane %v2982, %v2990
    %v2993 = vunpack.c.l.s4 1966171168
    %v2994 = vunpack.c.0.s8 %v2993
    %v2995 = vlaneseq
    %v2996 = vshrl.u32 %v2995, 7
    %v2997 = vsub.s32 %v2994, %v2996
    %v2998 = vrot.slane %v2983, %v2997
    %v3000 = vunpack.c.l.s4 1966171168
    %v3001 = vunpack.c.0.s8 %v3000
    %v3002 = vlaneseq
    %v3003 = vshrl.u32 %v3002, 7
    %v3004 = vsub.s32 %v3001, %v3003
    %v3005 = vrot.slane %v2984, %v3004
    %v3007 = vunpack.c.l.s4 1966171168
    %v3008 = vunpack.c.0.s8 %v3007
    %v3009 = vlaneseq
    %v3010 = vshrl.u32 %v3009, 7
    %v3011 = vsub.s32 %v3008, %v3010
    %v3012 = vrot.slane %v2960, %v3011
    %v3013 = vcombine.low %v2991, %v2998
    %v3014 = vcombine.low %v3005, %v3012
    %v3016 = vunpack.c.l.s4 1966171168
    %v3017 = vunpack.c.0.s8 %v3016
    %v3018 = vlaneseq
    %v3019 = vshrl.u32 %v3018, 7
    %v3020 = vsub.s32 %v3017, %v3019
    %v3021 = vrot.slane %v3013, %v3020
    %v3023 = vunpack.c.l.s4 1966171168
    %v3024 = vunpack.c.0.s8 %v3023
    %v3025 = vlaneseq
    %v3026 = vshrl.u32 %v3025, 7
    %v3027 = vsub.s32 %v3024, %v3026
    %v3028 = vrot.slane %v3014, %v3027
    %v3029 = vcombine.low %v3021, %v3028
    %v3030 = vcombine.low %v2961, %v2962
    %v3031 = vcombine.low %v2963, %v2964
    %v3032 = vcombine.low %v2965, %v2966
    %v3034 = vunpack.c.l.s4 1966171168
    %v3035 = vunpack.c.0.s8 %v3034
    %v3036 = vlaneseq
    %v3037 = vshrl.u32 %v3036, 7
    %v3038 = vsub.s32 %v3035, %v3037
    %v3039 = vrot.slane %v3030, %v3038
    %v3041 = vunpack.c.l.s4 1966171168
    %v3042 = vunpack.c.0.s8 %v3041
    %v3043 = vlaneseq
    %v3044 = vshrl.u32 %v3043, 7
    %v3045 = vsub.s32 %v3042, %v3044
    %v3046 = vrot.slane %v3031, %v3045
    %v3048 = vunpack.c.l.s4 1966171168
    %v3049 = vunpack.c.0.s8 %v3048
    %v3050 = vlaneseq
    %v3051 = vshrl.u32 %v3050, 7
    %v3052 = vsub.s32 %v3049, %v3051
    %v3053 = vrot.slane %v3032, %v3052
    %v3055 = vunpack.c.l.s4 1966171168
    %v3056 = vunpack.c.0.s8 %v3055
    %v3057 = vlaneseq
    %v3058 = vshrl.u32 %v3057, 7
    %v3059 = vsub.s32 %v3056, %v3058
    %v3060 = vrot.slane %v2967, %v3059
    %v3061 = vcombine.low %v3039, %v3046
    %v3062 = vcombine.low %v3053, %v3060
    %v3064 = vunpack.c.l.s4 1966171168
    %v3065 = vunpack.c.0.s8 %v3064
    %v3066 = vlaneseq
    %v3067 = vshrl.u32 %v3066, 7
    %v3068 = vsub.s32 %v3065, %v3067
    %v3069 = vrot.slane %v3061, %v3068
    %v3071 = vunpack.c.l.s4 1966171168
    %v3072 = vunpack.c.0.s8 %v3071
    %v3073 = vlaneseq
    %v3074 = vshrl.u32 %v3073, 7
    %v3075 = vsub.s32 %v3072, %v3074
    %v3076 = vrot.slane %v3062, %v3075
    %v3077 = vcombine.low %v3069, %v3076
    %vm3080 = vcmask 260096
    %v3081 = vsel %vm3080, %v3029, 0.0
    %3082 = vadd.xlane.f32.xlu0 %v3081
    %v3083 = vpop.xlane.xlu0 %3082
    %v3084 = vsel %vm3080, %v3077, 0.0
    %3085 = vadd.xlane.f32.xlu0 %v3084
    %v3086 = vpop.xlane.xlu0 %3085
    %v3087 = vrcp.pop 32.0
    %v3088 = vmul.f32 %v3083, %v3087
    %v3089 = vmul.f32 %v3086, %v3087
    %v3092 = vlaneseq
    %v3093 = vshrl.u32 %v3092, 7
    %v3094 = vsub.s32 0, %v3093
    %v3095 = vrot.slane %v3088, %v3094
    %v3096 = vlaneseq
    %v3097 = vshrl.u32 %v3096, 7
    %v3098 = vsub.s32 1, %v3097
    %v3099 = vrot.slane %v3088, %v3098
    %v3100 = vlaneseq
    %v3101 = vshrl.u32 %v3100, 7
    %v3102 = vsub.s32 2, %v3101
    %v3103 = vrot.slane %v3088, %v3102
    %v3104 = vlaneseq
    %v3105 = vshrl.u32 %v3104, 7
    %v3106 = vsub.s32 3, %v3105
    %v3107 = vrot.slane %v3088, %v3106
    %v3108 = vlaneseq
    %v3109 = vshrl.u32 %v3108, 7
    %v3110 = vsub.s32 4, %v3109
    %v3111 = vrot.slane %v3088, %v3110
    %v3112 = vlaneseq
    %v3113 = vshrl.u32 %v3112, 7
    %v3114 = vsub.s32 5, %v3113
    %v3115 = vrot.slane %v3088, %v3114
    %v3116 = vlaneseq
    %v3117 = vshrl.u32 %v3116, 7
    %v3118 = vsub.s32 6, %v3117
    %v3119 = vrot.slane %v3088, %v3118
    %v3120 = vlaneseq
    %v3121 = vshrl.u32 %v3120, 7
    %v3122 = vsub.s32 0, %v3121
    %v3123 = vrot.slane %v3089, %v3122
    %v3124 = vlaneseq
    %v3125 = vshrl.u32 %v3124, 7
    %v3126 = vsub.s32 1, %v3125
    %v3127 = vrot.slane %v3089, %v3126
    %v3128 = vlaneseq
    %v3129 = vshrl.u32 %v3128, 7
    %v3130 = vsub.s32 2, %v3129
    %v3131 = vrot.slane %v3089, %v3130
    %v3132 = vlaneseq
    %v3133 = vshrl.u32 %v3132, 7
    %v3134 = vsub.s32 3, %v3133
    %v3135 = vrot.slane %v3089, %v3134
    %v3136 = vlaneseq
    %v3137 = vshrl.u32 %v3136, 7
    %v3138 = vsub.s32 4, %v3137
    %v3139 = vrot.slane %v3089, %v3138
    %v3140 = vlaneseq
    %v3141 = vshrl.u32 %v3140, 7
    %v3142 = vsub.s32 5, %v3141
    %v3143 = vrot.slane %v3089, %v3142
    %v3144 = vlaneseq
    %v3145 = vshrl.u32 %v3144, 7
    %v3146 = vsub.s32 6, %v3145
    %v3147 = vrot.slane %v3089, %v3146
    %v3162 = vsub.f32 %v2954, %v3095
    %v3163 = vsub.f32 %v2955, %v3099
    %v3164 = vsub.f32 %v2956, %v3103
    %v3165 = vsub.f32 %v2957, %v3107
    %v3166 = vsub.f32 %v2958, %v3111
    %v3167 = vsub.f32 %v2959, %v3115
    %v3168 = vsub.f32 %v2960, %v3119
    %v3169 = vsub.f32 %v2961, %v3123
    %v3170 = vsub.f32 %v2962, %v3127
    %v3171 = vsub.f32 %v2963, %v3131
    %v3172 = vsub.f32 %v2964, %v3135
    %v3173 = vsub.f32 %v2965, %v3139
    %v3174 = vsub.f32 %v2966, %v3143
    %v3175 = vsub.f32 %v2967, %v3147
    %v3176 = vmul.f32 %v3162, %v3162
    %v3177 = vmul.f32 %v3163, %v3163
    %v3178 = vmul.f32 %v3164, %v3164
    %v3179 = vmul.f32 %v3165, %v3165
    %v3180 = vmul.f32 %v3166, %v3166
    %v3181 = vmul.f32 %v3167, %v3167
    %v3182 = vmul.f32 %v3168, %v3168
    %v3183 = vmul.f32 %v3169, %v3169
    %v3184 = vmul.f32 %v3170, %v3170
    %v3185 = vmul.f32 %v3171, %v3171
    %v3186 = vmul.f32 %v3172, %v3172
    %v3187 = vmul.f32 %v3173, %v3173
    %v3188 = vmul.f32 %v3174, %v3174
    %v3189 = vmul.f32 %v3175, %v3175
    %v3204 = vcombine.low %v3176, %v3177
    %v3205 = vcombine.low %v3178, %v3179
    %v3206 = vcombine.low %v3180, %v3181
    %v3208 = vunpack.c.l.s4 1966171168
    %v3209 = vunpack.c.0.s8 %v3208
    %v3210 = vlaneseq
    %v3211 = vshrl.u32 %v3210, 7
    %v3212 = vsub.s32 %v3209, %v3211
    %v3213 = vrot.slane %v3204, %v3212
    %v3215 = vunpack.c.l.s4 1966171168
    %v3216 = vunpack.c.0.s8 %v3215
    %v3217 = vlaneseq
    %v3218 = vshrl.u32 %v3217, 7
    %v3219 = vsub.s32 %v3216, %v3218
    %v3220 = vrot.slane %v3205, %v3219
    %v3222 = vunpack.c.l.s4 1966171168
    %v3223 = vunpack.c.0.s8 %v3222
    %v3224 = vlaneseq
    %v3225 = vshrl.u32 %v3224, 7
    %v3226 = vsub.s32 %v3223, %v3225
    %v3227 = vrot.slane %v3206, %v3226
    %v3229 = vunpack.c.l.s4 1966171168
    %v3230 = vunpack.c.0.s8 %v3229
    %v3231 = vlaneseq
    %v3232 = vshrl.u32 %v3231, 7
    %v3233 = vsub.s32 %v3230, %v3232
    %v3234 = vrot.slane %v3182, %v3233
    %v3235 = vcombine.low %v3213, %v3220
    %v3236 = vcombine.low %v3227, %v3234
    %v3238 = vunpack.c.l.s4 1966171168
    %v3239 = vunpack.c.0.s8 %v3238
    %v3240 = vlaneseq
    %v3241 = vshrl.u32 %v3240, 7
    %v3242 = vsub.s32 %v3239, %v3241
    %v3243 = vrot.slane %v3235, %v3242
    %v3245 = vunpack.c.l.s4 1966171168
    %v3246 = vunpack.c.0.s8 %v3245
    %v3247 = vlaneseq
    %v3248 = vshrl.u32 %v3247, 7
    %v3249 = vsub.s32 %v3246, %v3248
    %v3250 = vrot.slane %v3236, %v3249
    %v3251 = vcombine.low %v3243, %v3250
    %v3252 = vcombine.low %v3183, %v3184
    %v3253 = vcombine.low %v3185, %v3186
    %v3254 = vcombine.low %v3187, %v3188
    %v3256 = vunpack.c.l.s4 1966171168
    %v3257 = vunpack.c.0.s8 %v3256
    %v3258 = vlaneseq
    %v3259 = vshrl.u32 %v3258, 7
    %v3260 = vsub.s32 %v3257, %v3259
    %v3261 = vrot.slane %v3252, %v3260
    %v3263 = vunpack.c.l.s4 1966171168
    %v3264 = vunpack.c.0.s8 %v3263
    %v3265 = vlaneseq
    %v3266 = vshrl.u32 %v3265, 7
    %v3267 = vsub.s32 %v3264, %v3266
    %v3268 = vrot.slane %v3253, %v3267
    %v3270 = vunpack.c.l.s4 1966171168
    %v3271 = vunpack.c.0.s8 %v3270
    %v3272 = vlaneseq
    %v3273 = vshrl.u32 %v3272, 7
    %v3274 = vsub.s32 %v3271, %v3273
    %v3275 = vrot.slane %v3254, %v3274
    %v3277 = vunpack.c.l.s4 1966171168
    %v3278 = vunpack.c.0.s8 %v3277
    %v3279 = vlaneseq
    %v3280 = vshrl.u32 %v3279, 7
    %v3281 = vsub.s32 %v3278, %v3280
    %v3282 = vrot.slane %v3189, %v3281
    %v3283 = vcombine.low %v3261, %v3268
    %v3284 = vcombine.low %v3275, %v3282
    %v3286 = vunpack.c.l.s4 1966171168
    %v3287 = vunpack.c.0.s8 %v3286
    %v3288 = vlaneseq
    %v3289 = vshrl.u32 %v3288, 7
    %v3290 = vsub.s32 %v3287, %v3289
    %v3291 = vrot.slane %v3283, %v3290
    %v3293 = vunpack.c.l.s4 1966171168
    %v3294 = vunpack.c.0.s8 %v3293
    %v3295 = vlaneseq
    %v3296 = vshrl.u32 %v3295, 7
    %v3297 = vsub.s32 %v3294, %v3296
    %v3298 = vrot.slane %v3284, %v3297
    %v3299 = vcombine.low %v3291, %v3298
    %v3302 = vsel %vm3080, %v3251, 0.0
    %3303 = vadd.xlane.f32.xlu0 %v3302
    %v3304 = vpop.xlane.xlu0 %3303
    %v3305 = vsel %vm3080, %v3299, 0.0
    %3306 = vadd.xlane.f32.xlu0 %v3305
    %v3307 = vpop.xlane.xlu0 %3306
    %v3308 = vmul.f32 %v3304, %v3087
    %v3309 = vmul.f32 %v3307, %v3087
    %v3310 = vadd.f32 %v3308, 1e-05
    %v3311 = vadd.f32 %v3309, 1e-05
    %v3312 = vrsqrt.pop %v3310
    %v3313 = vrsqrt.pop %v3311
    %v3316 = vlaneseq
    %v3317 = vshrl.u32 %v3316, 7
    %v3318 = vsub.s32 0, %v3317
    %v3319 = vrot.slane %v3312, %v3318
    %v3320 = vlaneseq
    %v3321 = vshrl.u32 %v3320, 7
    %v3322 = vsub.s32 1, %v3321
    %v3323 = vrot.slane %v3312, %v3322
    %v3324 = vlaneseq
    %v3325 = vshrl.u32 %v3324, 7
    %v3326 = vsub.s32 2, %v3325
    %v3327 = vrot.slane %v3312, %v3326
    %v3328 = vlaneseq
    %v3329 = vshrl.u32 %v3328, 7
    %v3330 = vsub.s32 3, %v3329
    %v3331 = vrot.slane %v3312, %v3330
    %v3332 = vlaneseq
    %v3333 = vshrl.u32 %v3332, 7
    %v3334 = vsub.s32 4, %v3333
    %v3335 = vrot.slane %v3312, %v3334
    %v3336 = vlaneseq
    %v3337 = vshrl.u32 %v3336, 7
    %v3338 = vsub.s32 5, %v3337
    %v3339 = vrot.slane %v3312, %v3338
    %v3340 = vlaneseq
    %v3341 = vshrl.u32 %v3340, 7
    %v3342 = vsub.s32 6, %v3341
    %v3343 = vrot.slane %v3312, %v3342
    %v3344 = vlaneseq
    %v3345 = vshrl.u32 %v3344, 7
    %v3346 = vsub.s32 0, %v3345
    %v3347 = vrot.slane %v3313, %v3346
    %v3348 = vlaneseq
    %v3349 = vshrl.u32 %v3348, 7
    %v3350 = vsub.s32 1, %v3349
    %v3351 = vrot.slane %v3313, %v3350
    %v3352 = vlaneseq
    %v3353 = vshrl.u32 %v3352, 7
    %v3354 = vsub.s32 2, %v3353
    %v3355 = vrot.slane %v3313, %v3354
    %v3356 = vlaneseq
    %v3357 = vshrl.u32 %v3356, 7
    %v3358 = vsub.s32 3, %v3357
    %v3359 = vrot.slane %v3313, %v3358
    %v3360 = vlaneseq
    %v3361 = vshrl.u32 %v3360, 7
    %v3362 = vsub.s32 4, %v3361
    %v3363 = vrot.slane %v3313, %v3362
    %v3364 = vlaneseq
    %v3365 = vshrl.u32 %v3364, 7
    %v3366 = vsub.s32 5, %v3365
    %v3367 = vrot.slane %v3313, %v3366
    %v3368 = vlaneseq
    %v3369 = vshrl.u32 %v3368, 7
    %v3370 = vsub.s32 6, %v3369
    %v3371 = vrot.slane %v3313, %v3370
    %v3386 = vmul.f32 %v3162, %v3319
    %v3387 = vmul.f32 %v3163, %v3323
    %v3388 = vmul.f32 %v3164, %v3327
    %v3389 = vmul.f32 %v3165, %v3331
    %v3390 = vmul.f32 %v3166, %v3335
    %v3391 = vmul.f32 %v3167, %v3339
    %v3392 = vmul.f32 %v3168, %v3343
    %v3393 = vmul.f32 %v3169, %v3347
    %v3394 = vmul.f32 %v3170, %v3351
    %v3395 = vmul.f32 %v3171, %v3355
    %v3396 = vmul.f32 %v3172, %v3359
    %v3397 = vmul.f32 %v3173, %v3363
    %v3398 = vmul.f32 %v3174, %v3367
    %v3399 = vmul.f32 %v3175, %v3371
    %v3400 = vlaneseq
    %v3401 = vshrl.u32 %v3400, 7
    %v3402 = vsub.s32 0, %v3401
    %v3403 = vrot.slane %v623, %v3402
    %v3405 = vcombine.high %v3403, %v3403
    %v3407 = vunpack.c.l.s4 1966171168
    %v3408 = vunpack.c.0.s8 %v3407
    %v3409 = vlaneseq
    %v3410 = vshrl.u32 %v3409, 7
    %v3411 = vsub.s32 %v3408, %v3410
    %v3412 = vrot.slane %v3403, %v3411
    %v3414 = vunpack.c.l.s4 1966171168
    %v3415 = vunpack.c.0.s8 %v3414
    %v3416 = vlaneseq
    %v3417 = vshrl.u32 %v3416, 7
    %v3418 = vsub.s32 %v3415, %v3417
    %v3419 = vrot.slane %v3405, %v3418
    %v3420 = vcombine.high %v3412, %v3412
    %v3421 = vcombine.high %v3419, %v3419
    %v3423 = vunpack.c.l.s4 1966171168
    %v3424 = vunpack.c.0.s8 %v3423
    %v3425 = vlaneseq
    %v3426 = vshrl.u32 %v3425, 7
    %v3427 = vsub.s32 %v3424, %v3426
    %v3428 = vrot.slane %v3412, %v3427
    %v3430 = vunpack.c.l.s4 1966171168
    %v3431 = vunpack.c.0.s8 %v3430
    %v3432 = vlaneseq
    %v3433 = vshrl.u32 %v3432, 7
    %v3434 = vsub.s32 %v3431, %v3433
    %v3435 = vrot.slane %v3419, %v3434
    %v3437 = vunpack.c.l.s4 1966171168
    %v3438 = vunpack.c.0.s8 %v3437
    %v3439 = vlaneseq
    %v3440 = vshrl.u32 %v3439, 7
    %v3441 = vsub.s32 %v3438, %v3440
    %v3442 = vrot.slane %v3420, %v3441
    %v3444 = vunpack.c.l.s4 1966171168
    %v3445 = vunpack.c.0.s8 %v3444
    %v3446 = vlaneseq
    %v3447 = vshrl.u32 %v3446, 7
    %v3448 = vsub.s32 %v3445, %v3447
    %v3449 = vrot.slane %v3421, %v3448
    %v3450 = vcombine.high %v3428, %v3428
    %v3451 = vcombine.high %v3435, %v3435
    %v3452 = vcombine.high %v3442, %v3442
    %v3460 = vmul.f32 %v3386, %v3428
    %v3461 = vmul.f32 %v3387, %v3442
    %v3462 = vmul.f32 %v3388, %v3450
    %v3463 = vmul.f32 %v3389, %v3452
    %v3464 = vmul.f32 %v3390, %v3435
    %v3465 = vmul.f32 %v3391, %v3449
    %v3466 = vmul.f32 %v3392, %v3451
    %v3467 = vmul.f32 %v3393, %v3428
    %v3468 = vmul.f32 %v3394, %v3442
    %v3469 = vmul.f32 %v3395, %v3450
    %v3470 = vmul.f32 %v3396, %v3452
    %v3471 = vmul.f32 %v3397, %v3435
    %v3472 = vmul.f32 %v3398, %v3449
    %v3473 = vmul.f32 %v3399, %v3451
    %v3474 = vlaneseq
    %v3475 = vshrl.u32 %v3474, 7
    %v3476 = vsub.s32 1, %v3475
    %v3477 = vrot.slane %v623, %v3476
    %v3479 = vcombine.high %v3477, %v3477
    %v3481 = vunpack.c.l.s4 1966171168
    %v3482 = vunpack.c.0.s8 %v3481
    %v3483 = vlaneseq
    %v3484 = vshrl.u32 %v3483, 7
    %v3485 = vsub.s32 %v3482, %v3484
    %v3486 = vrot.slane %v3477, %v3485
    %v3488 = vunpack.c.l.s4 1966171168
    %v3489 = vunpack.c.0.s8 %v3488
    %v3490 = vlaneseq
    %v3491 = vshrl.u32 %v3490, 7
    %v3492 = vsub.s32 %v3489, %v3491
    %v3493 = vrot.slane %v3479, %v3492
    %v3494 = vcombine.high %v3486, %v3486
    %v3495 = vcombine.high %v3493, %v3493
    %v3497 = vunpack.c.l.s4 1966171168
    %v3498 = vunpack.c.0.s8 %v3497
    %v3499 = vlaneseq
    %v3500 = vshrl.u32 %v3499, 7
    %v3501 = vsub.s32 %v3498, %v3500
    %v3502 = vrot.slane %v3486, %v3501
    %v3504 = vunpack.c.l.s4 1966171168
    %v3505 = vunpack.c.0.s8 %v3504
    %v3506 = vlaneseq
    %v3507 = vshrl.u32 %v3506, 7
    %v3508 = vsub.s32 %v3505, %v3507
    %v3509 = vrot.slane %v3493, %v3508
    %v3511 = vunpack.c.l.s4 1966171168
    %v3512 = vunpack.c.0.s8 %v3511
    %v3513 = vlaneseq
    %v3514 = vshrl.u32 %v3513, 7
    %v3515 = vsub.s32 %v3512, %v3514
    %v3516 = vrot.slane %v3494, %v3515
    %v3518 = vunpack.c.l.s4 1966171168
    %v3519 = vunpack.c.0.s8 %v3518
    %v3520 = vlaneseq
    %v3521 = vshrl.u32 %v3520, 7
    %v3522 = vsub.s32 %v3519, %v3521
    %v3523 = vrot.slane %v3495, %v3522
    %v3524 = vcombine.high %v3502, %v3502
    %v3525 = vcombine.high %v3509, %v3509
    %v3526 = vcombine.high %v3516, %v3516
    %v3534 = vadd.f32 %v3460, %v3502
    %v3535 = vadd.f32 %v3461, %v3516
    %v3536 = vadd.f32 %v3462, %v3524
    %v3537 = vadd.f32 %v3463, %v3526
    %v3538 = vadd.f32 %v3464, %v3509
    %v3539 = vadd.f32 %v3465, %v3523
    %v3540 = vadd.f32 %v3466, %v3525
    %v3541 = vadd.f32 %v3467, %v3502
    %v3542 = vadd.f32 %v3468, %v3516
    %v3543 = vadd.f32 %v3469, %v3524
    %v3544 = vadd.f32 %v3470, %v3526
    %v3545 = vadd.f32 %v3471, %v3509
    %v3546 = vadd.f32 %v3472, %v3523
    %v3547 = vadd.f32 %v3473, %v3525
    %v3548 = vld [vmem:[%s7] sm:$0xff]
    %v3549 = vld [vmem:[%s7 + $0x8] sm:$0xff]
    %v3550 = vld [vmem:[%s7 + $0x10] sm:$0xff]
    %v3551 = vld [vmem:[%s7 + $0x18] sm:$0xff]
    %v3552 = vld [vmem:[%s8] sm:$0x1]
    %v3554 = vlaneseq
    %v3555 = vshrl.u32 %v3554, 7
    %v3556 = vsub.s32 0, %v3555
    %v3557 = vrot.slane %v3552, %v3556
    %v3558 = vcombine.high %v3557, %v3557
    %v3560 = vunpack.c.l.s4 1966171168
    %v3561 = vunpack.c.0.s8 %v3560
    %v3562 = vlaneseq
    %v3563 = vshrl.u32 %v3562, 7
    %v3564 = vsub.s32 %v3561, %v3563
    %v3565 = vrot.slane %v3557, %v3564
    %v3567 = vunpack.c.l.s4 1966171168
    %v3568 = vunpack.c.0.s8 %v3567
    %v3569 = vlaneseq
    %v3570 = vshrl.u32 %v3569, 7
    %v3571 = vsub.s32 %v3568, %v3570
    %v3572 = vrot.slane %v3558, %v3571
    %v3573 = vcombine.high %v3565, %v3565
    %v3574 = vcombine.high %v3572, %v3572
    %v3576 = vunpack.c.l.s4 1966171168
    %v3577 = vunpack.c.0.s8 %v3576
    %v3578 = vlaneseq
    %v3579 = vshrl.u32 %v3578, 7
    %v3580 = vsub.s32 %v3577, %v3579
    %v3581 = vrot.slane %v3565, %v3580
    %v3583 = vunpack.c.l.s4 1966171168
    %v3584 = vunpack.c.0.s8 %v3583
    %v3585 = vlaneseq
    %v3586 = vshrl.u32 %v3585, 7
    %v3587 = vsub.s32 %v3584, %v3586
    %v3588 = vrot.slane %v3572, %v3587
    %v3590 = vunpack.c.l.s4 1966171168
    %v3591 = vunpack.c.0.s8 %v3590
    %v3592 = vlaneseq
    %v3593 = vshrl.u32 %v3592, 7
    %v3594 = vsub.s32 %v3591, %v3593
    %v3595 = vrot.slane %v3573, %v3594
    %v3597 = vunpack.c.l.s4 1966171168
    %v3598 = vunpack.c.0.s8 %v3597
    %v3599 = vlaneseq
    %v3600 = vshrl.u32 %v3599, 7
    %v3601 = vsub.s32 %v3598, %v3600
    %v3602 = vrot.slane %v3574, %v3601
    %v3603 = vcombine.high %v3581, %v3581
    %v3604 = vcombine.high %v3588, %v3588
    %v3605 = vcombine.high %v3595, %v3595
    %v3620 = vcombine.low %v3534, %v3535
    %v3621 = vcombine.low %v3536, %v3537
    %v3622 = vcombine.low %v3538, %v3539
    %v3623 = vcombine.low %v3540, %v3541
    %v3625 = vunpack.c.l.s4 1966171168
    %v3626 = vunpack.c.0.s8 %v3625
    %v3627 = vlaneseq
    %v3628 = vshrl.u32 %v3627, 7
    %v3629 = vsub.s32 %v3626, %v3628
    %v3630 = vrot.slane %v3620, %v3629
    %v3632 = vunpack.c.l.s4 1966171168
    %v3633 = vunpack.c.0.s8 %v3632
    %v3634 = vlaneseq
    %v3635 = vshrl.u32 %v3634, 7
    %v3636 = vsub.s32 %v3633, %v3635
    %v3637 = vrot.slane %v3621, %v3636
    %v3639 = vunpack.c.l.s4 1966171168
    %v3640 = vunpack.c.0.s8 %v3639
    %v3641 = vlaneseq
    %v3642 = vshrl.u32 %v3641, 7
    %v3643 = vsub.s32 %v3640, %v3642
    %v3644 = vrot.slane %v3622, %v3643
    %v3646 = vunpack.c.l.s4 1966171168
    %v3647 = vunpack.c.0.s8 %v3646
    %v3648 = vlaneseq
    %v3649 = vshrl.u32 %v3648, 7
    %v3650 = vsub.s32 %v3647, %v3649
    %v3651 = vrot.slane %v3623, %v3650
    %v3652 = vcombine.low %v3630, %v3637
    %v3653 = vcombine.low %v3644, %v3651
    %v3655 = vunpack.c.l.s4 1966171168
    %v3656 = vunpack.c.0.s8 %v3655
    %v3657 = vlaneseq
    %v3658 = vshrl.u32 %v3657, 7
    %v3659 = vsub.s32 %v3656, %v3658
    %v3660 = vrot.slane %v3652, %v3659
    %v3662 = vunpack.c.l.s4 1966171168
    %v3663 = vunpack.c.0.s8 %v3662
    %v3664 = vlaneseq
    %v3665 = vshrl.u32 %v3664, 7
    %v3666 = vsub.s32 %v3663, %v3665
    %v3667 = vrot.slane %v3653, %v3666
    %v3668 = vcombine.low %v3660, %v3667
    %v3669 = vcombine.low %v3542, %v3543
    %v3670 = vcombine.low %v3544, %v3545
    %v3671 = vcombine.low %v3546, %v3547
    %v3673 = vunpack.c.l.s4 1966171168
    %v3674 = vunpack.c.0.s8 %v3673
    %v3675 = vlaneseq
    %v3676 = vshrl.u32 %v3675, 7
    %v3677 = vsub.s32 %v3674, %v3676
    %v3678 = vrot.slane %v3669, %v3677
    %v3680 = vunpack.c.l.s4 1966171168
    %v3681 = vunpack.c.0.s8 %v3680
    %v3682 = vlaneseq
    %v3683 = vshrl.u32 %v3682, 7
    %v3684 = vsub.s32 %v3681, %v3683
    %v3685 = vrot.slane %v3670, %v3684
    %v3687 = vunpack.c.l.s4 1966171168
    %v3688 = vunpack.c.0.s8 %v3687
    %v3689 = vlaneseq
    %v3690 = vshrl.u32 %v3689, 7
    %v3691 = vsub.s32 %v3688, %v3690
    %v3692 = vrot.slane %v3671, %v3691
    %v3693 = vcombine.low %v3678, %v3685
    %v3695 = vunpack.c.l.s4 1966171168
    %v3696 = vunpack.c.0.s8 %v3695
    %v3697 = vlaneseq
    %v3698 = vshrl.u32 %v3697, 7
    %v3699 = vsub.s32 %v3696, %v3698
    %v3700 = vrot.slane %v3693, %v3699
    %v3702 = vunpack.c.l.s4 1966171168
    %v3703 = vunpack.c.0.s8 %v3702
    %v3704 = vlaneseq
    %v3705 = vshrl.u32 %v3704, 7
    %v3706 = vsub.s32 %v3703, %v3705
    %v3707 = vrot.slane %v3692, %v3706
    %v3708 = vcombine.low %v3700, %v3707
    %v3709 = vcombine.low %v3581, %v3595
    %v3710 = vcombine.low %v3603, %v3605
    %v3711 = vcombine.low %v3588, %v3602
    %v3712 = vcombine.low %v3604, %v3581
    %v3714 = vunpack.c.l.s4 1966171168
    %v3715 = vunpack.c.0.s8 %v3714
    %v3716 = vlaneseq
    %v3717 = vshrl.u32 %v3716, 7
    %v3718 = vsub.s32 %v3715, %v3717
    %v3719 = vrot.slane %v3709, %v3718
    %v3721 = vunpack.c.l.s4 1966171168
    %v3722 = vunpack.c.0.s8 %v3721
    %v3723 = vlaneseq
    %v3724 = vshrl.u32 %v3723, 7
    %v3725 = vsub.s32 %v3722, %v3724
    %v3726 = vrot.slane %v3710, %v3725
    %v3728 = vunpack.c.l.s4 1966171168
    %v3729 = vunpack.c.0.s8 %v3728
    %v3730 = vlaneseq
    %v3731 = vshrl.u32 %v3730, 7
    %v3732 = vsub.s32 %v3729, %v3731
    %v3733 = vrot.slane %v3711, %v3732
    %v3735 = vunpack.c.l.s4 1966171168
    %v3736 = vunpack.c.0.s8 %v3735
    %v3737 = vlaneseq
    %v3738 = vshrl.u32 %v3737, 7
    %v3739 = vsub.s32 %v3736, %v3738
    %v3740 = vrot.slane %v3712, %v3739
    %v3741 = vcombine.low %v3719, %v3726
    %v3742 = vcombine.low %v3733, %v3740
    %v3744 = vunpack.c.l.s4 1966171168
    %v3745 = vunpack.c.0.s8 %v3744
    %v3746 = vlaneseq
    %v3747 = vshrl.u32 %v3746, 7
    %v3748 = vsub.s32 %v3745, %v3747
    %v3749 = vrot.slane %v3741, %v3748
    %v3751 = vunpack.c.l.s4 1966171168
    %v3752 = vunpack.c.0.s8 %v3751
    %v3753 = vlaneseq
    %v3754 = vshrl.u32 %v3753, 7
    %v3755 = vsub.s32 %v3752, %v3754
    %v3756 = vrot.slane %v3742, %v3755
    %v3757 = vcombine.low %v3749, %v3756
    %v3758 = vcombine.low %v3595, %v3603
    %v3759 = vcombine.low %v3605, %v3588
    %v3760 = vcombine.low %v3602, %v3604
    %v3762 = vunpack.c.l.s4 1966171168
    %v3763 = vunpack.c.0.s8 %v3762
    %v3764 = vlaneseq
    %v3765 = vshrl.u32 %v3764, 7
    %v3766 = vsub.s32 %v3763, %v3765
    %v3767 = vrot.slane %v3758, %v3766
    %v3769 = vunpack.c.l.s4 1966171168
    %v3770 = vunpack.c.0.s8 %v3769
    %v3771 = vlaneseq
    %v3772 = vshrl.u32 %v3771, 7
    %v3773 = vsub.s32 %v3770, %v3772
    %v3774 = vrot.slane %v3759, %v3773
    %v3776 = vunpack.c.l.s4 1966171168
    %v3777 = vunpack.c.0.s8 %v3776
    %v3778 = vlaneseq
    %v3779 = vshrl.u32 %v3778, 7
    %v3780 = vsub.s32 %v3777, %v3779
    %v3781 = vrot.slane %v3760, %v3780
    %v3782 = vcombine.low %v3767, %v3774
    %v3784 = vunpack.c.l.s4 1966171168
    %v3785 = vunpack.c.0.s8 %v3784
    %v3786 = vlaneseq
    %v3787 = vshrl.u32 %v3786, 7
    %v3788 = vsub.s32 %v3785, %v3787
    %v3789 = vrot.slane %v3782, %v3788
    %v3791 = vunpack.c.l.s4 1966171168
    %v3792 = vunpack.c.0.s8 %v3791
    %v3793 = vlaneseq
    %v3794 = vshrl.u32 %v3793, 7
    %v3795 = vsub.s32 %v3792, %v3794
    %v3796 = vrot.slane %v3781, %v3795
    %v3797 = vcombine.low %v3789, %v3796
    %v3800 = vsel %vm722, %v3668, 0
    %v3802 = vsel %vm722, %v3708, 0
    %3804 = vmatprep.subr.mxu0 0.0
    %3805 = vmatpush1.msra.mxu0 0.0
    %3806 = vmatprep.subr.mxu0 0.0
    %3807 = vmatpush1.msra.mxu0 0.0
    %3808 = vmatprep.subr.mxu0 0.0
    %3809 = vmatpush1.msra.mxu0 0.0
    %3810 = vmatprep.subr.mxu0 0.0
    %3811 = vmatpush1.msra.mxu0 0.0
    %3812 = vmatprep.subr.mxu0 0.0
    %3813 = vmatpush1.msra.mxu0 0.0
    %3814 = vmatprep.subr.mxu0 0.0
    %3815 = vmatpush1.msra.mxu0 0.0
    %3816 = vmatprep.subr.mxu0 0.0
    %3817 = vmatpush1.msra.mxu0 0.0
    %3818 = vmatprep.subr.mxu0 0.0
    %3819 = vmatpush1.msra.mxu0 0.0
    %3820 = vmatprep.subr.mxu0 0.0
    %3821 = vmatpush1.msra.mxu0 0.0
    %3822 = vmatprep.subr.mxu0 0.0
    %3823 = vmatpush1.msra.mxu0 0.0
    %3824 = vmatprep.subr.mxu0 0.0
    %3825 = vmatpush1.msra.mxu0 0.0
    %3826 = vmatprep.subr.mxu0 0.0
    %3827 = vmatpush1.msra.mxu0 0.0
    %3828 = vmatprep.subr.mxu0 0.0
    %3829 = vmatpush1.msra.mxu0 %v3551
    %3830 = vmatprep.subr.mxu0 0.0
    %3831 = vmatpush1.msra.mxu0 %v3550
    %3832 = vmatprep.subr.mxu0 0.0
    %3833 = vmatpush1.msra.mxu0 %v3549
    %3834 = vmatprep.subr.mxu0 0.0
    %3835 = vmatpush1.msra.mxu0 %v3548
    %3836 = vmatprep.subr.mxu0 0.0
    %3837 = vmatpush2.msra.mxu0 0.0
    %3838 = vmatprep.subr.mxu0 0.0
    %3839 = vmatpush2.msra.mxu0 0.0
    %3840 = vmatprep.subr.mxu0 0.0
    %3841 = vmatpush2.msra.mxu0 0.0
    %3842 = vmatprep.subr.mxu0 0.0
    %3843 = vmatpush2.msra.mxu0 0.0
    %3844 = vmatprep.subr.mxu0 0.0
    %3845 = vmatpush2.msra.mxu0 0.0
    %3846 = vmatprep.subr.mxu0 0.0
    %3847 = vmatpush2.msra.mxu0 0.0
    %3848 = vmatprep.subr.mxu0 0.0
    %3849 = vmatpush2.msra.mxu0 0.0
    %3850 = vmatprep.subr.mxu0 0.0
    %3851 = vmatpush2.msra.mxu0 0.0
    %3852 = vmatprep.subr.mxu0 0.0
    %3853 = vmatpush2.msra.mxu0 0.0
    %3854 = vmatprep.subr.mxu0 0.0
    %3855 = vmatpush2.msra.mxu0 0.0
    %3856 = vmatprep.subr.mxu0 0.0
    %3857 = vmatpush2.msra.mxu0 0.0
    %3858 = vmatprep.subr.mxu0 0.0
    %3859 = vmatpush2.msra.mxu0 0.0
    %3860 = vmatprep.subr.mxu0 0.0
    %3861 = vmatpush2.msra.mxu0 0.0
    %3862 = vmatprep.subr.mxu0 0.0
    %3863 = vmatpush2.msra.mxu0 0.0
    %3864 = vmatprep.subr.mxu0 0.0
    %3865 = vmatpush2.msra.mxu0 0.0
    %3866 = vmatprep.subr.mxu0 0.0
    %3867 = vmatpush2.msra.mxu0 0.0
    %3868 = vmatprep.mubr.f32.mxu0 0.0
    %3869 = vmatmul.mubr.f32.gmra.mxu0 %v3800
    %v3870 = vpop.f32.mrf.mxu0
    %v3871 = vadd.f32 %v3757, %v3870
    %v3872 = vpop.f32.mrf.mxu0
    %3873 = vmatprep.mubr.f32.mxu0 0.0
    %3874 = vmatmul.mubr.f32.gmra.mxu0 %v3802
    %v3875 = vpop.f32.mrf.mxu0
    %v3876 = vadd.f32 %v3797, %v3875
    %v3877 = vpop.f32.mrf.mxu0
    %3878 = vdwg.mxu0
    %v3881 = vcombine.high %v3871, %v3871
    %v3883 = vunpack.c.l.s4 1966171168
    %v3884 = vunpack.c.0.s8 %v3883
    %v3885 = vlaneseq
    %v3886 = vshrl.u32 %v3885, 7
    %v3887 = vsub.s32 %v3884, %v3886
    %v3888 = vrot.slane %v3871, %v3887
    %v3890 = vunpack.c.l.s4 1966171168
    %v3891 = vunpack.c.0.s8 %v3890
    %v3892 = vlaneseq
    %v3893 = vshrl.u32 %v3892, 7
    %v3894 = vsub.s32 %v3891, %v3893
    %v3895 = vrot.slane %v3881, %v3894
    %v3896 = vcombine.high %v3888, %v3888
    %v3897 = vcombine.high %v3895, %v3895
    %v3899 = vunpack.c.l.s4 1966171168
    %v3900 = vunpack.c.0.s8 %v3899
    %v3901 = vlaneseq
    %v3902 = vshrl.u32 %v3901, 7
    %v3903 = vsub.s32 %v3900, %v3902
    %v3904 = vrot.slane %v3888, %v3903
    %v3906 = vunpack.c.l.s4 1966171168
    %v3907 = vunpack.c.0.s8 %v3906
    %v3908 = vlaneseq
    %v3909 = vshrl.u32 %v3908, 7
    %v3910 = vsub.s32 %v3907, %v3909
    %v3911 = vrot.slane %v3895, %v3910
    %v3913 = vunpack.c.l.s4 1966171168
    %v3914 = vunpack.c.0.s8 %v3913
    %v3915 = vlaneseq
    %v3916 = vshrl.u32 %v3915, 7
    %v3917 = vsub.s32 %v3914, %v3916
    %v3918 = vrot.slane %v3896, %v3917
    %v3920 = vunpack.c.l.s4 1966171168
    %v3921 = vunpack.c.0.s8 %v3920
    %v3922 = vlaneseq
    %v3923 = vshrl.u32 %v3922, 7
    %v3924 = vsub.s32 %v3921, %v3923
    %v3925 = vrot.slane %v3897, %v3924
    %v3926 = vcombine.high %v3904, %v3904
    %v3927 = vcombine.high %v3911, %v3911
    %v3928 = vcombine.high %v3918, %v3918
    %v3929 = vcombine.high %v3925, %v3925
    %v3930 = vcombine.high %v3876, %v3876
    %v3932 = vunpack.c.l.s4 1966171168
    %v3933 = vunpack.c.0.s8 %v3932
    %v3934 = vlaneseq
    %v3935 = vshrl.u32 %v3934, 7
    %v3936 = vsub.s32 %v3933, %v3935
    %v3937 = vrot.slane %v3876, %v3936
    %v3939 = vunpack.c.l.s4 1966171168
    %v3940 = vunpack.c.0.s8 %v3939
    %v3941 = vlaneseq
    %v3942 = vshrl.u32 %v3941, 7
    %v3943 = vsub.s32 %v3940, %v3942
    %v3944 = vrot.slane %v3930, %v3943
    %v3945 = vcombine.high %v3937, %v3937
    %v3946 = vcombine.high %v3944, %v3944
    %v3948 = vunpack.c.l.s4 1966171168
    %v3949 = vunpack.c.0.s8 %v3948
    %v3950 = vlaneseq
    %v3951 = vshrl.u32 %v3950, 7
    %v3952 = vsub.s32 %v3949, %v3951
    %v3953 = vrot.slane %v3937, %v3952
    %v3955 = vunpack.c.l.s4 1966171168
    %v3956 = vunpack.c.0.s8 %v3955
    %v3957 = vlaneseq
    %v3958 = vshrl.u32 %v3957, 7
    %v3959 = vsub.s32 %v3956, %v3958
    %v3960 = vrot.slane %v3944, %v3959
    %v3962 = vunpack.c.l.s4 1966171168
    %v3963 = vunpack.c.0.s8 %v3962
    %v3964 = vlaneseq
    %v3965 = vshrl.u32 %v3964, 7
    %v3966 = vsub.s32 %v3963, %v3965
    %v3967 = vrot.slane %v3945, %v3966
    %v3969 = vunpack.c.l.s4 1966171168
    %v3970 = vunpack.c.0.s8 %v3969
    %v3971 = vlaneseq
    %v3972 = vshrl.u32 %v3971, 7
    %v3973 = vsub.s32 %v3970, %v3972
    %v3974 = vrot.slane %v3946, %v3973
    %v3975 = vcombine.high %v3953, %v3953
    %v3976 = vcombine.high %v3967, %v3967
    %v3991 = vmax.f32 %v3904, 0.0
    %v3992 = vmax.f32 %v3918, 0.0
    %v3993 = vmax.f32 %v3926, 0.0
    %v3994 = vmax.f32 %v3928, 0.0
    %v3995 = vmax.f32 %v3911, 0.0
    %v3996 = vmax.f32 %v3925, 0.0
    %v3997 = vmax.f32 %v3927, 0.0
    %v3998 = vmax.f32 %v3929, 0.0
    %v3999 = vmax.f32 %v3953, 0.0
    %v4000 = vmax.f32 %v3967, 0.0
    %v4001 = vmax.f32 %v3975, 0.0
    %v4002 = vmax.f32 %v3976, 0.0
    %v4003 = vmax.f32 %v3960, 0.0
    %v4004 = vmax.f32 %v3974, 0.0
    %v4005 = vld [vmem:[%s9] sm:$0xff]
    %v4006 = vld [vmem:[%s9 + $0x8] sm:$0xff]
    %v4007 = vld [vmem:[%s9 + $0x10] sm:$0xff]
    %v4008 = vld [vmem:[%s9 + $0x18] sm:$0xff]
    %v4009 = vld [vmem:[%s9 + $0x20] sm:$0xff]
    %v4010 = vld [vmem:[%s9 + $0x28] sm:$0xff]
    %v4011 = vld [vmem:[%s9 + $0x30] sm:$0xff]
    %v4012 = vld [vmem:[%s9 + $0x38] sm:$0xff]
    %v4013 = vld [vmem:[%s10] sm:$0x1]
    %v4015 = vlaneseq
    %v4016 = vshrl.u32 %v4015, 7
    %v4017 = vsub.s32 0, %v4016
    %v4018 = vrot.slane %v4013, %v4017
    %v4019 = vcombine.high %v4018, %v4018
    %v4021 = vunpack.c.l.s4 1966171168
    %v4022 = vunpack.c.0.s8 %v4021
    %v4023 = vlaneseq
    %v4024 = vshrl.u32 %v4023, 7
    %v4025 = vsub.s32 %v4022, %v4024
    %v4026 = vrot.slane %v4018, %v4025
    %v4028 = vunpack.c.l.s4 1966171168
    %v4029 = vunpack.c.0.s8 %v4028
    %v4030 = vlaneseq
    %v4031 = vshrl.u32 %v4030, 7
    %v4032 = vsub.s32 %v4029, %v4031
    %v4033 = vrot.slane %v4019, %v4032
    %v4034 = vcombine.high %v4026, %v4026
    %v4035 = vcombine.high %v4033, %v4033
    %v4037 = vunpack.c.l.s4 1966171168
    %v4038 = vunpack.c.0.s8 %v4037
    %v4039 = vlaneseq
    %v4040 = vshrl.u32 %v4039, 7
    %v4041 = vsub.s32 %v4038, %v4040
    %v4042 = vrot.slane %v4026, %v4041
    %v4044 = vunpack.c.l.s4 1966171168
    %v4045 = vunpack.c.0.s8 %v4044
    %v4046 = vlaneseq
    %v4047 = vshrl.u32 %v4046, 7
    %v4048 = vsub.s32 %v4045, %v4047
    %v4049 = vrot.slane %v4033, %v4048
    %v4051 = vunpack.c.l.s4 1966171168
    %v4052 = vunpack.c.0.s8 %v4051
    %v4053 = vlaneseq
    %v4054 = vshrl.u32 %v4053, 7
    %v4055 = vsub.s32 %v4052, %v4054
    %v4056 = vrot.slane %v4034, %v4055
    %v4058 = vunpack.c.l.s4 1966171168
    %v4059 = vunpack.c.0.s8 %v4058
    %v4060 = vlaneseq
    %v4061 = vshrl.u32 %v4060, 7
    %v4062 = vsub.s32 %v4059, %v4061
    %v4063 = vrot.slane %v4035, %v4062
    %v4064 = vcombine.high %v4042, %v4042
    %v4065 = vcombine.high %v4049, %v4049
    %v4066 = vcombine.high %v4056, %v4056
    %v4081 = vcombine.low %v3991, %v3992
    %v4082 = vcombine.low %v3993, %v3994
    %v4083 = vcombine.low %v3995, %v3996
    %v4084 = vcombine.low %v3997, %v3998
    %v4086 = vunpack.c.l.s4 1966171168
    %v4087 = vunpack.c.0.s8 %v4086
    %v4088 = vlaneseq
    %v4089 = vshrl.u32 %v4088, 7
    %v4090 = vsub.s32 %v4087, %v4089
    %v4091 = vrot.slane %v4081, %v4090
    %v4093 = vunpack.c.l.s4 1966171168
    %v4094 = vunpack.c.0.s8 %v4093
    %v4095 = vlaneseq
    %v4096 = vshrl.u32 %v4095, 7
    %v4097 = vsub.s32 %v4094, %v4096
    %v4098 = vrot.slane %v4082, %v4097
    %v4100 = vunpack.c.l.s4 1966171168
    %v4101 = vunpack.c.0.s8 %v4100
    %v4102 = vlaneseq
    %v4103 = vshrl.u32 %v4102, 7
    %v4104 = vsub.s32 %v4101, %v4103
    %v4105 = vrot.slane %v4083, %v4104
    %v4107 = vunpack.c.l.s4 1966171168
    %v4108 = vunpack.c.0.s8 %v4107
    %v4109 = vlaneseq
    %v4110 = vshrl.u32 %v4109, 7
    %v4111 = vsub.s32 %v4108, %v4110
    %v4112 = vrot.slane %v4084, %v4111
    %v4113 = vcombine.low %v4091, %v4098
    %v4114 = vcombine.low %v4105, %v4112
    %v4116 = vunpack.c.l.s4 1966171168
    %v4117 = vunpack.c.0.s8 %v4116
    %v4118 = vlaneseq
    %v4119 = vshrl.u32 %v4118, 7
    %v4120 = vsub.s32 %v4117, %v4119
    %v4121 = vrot.slane %v4113, %v4120
    %v4123 = vunpack.c.l.s4 1966171168
    %v4124 = vunpack.c.0.s8 %v4123
    %v4125 = vlaneseq
    %v4126 = vshrl.u32 %v4125, 7
    %v4127 = vsub.s32 %v4124, %v4126
    %v4128 = vrot.slane %v4114, %v4127
    %v4129 = vcombine.low %v4121, %v4128
    %v4130 = vcombine.low %v3999, %v4000
    %v4131 = vcombine.low %v4001, %v4002
    %v4132 = vcombine.low %v4003, %v4004
    %v4134 = vunpack.c.l.s4 1966171168
    %v4135 = vunpack.c.0.s8 %v4134
    %v4136 = vlaneseq
    %v4137 = vshrl.u32 %v4136, 7
    %v4138 = vsub.s32 %v4135, %v4137
    %v4139 = vrot.slane %v4130, %v4138
    %v4141 = vunpack.c.l.s4 1966171168
    %v4142 = vunpack.c.0.s8 %v4141
    %v4143 = vlaneseq
    %v4144 = vshrl.u32 %v4143, 7
    %v4145 = vsub.s32 %v4142, %v4144
    %v4146 = vrot.slane %v4131, %v4145
    %v4148 = vunpack.c.l.s4 1966171168
    %v4149 = vunpack.c.0.s8 %v4148
    %v4150 = vlaneseq
    %v4151 = vshrl.u32 %v4150, 7
    %v4152 = vsub.s32 %v4149, %v4151
    %v4153 = vrot.slane %v4132, %v4152
    %v4154 = vcombine.low %v4139, %v4146
    %v4156 = vunpack.c.l.s4 1966171168
    %v4157 = vunpack.c.0.s8 %v4156
    %v4158 = vlaneseq
    %v4159 = vshrl.u32 %v4158, 7
    %v4160 = vsub.s32 %v4157, %v4159
    %v4161 = vrot.slane %v4154, %v4160
    %v4163 = vunpack.c.l.s4 1966171168
    %v4164 = vunpack.c.0.s8 %v4163
    %v4165 = vlaneseq
    %v4166 = vshrl.u32 %v4165, 7
    %v4167 = vsub.s32 %v4164, %v4166
    %v4168 = vrot.slane %v4153, %v4167
    %v4169 = vcombine.low %v4161, %v4168
    %v4170 = vcombine.low %v4042, %v4056
    %v4171 = vcombine.low %v4064, %v4066
    %v4172 = vcombine.low %v4049, %v4063
    %v4173 = vcombine.low %v4065, %v4042
    %v4175 = vunpack.c.l.s4 1966171168
    %v4176 = vunpack.c.0.s8 %v4175
    %v4177 = vlaneseq
    %v4178 = vshrl.u32 %v4177, 7
    %v4179 = vsub.s32 %v4176, %v4178
    %v4180 = vrot.slane %v4170, %v4179
    %v4182 = vunpack.c.l.s4 1966171168
    %v4183 = vunpack.c.0.s8 %v4182
    %v4184 = vlaneseq
    %v4185 = vshrl.u32 %v4184, 7
    %v4186 = vsub.s32 %v4183, %v4185
    %v4187 = vrot.slane %v4171, %v4186
    %v4189 = vunpack.c.l.s4 1966171168
    %v4190 = vunpack.c.0.s8 %v4189
    %v4191 = vlaneseq
    %v4192 = vshrl.u32 %v4191, 7
    %v4193 = vsub.s32 %v4190, %v4192
    %v4194 = vrot.slane %v4172, %v4193
    %v4196 = vunpack.c.l.s4 1966171168
    %v4197 = vunpack.c.0.s8 %v4196
    %v4198 = vlaneseq
    %v4199 = vshrl.u32 %v4198, 7
    %v4200 = vsub.s32 %v4197, %v4199
    %v4201 = vrot.slane %v4173, %v4200
    %v4202 = vcombine.low %v4180, %v4187
    %v4203 = vcombine.low %v4194, %v4201
    %v4205 = vunpack.c.l.s4 1966171168
    %v4206 = vunpack.c.0.s8 %v4205
    %v4207 = vlaneseq
    %v4208 = vshrl.u32 %v4207, 7
    %v4209 = vsub.s32 %v4206, %v4208
    %v4210 = vrot.slane %v4202, %v4209
    %v4212 = vunpack.c.l.s4 1966171168
    %v4213 = vunpack.c.0.s8 %v4212
    %v4214 = vlaneseq
    %v4215 = vshrl.u32 %v4214, 7
    %v4216 = vsub.s32 %v4213, %v4215
    %v4217 = vrot.slane %v4203, %v4216
    %v4218 = vcombine.low %v4210, %v4217
    %v4219 = vcombine.low %v4056, %v4064
    %v4220 = vcombine.low %v4066, %v4049
    %v4221 = vcombine.low %v4063, %v4065
    %v4223 = vunpack.c.l.s4 1966171168
    %v4224 = vunpack.c.0.s8 %v4223
    %v4225 = vlaneseq
    %v4226 = vshrl.u32 %v4225, 7
    %v4227 = vsub.s32 %v4224, %v4226
    %v4228 = vrot.slane %v4219, %v4227
    %v4230 = vunpack.c.l.s4 1966171168
    %v4231 = vunpack.c.0.s8 %v4230
    %v4232 = vlaneseq
    %v4233 = vshrl.u32 %v4232, 7
    %v4234 = vsub.s32 %v4231, %v4233
    %v4235 = vrot.slane %v4220, %v4234
    %v4237 = vunpack.c.l.s4 1966171168
    %v4238 = vunpack.c.0.s8 %v4237
    %v4239 = vlaneseq
    %v4240 = vshrl.u32 %v4239, 7
    %v4241 = vsub.s32 %v4238, %v4240
    %v4242 = vrot.slane %v4221, %v4241
    %v4243 = vcombine.low %v4228, %v4235
    %v4245 = vunpack.c.l.s4 1966171168
    %v4246 = vunpack.c.0.s8 %v4245
    %v4247 = vlaneseq
    %v4248 = vshrl.u32 %v4247, 7
    %v4249 = vsub.s32 %v4246, %v4248
    %v4250 = vrot.slane %v4243, %v4249
    %v4252 = vunpack.c.l.s4 1966171168
    %v4253 = vunpack.c.0.s8 %v4252
    %v4254 = vlaneseq
    %v4255 = vshrl.u32 %v4254, 7
    %v4256 = vsub.s32 %v4253, %v4255
    %v4257 = vrot.slane %v4242, %v4256
    %v4258 = vcombine.low %v4250, %v4257
    %vm4261 = vcmask 523264
    %v4262 = vsel %vm4261, %v4129, 0
    %v4264 = vsel %vm4261, %v4169, 0
    %4266 = vmatprep.subr.mxu0 0.0
    %4267 = vmatpush1.msra.mxu0 0.0
    %4268 = vmatprep.subr.mxu0 0.0
    %4269 = vmatpush1.msra.mxu0 0.0
    %4270 = vmatprep.subr.mxu0 0.0
    %4271 = vmatpush1.msra.mxu0 0.0
    %4272 = vmatprep.subr.mxu0 0.0
    %4273 = vmatpush1.msra.mxu0 0.0
    %4274 = vmatprep.subr.mxu0 0.0
    %4275 = vmatpush1.msra.mxu0 0.0
    %4276 = vmatprep.subr.mxu0 0.0
    %4277 = vmatpush1.msra.mxu0 0.0
    %4278 = vmatprep.subr.mxu0 0.0
    %4279 = vmatpush1.msra.mxu0 0.0
    %4280 = vmatprep.subr.mxu0 0.0
    %4281 = vmatpush1.msra.mxu0 0.0
    %4282 = vmatprep.subr.mxu0 0.0
    %4283 = vmatpush1.msra.mxu0 %v4012
    %4284 = vmatprep.subr.mxu0 0.0
    %4285 = vmatpush1.msra.mxu0 %v4011
    %4286 = vmatprep.subr.mxu0 0.0
    %4287 = vmatpush1.msra.mxu0 %v4010
    %4288 = vmatprep.subr.mxu0 0.0
    %4289 = vmatpush1.msra.mxu0 %v4009
    %4290 = vmatprep.subr.mxu0 0.0
    %4291 = vmatpush1.msra.mxu0 %v4008
    %4292 = vmatprep.subr.mxu0 0.0
    %4293 = vmatpush1.msra.mxu0 %v4007
    %4294 = vmatprep.subr.mxu0 0.0
    %4295 = vmatpush1.msra.mxu0 %v4006
    %4296 = vmatprep.subr.mxu0 0.0
    %4297 = vmatpush1.msra.mxu0 %v4005
    %4298 = vmatprep.subr.mxu0 0.0
    %4299 = vmatpush2.msra.mxu0 0.0
    %4300 = vmatprep.subr.mxu0 0.0
    %4301 = vmatpush2.msra.mxu0 0.0
    %4302 = vmatprep.subr.mxu0 0.0
    %4303 = vmatpush2.msra.mxu0 0.0
    %4304 = vmatprep.subr.mxu0 0.0
    %4305 = vmatpush2.msra.mxu0 0.0
    %4306 = vmatprep.subr.mxu0 0.0
    %4307 = vmatpush2.msra.mxu0 0.0
    %4308 = vmatprep.subr.mxu0 0.0
    %4309 = vmatpush2.msra.mxu0 0.0
    %4310 = vmatprep.subr.mxu0 0.0
    %4311 = vmatpush2.msra.mxu0 0.0
    %4312 = vmatprep.subr.mxu0 0.0
    %4313 = vmatpush2.msra.mxu0 0.0
    %4314 = vmatprep.subr.mxu0 0.0
    %4315 = vmatpush2.msra.mxu0 0.0
    %4316 = vmatprep.subr.mxu0 0.0
    %4317 = vmatpush2.msra.mxu0 0.0
    %4318 = vmatprep.subr.mxu0 0.0
    %4319 = vmatpush2.msra.mxu0 0.0
    %4320 = vmatprep.subr.mxu0 0.0
    %4321 = vmatpush2.msra.mxu0 0.0
    %4322 = vmatprep.subr.mxu0 0.0
    %4323 = vmatpush2.msra.mxu0 0.0
    %4324 = vmatprep.subr.mxu0 0.0
    %4325 = vmatpush2.msra.mxu0 0.0
    %4326 = vmatprep.subr.mxu0 0.0
    %4327 = vmatpush2.msra.mxu0 0.0
    %4328 = vmatprep.subr.mxu0 0.0
    %4329 = vmatpush2.msra.mxu0 0.0
    %4330 = vmatprep.mubr.f32.mxu0 0.0
    %4331 = vmatmul.mubr.f32.gmra.mxu0 %v4262
    %v4332 = vpop.f32.mrf.mxu0
    %v4333 = vadd.f32 %v4218, %v4332
    %v4334 = vpop.f32.mrf.mxu0
    %4335 = vmatprep.mubr.f32.mxu0 0.0
    %4336 = vmatmul.mubr.f32.gmra.mxu0 %v4264
    %v4337 = vpop.f32.mrf.mxu0
    %v4338 = vadd.f32 %v4258, %v4337
    %v4339 = vpop.f32.mrf.mxu0
    %4340 = vdwg.mxu0
    %v4343 = vcombine.high %v4333, %v4333
    %v4345 = vunpack.c.l.s4 1966171168
    %v4346 = vunpack.c.0.s8 %v4345
    %v4347 = vlaneseq
    %v4348 = vshrl.u32 %v4347, 7
    %v4349 = vsub.s32 %v4346, %v4348
    %v4350 = vrot.slane %v4333, %v4349
    %v4352 = vunpack.c.l.s4 1966171168
    %v4353 = vunpack.c.0.s8 %v4352
    %v4354 = vlaneseq
    %v4355 = vshrl.u32 %v4354, 7
    %v4356 = vsub.s32 %v4353, %v4355
    %v4357 = vrot.slane %v4343, %v4356
    %v4358 = vcombine.high %v4350, %v4350
    %v4359 = vcombine.high %v4357, %v4357
    %v4361 = vunpack.c.l.s4 1966171168
    %v4362 = vunpack.c.0.s8 %v4361
    %v4363 = vlaneseq
    %v4364 = vshrl.u32 %v4363, 7
    %v4365 = vsub.s32 %v4362, %v4364
    %v4366 = vrot.slane %v4350, %v4365
    %v4368 = vunpack.c.l.s4 1966171168
    %v4369 = vunpack.c.0.s8 %v4368
    %v4370 = vlaneseq
    %v4371 = vshrl.u32 %v4370, 7
    %v4372 = vsub.s32 %v4369, %v4371
    %v4373 = vrot.slane %v4357, %v4372
    %v4375 = vunpack.c.l.s4 1966171168
    %v4376 = vunpack.c.0.s8 %v4375
    %v4377 = vlaneseq
    %v4378 = vshrl.u32 %v4377, 7
    %v4379 = vsub.s32 %v4376, %v4378
    %v4380 = vrot.slane %v4358, %v4379
    %v4382 = vunpack.c.l.s4 1966171168
    %v4383 = vunpack.c.0.s8 %v4382
    %v4384 = vlaneseq
    %v4385 = vshrl.u32 %v4384, 7
    %v4386 = vsub.s32 %v4383, %v4385
    %v4387 = vrot.slane %v4359, %v4386
    %v4388 = vcombine.high %v4366, %v4366
    %v4389 = vcombine.high %v4373, %v4373
    %v4390 = vcombine.high %v4380, %v4380
    %v4391 = vcombine.high %v4387, %v4387
    %v4392 = vcombine.high %v4338, %v4338
    %v4394 = vunpack.c.l.s4 1966171168
    %v4395 = vunpack.c.0.s8 %v4394
    %v4396 = vlaneseq
    %v4397 = vshrl.u32 %v4396, 7
    %v4398 = vsub.s32 %v4395, %v4397
    %v4399 = vrot.slane %v4338, %v4398
    %v4401 = vunpack.c.l.s4 1966171168
    %v4402 = vunpack.c.0.s8 %v4401
    %v4403 = vlaneseq
    %v4404 = vshrl.u32 %v4403, 7
    %v4405 = vsub.s32 %v4402, %v4404
    %v4406 = vrot.slane %v4392, %v4405
    %v4407 = vcombine.high %v4399, %v4399
    %v4408 = vcombine.high %v4406, %v4406
    %v4410 = vunpack.c.l.s4 1966171168
    %v4411 = vunpack.c.0.s8 %v4410
    %v4412 = vlaneseq
    %v4413 = vshrl.u32 %v4412, 7
    %v4414 = vsub.s32 %v4411, %v4413
    %v4415 = vrot.slane %v4399, %v4414
    %v4417 = vunpack.c.l.s4 1966171168
    %v4418 = vunpack.c.0.s8 %v4417
    %v4419 = vlaneseq
    %v4420 = vshrl.u32 %v4419, 7
    %v4421 = vsub.s32 %v4418, %v4420
    %v4422 = vrot.slane %v4406, %v4421
    %v4424 = vunpack.c.l.s4 1966171168
    %v4425 = vunpack.c.0.s8 %v4424
    %v4426 = vlaneseq
    %v4427 = vshrl.u32 %v4426, 7
    %v4428 = vsub.s32 %v4425, %v4427
    %v4429 = vrot.slane %v4407, %v4428
    %v4431 = vunpack.c.l.s4 1966171168
    %v4432 = vunpack.c.0.s8 %v4431
    %v4433 = vlaneseq
    %v4434 = vshrl.u32 %v4433, 7
    %v4435 = vsub.s32 %v4432, %v4434
    %v4436 = vrot.slane %v4408, %v4435
    %v4437 = vcombine.high %v4415, %v4415
    %v4438 = vcombine.high %v4429, %v4429
    %v4453 = vadd.f32 %v3534, %v4366
    %v4454 = vadd.f32 %v3535, %v4380
    %v4455 = vadd.f32 %v3536, %v4388
    %v4456 = vadd.f32 %v3537, %v4390
    %v4457 = vadd.f32 %v3538, %v4373
    %v4458 = vadd.f32 %v3539, %v4387
    %v4459 = vadd.f32 %v3540, %v4389
    %v4460 = vadd.f32 %v3541, %v4391
    %v4461 = vadd.f32 %v3542, %v4415
    %v4462 = vadd.f32 %v3543, %v4429
    %v4463 = vadd.f32 %v3544, %v4437
    %v4464 = vadd.f32 %v3545, %v4438
    %v4465 = vadd.f32 %v3546, %v4422
    %v4466 = vadd.f32 %v3547, %v4436
    %v4481 = vcombine.low %v4453, %v4454
    %v4482 = vcombine.low %v4455, %v4456
    %v4483 = vcombine.low %v4457, %v4458
    %v4485 = vunpack.c.l.s4 1966171168
    %v4486 = vunpack.c.0.s8 %v4485
    %v4487 = vlaneseq
    %v4488 = vshrl.u32 %v4487, 7
    %v4489 = vsub.s32 %v4486, %v4488
    %v4490 = vrot.slane %v4481, %v4489
    %v4492 = vunpack.c.l.s4 1966171168
    %v4493 = vunpack.c.0.s8 %v4492
    %v4494 = vlaneseq
    %v4495 = vshrl.u32 %v4494, 7
    %v4496 = vsub.s32 %v4493, %v4495
    %v4497 = vrot.slane %v4482, %v4496
    %v4499 = vunpack.c.l.s4 1966171168
    %v4500 = vunpack.c.0.s8 %v4499
    %v4501 = vlaneseq
    %v4502 = vshrl.u32 %v4501, 7
    %v4503 = vsub.s32 %v4500, %v4502
    %v4504 = vrot.slane %v4483, %v4503
    %v4506 = vunpack.c.l.s4 1966171168
    %v4507 = vunpack.c.0.s8 %v4506
    %v4508 = vlaneseq
    %v4509 = vshrl.u32 %v4508, 7
    %v4510 = vsub.s32 %v4507, %v4509
    %v4511 = vrot.slane %v4459, %v4510
    %v4512 = vcombine.low %v4490, %v4497
    %v4513 = vcombine.low %v4504, %v4511
    %v4515 = vunpack.c.l.s4 1966171168
    %v4516 = vunpack.c.0.s8 %v4515
    %v4517 = vlaneseq
    %v4518 = vshrl.u32 %v4517, 7
    %v4519 = vsub.s32 %v4516, %v4518
    %v4520 = vrot.slane %v4512, %v4519
    %v4522 = vunpack.c.l.s4 1966171168
    %v4523 = vunpack.c.0.s8 %v4522
    %v4524 = vlaneseq
    %v4525 = vshrl.u32 %v4524, 7
    %v4526 = vsub.s32 %v4523, %v4525
    %v4527 = vrot.slane %v4513, %v4526
    %v4528 = vcombine.low %v4520, %v4527
    %v4529 = vcombine.low %v4460, %v4461
    %v4530 = vcombine.low %v4462, %v4463
    %v4531 = vcombine.low %v4464, %v4465
    %v4533 = vunpack.c.l.s4 1966171168
    %v4534 = vunpack.c.0.s8 %v4533
    %v4535 = vlaneseq
    %v4536 = vshrl.u32 %v4535, 7
    %v4537 = vsub.s32 %v4534, %v4536
    %v4538 = vrot.slane %v4529, %v4537
    %v4540 = vunpack.c.l.s4 1966171168
    %v4541 = vunpack.c.0.s8 %v4540
    %v4542 = vlaneseq
    %v4543 = vshrl.u32 %v4542, 7
    %v4544 = vsub.s32 %v4541, %v4543
    %v4545 = vrot.slane %v4530, %v4544
    %v4547 = vunpack.c.l.s4 1966171168
    %v4548 = vunpack.c.0.s8 %v4547
    %v4549 = vlaneseq
    %v4550 = vshrl.u32 %v4549, 7
    %v4551 = vsub.s32 %v4548, %v4550
    %v4552 = vrot.slane %v4531, %v4551
    %v4554 = vunpack.c.l.s4 1966171168
    %v4555 = vunpack.c.0.s8 %v4554
    %v4556 = vlaneseq
    %v4557 = vshrl.u32 %v4556, 7
    %v4558 = vsub.s32 %v4555, %v4557
    %v4559 = vrot.slane %v4466, %v4558
    %v4560 = vcombine.low %v4538, %v4545
    %v4561 = vcombine.low %v4552, %v4559
    %v4563 = vunpack.c.l.s4 1966171168
    %v4564 = vunpack.c.0.s8 %v4563
    %v4565 = vlaneseq
    %v4566 = vshrl.u32 %v4565, 7
    %v4567 = vsub.s32 %v4564, %v4566
    %v4568 = vrot.slane %v4560, %v4567
    %v4570 = vunpack.c.l.s4 1966171168
    %v4571 = vunpack.c.0.s8 %v4570
    %v4572 = vlaneseq
    %v4573 = vshrl.u32 %v4572, 7
    %v4574 = vsub.s32 %v4571, %v4573
    %v4575 = vrot.slane %v4561, %v4574
    %v4576 = vcombine.low %v4568, %v4575
    %v4579 = vsel %vm3080, %v4528, 0.0
    %4580 = vadd.xlane.f32.xlu0 %v4579
    %v4581 = vpop.xlane.xlu0 %4580
    %v4582 = vsel %vm3080, %v4576, 0.0
    %4583 = vadd.xlane.f32.xlu0 %v4582
    %v4584 = vpop.xlane.xlu0 %4583
    %v4585 = vmul.f32 %v4581, %v3087
    %v4586 = vmul.f32 %v4584, %v3087
    %v4589 = vlaneseq
    %v4590 = vshrl.u32 %v4589, 7
    %v4591 = vsub.s32 0, %v4590
    %v4592 = vrot.slane %v4585, %v4591
    %v4593 = vlaneseq
    %v4594 = vshrl.u32 %v4593, 7
    %v4595 = vsub.s32 1, %v4594
    %v4596 = vrot.slane %v4585, %v4595
    %v4597 = vlaneseq
    %v4598 = vshrl.u32 %v4597, 7
    %v4599 = vsub.s32 2, %v4598
    %v4600 = vrot.slane %v4585, %v4599
    %v4601 = vlaneseq
    %v4602 = vshrl.u32 %v4601, 7
    %v4603 = vsub.s32 3, %v4602
    %v4604 = vrot.slane %v4585, %v4603
    %v4605 = vlaneseq
    %v4606 = vshrl.u32 %v4605, 7
    %v4607 = vsub.s32 4, %v4606
    %v4608 = vrot.slane %v4585, %v4607
    %v4609 = vlaneseq
    %v4610 = vshrl.u32 %v4609, 7
    %v4611 = vsub.s32 5, %v4610
    %v4612 = vrot.slane %v4585, %v4611
    %v4613 = vlaneseq
    %v4614 = vshrl.u32 %v4613, 7
    %v4615 = vsub.s32 6, %v4614
    %v4616 = vrot.slane %v4585, %v4615
    %v4617 = vlaneseq
    %v4618 = vshrl.u32 %v4617, 7
    %v4619 = vsub.s32 0, %v4618
    %v4620 = vrot.slane %v4586, %v4619
    %v4621 = vlaneseq
    %v4622 = vshrl.u32 %v4621, 7
    %v4623 = vsub.s32 1, %v4622
    %v4624 = vrot.slane %v4586, %v4623
    %v4625 = vlaneseq
    %v4626 = vshrl.u32 %v4625, 7
    %v4627 = vsub.s32 2, %v4626
    %v4628 = vrot.slane %v4586, %v4627
    %v4629 = vlaneseq
    %v4630 = vshrl.u32 %v4629, 7
    %v4631 = vsub.s32 3, %v4630
    %v4632 = vrot.slane %v4586, %v4631
    %v4633 = vlaneseq
    %v4634 = vshrl.u32 %v4633, 7
    %v4635 = vsub.s32 4, %v4634
    %v4636 = vrot.slane %v4586, %v4635
    %v4637 = vlaneseq
    %v4638 = vshrl.u32 %v4637, 7
    %v4639 = vsub.s32 5, %v4638
    %v4640 = vrot.slane %v4586, %v4639
    %v4641 = vlaneseq
    %v4642 = vshrl.u32 %v4641, 7
    %v4643 = vsub.s32 6, %v4642
    %v4644 = vrot.slane %v4586, %v4643
    %v4659 = vsub.f32 %v4453, %v4592
    %v4660 = vsub.f32 %v4454, %v4596
    %v4661 = vsub.f32 %v4455, %v4600
    %v4662 = vsub.f32 %v4456, %v4604
    %v4663 = vsub.f32 %v4457, %v4608
    %v4664 = vsub.f32 %v4458, %v4612
    %v4665 = vsub.f32 %v4459, %v4616
    %v4666 = vsub.f32 %v4460, %v4620
    %v4667 = vsub.f32 %v4461, %v4624
    %v4668 = vsub.f32 %v4462, %v4628
    %v4669 = vsub.f32 %v4463, %v4632
    %v4670 = vsub.f32 %v4464, %v4636
    %v4671 = vsub.f32 %v4465, %v4640
    %v4672 = vsub.f32 %v4466, %v4644
    %v4673 = vmul.f32 %v4659, %v4659
    %v4674 = vmul.f32 %v4660, %v4660
    %v4675 = vmul.f32 %v4661, %v4661
    %v4676 = vmul.f32 %v4662, %v4662
    %v4677 = vmul.f32 %v4663, %v4663
    %v4678 = vmul.f32 %v4664, %v4664
    %v4679 = vmul.f32 %v4665, %v4665
    %v4680 = vmul.f32 %v4666, %v4666
    %v4681 = vmul.f32 %v4667, %v4667
    %v4682 = vmul.f32 %v4668, %v4668
    %v4683 = vmul.f32 %v4669, %v4669
    %v4684 = vmul.f32 %v4670, %v4670
    %v4685 = vmul.f32 %v4671, %v4671
    %v4686 = vmul.f32 %v4672, %v4672
    %v4701 = vcombine.low %v4673, %v4674
    %v4702 = vcombine.low %v4675, %v4676
    %v4703 = vcombine.low %v4677, %v4678
    %v4705 = vunpack.c.l.s4 1966171168
    %v4706 = vunpack.c.0.s8 %v4705
    %v4707 = vlaneseq
    %v4708 = vshrl.u32 %v4707, 7
    %v4709 = vsub.s32 %v4706, %v4708
    %v4710 = vrot.slane %v4701, %v4709
    %v4712 = vunpack.c.l.s4 1966171168
    %v4713 = vunpack.c.0.s8 %v4712
    %v4714 = vlaneseq
    %v4715 = vshrl.u32 %v4714, 7
    %v4716 = vsub.s32 %v4713, %v4715
    %v4717 = vrot.slane %v4702, %v4716
    %v4719 = vunpack.c.l.s4 1966171168
    %v4720 = vunpack.c.0.s8 %v4719
    %v4721 = vlaneseq
    %v4722 = vshrl.u32 %v4721, 7
    %v4723 = vsub.s32 %v4720, %v4722
    %v4724 = vrot.slane %v4703, %v4723
    %v4726 = vunpack.c.l.s4 1966171168
    %v4727 = vunpack.c.0.s8 %v4726
    %v4728 = vlaneseq
    %v4729 = vshrl.u32 %v4728, 7
    %v4730 = vsub.s32 %v4727, %v4729
    %v4731 = vrot.slane %v4679, %v4730
    %v4732 = vcombine.low %v4710, %v4717
    %v4733 = vcombine.low %v4724, %v4731
    %v4735 = vunpack.c.l.s4 1966171168
    %v4736 = vunpack.c.0.s8 %v4735
    %v4737 = vlaneseq
    %v4738 = vshrl.u32 %v4737, 7
    %v4739 = vsub.s32 %v4736, %v4738
    %v4740 = vrot.slane %v4732, %v4739
    %v4742 = vunpack.c.l.s4 1966171168
    %v4743 = vunpack.c.0.s8 %v4742
    %v4744 = vlaneseq
    %v4745 = vshrl.u32 %v4744, 7
    %v4746 = vsub.s32 %v4743, %v4745
    %v4747 = vrot.slane %v4733, %v4746
    %v4748 = vcombine.low %v4740, %v4747
    %v4749 = vcombine.low %v4680, %v4681
    %v4750 = vcombine.low %v4682, %v4683
    %v4751 = vcombine.low %v4684, %v4685
    %v4753 = vunpack.c.l.s4 1966171168
    %v4754 = vunpack.c.0.s8 %v4753
    %v4755 = vlaneseq
    %v4756 = vshrl.u32 %v4755, 7
    %v4757 = vsub.s32 %v4754, %v4756
    %v4758 = vrot.slane %v4749, %v4757
    %v4760 = vunpack.c.l.s4 1966171168
    %v4761 = vunpack.c.0.s8 %v4760
    %v4762 = vlaneseq
    %v4763 = vshrl.u32 %v4762, 7
    %v4764 = vsub.s32 %v4761, %v4763
    %v4765 = vrot.slane %v4750, %v4764
    %v4767 = vunpack.c.l.s4 1966171168
    %v4768 = vunpack.c.0.s8 %v4767
    %v4769 = vlaneseq
    %v4770 = vshrl.u32 %v4769, 7
    %v4771 = vsub.s32 %v4768, %v4770
    %v4772 = vrot.slane %v4751, %v4771
    %v4774 = vunpack.c.l.s4 1966171168
    %v4775 = vunpack.c.0.s8 %v4774
    %v4776 = vlaneseq
    %v4777 = vshrl.u32 %v4776, 7
    %v4778 = vsub.s32 %v4775, %v4777
    %v4779 = vrot.slane %v4686, %v4778
    %v4780 = vcombine.low %v4758, %v4765
    %v4781 = vcombine.low %v4772, %v4779
    %v4783 = vunpack.c.l.s4 1966171168
    %v4784 = vunpack.c.0.s8 %v4783
    %v4785 = vlaneseq
    %v4786 = vshrl.u32 %v4785, 7
    %v4787 = vsub.s32 %v4784, %v4786
    %v4788 = vrot.slane %v4780, %v4787
    %v4790 = vunpack.c.l.s4 1966171168
    %v4791 = vunpack.c.0.s8 %v4790
    %v4792 = vlaneseq
    %v4793 = vshrl.u32 %v4792, 7
    %v4794 = vsub.s32 %v4791, %v4793
    %v4795 = vrot.slane %v4781, %v4794
    %v4796 = vcombine.low %v4788, %v4795
    %v4799 = vsel %vm3080, %v4748, 0.0
    %4800 = vadd.xlane.f32.xlu0 %v4799
    %v4801 = vpop.xlane.xlu0 %4800
    %v4802 = vsel %vm3080, %v4796, 0.0
    %4803 = vadd.xlane.f32.xlu0 %v4802
    %v4804 = vpop.xlane.xlu0 %4803
    %v4805 = vmul.f32 %v4801, %v3087
    %v4806 = vmul.f32 %v4804, %v3087
    %v4807 = vadd.f32 %v4805, 1e-05
    %v4808 = vadd.f32 %v4806, 1e-05
    %v4809 = vrsqrt.pop %v4807
    %v4810 = vrsqrt.pop %v4808
    %v4813 = vlaneseq
    %v4814 = vshrl.u32 %v4813, 7
    %v4815 = vsub.s32 0, %v4814
    %v4816 = vrot.slane %v4809, %v4815
    %v4817 = vlaneseq
    %v4818 = vshrl.u32 %v4817, 7
    %v4819 = vsub.s32 1, %v4818
    %v4820 = vrot.slane %v4809, %v4819
    %v4821 = vlaneseq
    %v4822 = vshrl.u32 %v4821, 7
    %v4823 = vsub.s32 2, %v4822
    %v4824 = vrot.slane %v4809, %v4823
    %v4825 = vlaneseq
    %v4826 = vshrl.u32 %v4825, 7
    %v4827 = vsub.s32 3, %v4826
    %v4828 = vrot.slane %v4809, %v4827
    %v4829 = vlaneseq
    %v4830 = vshrl.u32 %v4829, 7
    %v4831 = vsub.s32 4, %v4830
    %v4832 = vrot.slane %v4809, %v4831
    %v4833 = vlaneseq
    %v4834 = vshrl.u32 %v4833, 7
    %v4835 = vsub.s32 5, %v4834
    %v4836 = vrot.slane %v4809, %v4835
    %v4837 = vlaneseq
    %v4838 = vshrl.u32 %v4837, 7
    %v4839 = vsub.s32 6, %v4838
    %v4840 = vrot.slane %v4809, %v4839
    %v4841 = vlaneseq
    %v4842 = vshrl.u32 %v4841, 7
    %v4843 = vsub.s32 0, %v4842
    %v4844 = vrot.slane %v4810, %v4843
    %v4845 = vlaneseq
    %v4846 = vshrl.u32 %v4845, 7
    %v4847 = vsub.s32 1, %v4846
    %v4848 = vrot.slane %v4810, %v4847
    %v4849 = vlaneseq
    %v4850 = vshrl.u32 %v4849, 7
    %v4851 = vsub.s32 2, %v4850
    %v4852 = vrot.slane %v4810, %v4851
    %v4853 = vlaneseq
    %v4854 = vshrl.u32 %v4853, 7
    %v4855 = vsub.s32 3, %v4854
    %v4856 = vrot.slane %v4810, %v4855
    %v4857 = vlaneseq
    %v4858 = vshrl.u32 %v4857, 7
    %v4859 = vsub.s32 4, %v4858
    %v4860 = vrot.slane %v4810, %v4859
    %v4861 = vlaneseq
    %v4862 = vshrl.u32 %v4861, 7
    %v4863 = vsub.s32 5, %v4862
    %v4864 = vrot.slane %v4810, %v4863
    %v4865 = vlaneseq
    %v4866 = vshrl.u32 %v4865, 7
    %v4867 = vsub.s32 6, %v4866
    %v4868 = vrot.slane %v4810, %v4867
    %v4883 = vmul.f32 %v4659, %v4816
    %v4884 = vmul.f32 %v4660, %v4820
    %v4885 = vmul.f32 %v4661, %v4824
    %v4886 = vmul.f32 %v4662, %v4828
    %v4887 = vmul.f32 %v4663, %v4832
    %v4888 = vmul.f32 %v4664, %v4836
    %v4889 = vmul.f32 %v4665, %v4840
    %v4890 = vmul.f32 %v4666, %v4844
    %v4891 = vmul.f32 %v4667, %v4848
    %v4892 = vmul.f32 %v4668, %v4852
    %v4893 = vmul.f32 %v4669, %v4856
    %v4894 = vmul.f32 %v4670, %v4860
    %v4895 = vmul.f32 %v4671, %v4864
    %v4896 = vmul.f32 %v4672, %v4868
    %v4897 = vlaneseq
    %v4898 = vshrl.u32 %v4897, 7
    %v4899 = vsub.s32 2, %v4898
    %v4900 = vrot.slane %v623, %v4899
    %v4902 = vcombine.high %v4900, %v4900
    %v4904 = vunpack.c.l.s4 1966171168
    %v4905 = vunpack.c.0.s8 %v4904
    %v4906 = vlaneseq
    %v4907 = vshrl.u32 %v4906, 7
    %v4908 = vsub.s32 %v4905, %v4907
    %v4909 = vrot.slane %v4900, %v4908
    %v4911 = vunpack.c.l.s4 1966171168
    %v4912 = vunpack.c.0.s8 %v4911
    %v4913 = vlaneseq
    %v4914 = vshrl.u32 %v4913, 7
    %v4915 = vsub.s32 %v4912, %v4914
    %v4916 = vrot.slane %v4902, %v4915
    %v4917 = vcombine.high %v4909, %v4909
    %v4918 = vcombine.high %v4916, %v4916
    %v4920 = vunpack.c.l.s4 1966171168
    %v4921 = vunpack.c.0.s8 %v4920
    %v4922 = vlaneseq
    %v4923 = vshrl.u32 %v4922, 7
    %v4924 = vsub.s32 %v4921, %v4923
    %v4925 = vrot.slane %v4909, %v4924
    %v4927 = vunpack.c.l.s4 1966171168
    %v4928 = vunpack.c.0.s8 %v4927
    %v4929 = vlaneseq
    %v4930 = vshrl.u32 %v4929, 7
    %v4931 = vsub.s32 %v4928, %v4930
    %v4932 = vrot.slane %v4916, %v4931
    %v4934 = vunpack.c.l.s4 1966171168
    %v4935 = vunpack.c.0.s8 %v4934
    %v4936 = vlaneseq
    %v4937 = vshrl.u32 %v4936, 7
    %v4938 = vsub.s32 %v4935, %v4937
    %v4939 = vrot.slane %v4917, %v4938
    %v4941 = vunpack.c.l.s4 1966171168
    %v4942 = vunpack.c.0.s8 %v4941
    %v4943 = vlaneseq
    %v4944 = vshrl.u32 %v4943, 7
    %v4945 = vsub.s32 %v4942, %v4944
    %v4946 = vrot.slane %v4918, %v4945
    %v4947 = vcombine.high %v4925, %v4925
    %v4948 = vcombine.high %v4932, %v4932
    %v4949 = vcombine.high %v4939, %v4939
    %v4957 = vmul.f32 %v4883, %v4925
    %v4958 = vmul.f32 %v4884, %v4939
    %v4959 = vmul.f32 %v4885, %v4947
    %v4960 = vmul.f32 %v4886, %v4949
    %v4961 = vmul.f32 %v4887, %v4932
    %v4962 = vmul.f32 %v4888, %v4946
    %v4963 = vmul.f32 %v4889, %v4948
    %v4964 = vmul.f32 %v4890, %v4925
    %v4965 = vmul.f32 %v4891, %v4939
    %v4966 = vmul.f32 %v4892, %v4947
    %v4967 = vmul.f32 %v4893, %v4949
    %v4968 = vmul.f32 %v4894, %v4932
    %v4969 = vmul.f32 %v4895, %v4946
    %v4970 = vmul.f32 %v4896, %v4948
    %v4971 = vlaneseq
    %v4972 = vshrl.u32 %v4971, 7
    %v4973 = vsub.s32 3, %v4972
    %v4974 = vrot.slane %v623, %v4973
    %v4976 = vcombine.high %v4974, %v4974
    %v4978 = vunpack.c.l.s4 1966171168
    %v4979 = vunpack.c.0.s8 %v4978
    %v4980 = vlaneseq
    %v4981 = vshrl.u32 %v4980, 7
    %v4982 = vsub.s32 %v4979, %v4981
    %v4983 = vrot.slane %v4974, %v4982
    %v4985 = vunpack.c.l.s4 1966171168
    %v4986 = vunpack.c.0.s8 %v4985
    %v4987 = vlaneseq
    %v4988 = vshrl.u32 %v4987, 7
    %v4989 = vsub.s32 %v4986, %v4988
    %v4990 = vrot.slane %v4976, %v4989
    %v4991 = vcombine.high %v4983, %v4983
    %v4992 = vcombine.high %v4990, %v4990
    %v4994 = vunpack.c.l.s4 1966171168
    %v4995 = vunpack.c.0.s8 %v4994
    %v4996 = vlaneseq
    %v4997 = vshrl.u32 %v4996, 7
    %v4998 = vsub.s32 %v4995, %v4997
    %v4999 = vrot.slane %v4983, %v4998
    %v5001 = vunpack.c.l.s4 1966171168
    %v5002 = vunpack.c.0.s8 %v5001
    %v5003 = vlaneseq
    %v5004 = vshrl.u32 %v5003, 7
    %v5005 = vsub.s32 %v5002, %v5004
    %v5006 = vrot.slane %v4990, %v5005
    %v5008 = vunpack.c.l.s4 1966171168
    %v5009 = vunpack.c.0.s8 %v5008
    %v5010 = vlaneseq
    %v5011 = vshrl.u32 %v5010, 7
    %v5012 = vsub.s32 %v5009, %v5011
    %v5013 = vrot.slane %v4991, %v5012
    %v5015 = vunpack.c.l.s4 1966171168
    %v5016 = vunpack.c.0.s8 %v5015
    %v5017 = vlaneseq
    %v5018 = vshrl.u32 %v5017, 7
    %v5019 = vsub.s32 %v5016, %v5018
    %v5020 = vrot.slane %v4992, %v5019
    %v5021 = vcombine.high %v4999, %v4999
    %v5022 = vcombine.high %v5006, %v5006
    %v5023 = vcombine.high %v5013, %v5013
    %v5031 = vadd.f32 %v4957, %v4999
    %v5032 = vadd.f32 %v4958, %v5013
    %v5033 = vadd.f32 %v4959, %v5021
    %v5034 = vadd.f32 %v4960, %v5023
    %v5035 = vadd.f32 %v4961, %v5006
    %v5036 = vadd.f32 %v4962, %v5020
    %v5037 = vadd.f32 %v4963, %v5022
    %v5038 = vadd.f32 %v4964, %v4999
    %v5039 = vadd.f32 %v4965, %v5013
    %v5040 = vadd.f32 %v4966, %v5021
    %v5041 = vadd.f32 %v4967, %v5023
    %v5042 = vadd.f32 %v4968, %v5006
    %v5043 = vadd.f32 %v4969, %v5020
    %v5044 = vadd.f32 %v4970, %v5022
    %s5045 = scalar_lea.vmem %s3, 128
    %v5046 = vld [vmem:[%s5045] sm:$0xff]
    %v5047 = vld [vmem:[%s5045 + $0x8] sm:$0xff]
    %v5048 = vld [vmem:[%s5045 + $0x10] sm:$0xff]
    %v5049 = vld [vmem:[%s5045 + $0x18] sm:$0xff]
    %v5050 = vld [vmem:[%s5045 + $0x20] sm:$0xff]
    %v5051 = vld [vmem:[%s5045 + $0x28] sm:$0xff]
    %v5052 = vld [vmem:[%s5045 + $0x30] sm:$0xff]
    %v5053 = vld [vmem:[%s5045 + $0x38] sm:$0xff]
    %v5054 = vld [vmem:[%s5045 + $0x40] sm:$0xff]
    %v5055 = vld [vmem:[%s5045 + $0x48] sm:$0xff]
    %v5056 = vld [vmem:[%s5045 + $0x50] sm:$0xff]
    %v5057 = vld [vmem:[%s5045 + $0x58] sm:$0xff]
    %v5058 = vld [vmem:[%s5045 + $0x60] sm:$0xff]
    %v5059 = vld [vmem:[%s5045 + $0x68] sm:$0xff]
    %v5060 = vld [vmem:[%s5045 + $0x70] sm:$0xff]
    %v5061 = vld [vmem:[%s5045 + $0x78] sm:$0xff]
    %s5062 = scalar_lea.vmem %s4, 4
    %v5063 = vld [vmem:[%s5062] sm:$0x1]
    %v5064 = vld [vmem:[%s5062 + $0x1] sm:$0x1]
    %v5065 = vld [vmem:[%s5062 + $0x2] sm:$0x1]
    %v5066 = vld [vmem:[%s5062 + $0x3] sm:$0x1]
    %s5067 = scalar_lea.vmem %s5, 32
    %v5068 = vld [vmem:[%s5067] sm:$0xff]
    %v5069 = vld [vmem:[%s5067 + $0x8] sm:$0xff]
    %v5070 = vld [vmem:[%s5067 + $0x10] sm:$0xff]
    %v5071 = vld [vmem:[%s5067 + $0x18] sm:$0xff]
    %s5072 = scalar_lea.vmem %s6, 1
    %v5073 = vld [vmem:[%s5072] sm:$0x1]
    %v5078 = vlaneseq
    %v5079 = vshrl.u32 %v5078, 7
    %v5080 = vsub.s32 0, %v5079
    %v5081 = vrot.slane %v5063, %v5080
    %v5082 = vlaneseq
    %v5083 = vshrl.u32 %v5082, 7
    %v5084 = vsub.s32 0, %v5083
    %v5085 = vrot.slane %v5064, %v5084
    %v5086 = vlaneseq
    %v5087 = vshrl.u32 %v5086, 7
    %v5088 = vsub.s32 0, %v5087
    %v5089 = vrot.slane %v5065, %v5088
    %v5090 = vlaneseq
    %v5091 = vshrl.u32 %v5090, 7
    %v5092 = vsub.s32 0, %v5091
    %v5093 = vrot.slane %v5066, %v5092
    %v5105 = vcombine.low %v5031, %v5032
    %v5106 = vcombine.low %v5033, %v5034
    %v5107 = vcombine.low %v5035, %v5036
    %v5109 = vunpack.c.l.s4 1966171168
    %v5110 = vunpack.c.0.s8 %v5109
    %v5111 = vlaneseq
    %v5112 = vshrl.u32 %v5111, 7
    %v5113 = vsub.s32 %v5110, %v5112
    %v5114 = vrot.slane %v5105, %v5113
    %v5116 = vunpack.c.l.s4 1966171168
    %v5117 = vunpack.c.0.s8 %v5116
    %v5118 = vlaneseq
    %v5119 = vshrl.u32 %v5118, 7
    %v5120 = vsub.s32 %v5117, %v5119
    %v5121 = vrot.slane %v5106, %v5120
    %v5123 = vunpack.c.l.s4 1966171168
    %v5124 = vunpack.c.0.s8 %v5123
    %v5125 = vlaneseq
    %v5126 = vshrl.u32 %v5125, 7
    %v5127 = vsub.s32 %v5124, %v5126
    %v5128 = vrot.slane %v5107, %v5127
    %v5130 = vunpack.c.l.s4 1966171168
    %v5131 = vunpack.c.0.s8 %v5130
    %v5132 = vlaneseq
    %v5133 = vshrl.u32 %v5132, 7
    %v5134 = vsub.s32 %v5131, %v5133
    %v5135 = vrot.slane %v5037, %v5134
    %v5136 = vcombine.low %v5114, %v5121
    %v5137 = vcombine.low %v5128, %v5135
    %v5139 = vunpack.c.l.s4 1966171168
    %v5140 = vunpack.c.0.s8 %v5139
    %v5141 = vlaneseq
    %v5142 = vshrl.u32 %v5141, 7
    %v5143 = vsub.s32 %v5140, %v5142
    %v5144 = vrot.slane %v5136, %v5143
    %v5146 = vunpack.c.l.s4 1966171168
    %v5147 = vunpack.c.0.s8 %v5146
    %v5148 = vlaneseq
    %v5149 = vshrl.u32 %v5148, 7
    %v5150 = vsub.s32 %v5147, %v5149
    %v5151 = vrot.slane %v5137, %v5150
    %v5152 = vcombine.low %v5144, %v5151
    %v5153 = vsel %vm722, %v5152, 0
    %5155 = vmatprep.subr.mxu0 0.0
    %5156 = vmatpush1.msra.mxu0 0.0
    %5157 = vmatprep.subr.mxu0 0.0
    %5158 = vmatpush1.msra.mxu0 0.0
    %5159 = vmatprep.subr.mxu0 0.0
    %5160 = vmatpush1.msra.mxu0 0.0
    %5161 = vmatprep.subr.mxu0 0.0
    %5162 = vmatpush1.msra.mxu0 0.0
    %5163 = vmatprep.subr.mxu0 0.0
    %5164 = vmatpush1.msra.mxu0 0.0
    %5165 = vmatprep.subr.mxu0 0.0
    %5166 = vmatpush1.msra.mxu0 0.0
    %5167 = vmatprep.subr.mxu0 0.0
    %5168 = vmatpush1.msra.mxu0 0.0
    %5169 = vmatprep.subr.mxu0 0.0
    %5170 = vmatpush1.msra.mxu0 0.0
    %5171 = vmatprep.subr.mxu0 0.0
    %5172 = vmatpush1.msra.mxu0 0.0
    %5173 = vmatprep.subr.mxu0 0.0
    %5174 = vmatpush1.msra.mxu0 0.0
    %5175 = vmatprep.subr.mxu0 0.0
    %5176 = vmatpush1.msra.mxu0 0.0
    %5177 = vmatprep.subr.mxu0 0.0
    %5178 = vmatpush1.msra.mxu0 0.0
    %5179 = vmatprep.subr.mxu0 0.0
    %5180 = vmatpush1.msra.mxu0 %v5049
    %5181 = vmatprep.subr.mxu0 0.0
    %5182 = vmatpush1.msra.mxu0 %v5048
    %5183 = vmatprep.subr.mxu0 0.0
    %5184 = vmatpush1.msra.mxu0 %v5047
    %5185 = vmatprep.subr.mxu0 0.0
    %5186 = vmatpush1.msra.mxu0 %v5046
    %5187 = vmatprep.subr.mxu0 0.0
    %5188 = vmatpush2.msra.mxu0 0.0
    %5189 = vmatprep.subr.mxu0 0.0
    %5190 = vmatpush2.msra.mxu0 0.0
    %5191 = vmatprep.subr.mxu0 0.0
    %5192 = vmatpush2.msra.mxu0 0.0
    %5193 = vmatprep.subr.mxu0 0.0
    %5194 = vmatpush2.msra.mxu0 0.0
    %5195 = vmatprep.subr.mxu0 0.0
    %5196 = vmatpush2.msra.mxu0 0.0
    %5197 = vmatprep.subr.mxu0 0.0
    %5198 = vmatpush2.msra.mxu0 0.0
    %5199 = vmatprep.subr.mxu0 0.0
    %5200 = vmatpush2.msra.mxu0 0.0
    %5201 = vmatprep.subr.mxu0 0.0
    %5202 = vmatpush2.msra.mxu0 0.0
    %5203 = vmatprep.subr.mxu0 0.0
    %5204 = vmatpush2.msra.mxu0 0.0
    %5205 = vmatprep.subr.mxu0 0.0
    %5206 = vmatpush2.msra.mxu0 0.0
    %5207 = vmatprep.subr.mxu0 0.0
    %5208 = vmatpush2.msra.mxu0 0.0
    %5209 = vmatprep.subr.mxu0 0.0
    %5210 = vmatpush2.msra.mxu0 0.0
    %5211 = vmatprep.subr.mxu0 0.0
    %5212 = vmatpush2.msra.mxu0 0.0
    %5213 = vmatprep.subr.mxu0 0.0
    %5214 = vmatpush2.msra.mxu0 0.0
    %5215 = vmatprep.subr.mxu0 0.0
    %5216 = vmatpush2.msra.mxu0 0.0
    %5217 = vmatprep.subr.mxu0 0.0
    %5218 = vmatpush2.msra.mxu0 0.0
    %5219 = vmatprep.mubr.f32.mxu0 0.0
    %5220 = vmatmul.mubr.f32.gmra.mxu0 %v5153
    %v5221 = vpop.f32.mrf.mxu0
    %v5222 = vadd.f32 %v5081, %v5221
    %v5223 = vpop.f32.mrf.mxu0
    %5224 = vdwg.mxu0
    %5225 = vmatprep.subr.mxu0 0.0
    %5226 = vmatpush1.msra.mxu0 0.0
    %5227 = vmatprep.subr.mxu0 0.0
    %5228 = vmatpush1.msra.mxu0 0.0
    %5229 = vmatprep.subr.mxu0 0.0
    %5230 = vmatpush1.msra.mxu0 0.0
    %5231 = vmatprep.subr.mxu0 0.0
    %5232 = vmatpush1.msra.mxu0 0.0
    %5233 = vmatprep.subr.mxu0 0.0
    %5234 = vmatpush1.msra.mxu0 0.0
    %5235 = vmatprep.subr.mxu0 0.0
    %5236 = vmatpush1.msra.mxu0 0.0
    %5237 = vmatprep.subr.mxu0 0.0
    %5238 = vmatpush1.msra.mxu0 0.0
    %5239 = vmatprep.subr.mxu0 0.0
    %5240 = vmatpush1.msra.mxu0 0.0
    %5241 = vmatprep.subr.mxu0 0.0
    %5242 = vmatpush1.msra.mxu0 0.0
    %5243 = vmatprep.subr.mxu0 0.0
    %5244 = vmatpush1.msra.mxu0 0.0
    %5245 = vmatprep.subr.mxu0 0.0
    %5246 = vmatpush1.msra.mxu0 0.0
    %5247 = vmatprep.subr.mxu0 0.0
    %5248 = vmatpush1.msra.mxu0 0.0
    %5249 = vmatprep.subr.mxu0 0.0
    %5250 = vmatpush1.msra.mxu0 %v5053
    %5251 = vmatprep.subr.mxu0 0.0
    %5252 = vmatpush1.msra.mxu0 %v5052
    %5253 = vmatprep.subr.mxu0 0.0
    %5254 = vmatpush1.msra.mxu0 %v5051
    %5255 = vmatprep.subr.mxu0 0.0
    %5256 = vmatpush1.msra.mxu0 %v5050
    %5257 = vmatprep.subr.mxu0 0.0
    %5258 = vmatpush2.msra.mxu0 0.0
    %5259 = vmatprep.subr.mxu0 0.0
    %5260 = vmatpush2.msra.mxu0 0.0
    %5261 = vmatprep.subr.mxu0 0.0
    %5262 = vmatpush2.msra.mxu0 0.0
    %5263 = vmatprep.subr.mxu0 0.0
    %5264 = vmatpush2.msra.mxu0 0.0
    %5265 = vmatprep.subr.mxu0 0.0
    %5266 = vmatpush2.msra.mxu0 0.0
    %5267 = vmatprep.subr.mxu0 0.0
    %5268 = vmatpush2.msra.mxu0 0.0
    %5269 = vmatprep.subr.mxu0 0.0
    %5270 = vmatpush2.msra.mxu0 0.0
    %5271 = vmatprep.subr.mxu0 0.0
    %5272 = vmatpush2.msra.mxu0 0.0
    %5273 = vmatprep.subr.mxu0 0.0
    %5274 = vmatpush2.msra.mxu0 0.0
    %5275 = vmatprep.subr.mxu0 0.0
    %5276 = vmatpush2.msra.mxu0 0.0
    %5277 = vmatprep.subr.mxu0 0.0
    %5278 = vmatpush2.msra.mxu0 0.0
    %5279 = vmatprep.subr.mxu0 0.0
    %5280 = vmatpush2.msra.mxu0 0.0
    %5281 = vmatprep.subr.mxu0 0.0
    %5282 = vmatpush2.msra.mxu0 0.0
    %5283 = vmatprep.subr.mxu0 0.0
    %5284 = vmatpush2.msra.mxu0 0.0
    %5285 = vmatprep.subr.mxu0 0.0
    %5286 = vmatpush2.msra.mxu0 0.0
    %5287 = vmatprep.subr.mxu0 0.0
    %5288 = vmatpush2.msra.mxu0 0.0
    %5289 = vmatprep.mubr.f32.mxu0 0.0
    %5290 = vmatmul.mubr.f32.gmra.mxu0 %v5153
    %v5291 = vpop.f32.mrf.mxu0
    %v5292 = vadd.f32 %v5085, %v5291
    %v5293 = vpop.f32.mrf.mxu0
    %5294 = vdwg.mxu0
    %5295 = vmatprep.subr.mxu0 0.0
    %5296 = vmatpush1.msra.mxu0 0.0
    %5297 = vmatprep.subr.mxu0 0.0
    %5298 = vmatpush1.msra.mxu0 0.0
    %5299 = vmatprep.subr.mxu0 0.0
    %5300 = vmatpush1.msra.mxu0 0.0
    %5301 = vmatprep.subr.mxu0 0.0
    %5302 = vmatpush1.msra.mxu0 0.0
    %5303 = vmatprep.subr.mxu0 0.0
    %5304 = vmatpush1.msra.mxu0 0.0
    %5305 = vmatprep.subr.mxu0 0.0
    %5306 = vmatpush1.msra.mxu0 0.0
    %5307 = vmatprep.subr.mxu0 0.0
    %5308 = vmatpush1.msra.mxu0 0.0
    %5309 = vmatprep.subr.mxu0 0.0
    %5310 = vmatpush1.msra.mxu0 0.0
    %5311 = vmatprep.subr.mxu0 0.0
    %5312 = vmatpush1.msra.mxu0 0.0
    %5313 = vmatprep.subr.mxu0 0.0
    %5314 = vmatpush1.msra.mxu0 0.0
    %5315 = vmatprep.subr.mxu0 0.0
    %5316 = vmatpush1.msra.mxu0 0.0
    %5317 = vmatprep.subr.mxu0 0.0
    %5318 = vmatpush1.msra.mxu0 0.0
    %5319 = vmatprep.subr.mxu0 0.0
    %5320 = vmatpush1.msra.mxu0 %v5057
    %5321 = vmatprep.subr.mxu0 0.0
    %5322 = vmatpush1.msra.mxu0 %v5056
    %5323 = vmatprep.subr.mxu0 0.0
    %5324 = vmatpush1.msra.mxu0 %v5055
    %5325 = vmatprep.subr.mxu0 0.0
    %5326 = vmatpush1.msra.mxu0 %v5054
    %5327 = vmatprep.subr.mxu0 0.0
    %5328 = vmatpush2.msra.mxu0 0.0
    %5329 = vmatprep.subr.mxu0 0.0
    %5330 = vmatpush2.msra.mxu0 0.0
    %5331 = vmatprep.subr.mxu0 0.0
    %5332 = vmatpush2.msra.mxu0 0.0
    %5333 = vmatprep.subr.mxu0 0.0
    %5334 = vmatpush2.msra.mxu0 0.0
    %5335 = vmatprep.subr.mxu0 0.0
    %5336 = vmatpush2.msra.mxu0 0.0
    %5337 = vmatprep.subr.mxu0 0.0
    %5338 = vmatpush2.msra.mxu0 0.0
    %5339 = vmatprep.subr.mxu0 0.0
    %5340 = vmatpush2.msra.mxu0 0.0
    %5341 = vmatprep.subr.mxu0 0.0
    %5342 = vmatpush2.msra.mxu0 0.0
    %5343 = vmatprep.subr.mxu0 0.0
    %5344 = vmatpush2.msra.mxu0 0.0
    %5345 = vmatprep.subr.mxu0 0.0
    %5346 = vmatpush2.msra.mxu0 0.0
    %5347 = vmatprep.subr.mxu0 0.0
    %5348 = vmatpush2.msra.mxu0 0.0
    %5349 = vmatprep.subr.mxu0 0.0
    %5350 = vmatpush2.msra.mxu0 0.0
    %5351 = vmatprep.subr.mxu0 0.0
    %5352 = vmatpush2.msra.mxu0 0.0
    %5353 = vmatprep.subr.mxu0 0.0
    %5354 = vmatpush2.msra.mxu0 0.0
    %5355 = vmatprep.subr.mxu0 0.0
    %5356 = vmatpush2.msra.mxu0 0.0
    %5357 = vmatprep.subr.mxu0 0.0
    %5358 = vmatpush2.msra.mxu0 0.0
    %5359 = vmatprep.mubr.f32.mxu0 0.0
    %5360 = vmatmul.mubr.f32.gmra.mxu0 %v5153
    %v5361 = vpop.f32.mrf.mxu0
    %v5362 = vadd.f32 %v5089, %v5361
    %v5363 = vpop.f32.mrf.mxu0
    %5364 = vdwg.mxu0
    %5365 = vmatprep.subr.mxu0 0.0
    %5366 = vmatpush1.msra.mxu0 0.0
    %5367 = vmatprep.subr.mxu0 0.0
    %5368 = vmatpush1.msra.mxu0 0.0
    %5369 = vmatprep.subr.mxu0 0.0
    %5370 = vmatpush1.msra.mxu0 0.0
    %5371 = vmatprep.subr.mxu0 0.0
    %5372 = vmatpush1.msra.mxu0 0.0
    %5373 = vmatprep.subr.mxu0 0.0
    %5374 = vmatpush1.msra.mxu0 0.0
    %5375 = vmatprep.subr.mxu0 0.0
    %5376 = vmatpush1.msra.mxu0 0.0
    %5377 = vmatprep.subr.mxu0 0.0
    %5378 = vmatpush1.msra.mxu0 0.0
    %5379 = vmatprep.subr.mxu0 0.0
    %5380 = vmatpush1.msra.mxu0 0.0
    %5381 = vmatprep.subr.mxu0 0.0
    %5382 = vmatpush1.msra.mxu0 0.0
    %5383 = vmatprep.subr.mxu0 0.0
    %5384 = vmatpush1.msra.mxu0 0.0
    %5385 = vmatprep.subr.mxu0 0.0
    %5386 = vmatpush1.msra.mxu0 0.0
    %5387 = vmatprep.subr.mxu0 0.0
    %5388 = vmatpush1.msra.mxu0 0.0
    %5389 = vmatprep.subr.mxu0 0.0
    %5390 = vmatpush1.msra.mxu0 %v5061
    %5391 = vmatprep.subr.mxu0 0.0
    %5392 = vmatpush1.msra.mxu0 %v5060
    %5393 = vmatprep.subr.mxu0 0.0
    %5394 = vmatpush1.msra.mxu0 %v5059
    %5395 = vmatprep.subr.mxu0 0.0
    %5396 = vmatpush1.msra.mxu0 %v5058
    %5397 = vmatprep.subr.mxu0 0.0
    %5398 = vmatpush2.msra.mxu0 0.0
    %5399 = vmatprep.subr.mxu0 0.0
    %5400 = vmatpush2.msra.mxu0 0.0
    %5401 = vmatprep.subr.mxu0 0.0
    %5402 = vmatpush2.msra.mxu0 0.0
    %5403 = vmatprep.subr.mxu0 0.0
    %5404 = vmatpush2.msra.mxu0 0.0
    %5405 = vmatprep.subr.mxu0 0.0
    %5406 = vmatpush2.msra.mxu0 0.0
    %5407 = vmatprep.subr.mxu0 0.0
    %5408 = vmatpush2.msra.mxu0 0.0
    %5409 = vmatprep.subr.mxu0 0.0
    %5410 = vmatpush2.msra.mxu0 0.0
    %5411 = vmatprep.subr.mxu0 0.0
    %5412 = vmatpush2.msra.mxu0 0.0
    %5413 = vmatprep.subr.mxu0 0.0
    %5414 = vmatpush2.msra.mxu0 0.0
    %5415 = vmatprep.subr.mxu0 0.0
    %5416 = vmatpush2.msra.mxu0 0.0
    %5417 = vmatprep.subr.mxu0 0.0
    %5418 = vmatpush2.msra.mxu0 0.0
    %5419 = vmatprep.subr.mxu0 0.0
    %5420 = vmatpush2.msra.mxu0 0.0
    %5421 = vmatprep.subr.mxu0 0.0
    %5422 = vmatpush2.msra.mxu0 0.0
    %5423 = vmatprep.subr.mxu0 0.0
    %5424 = vmatpush2.msra.mxu0 0.0
    %5425 = vmatprep.subr.mxu0 0.0
    %5426 = vmatpush2.msra.mxu0 0.0
    %5427 = vmatprep.subr.mxu0 0.0
    %5428 = vmatpush2.msra.mxu0 0.0
    %5429 = vmatprep.mubr.f32.mxu0 0.0
    %5430 = vmatmul.mubr.f32.gmra.mxu0 %v5153
    %v5431 = vpop.f32.mrf.mxu0
    %v5432 = vadd.f32 %v5093, %v5431
    %v5433 = vpop.f32.mrf.mxu0
    %5434 = vdwg.mxu0
    %5436 = vrot.lane.b32.xlu0 %v5222, 120
    %v5437 = vpop.permute.xlu0 %5436
    %v5438 = vsel %vm1008, %v5222, 0
    %v5440 = vsel %vm1008, %v5437, 0
    %5442 = vmatprep.subr.mxu0 0.0
    %5443 = vmatpush1.xpose.msra.mxu0 0.0
    %5444 = vmatprep.subr.mxu0 0.0
    %5445 = vmatpush1.xpose.msra.mxu0 0.0
    %5446 = vmatprep.subr.mxu0 0.0
    %5447 = vmatpush1.xpose.msra.mxu0 0.0
    %5448 = vmatprep.subr.mxu0 0.0
    %5449 = vmatpush1.xpose.msra.mxu0 0.0
    %5450 = vmatprep.subr.mxu0 0.0
    %5451 = vmatpush1.xpose.msra.mxu0 0.0
    %5452 = vmatprep.subr.mxu0 0.0
    %5453 = vmatpush1.xpose.msra.mxu0 0.0
    %5454 = vmatprep.subr.mxu0 0.0
    %5455 = vmatpush1.xpose.msra.mxu0 0.0
    %5456 = vmatprep.subr.mxu0 0.0
    %5457 = vmatpush1.xpose.msra.mxu0 0.0
    %5458 = vmatprep.subr.mxu0 0.0
    %5459 = vmatpush1.xpose.msra.mxu0 0.0
    %5460 = vmatprep.subr.mxu0 0.0
    %5461 = vmatpush1.xpose.msra.mxu0 0.0
    %5462 = vmatprep.subr.mxu0 0.0
    %5463 = vmatpush1.xpose.msra.mxu0 0.0
    %5464 = vmatprep.subr.mxu0 0.0
    %5465 = vmatpush1.xpose.msra.mxu0 0.0
    %5466 = vmatprep.subr.mxu0 0.0
    %5467 = vmatpush1.xpose.msra.mxu0 0.0
    %5468 = vmatprep.subr.mxu0 0.0
    %5469 = vmatpush1.xpose.msra.mxu0 0.0
    %5470 = vmatprep.subr.mxu0 0.0
    %5471 = vmatpush1.xpose.msra.mxu0 0.0
    %5472 = vmatprep.subr.mxu0 0.0
    %5473 = vmatpush1.xpose.msra.mxu0 %v5440
    %5474 = vmatprep.subr.mxu0 0.0
    %5475 = vmatpush2.xpose.msra.mxu0 0.0
    %5476 = vmatprep.subr.mxu0 0.0
    %5477 = vmatpush2.xpose.msra.mxu0 0.0
    %5478 = vmatprep.subr.mxu0 0.0
    %5479 = vmatpush2.xpose.msra.mxu0 0.0
    %5480 = vmatprep.subr.mxu0 0.0
    %5481 = vmatpush2.xpose.msra.mxu0 0.0
    %5482 = vmatprep.subr.mxu0 0.0
    %5483 = vmatpush2.xpose.msra.mxu0 0.0
    %5484 = vmatprep.subr.mxu0 0.0
    %5485 = vmatpush2.xpose.msra.mxu0 0.0
    %5486 = vmatprep.subr.mxu0 0.0
    %5487 = vmatpush2.xpose.msra.mxu0 0.0
    %5488 = vmatprep.subr.mxu0 0.0
    %5489 = vmatpush2.xpose.msra.mxu0 0.0
    %5490 = vmatprep.subr.mxu0 0.0
    %5491 = vmatpush2.xpose.msra.mxu0 0.0
    %5492 = vmatprep.subr.mxu0 0.0
    %5493 = vmatpush2.xpose.msra.mxu0 0.0
    %5494 = vmatprep.subr.mxu0 0.0
    %5495 = vmatpush2.xpose.msra.mxu0 0.0
    %5496 = vmatprep.subr.mxu0 0.0
    %5497 = vmatpush2.xpose.msra.mxu0 0.0
    %5498 = vmatprep.subr.mxu0 0.0
    %5499 = vmatpush2.xpose.msra.mxu0 0.0
    %5500 = vmatprep.subr.mxu0 0.0
    %5501 = vmatpush2.xpose.msra.mxu0 0.0
    %5502 = vmatprep.subr.mxu0 0.0
    %5503 = vmatpush2.xpose.msra.mxu0 0.0
    %5504 = vmatprep.subr.mxu0 0.0
    %5505 = vmatpush2.xpose.msra.mxu0 0.0
    %5506 = vmatprep.mubr.f32.mxu0 0.0
    %5507 = vmatmul.mubr.f32.gmra.mxu0 %v5438
    %v5508 = vpop.f32.mrf.mxu0
    %v5509 = vadd.f32 0.0, %v5508
    %v5510 = vpop.f32.mrf.mxu0
    %5511 = vdwg.mxu0
    %5513 = vrot.lane.b32.xlu0 %v5292, 120
    %v5514 = vpop.permute.xlu0 %5513
    %v5515 = vsel %vm1008, %v5292, 0
    %v5517 = vsel %vm1008, %v5514, 0
    %5519 = vmatprep.subr.mxu0 0.0
    %5520 = vmatpush1.xpose.msra.mxu0 0.0
    %5521 = vmatprep.subr.mxu0 0.0
    %5522 = vmatpush1.xpose.msra.mxu0 0.0
    %5523 = vmatprep.subr.mxu0 0.0
    %5524 = vmatpush1.xpose.msra.mxu0 0.0
    %5525 = vmatprep.subr.mxu0 0.0
    %5526 = vmatpush1.xpose.msra.mxu0 0.0
    %5527 = vmatprep.subr.mxu0 0.0
    %5528 = vmatpush1.xpose.msra.mxu0 0.0
    %5529 = vmatprep.subr.mxu0 0.0
    %5530 = vmatpush1.xpose.msra.mxu0 0.0
    %5531 = vmatprep.subr.mxu0 0.0
    %5532 = vmatpush1.xpose.msra.mxu0 0.0
    %5533 = vmatprep.subr.mxu0 0.0
    %5534 = vmatpush1.xpose.msra.mxu0 0.0
    %5535 = vmatprep.subr.mxu0 0.0
    %5536 = vmatpush1.xpose.msra.mxu0 0.0
    %5537 = vmatprep.subr.mxu0 0.0
    %5538 = vmatpush1.xpose.msra.mxu0 0.0
    %5539 = vmatprep.subr.mxu0 0.0
    %5540 = vmatpush1.xpose.msra.mxu0 0.0
    %5541 = vmatprep.subr.mxu0 0.0
    %5542 = vmatpush1.xpose.msra.mxu0 0.0
    %5543 = vmatprep.subr.mxu0 0.0
    %5544 = vmatpush1.xpose.msra.mxu0 0.0
    %5545 = vmatprep.subr.mxu0 0.0
    %5546 = vmatpush1.xpose.msra.mxu0 0.0
    %5547 = vmatprep.subr.mxu0 0.0
    %5548 = vmatpush1.xpose.msra.mxu0 0.0
    %5549 = vmatprep.subr.mxu0 0.0
    %5550 = vmatpush1.xpose.msra.mxu0 %v5517
    %5551 = vmatprep.subr.mxu0 0.0
    %5552 = vmatpush2.xpose.msra.mxu0 0.0
    %5553 = vmatprep.subr.mxu0 0.0
    %5554 = vmatpush2.xpose.msra.mxu0 0.0
    %5555 = vmatprep.subr.mxu0 0.0
    %5556 = vmatpush2.xpose.msra.mxu0 0.0
    %5557 = vmatprep.subr.mxu0 0.0
    %5558 = vmatpush2.xpose.msra.mxu0 0.0
    %5559 = vmatprep.subr.mxu0 0.0
    %5560 = vmatpush2.xpose.msra.mxu0 0.0
    %5561 = vmatprep.subr.mxu0 0.0
    %5562 = vmatpush2.xpose.msra.mxu0 0.0
    %5563 = vmatprep.subr.mxu0 0.0
    %5564 = vmatpush2.xpose.msra.mxu0 0.0
    %5565 = vmatprep.subr.mxu0 0.0
    %5566 = vmatpush2.xpose.msra.mxu0 0.0
    %5567 = vmatprep.subr.mxu0 0.0
    %5568 = vmatpush2.xpose.msra.mxu0 0.0
    %5569 = vmatprep.subr.mxu0 0.0
    %5570 = vmatpush2.xpose.msra.mxu0 0.0
    %5571 = vmatprep.subr.mxu0 0.0
    %5572 = vmatpush2.xpose.msra.mxu0 0.0
    %5573 = vmatprep.subr.mxu0 0.0
    %5574 = vmatpush2.xpose.msra.mxu0 0.0
    %5575 = vmatprep.subr.mxu0 0.0
    %5576 = vmatpush2.xpose.msra.mxu0 0.0
    %5577 = vmatprep.subr.mxu0 0.0
    %5578 = vmatpush2.xpose.msra.mxu0 0.0
    %5579 = vmatprep.subr.mxu0 0.0
    %5580 = vmatpush2.xpose.msra.mxu0 0.0
    %5581 = vmatprep.subr.mxu0 0.0
    %5582 = vmatpush2.xpose.msra.mxu0 0.0
    %5583 = vmatprep.mubr.f32.mxu0 0.0
    %5584 = vmatmul.mubr.f32.gmra.mxu0 %v5515
    %v5585 = vpop.f32.mrf.mxu0
    %v5586 = vadd.f32 0.0, %v5585
    %v5587 = vpop.f32.mrf.mxu0
    %5588 = vdwg.mxu0
    %5590 = vrot.lane.b32.xlu0 %v5362, 120
    %v5591 = vpop.permute.xlu0 %5590
    %v5592 = vsel %vm1008, %v5362, 0
    %v5594 = vsel %vm1008, %v5591, 0
    %5596 = vmatprep.subr.mxu0 0.0
    %5597 = vmatpush1.xpose.msra.mxu0 0.0
    %5598 = vmatprep.subr.mxu0 0.0
    %5599 = vmatpush1.xpose.msra.mxu0 0.0
    %5600 = vmatprep.subr.mxu0 0.0
    %5601 = vmatpush1.xpose.msra.mxu0 0.0
    %5602 = vmatprep.subr.mxu0 0.0
    %5603 = vmatpush1.xpose.msra.mxu0 0.0
    %5604 = vmatprep.subr.mxu0 0.0
    %5605 = vmatpush1.xpose.msra.mxu0 0.0
    %5606 = vmatprep.subr.mxu0 0.0
    %5607 = vmatpush1.xpose.msra.mxu0 0.0
    %5608 = vmatprep.subr.mxu0 0.0
    %5609 = vmatpush1.xpose.msra.mxu0 0.0
    %5610 = vmatprep.subr.mxu0 0.0
    %5611 = vmatpush1.xpose.msra.mxu0 0.0
    %5612 = vmatprep.subr.mxu0 0.0
    %5613 = vmatpush1.xpose.msra.mxu0 0.0
    %5614 = vmatprep.subr.mxu0 0.0
    %5615 = vmatpush1.xpose.msra.mxu0 0.0
    %5616 = vmatprep.subr.mxu0 0.0
    %5617 = vmatpush1.xpose.msra.mxu0 0.0
    %5618 = vmatprep.subr.mxu0 0.0
    %5619 = vmatpush1.xpose.msra.mxu0 0.0
    %5620 = vmatprep.subr.mxu0 0.0
    %5621 = vmatpush1.xpose.msra.mxu0 0.0
    %5622 = vmatprep.subr.mxu0 0.0
    %5623 = vmatpush1.xpose.msra.mxu0 0.0
    %5624 = vmatprep.subr.mxu0 0.0
    %5625 = vmatpush1.xpose.msra.mxu0 0.0
    %5626 = vmatprep.subr.mxu0 0.0
    %5627 = vmatpush1.xpose.msra.mxu0 %v5594
    %5628 = vmatprep.subr.mxu0 0.0
    %5629 = vmatpush2.xpose.msra.mxu0 0.0
    %5630 = vmatprep.subr.mxu0 0.0
    %5631 = vmatpush2.xpose.msra.mxu0 0.0
    %5632 = vmatprep.subr.mxu0 0.0
    %5633 = vmatpush2.xpose.msra.mxu0 0.0
    %5634 = vmatprep.subr.mxu0 0.0
    %5635 = vmatpush2.xpose.msra.mxu0 0.0
    %5636 = vmatprep.subr.mxu0 0.0
    %5637 = vmatpush2.xpose.msra.mxu0 0.0
    %5638 = vmatprep.subr.mxu0 0.0
    %5639 = vmatpush2.xpose.msra.mxu0 0.0
    %5640 = vmatprep.subr.mxu0 0.0
    %5641 = vmatpush2.xpose.msra.mxu0 0.0
    %5642 = vmatprep.subr.mxu0 0.0
    %5643 = vmatpush2.xpose.msra.mxu0 0.0
    %5644 = vmatprep.subr.mxu0 0.0
    %5645 = vmatpush2.xpose.msra.mxu0 0.0
    %5646 = vmatprep.subr.mxu0 0.0
    %5647 = vmatpush2.xpose.msra.mxu0 0.0
    %5648 = vmatprep.subr.mxu0 0.0
    %5649 = vmatpush2.xpose.msra.mxu0 0.0
    %5650 = vmatprep.subr.mxu0 0.0
    %5651 = vmatpush2.xpose.msra.mxu0 0.0
    %5652 = vmatprep.subr.mxu0 0.0
    %5653 = vmatpush2.xpose.msra.mxu0 0.0
    %5654 = vmatprep.subr.mxu0 0.0
    %5655 = vmatpush2.xpose.msra.mxu0 0.0
    %5656 = vmatprep.subr.mxu0 0.0
    %5657 = vmatpush2.xpose.msra.mxu0 0.0
    %5658 = vmatprep.subr.mxu0 0.0
    %5659 = vmatpush2.xpose.msra.mxu0 0.0
    %5660 = vmatprep.mubr.f32.mxu0 0.0
    %5661 = vmatmul.mubr.f32.gmra.mxu0 %v5592
    %v5662 = vpop.f32.mrf.mxu0
    %v5663 = vadd.f32 0.0, %v5662
    %v5664 = vpop.f32.mrf.mxu0
    %5665 = vdwg.mxu0
    %5667 = vrot.lane.b32.xlu0 %v5432, 120
    %v5668 = vpop.permute.xlu0 %5667
    %v5669 = vsel %vm1008, %v5432, 0
    %v5671 = vsel %vm1008, %v5668, 0
    %5673 = vmatprep.subr.mxu0 0.0
    %5674 = vmatpush1.xpose.msra.mxu0 0.0
    %5675 = vmatprep.subr.mxu0 0.0
    %5676 = vmatpush1.xpose.msra.mxu0 0.0
    %5677 = vmatprep.subr.mxu0 0.0
    %5678 = vmatpush1.xpose.msra.mxu0 0.0
    %5679 = vmatprep.subr.mxu0 0.0
    %5680 = vmatpush1.xpose.msra.mxu0 0.0
    %5681 = vmatprep.subr.mxu0 0.0
    %5682 = vmatpush1.xpose.msra.mxu0 0.0
    %5683 = vmatprep.subr.mxu0 0.0
    %5684 = vmatpush1.xpose.msra.mxu0 0.0
    %5685 = vmatprep.subr.mxu0 0.0
    %5686 = vmatpush1.xpose.msra.mxu0 0.0
    %5687 = vmatprep.subr.mxu0 0.0
    %5688 = vmatpush1.xpose.msra.mxu0 0.0
    %5689 = vmatprep.subr.mxu0 0.0
    %5690 = vmatpush1.xpose.msra.mxu0 0.0
    %5691 = vmatprep.subr.mxu0 0.0
    %5692 = vmatpush1.xpose.msra.mxu0 0.0
    %5693 = vmatprep.subr.mxu0 0.0
    %5694 = vmatpush1.xpose.msra.mxu0 0.0
    %5695 = vmatprep.subr.mxu0 0.0
    %5696 = vmatpush1.xpose.msra.mxu0 0.0
    %5697 = vmatprep.subr.mxu0 0.0
    %5698 = vmatpush1.xpose.msra.mxu0 0.0
    %5699 = vmatprep.subr.mxu0 0.0
    %5700 = vmatpush1.xpose.msra.mxu0 0.0
    %5701 = vmatprep.subr.mxu0 0.0
    %5702 = vmatpush1.xpose.msra.mxu0 0.0
    %5703 = vmatprep.subr.mxu0 0.0
    %5704 = vmatpush1.xpose.msra.mxu0 %v5671
    %5705 = vmatprep.subr.mxu0 0.0
    %5706 = vmatpush2.xpose.msra.mxu0 0.0
    %5707 = vmatprep.subr.mxu0 0.0
    %5708 = vmatpush2.xpose.msra.mxu0 0.0
    %5709 = vmatprep.subr.mxu0 0.0
    %5710 = vmatpush2.xpose.msra.mxu0 0.0
    %5711 = vmatprep.subr.mxu0 0.0
    %5712 = vmatpush2.xpose.msra.mxu0 0.0
    %5713 = vmatprep.subr.mxu0 0.0
    %5714 = vmatpush2.xpose.msra.mxu0 0.0
    %5715 = vmatprep.subr.mxu0 0.0
    %5716 = vmatpush2.xpose.msra.mxu0 0.0
    %5717 = vmatprep.subr.mxu0 0.0
    %5718 = vmatpush2.xpose.msra.mxu0 0.0
    %5719 = vmatprep.subr.mxu0 0.0
    %5720 = vmatpush2.xpose.msra.mxu0 0.0
    %5721 = vmatprep.subr.mxu0 0.0
    %5722 = vmatpush2.xpose.msra.mxu0 0.0
    %5723 = vmatprep.subr.mxu0 0.0
    %5724 = vmatpush2.xpose.msra.mxu0 0.0
    %5725 = vmatprep.subr.mxu0 0.0
    %5726 = vmatpush2.xpose.msra.mxu0 0.0
    %5727 = vmatprep.subr.mxu0 0.0
    %5728 = vmatpush2.xpose.msra.mxu0 0.0
    %5729 = vmatprep.subr.mxu0 0.0
    %5730 = vmatpush2.xpose.msra.mxu0 0.0
    %5731 = vmatprep.subr.mxu0 0.0
    %5732 = vmatpush2.xpose.msra.mxu0 0.0
    %5733 = vmatprep.subr.mxu0 0.0
    %5734 = vmatpush2.xpose.msra.mxu0 0.0
    %5735 = vmatprep.subr.mxu0 0.0
    %5736 = vmatpush2.xpose.msra.mxu0 0.0
    %5737 = vmatprep.mubr.f32.mxu0 0.0
    %5738 = vmatmul.mubr.f32.gmra.mxu0 %v5669
    %v5739 = vpop.f32.mrf.mxu0
    %v5740 = vadd.f32 0.0, %v5739
    %v5741 = vpop.f32.mrf.mxu0
    %5742 = vdwg.mxu0
    %v5743 = vsel %vm1314, %v5509, -inf
    %5744 = vmax.xlane.f32.xlu0 %v5743
    %v5745 = vpop.xlane.xlu0 %5744
    %v5746 = vsel %vm1314, %v5586, -inf
    %5747 = vmax.xlane.f32.xlu0 %v5746
    %v5748 = vpop.xlane.xlu0 %5747
    %v5749 = vsel %vm1314, %v5663, -inf
    %5750 = vmax.xlane.f32.xlu0 %v5749
    %v5751 = vpop.xlane.xlu0 %5750
    %v5752 = vsel %vm1314, %v5740, -inf
    %5753 = vmax.xlane.f32.xlu0 %v5752
    %v5754 = vpop.xlane.xlu0 %5753
    %v5755 = vsub.f32 %v5509, %v5745
    %v5756 = vsub.f32 %v5586, %v5748
    %v5757 = vsub.f32 %v5663, %v5751
    %v5758 = vsub.f32 %v5740, %v5754
    %v5759 = vmul.f32 %v5755, 1.442695
    %v5760 = vpow.pop %v5759
    %v5761 = vmul.f32 %v5756, 1.442695
    %v5762 = vpow.pop %v5761
    %v5763 = vmul.f32 %v5757, 1.442695
    %v5764 = vpow.pop %v5763
    %v5765 = vmul.f32 %v5758, 1.442695
    %v5766 = vpow.pop %v5765
    %v5767 = vsel %vm1314, %v5760, 0.0
    %5768 = vadd.xlane.f32.xlu0 %v5767
    %v5769 = vpop.xlane.xlu0 %5768
    %v5770 = vsel %vm1314, %v5762, 0.0
    %5771 = vadd.xlane.f32.xlu0 %v5770
    %v5772 = vpop.xlane.xlu0 %5771
    %v5773 = vsel %vm1314, %v5764, 0.0
    %5774 = vadd.xlane.f32.xlu0 %v5773
    %v5775 = vpop.xlane.xlu0 %5774
    %v5776 = vsel %vm1314, %v5766, 0.0
    %5777 = vadd.xlane.f32.xlu0 %v5776
    %v5778 = vpop.xlane.xlu0 %5777
    %v5779 = vrcp.pop %v5769
    %v5780 = vrcp.pop %v5772
    %v5781 = vrcp.pop %v5775
    %v5782 = vrcp.pop %v5778
    %v5783 = vmul.f32 %v5760, %v5779
    %v5784 = vmul.f32 %v5762, %v5780
    %v5785 = vmul.f32 %v5764, %v5781
    %v5786 = vmul.f32 %v5766, %v5782
    %5787 = vrot.lane.b32.xlu0 %v5222, 112
    %v5788 = vpop.permute.xlu0 %5787
    %v5790 = vsel %vm1361, %v5783, 0
    %v5792 = vsel %vm1365, %v5788, 0
    %5794 = vmatprep.subr.mxu0 0.0
    %5795 = vmatpush1.msra.mxu0 0.0
    %5796 = vmatprep.subr.mxu0 0.0
    %5797 = vmatpush1.msra.mxu0 0.0
    %5798 = vmatprep.subr.mxu0 0.0
    %5799 = vmatpush1.msra.mxu0 0.0
    %5800 = vmatprep.subr.mxu0 0.0
    %5801 = vmatpush1.msra.mxu0 0.0
    %5802 = vmatprep.subr.mxu0 0.0
    %5803 = vmatpush1.msra.mxu0 0.0
    %5804 = vmatprep.subr.mxu0 0.0
    %5805 = vmatpush1.msra.mxu0 0.0
    %5806 = vmatprep.subr.mxu0 0.0
    %5807 = vmatpush1.msra.mxu0 0.0
    %5808 = vmatprep.subr.mxu0 0.0
    %5809 = vmatpush1.msra.mxu0 0.0
    %5810 = vmatprep.subr.mxu0 0.0
    %5811 = vmatpush1.msra.mxu0 0.0
    %5812 = vmatprep.subr.mxu0 0.0
    %5813 = vmatpush1.msra.mxu0 0.0
    %5814 = vmatprep.subr.mxu0 0.0
    %5815 = vmatpush1.msra.mxu0 0.0
    %5816 = vmatprep.subr.mxu0 0.0
    %5817 = vmatpush1.msra.mxu0 0.0
    %5818 = vmatprep.subr.mxu0 0.0
    %5819 = vmatpush1.msra.mxu0 0.0
    %5820 = vmatprep.subr.mxu0 0.0
    %5821 = vmatpush1.msra.mxu0 0.0
    %5822 = vmatprep.subr.mxu0 0.0
    %5823 = vmatpush1.msra.mxu0 0.0
    %5824 = vmatprep.subr.mxu0 0.0
    %5825 = vmatpush1.msra.mxu0 %v5792
    %5826 = vmatprep.subr.mxu0 0.0
    %5827 = vmatpush2.msra.mxu0 0.0
    %5828 = vmatprep.subr.mxu0 0.0
    %5829 = vmatpush2.msra.mxu0 0.0
    %5830 = vmatprep.subr.mxu0 0.0
    %5831 = vmatpush2.msra.mxu0 0.0
    %5832 = vmatprep.subr.mxu0 0.0
    %5833 = vmatpush2.msra.mxu0 0.0
    %5834 = vmatprep.subr.mxu0 0.0
    %5835 = vmatpush2.msra.mxu0 0.0
    %5836 = vmatprep.subr.mxu0 0.0
    %5837 = vmatpush2.msra.mxu0 0.0
    %5838 = vmatprep.subr.mxu0 0.0
    %5839 = vmatpush2.msra.mxu0 0.0
    %5840 = vmatprep.subr.mxu0 0.0
    %5841 = vmatpush2.msra.mxu0 0.0
    %5842 = vmatprep.subr.mxu0 0.0
    %5843 = vmatpush2.msra.mxu0 0.0
    %5844 = vmatprep.subr.mxu0 0.0
    %5845 = vmatpush2.msra.mxu0 0.0
    %5846 = vmatprep.subr.mxu0 0.0
    %5847 = vmatpush2.msra.mxu0 0.0
    %5848 = vmatprep.subr.mxu0 0.0
    %5849 = vmatpush2.msra.mxu0 0.0
    %5850 = vmatprep.subr.mxu0 0.0
    %5851 = vmatpush2.msra.mxu0 0.0
    %5852 = vmatprep.subr.mxu0 0.0
    %5853 = vmatpush2.msra.mxu0 0.0
    %5854 = vmatprep.subr.mxu0 0.0
    %5855 = vmatpush2.msra.mxu0 0.0
    %5856 = vmatprep.subr.mxu0 0.0
    %5857 = vmatpush2.msra.mxu0 0.0
    %5858 = vmatprep.mubr.f32.mxu0 0.0
    %5859 = vmatmul.mubr.f32.gmra.mxu0 %v5790
    %v5860 = vpop.f32.mrf.mxu0
    %v5861 = vadd.f32 0.0, %v5860
    %v5862 = vpop.f32.mrf.mxu0
    %5863 = vdwg.mxu0
    %5864 = vrot.lane.b32.xlu0 %v5292, 112
    %v5865 = vpop.permute.xlu0 %5864
    %v5867 = vsel %vm1361, %v5784, 0
    %v5869 = vsel %vm1365, %v5865, 0
    %5871 = vmatprep.subr.mxu0 0.0
    %5872 = vmatpush1.msra.mxu0 0.0
    %5873 = vmatprep.subr.mxu0 0.0
    %5874 = vmatpush1.msra.mxu0 0.0
    %5875 = vmatprep.subr.mxu0 0.0
    %5876 = vmatpush1.msra.mxu0 0.0
    %5877 = vmatprep.subr.mxu0 0.0
    %5878 = vmatpush1.msra.mxu0 0.0
    %5879 = vmatprep.subr.mxu0 0.0
    %5880 = vmatpush1.msra.mxu0 0.0
    %5881 = vmatprep.subr.mxu0 0.0
    %5882 = vmatpush1.msra.mxu0 0.0
    %5883 = vmatprep.subr.mxu0 0.0
    %5884 = vmatpush1.msra.mxu0 0.0
    %5885 = vmatprep.subr.mxu0 0.0
    %5886 = vmatpush1.msra.mxu0 0.0
    %5887 = vmatprep.subr.mxu0 0.0
    %5888 = vmatpush1.msra.mxu0 0.0
    %5889 = vmatprep.subr.mxu0 0.0
    %5890 = vmatpush1.msra.mxu0 0.0
    %5891 = vmatprep.subr.mxu0 0.0
    %5892 = vmatpush1.msra.mxu0 0.0
    %5893 = vmatprep.subr.mxu0 0.0
    %5894 = vmatpush1.msra.mxu0 0.0
    %5895 = vmatprep.subr.mxu0 0.0
    %5896 = vmatpush1.msra.mxu0 0.0
    %5897 = vmatprep.subr.mxu0 0.0
    %5898 = vmatpush1.msra.mxu0 0.0
    %5899 = vmatprep.subr.mxu0 0.0
    %5900 = vmatpush1.msra.mxu0 0.0
    %5901 = vmatprep.subr.mxu0 0.0
    %5902 = vmatpush1.msra.mxu0 %v5869
    %5903 = vmatprep.subr.mxu0 0.0
    %5904 = vmatpush2.msra.mxu0 0.0
    %5905 = vmatprep.subr.mxu0 0.0
    %5906 = vmatpush2.msra.mxu0 0.0
    %5907 = vmatprep.subr.mxu0 0.0
    %5908 = vmatpush2.msra.mxu0 0.0
    %5909 = vmatprep.subr.mxu0 0.0
    %5910 = vmatpush2.msra.mxu0 0.0
    %5911 = vmatprep.subr.mxu0 0.0
    %5912 = vmatpush2.msra.mxu0 0.0
    %5913 = vmatprep.subr.mxu0 0.0
    %5914 = vmatpush2.msra.mxu0 0.0
    %5915 = vmatprep.subr.mxu0 0.0
    %5916 = vmatpush2.msra.mxu0 0.0
    %5917 = vmatprep.subr.mxu0 0.0
    %5918 = vmatpush2.msra.mxu0 0.0
    %5919 = vmatprep.subr.mxu0 0.0
    %5920 = vmatpush2.msra.mxu0 0.0
    %5921 = vmatprep.subr.mxu0 0.0
    %5922 = vmatpush2.msra.mxu0 0.0
    %5923 = vmatprep.subr.mxu0 0.0
    %5924 = vmatpush2.msra.mxu0 0.0
    %5925 = vmatprep.subr.mxu0 0.0
    %5926 = vmatpush2.msra.mxu0 0.0
    %5927 = vmatprep.subr.mxu0 0.0
    %5928 = vmatpush2.msra.mxu0 0.0
    %5929 = vmatprep.subr.mxu0 0.0
    %5930 = vmatpush2.msra.mxu0 0.0
    %5931 = vmatprep.subr.mxu0 0.0
    %5932 = vmatpush2.msra.mxu0 0.0
    %5933 = vmatprep.subr.mxu0 0.0
    %5934 = vmatpush2.msra.mxu0 0.0
    %5935 = vmatprep.mubr.f32.mxu0 0.0
    %5936 = vmatmul.mubr.f32.gmra.mxu0 %v5867
    %v5937 = vpop.f32.mrf.mxu0
    %v5938 = vadd.f32 0.0, %v5937
    %v5939 = vpop.f32.mrf.mxu0
    %5940 = vdwg.mxu0
    %5941 = vrot.lane.b32.xlu0 %v5362, 112
    %v5942 = vpop.permute.xlu0 %5941
    %v5944 = vsel %vm1361, %v5785, 0
    %v5946 = vsel %vm1365, %v5942, 0
    %5948 = vmatprep.subr.mxu0 0.0
    %5949 = vmatpush1.msra.mxu0 0.0
    %5950 = vmatprep.subr.mxu0 0.0
    %5951 = vmatpush1.msra.mxu0 0.0
    %5952 = vmatprep.subr.mxu0 0.0
    %5953 = vmatpush1.msra.mxu0 0.0
    %5954 = vmatprep.subr.mxu0 0.0
    %5955 = vmatpush1.msra.mxu0 0.0
    %5956 = vmatprep.subr.mxu0 0.0
    %5957 = vmatpush1.msra.mxu0 0.0
    %5958 = vmatprep.subr.mxu0 0.0
    %5959 = vmatpush1.msra.mxu0 0.0
    %5960 = vmatprep.subr.mxu0 0.0
    %5961 = vmatpush1.msra.mxu0 0.0
    %5962 = vmatprep.subr.mxu0 0.0
    %5963 = vmatpush1.msra.mxu0 0.0
    %5964 = vmatprep.subr.mxu0 0.0
    %5965 = vmatpush1.msra.mxu0 0.0
    %5966 = vmatprep.subr.mxu0 0.0
    %5967 = vmatpush1.msra.mxu0 0.0
    %5968 = vmatprep.subr.mxu0 0.0
    %5969 = vmatpush1.msra.mxu0 0.0
    %5970 = vmatprep.subr.mxu0 0.0
    %5971 = vmatpush1.msra.mxu0 0.0
    %5972 = vmatprep.subr.mxu0 0.0
    %5973 = vmatpush1.msra.mxu0 0.0
    %5974 = vmatprep.subr.mxu0 0.0
    %5975 = vmatpush1.msra.mxu0 0.0
    %5976 = vmatprep.subr.mxu0 0.0
    %5977 = vmatpush1.msra.mxu0 0.0
    %5978 = vmatprep.subr.mxu0 0.0
    %5979 = vmatpush1.msra.mxu0 %v5946
    %5980 = vmatprep.subr.mxu0 0.0
    %5981 = vmatpush2.msra.mxu0 0.0
    %5982 = vmatprep.subr.mxu0 0.0
    %5983 = vmatpush2.msra.mxu0 0.0
    %5984 = vmatprep.subr.mxu0 0.0
    %5985 = vmatpush2.msra.mxu0 0.0
    %5986 = vmatprep.subr.mxu0 0.0
    %5987 = vmatpush2.msra.mxu0 0.0
    %5988 = vmatprep.subr.mxu0 0.0
    %5989 = vmatpush2.msra.mxu0 0.0
    %5990 = vmatprep.subr.mxu0 0.0
    %5991 = vmatpush2.msra.mxu0 0.0
    %5992 = vmatprep.subr.mxu0 0.0
    %5993 = vmatpush2.msra.mxu0 0.0
    %5994 = vmatprep.subr.mxu0 0.0
    %5995 = vmatpush2.msra.mxu0 0.0
    %5996 = vmatprep.subr.mxu0 0.0
    %5997 = vmatpush2.msra.mxu0 0.0
    %5998 = vmatprep.subr.mxu0 0.0
    %5999 = vmatpush2.msra.mxu0 0.0
    %6000 = vmatprep.subr.mxu0 0.0
    %6001 = vmatpush2.msra.mxu0 0.0
    %6002 = vmatprep.subr.mxu0 0.0
    %6003 = vmatpush2.msra.mxu0 0.0
    %6004 = vmatprep.subr.mxu0 0.0
    %6005 = vmatpush2.msra.mxu0 0.0
    %6006 = vmatprep.subr.mxu0 0.0
    %6007 = vmatpush2.msra.mxu0 0.0
    %6008 = vmatprep.subr.mxu0 0.0
    %6009 = vmatpush2.msra.mxu0 0.0
    %6010 = vmatprep.subr.mxu0 0.0
    %6011 = vmatpush2.msra.mxu0 0.0
    %6012 = vmatprep.mubr.f32.mxu0 0.0
    %6013 = vmatmul.mubr.f32.gmra.mxu0 %v5944
    %v6014 = vpop.f32.mrf.mxu0
    %v6015 = vadd.f32 0.0, %v6014
    %v6016 = vpop.f32.mrf.mxu0
    %6017 = vdwg.mxu0
    %6018 = vrot.lane.b32.xlu0 %v5432, 112
    %v6019 = vpop.permute.xlu0 %6018
    %v6021 = vsel %vm1361, %v5786, 0
    %v6023 = vsel %vm1365, %v6019, 0
    %6025 = vmatprep.subr.mxu0 0.0
    %6026 = vmatpush1.msra.mxu0 0.0
    %6027 = vmatprep.subr.mxu0 0.0
    %6028 = vmatpush1.msra.mxu0 0.0
    %6029 = vmatprep.subr.mxu0 0.0
    %6030 = vmatpush1.msra.mxu0 0.0
    %6031 = vmatprep.subr.mxu0 0.0
    %6032 = vmatpush1.msra.mxu0 0.0
    %6033 = vmatprep.subr.mxu0 0.0
    %6034 = vmatpush1.msra.mxu0 0.0
    %6035 = vmatprep.subr.mxu0 0.0
    %6036 = vmatpush1.msra.mxu0 0.0
    %6037 = vmatprep.subr.mxu0 0.0
    %6038 = vmatpush1.msra.mxu0 0.0
    %6039 = vmatprep.subr.mxu0 0.0
    %6040 = vmatpush1.msra.mxu0 0.0
    %6041 = vmatprep.subr.mxu0 0.0
    %6042 = vmatpush1.msra.mxu0 0.0
    %6043 = vmatprep.subr.mxu0 0.0
    %6044 = vmatpush1.msra.mxu0 0.0
    %6045 = vmatprep.subr.mxu0 0.0
    %6046 = vmatpush1.msra.mxu0 0.0
    %6047 = vmatprep.subr.mxu0 0.0
    %6048 = vmatpush1.msra.mxu0 0.0
    %6049 = vmatprep.subr.mxu0 0.0
    %6050 = vmatpush1.msra.mxu0 0.0
    %6051 = vmatprep.subr.mxu0 0.0
    %6052 = vmatpush1.msra.mxu0 0.0
    %6053 = vmatprep.subr.mxu0 0.0
    %6054 = vmatpush1.msra.mxu0 0.0
    %6055 = vmatprep.subr.mxu0 0.0
    %6056 = vmatpush1.msra.mxu0 %v6023
    %6057 = vmatprep.subr.mxu0 0.0
    %6058 = vmatpush2.msra.mxu0 0.0
    %6059 = vmatprep.subr.mxu0 0.0
    %6060 = vmatpush2.msra.mxu0 0.0
    %6061 = vmatprep.subr.mxu0 0.0
    %6062 = vmatpush2.msra.mxu0 0.0
    %6063 = vmatprep.subr.mxu0 0.0
    %6064 = vmatpush2.msra.mxu0 0.0
    %6065 = vmatprep.subr.mxu0 0.0
    %6066 = vmatpush2.msra.mxu0 0.0
    %6067 = vmatprep.subr.mxu0 0.0
    %6068 = vmatpush2.msra.mxu0 0.0
    %6069 = vmatprep.subr.mxu0 0.0
    %6070 = vmatpush2.msra.mxu0 0.0
    %6071 = vmatprep.subr.mxu0 0.0
    %6072 = vmatpush2.msra.mxu0 0.0
    %6073 = vmatprep.subr.mxu0 0.0
    %6074 = vmatpush2.msra.mxu0 0.0
    %6075 = vmatprep.subr.mxu0 0.0
    %6076 = vmatpush2.msra.mxu0 0.0
    %6077 = vmatprep.subr.mxu0 0.0
    %6078 = vmatpush2.msra.mxu0 0.0
    %6079 = vmatprep.subr.mxu0 0.0
    %6080 = vmatpush2.msra.mxu0 0.0
    %6081 = vmatprep.subr.mxu0 0.0
    %6082 = vmatpush2.msra.mxu0 0.0
    %6083 = vmatprep.subr.mxu0 0.0
    %6084 = vmatpush2.msra.mxu0 0.0
    %6085 = vmatprep.subr.mxu0 0.0
    %6086 = vmatpush2.msra.mxu0 0.0
    %6087 = vmatprep.subr.mxu0 0.0
    %6088 = vmatpush2.msra.mxu0 0.0
    %6089 = vmatprep.mubr.f32.mxu0 0.0
    %6090 = vmatmul.mubr.f32.gmra.mxu0 %v6021
    %v6091 = vpop.f32.mrf.mxu0
    %v6092 = vadd.f32 0.0, %v6091
    %v6093 = vpop.f32.mrf.mxu0
    %6094 = vdwg.mxu0
    %6096 = vrot.lane.b32.xlu0 %v5938, 8
    %v6097 = vpop.permute.xlu0 %6096
    %6100 = vrot.lane.b32.xlu0 %v6015, 16
    %v6101 = vpop.permute.xlu0 %6100
    %6104 = vrot.lane.b32.xlu0 %v6092, 24
    %v6105 = vpop.permute.xlu0 %6104
    %v6107 = vsel %vm1008, %v5861, %v6097
    %v6108 = vsel %vm431, %v6107, %v6101
    %v6109 = vsel %vm1683, %v6108, %v6105
    %v6111 = vlaneseq
    %v6112 = vshrl.u32 %v6111, 7
    %v6113 = vsub.s32 0, %v6112
    %v6114 = vrot.slane %v5073, %v6113
    %v6117 = vsel %vm722, %v6109, 0
    %6119 = vmatprep.subr.mxu0 0.0
    %6120 = vmatpush1.msra.mxu0 0.0
    %6121 = vmatprep.subr.mxu0 0.0
    %6122 = vmatpush1.msra.mxu0 0.0
    %6123 = vmatprep.subr.mxu0 0.0
    %6124 = vmatpush1.msra.mxu0 0.0
    %6125 = vmatprep.subr.mxu0 0.0
    %6126 = vmatpush1.msra.mxu0 0.0
    %6127 = vmatprep.subr.mxu0 0.0
    %6128 = vmatpush1.msra.mxu0 0.0
    %6129 = vmatprep.subr.mxu0 0.0
    %6130 = vmatpush1.msra.mxu0 0.0
    %6131 = vmatprep.subr.mxu0 0.0
    %6132 = vmatpush1.msra.mxu0 0.0
    %6133 = vmatprep.subr.mxu0 0.0
    %6134 = vmatpush1.msra.mxu0 0.0
    %6135 = vmatprep.subr.mxu0 0.0
    %6136 = vmatpush1.msra.mxu0 0.0
    %6137 = vmatprep.subr.mxu0 0.0
    %6138 = vmatpush1.msra.mxu0 0.0
    %6139 = vmatprep.subr.mxu0 0.0
    %6140 = vmatpush1.msra.mxu0 0.0
    %6141 = vmatprep.subr.mxu0 0.0
    %6142 = vmatpush1.msra.mxu0 0.0
    %6143 = vmatprep.subr.mxu0 0.0
    %6144 = vmatpush1.msra.mxu0 %v5071
    %6145 = vmatprep.subr.mxu0 0.0
    %6146 = vmatpush1.msra.mxu0 %v5070
    %6147 = vmatprep.subr.mxu0 0.0
    %6148 = vmatpush1.msra.mxu0 %v5069
    %6149 = vmatprep.subr.mxu0 0.0
    %6150 = vmatpush1.msra.mxu0 %v5068
    %6151 = vmatprep.subr.mxu0 0.0
    %6152 = vmatpush2.msra.mxu0 0.0
    %6153 = vmatprep.subr.mxu0 0.0
    %6154 = vmatpush2.msra.mxu0 0.0
    %6155 = vmatprep.subr.mxu0 0.0
    %6156 = vmatpush2.msra.mxu0 0.0
    %6157 = vmatprep.subr.mxu0 0.0
    %6158 = vmatpush2.msra.mxu0 0.0
    %6159 = vmatprep.subr.mxu0 0.0
    %6160 = vmatpush2.msra.mxu0 0.0
    %6161 = vmatprep.subr.mxu0 0.0
    %6162 = vmatpush2.msra.mxu0 0.0
    %6163 = vmatprep.subr.mxu0 0.0
    %6164 = vmatpush2.msra.mxu0 0.0
    %6165 = vmatprep.subr.mxu0 0.0
    %6166 = vmatpush2.msra.mxu0 0.0
    %6167 = vmatprep.subr.mxu0 0.0
    %6168 = vmatpush2.msra.mxu0 0.0
    %6169 = vmatprep.subr.mxu0 0.0
    %6170 = vmatpush2.msra.mxu0 0.0
    %6171 = vmatprep.subr.mxu0 0.0
    %6172 = vmatpush2.msra.mxu0 0.0
    %6173 = vmatprep.subr.mxu0 0.0
    %6174 = vmatpush2.msra.mxu0 0.0
    %6175 = vmatprep.subr.mxu0 0.0
    %6176 = vmatpush2.msra.mxu0 0.0
    %6177 = vmatprep.subr.mxu0 0.0
    %6178 = vmatpush2.msra.mxu0 0.0
    %6179 = vmatprep.subr.mxu0 0.0
    %6180 = vmatpush2.msra.mxu0 0.0
    %6181 = vmatprep.subr.mxu0 0.0
    %6182 = vmatpush2.msra.mxu0 0.0
    %6183 = vmatprep.mubr.f32.mxu0 0.0
    %6184 = vmatmul.mubr.f32.gmra.mxu0 %v6117
    %v6185 = vpop.f32.mrf.mxu0
    %v6186 = vadd.f32 %v6114, %v6185
    %v6187 = vpop.f32.mrf.mxu0
    %6188 = vdwg.mxu0
    %v6196 = vcombine.low %v5038, %v5039
    %v6197 = vcombine.low %v5040, %v5041
    %v6198 = vcombine.low %v5042, %v5043
    %v6200 = vunpack.c.l.s4 1966171168
    %v6201 = vunpack.c.0.s8 %v6200
    %v6202 = vlaneseq
    %v6203 = vshrl.u32 %v6202, 7
    %v6204 = vsub.s32 %v6201, %v6203
    %v6205 = vrot.slane %v6196, %v6204
    %v6207 = vunpack.c.l.s4 1966171168
    %v6208 = vunpack.c.0.s8 %v6207
    %v6209 = vlaneseq
    %v6210 = vshrl.u32 %v6209, 7
    %v6211 = vsub.s32 %v6208, %v6210
    %v6212 = vrot.slane %v6197, %v6211
    %v6214 = vunpack.c.l.s4 1966171168
    %v6215 = vunpack.c.0.s8 %v6214
    %v6216 = vlaneseq
    %v6217 = vshrl.u32 %v6216, 7
    %v6218 = vsub.s32 %v6215, %v6217
    %v6219 = vrot.slane %v6198, %v6218
    %v6221 = vunpack.c.l.s4 1966171168
    %v6222 = vunpack.c.0.s8 %v6221
    %v6223 = vlaneseq
    %v6224 = vshrl.u32 %v6223, 7
    %v6225 = vsub.s32 %v6222, %v6224
    %v6226 = vrot.slane %v5044, %v6225
    %v6227 = vcombine.low %v6205, %v6212
    %v6228 = vcombine.low %v6219, %v6226
    %v6230 = vunpack.c.l.s4 1966171168
    %v6231 = vunpack.c.0.s8 %v6230
    %v6232 = vlaneseq
    %v6233 = vshrl.u32 %v6232, 7
    %v6234 = vsub.s32 %v6231, %v6233
    %v6235 = vrot.slane %v6227, %v6234
    %v6237 = vunpack.c.l.s4 1966171168
    %v6238 = vunpack.c.0.s8 %v6237
    %v6239 = vlaneseq
    %v6240 = vshrl.u32 %v6239, 7
    %v6241 = vsub.s32 %v6238, %v6240
    %v6242 = vrot.slane %v6228, %v6241
    %v6243 = vcombine.low %v6235, %v6242
    %v6244 = vsel %vm722, %v6243, 0
    %6246 = vmatprep.subr.mxu0 0.0
    %6247 = vmatpush1.msra.mxu0 0.0
    %6248 = vmatprep.subr.mxu0 0.0
    %6249 = vmatpush1.msra.mxu0 0.0
    %6250 = vmatprep.subr.mxu0 0.0
    %6251 = vmatpush1.msra.mxu0 0.0
    %6252 = vmatprep.subr.mxu0 0.0
    %6253 = vmatpush1.msra.mxu0 0.0
    %6254 = vmatprep.subr.mxu0 0.0
    %6255 = vmatpush1.msra.mxu0 0.0
    %6256 = vmatprep.subr.mxu0 0.0
    %6257 = vmatpush1.msra.mxu0 0.0
    %6258 = vmatprep.subr.mxu0 0.0
    %6259 = vmatpush1.msra.mxu0 0.0
    %6260 = vmatprep.subr.mxu0 0.0
    %6261 = vmatpush1.msra.mxu0 0.0
    %6262 = vmatprep.subr.mxu0 0.0
    %6263 = vmatpush1.msra.mxu0 0.0
    %6264 = vmatprep.subr.mxu0 0.0
    %6265 = vmatpush1.msra.mxu0 0.0
    %6266 = vmatprep.subr.mxu0 0.0
    %6267 = vmatpush1.msra.mxu0 0.0
    %6268 = vmatprep.subr.mxu0 0.0
    %6269 = vmatpush1.msra.mxu0 0.0
    %6270 = vmatprep.subr.mxu0 0.0
    %6271 = vmatpush1.msra.mxu0 %v5049
    %6272 = vmatprep.subr.mxu0 0.0
    %6273 = vmatpush1.msra.mxu0 %v5048
    %6274 = vmatprep.subr.mxu0 0.0
    %6275 = vmatpush1.msra.mxu0 %v5047
    %6276 = vmatprep.subr.mxu0 0.0
    %6277 = vmatpush1.msra.mxu0 %v5046
    %6278 = vmatprep.subr.mxu0 0.0
    %6279 = vmatpush2.msra.mxu0 0.0
    %6280 = vmatprep.subr.mxu0 0.0
    %6281 = vmatpush2.msra.mxu0 0.0
    %6282 = vmatprep.subr.mxu0 0.0
    %6283 = vmatpush2.msra.mxu0 0.0
    %6284 = vmatprep.subr.mxu0 0.0
    %6285 = vmatpush2.msra.mxu0 0.0
    %6286 = vmatprep.subr.mxu0 0.0
    %6287 = vmatpush2.msra.mxu0 0.0
    %6288 = vmatprep.subr.mxu0 0.0
    %6289 = vmatpush2.msra.mxu0 0.0
    %6290 = vmatprep.subr.mxu0 0.0
    %6291 = vmatpush2.msra.mxu0 0.0
    %6292 = vmatprep.subr.mxu0 0.0
    %6293 = vmatpush2.msra.mxu0 0.0
    %6294 = vmatprep.subr.mxu0 0.0
    %6295 = vmatpush2.msra.mxu0 0.0
    %6296 = vmatprep.subr.mxu0 0.0
    %6297 = vmatpush2.msra.mxu0 0.0
    %6298 = vmatprep.subr.mxu0 0.0
    %6299 = vmatpush2.msra.mxu0 0.0
    %6300 = vmatprep.subr.mxu0 0.0
    %6301 = vmatpush2.msra.mxu0 0.0
    %6302 = vmatprep.subr.mxu0 0.0
    %6303 = vmatpush2.msra.mxu0 0.0
    %6304 = vmatprep.subr.mxu0 0.0
    %6305 = vmatpush2.msra.mxu0 0.0
    %6306 = vmatprep.subr.mxu0 0.0
    %6307 = vmatpush2.msra.mxu0 0.0
    %6308 = vmatprep.subr.mxu0 0.0
    %6309 = vmatpush2.msra.mxu0 0.0
    %6310 = vmatprep.mubr.f32.mxu0 0.0
    %6311 = vmatmul.mubr.f32.gmra.mxu0 %v6244
    %v6312 = vpop.f32.mrf.mxu0
    %v6313 = vadd.f32 %v5081, %v6312
    %v6314 = vpop.f32.mrf.mxu0
    %6315 = vdwg.mxu0
    %6316 = vmatprep.subr.mxu0 0.0
    %6317 = vmatpush1.msra.mxu0 0.0
    %6318 = vmatprep.subr.mxu0 0.0
    %6319 = vmatpush1.msra.mxu0 0.0
    %6320 = vmatprep.subr.mxu0 0.0
    %6321 = vmatpush1.msra.mxu0 0.0
    %6322 = vmatprep.subr.mxu0 0.0
    %6323 = vmatpush1.msra.mxu0 0.0
    %6324 = vmatprep.subr.mxu0 0.0
    %6325 = vmatpush1.msra.mxu0 0.0
    %6326 = vmatprep.subr.mxu0 0.0
    %6327 = vmatpush1.msra.mxu0 0.0
    %6328 = vmatprep.subr.mxu0 0.0
    %6329 = vmatpush1.msra.mxu0 0.0
    %6330 = vmatprep.subr.mxu0 0.0
    %6331 = vmatpush1.msra.mxu0 0.0
    %6332 = vmatprep.subr.mxu0 0.0
    %6333 = vmatpush1.msra.mxu0 0.0
    %6334 = vmatprep.subr.mxu0 0.0
    %6335 = vmatpush1.msra.mxu0 0.0
    %6336 = vmatprep.subr.mxu0 0.0
    %6337 = vmatpush1.msra.mxu0 0.0
    %6338 = vmatprep.subr.mxu0 0.0
    %6339 = vmatpush1.msra.mxu0 0.0
    %6340 = vmatprep.subr.mxu0 0.0
    %6341 = vmatpush1.msra.mxu0 %v5053
    %6342 = vmatprep.subr.mxu0 0.0
    %6343 = vmatpush1.msra.mxu0 %v5052
    %6344 = vmatprep.subr.mxu0 0.0
    %6345 = vmatpush1.msra.mxu0 %v5051
    %6346 = vmatprep.subr.mxu0 0.0
    %6347 = vmatpush1.msra.mxu0 %v5050
    %6348 = vmatprep.subr.mxu0 0.0
    %6349 = vmatpush2.msra.mxu0 0.0
    %6350 = vmatprep.subr.mxu0 0.0
    %6351 = vmatpush2.msra.mxu0 0.0
    %6352 = vmatprep.subr.mxu0 0.0
    %6353 = vmatpush2.msra.mxu0 0.0
    %6354 = vmatprep.subr.mxu0 0.0
    %6355 = vmatpush2.msra.mxu0 0.0
    %6356 = vmatprep.subr.mxu0 0.0
    %6357 = vmatpush2.msra.mxu0 0.0
    %6358 = vmatprep.subr.mxu0 0.0
    %6359 = vmatpush2.msra.mxu0 0.0
    %6360 = vmatprep.subr.mxu0 0.0
    %6361 = vmatpush2.msra.mxu0 0.0
    %6362 = vmatprep.subr.mxu0 0.0
    %6363 = vmatpush2.msra.mxu0 0.0
    %6364 = vmatprep.subr.mxu0 0.0
    %6365 = vmatpush2.msra.mxu0 0.0
    %6366 = vmatprep.subr.mxu0 0.0
    %6367 = vmatpush2.msra.mxu0 0.0
    %6368 = vmatprep.subr.mxu0 0.0
    %6369 = vmatpush2.msra.mxu0 0.0
    %6370 = vmatprep.subr.mxu0 0.0
    %6371 = vmatpush2.msra.mxu0 0.0
    %6372 = vmatprep.subr.mxu0 0.0
    %6373 = vmatpush2.msra.mxu0 0.0
    %6374 = vmatprep.subr.mxu0 0.0
    %6375 = vmatpush2.msra.mxu0 0.0
    %6376 = vmatprep.subr.mxu0 0.0
    %6377 = vmatpush2.msra.mxu0 0.0
    %6378 = vmatprep.subr.mxu0 0.0
    %6379 = vmatpush2.msra.mxu0 0.0
    %6380 = vmatprep.mubr.f32.mxu0 0.0
    %6381 = vmatmul.mubr.f32.gmra.mxu0 %v6244
    %v6382 = vpop.f32.mrf.mxu0
    %v6383 = vadd.f32 %v5085, %v6382
    %v6384 = vpop.f32.mrf.mxu0
    %6385 = vdwg.mxu0
    %6386 = vmatprep.subr.mxu0 0.0
    %6387 = vmatpush1.msra.mxu0 0.0
    %6388 = vmatprep.subr.mxu0 0.0
    %6389 = vmatpush1.msra.mxu0 0.0
    %6390 = vmatprep.subr.mxu0 0.0
    %6391 = vmatpush1.msra.mxu0 0.0
    %6392 = vmatprep.subr.mxu0 0.0
    %6393 = vmatpush1.msra.mxu0 0.0
    %6394 = vmatprep.subr.mxu0 0.0
    %6395 = vmatpush1.msra.mxu0 0.0
    %6396 = vmatprep.subr.mxu0 0.0
    %6397 = vmatpush1.msra.mxu0 0.0
    %6398 = vmatprep.subr.mxu0 0.0
    %6399 = vmatpush1.msra.mxu0 0.0
    %6400 = vmatprep.subr.mxu0 0.0
    %6401 = vmatpush1.msra.mxu0 0.0
    %6402 = vmatprep.subr.mxu0 0.0
    %6403 = vmatpush1.msra.mxu0 0.0
    %6404 = vmatprep.subr.mxu0 0.0
    %6405 = vmatpush1.msra.mxu0 0.0
    %6406 = vmatprep.subr.mxu0 0.0
    %6407 = vmatpush1.msra.mxu0 0.0
    %6408 = vmatprep.subr.mxu0 0.0
    %6409 = vmatpush1.msra.mxu0 0.0
    %6410 = vmatprep.subr.mxu0 0.0
    %6411 = vmatpush1.msra.mxu0 %v5057
    %6412 = vmatprep.subr.mxu0 0.0
    %6413 = vmatpush1.msra.mxu0 %v5056
    %6414 = vmatprep.subr.mxu0 0.0
    %6415 = vmatpush1.msra.mxu0 %v5055
    %6416 = vmatprep.subr.mxu0 0.0
    %6417 = vmatpush1.msra.mxu0 %v5054
    %6418 = vmatprep.subr.mxu0 0.0
    %6419 = vmatpush2.msra.mxu0 0.0
    %6420 = vmatprep.subr.mxu0 0.0
    %6421 = vmatpush2.msra.mxu0 0.0
    %6422 = vmatprep.subr.mxu0 0.0
    %6423 = vmatpush2.msra.mxu0 0.0
    %6424 = vmatprep.subr.mxu0 0.0
    %6425 = vmatpush2.msra.mxu0 0.0
    %6426 = vmatprep.subr.mxu0 0.0
    %6427 = vmatpush2.msra.mxu0 0.0
    %6428 = vmatprep.subr.mxu0 0.0
    %6429 = vmatpush2.msra.mxu0 0.0
    %6430 = vmatprep.subr.mxu0 0.0
    %6431 = vmatpush2.msra.mxu0 0.0
    %6432 = vmatprep.subr.mxu0 0.0
    %6433 = vmatpush2.msra.mxu0 0.0
    %6434 = vmatprep.subr.mxu0 0.0
    %6435 = vmatpush2.msra.mxu0 0.0
    %6436 = vmatprep.subr.mxu0 0.0
    %6437 = vmatpush2.msra.mxu0 0.0
    %6438 = vmatprep.subr.mxu0 0.0
    %6439 = vmatpush2.msra.mxu0 0.0
    %6440 = vmatprep.subr.mxu0 0.0
    %6441 = vmatpush2.msra.mxu0 0.0
    %6442 = vmatprep.subr.mxu0 0.0
    %6443 = vmatpush2.msra.mxu0 0.0
    %6444 = vmatprep.subr.mxu0 0.0
    %6445 = vmatpush2.msra.mxu0 0.0
    %6446 = vmatprep.subr.mxu0 0.0
    %6447 = vmatpush2.msra.mxu0 0.0
    %6448 = vmatprep.subr.mxu0 0.0
    %6449 = vmatpush2.msra.mxu0 0.0
    %6450 = vmatprep.mubr.f32.mxu0 0.0
    %6451 = vmatmul.mubr.f32.gmra.mxu0 %v6244
    %v6452 = vpop.f32.mrf.mxu0
    %v6453 = vadd.f32 %v5089, %v6452
    %v6454 = vpop.f32.mrf.mxu0
    %6455 = vdwg.mxu0
    %6456 = vmatprep.subr.mxu0 0.0
    %6457 = vmatpush1.msra.mxu0 0.0
    %6458 = vmatprep.subr.mxu0 0.0
    %6459 = vmatpush1.msra.mxu0 0.0
    %6460 = vmatprep.subr.mxu0 0.0
    %6461 = vmatpush1.msra.mxu0 0.0
    %6462 = vmatprep.subr.mxu0 0.0
    %6463 = vmatpush1.msra.mxu0 0.0
    %6464 = vmatprep.subr.mxu0 0.0
    %6465 = vmatpush1.msra.mxu0 0.0
    %6466 = vmatprep.subr.mxu0 0.0
    %6467 = vmatpush1.msra.mxu0 0.0
    %6468 = vmatprep.subr.mxu0 0.0
    %6469 = vmatpush1.msra.mxu0 0.0
    %6470 = vmatprep.subr.mxu0 0.0
    %6471 = vmatpush1.msra.mxu0 0.0
    %6472 = vmatprep.subr.mxu0 0.0
    %6473 = vmatpush1.msra.mxu0 0.0
    %6474 = vmatprep.subr.mxu0 0.0
    %6475 = vmatpush1.msra.mxu0 0.0
    %6476 = vmatprep.subr.mxu0 0.0
    %6477 = vmatpush1.msra.mxu0 0.0
    %6478 = vmatprep.subr.mxu0 0.0
    %6479 = vmatpush1.msra.mxu0 0.0
    %6480 = vmatprep.subr.mxu0 0.0
    %6481 = vmatpush1.msra.mxu0 %v5061
    %6482 = vmatprep.subr.mxu0 0.0
    %6483 = vmatpush1.msra.mxu0 %v5060
    %6484 = vmatprep.subr.mxu0 0.0
    %6485 = vmatpush1.msra.mxu0 %v5059
    %6486 = vmatprep.subr.mxu0 0.0
    %6487 = vmatpush1.msra.mxu0 %v5058
    %6488 = vmatprep.subr.mxu0 0.0
    %6489 = vmatpush2.msra.mxu0 0.0
    %6490 = vmatprep.subr.mxu0 0.0
    %6491 = vmatpush2.msra.mxu0 0.0
    %6492 = vmatprep.subr.mxu0 0.0
    %6493 = vmatpush2.msra.mxu0 0.0
    %6494 = vmatprep.subr.mxu0 0.0
    %6495 = vmatpush2.msra.mxu0 0.0
    %6496 = vmatprep.subr.mxu0 0.0
    %6497 = vmatpush2.msra.mxu0 0.0
    %6498 = vmatprep.subr.mxu0 0.0
    %6499 = vmatpush2.msra.mxu0 0.0
    %6500 = vmatprep.subr.mxu0 0.0
    %6501 = vmatpush2.msra.mxu0 0.0
    %6502 = vmatprep.subr.mxu0 0.0
    %6503 = vmatpush2.msra.mxu0 0.0
    %6504 = vmatprep.subr.mxu0 0.0
    %6505 = vmatpush2.msra.mxu0 0.0
    %6506 = vmatprep.subr.mxu0 0.0
    %6507 = vmatpush2.msra.mxu0 0.0
    %6508 = vmatprep.subr.mxu0 0.0
    %6509 = vmatpush2.msra.mxu0 0.0
    %6510 = vmatprep.subr.mxu0 0.0
    %6511 = vmatpush2.msra.mxu0 0.0
    %6512 = vmatprep.subr.mxu0 0.0
    %6513 = vmatpush2.msra.mxu0 0.0
    %6514 = vmatprep.subr.mxu0 0.0
    %6515 = vmatpush2.msra.mxu0 0.0
    %6516 = vmatprep.subr.mxu0 0.0
    %6517 = vmatpush2.msra.mxu0 0.0
    %6518 = vmatprep.subr.mxu0 0.0
    %6519 = vmatpush2.msra.mxu0 0.0
    %6520 = vmatprep.mubr.f32.mxu0 0.0
    %6521 = vmatmul.mubr.f32.gmra.mxu0 %v6244
    %v6522 = vpop.f32.mrf.mxu0
    %v6523 = vadd.f32 %v5093, %v6522
    %v6524 = vpop.f32.mrf.mxu0
    %6525 = vdwg.mxu0
    %6527 = vrot.lane.b32.xlu0 %v6313, 120
    %v6528 = vpop.permute.xlu0 %6527
    %v6529 = vsel %vm1008, %v6313, 0
    %v6531 = vsel %vm1008, %v6528, 0
    %6533 = vmatprep.subr.mxu0 0.0
    %6534 = vmatpush1.xpose.msra.mxu0 0.0
    %6535 = vmatprep.subr.mxu0 0.0
    %6536 = vmatpush1.xpose.msra.mxu0 0.0
    %6537 = vmatprep.subr.mxu0 0.0
    %6538 = vmatpush1.xpose.msra.mxu0 0.0
    %6539 = vmatprep.subr.mxu0 0.0
    %6540 = vmatpush1.xpose.msra.mxu0 0.0
    %6541 = vmatprep.subr.mxu0 0.0
    %6542 = vmatpush1.xpose.msra.mxu0 0.0
    %6543 = vmatprep.subr.mxu0 0.0
    %6544 = vmatpush1.xpose.msra.mxu0 0.0
    %6545 = vmatprep.subr.mxu0 0.0
    %6546 = vmatpush1.xpose.msra.mxu0 0.0
    %6547 = vmatprep.subr.mxu0 0.0
    %6548 = vmatpush1.xpose.msra.mxu0 0.0
    %6549 = vmatprep.subr.mxu0 0.0
    %6550 = vmatpush1.xpose.msra.mxu0 0.0
    %6551 = vmatprep.subr.mxu0 0.0
    %6552 = vmatpush1.xpose.msra.mxu0 0.0
    %6553 = vmatprep.subr.mxu0 0.0
    %6554 = vmatpush1.xpose.msra.mxu0 0.0
    %6555 = vmatprep.subr.mxu0 0.0
    %6556 = vmatpush1.xpose.msra.mxu0 0.0
    %6557 = vmatprep.subr.mxu0 0.0
    %6558 = vmatpush1.xpose.msra.mxu0 0.0
    %6559 = vmatprep.subr.mxu0 0.0
    %6560 = vmatpush1.xpose.msra.mxu0 0.0
    %6561 = vmatprep.subr.mxu0 0.0
    %6562 = vmatpush1.xpose.msra.mxu0 0.0
    %6563 = vmatprep.subr.mxu0 0.0
    %6564 = vmatpush1.xpose.msra.mxu0 %v6531
    %6565 = vmatprep.subr.mxu0 0.0
    %6566 = vmatpush2.xpose.msra.mxu0 0.0
    %6567 = vmatprep.subr.mxu0 0.0
    %6568 = vmatpush2.xpose.msra.mxu0 0.0
    %6569 = vmatprep.subr.mxu0 0.0
    %6570 = vmatpush2.xpose.msra.mxu0 0.0
    %6571 = vmatprep.subr.mxu0 0.0
    %6572 = vmatpush2.xpose.msra.mxu0 0.0
    %6573 = vmatprep.subr.mxu0 0.0
    %6574 = vmatpush2.xpose.msra.mxu0 0.0
    %6575 = vmatprep.subr.mxu0 0.0
    %6576 = vmatpush2.xpose.msra.mxu0 0.0
    %6577 = vmatprep.subr.mxu0 0.0
    %6578 = vmatpush2.xpose.msra.mxu0 0.0
    %6579 = vmatprep.subr.mxu0 0.0
    %6580 = vmatpush2.xpose.msra.mxu0 0.0
    %6581 = vmatprep.subr.mxu0 0.0
    %6582 = vmatpush2.xpose.msra.mxu0 0.0
    %6583 = vmatprep.subr.mxu0 0.0
    %6584 = vmatpush2.xpose.msra.mxu0 0.0
    %6585 = vmatprep.subr.mxu0 0.0
    %6586 = vmatpush2.xpose.msra.mxu0 0.0
    %6587 = vmatprep.subr.mxu0 0.0
    %6588 = vmatpush2.xpose.msra.mxu0 0.0
    %6589 = vmatprep.subr.mxu0 0.0
    %6590 = vmatpush2.xpose.msra.mxu0 0.0
    %6591 = vmatprep.subr.mxu0 0.0
    %6592 = vmatpush2.xpose.msra.mxu0 0.0
    %6593 = vmatprep.subr.mxu0 0.0
    %6594 = vmatpush2.xpose.msra.mxu0 0.0
    %6595 = vmatprep.subr.mxu0 0.0
    %6596 = vmatpush2.xpose.msra.mxu0 0.0
    %6597 = vmatprep.mubr.f32.mxu0 0.0
    %6598 = vmatmul.mubr.f32.gmra.mxu0 %v6529
    %v6599 = vpop.f32.mrf.mxu0
    %v6600 = vadd.f32 0.0, %v6599
    %v6601 = vpop.f32.mrf.mxu0
    %6602 = vdwg.mxu0
    %6604 = vrot.lane.b32.xlu0 %v6383, 120
    %v6605 = vpop.permute.xlu0 %6604
    %v6606 = vsel %vm1008, %v6383, 0
    %v6608 = vsel %vm1008, %v6605, 0
    %6610 = vmatprep.subr.mxu0 0.0
    %6611 = vmatpush1.xpose.msra.mxu0 0.0
    %6612 = vmatprep.subr.mxu0 0.0
    %6613 = vmatpush1.xpose.msra.mxu0 0.0
    %6614 = vmatprep.subr.mxu0 0.0
    %6615 = vmatpush1.xpose.msra.mxu0 0.0
    %6616 = vmatprep.subr.mxu0 0.0
    %6617 = vmatpush1.xpose.msra.mxu0 0.0
    %6618 = vmatprep.subr.mxu0 0.0
    %6619 = vmatpush1.xpose.msra.mxu0 0.0
    %6620 = vmatprep.subr.mxu0 0.0
    %6621 = vmatpush1.xpose.msra.mxu0 0.0
    %6622 = vmatprep.subr.mxu0 0.0
    %6623 = vmatpush1.xpose.msra.mxu0 0.0
    %6624 = vmatprep.subr.mxu0 0.0
    %6625 = vmatpush1.xpose.msra.mxu0 0.0
    %6626 = vmatprep.subr.mxu0 0.0
    %6627 = vmatpush1.xpose.msra.mxu0 0.0
    %6628 = vmatprep.subr.mxu0 0.0
    %6629 = vmatpush1.xpose.msra.mxu0 0.0
    %6630 = vmatprep.subr.mxu0 0.0
    %6631 = vmatpush1.xpose.msra.mxu0 0.0
    %6632 = vmatprep.subr.mxu0 0.0
    %6633 = vmatpush1.xpose.msra.mxu0 0.0
    %6634 = vmatprep.subr.mxu0 0.0
    %6635 = vmatpush1.xpose.msra.mxu0 0.0
    %6636 = vmatprep.subr.mxu0 0.0
    %6637 = vmatpush1.xpose.msra.mxu0 0.0
    %6638 = vmatprep.subr.mxu0 0.0
    %6639 = vmatpush1.xpose.msra.mxu0 0.0
    %6640 = vmatprep.subr.mxu0 0.0
    %6641 = vmatpush1.xpose.msra.mxu0 %v6608
    %6642 = vmatprep.subr.mxu0 0.0
    %6643 = vmatpush2.xpose.msra.mxu0 0.0
    %6644 = vmatprep.subr.mxu0 0.0
    %6645 = vmatpush2.xpose.msra.mxu0 0.0
    %6646 = vmatprep.subr.mxu0 0.0
    %6647 = vmatpush2.xpose.msra.mxu0 0.0
    %6648 = vmatprep.subr.mxu0 0.0
    %6649 = vmatpush2.xpose.msra.mxu0 0.0
    %6650 = vmatprep.subr.mxu0 0.0
    %6651 = vmatpush2.xpose.msra.mxu0 0.0
    %6652 = vmatprep.subr.mxu0 0.0
    %6653 = vmatpush2.xpose.msra.mxu0 0.0
    %6654 = vmatprep.subr.mxu0 0.0
    %6655 = vmatpush2.xpose.msra.mxu0 0.0
    %6656 = vmatprep.subr.mxu0 0.0
    %6657 = vmatpush2.xpose.msra.mxu0 0.0
    %6658 = vmatprep.subr.mxu0 0.0
    %6659 = vmatpush2.xpose.msra.mxu0 0.0
    %6660 = vmatprep.subr.mxu0 0.0
    %6661 = vmatpush2.xpose.msra.mxu0 0.0
    %6662 = vmatprep.subr.mxu0 0.0
    %6663 = vmatpush2.xpose.msra.mxu0 0.0
    %6664 = vmatprep.subr.mxu0 0.0
    %6665 = vmatpush2.xpose.msra.mxu0 0.0
    %6666 = vmatprep.subr.mxu0 0.0
    %6667 = vmatpush2.xpose.msra.mxu0 0.0
    %6668 = vmatprep.subr.mxu0 0.0
    %6669 = vmatpush2.xpose.msra.mxu0 0.0
    %6670 = vmatprep.subr.mxu0 0.0
    %6671 = vmatpush2.xpose.msra.mxu0 0.0
    %6672 = vmatprep.subr.mxu0 0.0
    %6673 = vmatpush2.xpose.msra.mxu0 0.0
    %6674 = vmatprep.mubr.f32.mxu0 0.0
    %6675 = vmatmul.mubr.f32.gmra.mxu0 %v6606
    %v6676 = vpop.f32.mrf.mxu0
    %v6677 = vadd.f32 0.0, %v6676
    %v6678 = vpop.f32.mrf.mxu0
    %6679 = vdwg.mxu0
    %6681 = vrot.lane.b32.xlu0 %v6453, 120
    %v6682 = vpop.permute.xlu0 %6681
    %v6683 = vsel %vm1008, %v6453, 0
    %v6685 = vsel %vm1008, %v6682, 0
    %6687 = vmatprep.subr.mxu0 0.0
    %6688 = vmatpush1.xpose.msra.mxu0 0.0
    %6689 = vmatprep.subr.mxu0 0.0
    %6690 = vmatpush1.xpose.msra.mxu0 0.0
    %6691 = vmatprep.subr.mxu0 0.0
    %6692 = vmatpush1.xpose.msra.mxu0 0.0
    %6693 = vmatprep.subr.mxu0 0.0
    %6694 = vmatpush1.xpose.msra.mxu0 0.0
    %6695 = vmatprep.subr.mxu0 0.0
    %6696 = vmatpush1.xpose.msra.mxu0 0.0
    %6697 = vmatprep.subr.mxu0 0.0
    %6698 = vmatpush1.xpose.msra.mxu0 0.0
    %6699 = vmatprep.subr.mxu0 0.0
    %6700 = vmatpush1.xpose.msra.mxu0 0.0
    %6701 = vmatprep.subr.mxu0 0.0
    %6702 = vmatpush1.xpose.msra.mxu0 0.0
    %6703 = vmatprep.subr.mxu0 0.0
    %6704 = vmatpush1.xpose.msra.mxu0 0.0
    %6705 = vmatprep.subr.mxu0 0.0
    %6706 = vmatpush1.xpose.msra.mxu0 0.0
    %6707 = vmatprep.subr.mxu0 0.0
    %6708 = vmatpush1.xpose.msra.mxu0 0.0
    %6709 = vmatprep.subr.mxu0 0.0
    %6710 = vmatpush1.xpose.msra.mxu0 0.0
    %6711 = vmatprep.subr.mxu0 0.0
    %6712 = vmatpush1.xpose.msra.mxu0 0.0
    %6713 = vmatprep.subr.mxu0 0.0
    %6714 = vmatpush1.xpose.msra.mxu0 0.0
    %6715 = vmatprep.subr.mxu0 0.0
    %6716 = vmatpush1.xpose.msra.mxu0 0.0
    %6717 = vmatprep.subr.mxu0 0.0
    %6718 = vmatpush1.xpose.msra.mxu0 %v6685
    %6719 = vmatprep.subr.mxu0 0.0
    %6720 = vmatpush2.xpose.msra.mxu0 0.0
    %6721 = vmatprep.subr.mxu0 0.0
    %6722 = vmatpush2.xpose.msra.mxu0 0.0
    %6723 = vmatprep.subr.mxu0 0.0
    %6724 = vmatpush2.xpose.msra.mxu0 0.0
    %6725 = vmatprep.subr.mxu0 0.0
    %6726 = vmatpush2.xpose.msra.mxu0 0.0
    %6727 = vmatprep.subr.mxu0 0.0
    %6728 = vmatpush2.xpose.msra.mxu0 0.0
    %6729 = vmatprep.subr.mxu0 0.0
    %6730 = vmatpush2.xpose.msra.mxu0 0.0
    %6731 = vmatprep.subr.mxu0 0.0
    %6732 = vmatpush2.xpose.msra.mxu0 0.0
    %6733 = vmatprep.subr.mxu0 0.0
    %6734 = vmatpush2.xpose.msra.mxu0 0.0
    %6735 = vmatprep.subr.mxu0 0.0
    %6736 = vmatpush2.xpose.msra.mxu0 0.0
    %6737 = vmatprep.subr.mxu0 0.0
    %6738 = vmatpush2.xpose.msra.mxu0 0.0
    %6739 = vmatprep.subr.mxu0 0.0
    %6740 = vmatpush2.xpose.msra.mxu0 0.0
    %6741 = vmatprep.subr.mxu0 0.0
    %6742 = vmatpush2.xpose.msra.mxu0 0.0
    %6743 = vmatprep.subr.mxu0 0.0
    %6744 = vmatpush2.xpose.msra.mxu0 0.0
    %6745 = vmatprep.subr.mxu0 0.0
    %6746 = vmatpush2.xpose.msra.mxu0 0.0
    %6747 = vmatprep.subr.mxu0 0.0
    %6748 = vmatpush2.xpose.msra.mxu0 0.0
    %6749 = vmatprep.subr.mxu0 0.0
    %6750 = vmatpush2.xpose.msra.mxu0 0.0
    %6751 = vmatprep.mubr.f32.mxu0 0.0
    %6752 = vmatmul.mubr.f32.gmra.mxu0 %v6683
    %v6753 = vpop.f32.mrf.mxu0
    %v6754 = vadd.f32 0.0, %v6753
    %v6755 = vpop.f32.mrf.mxu0
    %6756 = vdwg.mxu0
    %6758 = vrot.lane.b32.xlu0 %v6523, 120
    %v6759 = vpop.permute.xlu0 %6758
    %v6760 = vsel %vm1008, %v6523, 0
    %v6762 = vsel %vm1008, %v6759, 0
    %6764 = vmatprep.subr.mxu0 0.0
    %6765 = vmatpush1.xpose.msra.mxu0 0.0
    %6766 = vmatprep.subr.mxu0 0.0
    %6767 = vmatpush1.xpose.msra.mxu0 0.0
    %6768 = vmatprep.subr.mxu0 0.0
    %6769 = vmatpush1.xpose.msra.mxu0 0.0
    %6770 = vmatprep.subr.mxu0 0.0
    %6771 = vmatpush1.xpose.msra.mxu0 0.0
    %6772 = vmatprep.subr.mxu0 0.0
    %6773 = vmatpush1.xpose.msra.mxu0 0.0
    %6774 = vmatprep.subr.mxu0 0.0
    %6775 = vmatpush1.xpose.msra.mxu0 0.0
    %6776 = vmatprep.subr.mxu0 0.0
    %6777 = vmatpush1.xpose.msra.mxu0 0.0
    %6778 = vmatprep.subr.mxu0 0.0
    %6779 = vmatpush1.xpose.msra.mxu0 0.0
    %6780 = vmatprep.subr.mxu0 0.0
    %6781 = vmatpush1.xpose.msra.mxu0 0.0
    %6782 = vmatprep.subr.mxu0 0.0
    %6783 = vmatpush1.xpose.msra.mxu0 0.0
    %6784 = vmatprep.subr.mxu0 0.0
    %6785 = vmatpush1.xpose.msra.mxu0 0.0
    %6786 = vmatprep.subr.mxu0 0.0
    %6787 = vmatpush1.xpose.msra.mxu0 0.0
    %6788 = vmatprep.subr.mxu0 0.0
    %6789 = vmatpush1.xpose.msra.mxu0 0.0
    %6790 = vmatprep.subr.mxu0 0.0
    %6791 = vmatpush1.xpose.msra.mxu0 0.0
    %6792 = vmatprep.subr.mxu0 0.0
    %6793 = vmatpush1.xpose.msra.mxu0 0.0
    %6794 = vmatprep.subr.mxu0 0.0
    %6795 = vmatpush1.xpose.msra.mxu0 %v6762
    %6796 = vmatprep.subr.mxu0 0.0
    %6797 = vmatpush2.xpose.msra.mxu0 0.0
    %6798 = vmatprep.subr.mxu0 0.0
    %6799 = vmatpush2.xpose.msra.mxu0 0.0
    %6800 = vmatprep.subr.mxu0 0.0
    %6801 = vmatpush2.xpose.msra.mxu0 0.0
    %6802 = vmatprep.subr.mxu0 0.0
    %6803 = vmatpush2.xpose.msra.mxu0 0.0
    %6804 = vmatprep.subr.mxu0 0.0
    %6805 = vmatpush2.xpose.msra.mxu0 0.0
    %6806 = vmatprep.subr.mxu0 0.0
    %6807 = vmatpush2.xpose.msra.mxu0 0.0
    %6808 = vmatprep.subr.mxu0 0.0
    %6809 = vmatpush2.xpose.msra.mxu0 0.0
    %6810 = vmatprep.subr.mxu0 0.0
    %6811 = vmatpush2.xpose.msra.mxu0 0.0
    %6812 = vmatprep.subr.mxu0 0.0
    %6813 = vmatpush2.xpose.msra.mxu0 0.0
    %6814 = vmatprep.subr.mxu0 0.0
    %6815 = vmatpush2.xpose.msra.mxu0 0.0
    %6816 = vmatprep.subr.mxu0 0.0
    %6817 = vmatpush2.xpose.msra.mxu0 0.0
    %6818 = vmatprep.subr.mxu0 0.0
    %6819 = vmatpush2.xpose.msra.mxu0 0.0
    %6820 = vmatprep.subr.mxu0 0.0
    %6821 = vmatpush2.xpose.msra.mxu0 0.0
    %6822 = vmatprep.subr.mxu0 0.0
    %6823 = vmatpush2.xpose.msra.mxu0 0.0
    %6824 = vmatprep.subr.mxu0 0.0
    %6825 = vmatpush2.xpose.msra.mxu0 0.0
    %6826 = vmatprep.subr.mxu0 0.0
    %6827 = vmatpush2.xpose.msra.mxu0 0.0
    %6828 = vmatprep.mubr.f32.mxu0 0.0
    %6829 = vmatmul.mubr.f32.gmra.mxu0 %v6760
    %v6830 = vpop.f32.mrf.mxu0
    %v6831 = vadd.f32 0.0, %v6830
    %v6832 = vpop.f32.mrf.mxu0
    %6833 = vdwg.mxu0
    %v6834 = vsel %vm1314, %v6600, -inf
    %6835 = vmax.xlane.f32.xlu0 %v6834
    %v6836 = vpop.xlane.xlu0 %6835
    %v6837 = vsel %vm1314, %v6677, -inf
    %6838 = vmax.xlane.f32.xlu0 %v6837
    %v6839 = vpop.xlane.xlu0 %6838
    %v6840 = vsel %vm1314, %v6754, -inf
    %6841 = vmax.xlane.f32.xlu0 %v6840
    %v6842 = vpop.xlane.xlu0 %6841
    %v6843 = vsel %vm1314, %v6831, -inf
    %6844 = vmax.xlane.f32.xlu0 %v6843
    %v6845 = vpop.xlane.xlu0 %6844
    %v6846 = vsub.f32 %v6600, %v6836
    %v6847 = vsub.f32 %v6677, %v6839
    %v6848 = vsub.f32 %v6754, %v6842
    %v6849 = vsub.f32 %v6831, %v6845
    %v6850 = vmul.f32 %v6846, 1.442695
    %v6851 = vpow.pop %v6850
    %v6852 = vmul.f32 %v6847, 1.442695
    %v6853 = vpow.pop %v6852
    %v6854 = vmul.f32 %v6848, 1.442695
    %v6855 = vpow.pop %v6854
    %v6856 = vmul.f32 %v6849, 1.442695
    %v6857 = vpow.pop %v6856
    %v6858 = vsel %vm1314, %v6851, 0.0
    %6859 = vadd.xlane.f32.xlu0 %v6858
    %v6860 = vpop.xlane.xlu0 %6859
    %v6861 = vsel %vm1314, %v6853, 0.0
    %6862 = vadd.xlane.f32.xlu0 %v6861
    %v6863 = vpop.xlane.xlu0 %6862
    %v6864 = vsel %vm1314, %v6855, 0.0
    %6865 = vadd.xlane.f32.xlu0 %v6864
    %v6866 = vpop.xlane.xlu0 %6865
    %v6867 = vsel %vm1314, %v6857, 0.0
    %6868 = vadd.xlane.f32.xlu0 %v6867
    %v6869 = vpop.xlane.xlu0 %6868
    %v6870 = vrcp.pop %v6860
    %v6871 = vrcp.pop %v6863
    %v6872 = vrcp.pop %v6866
    %v6873 = vrcp.pop %v6869
    %v6874 = vmul.f32 %v6851, %v6870
    %v6875 = vmul.f32 %v6853, %v6871
    %v6876 = vmul.f32 %v6855, %v6872
    %v6877 = vmul.f32 %v6857, %v6873
    %6878 = vrot.lane.b32.xlu0 %v6313, 112
    %v6879 = vpop.permute.xlu0 %6878
    %v6881 = vsel %vm1361, %v6874, 0
    %v6883 = vsel %vm1365, %v6879, 0
    %6885 = vmatprep.subr.mxu0 0.0
    %6886 = vmatpush1.msra.mxu0 0.0
    %6887 = vmatprep.subr.mxu0 0.0
    %6888 = vmatpush1.msra.mxu0 0.0
    %6889 = vmatprep.subr.mxu0 0.0
    %6890 = vmatpush1.msra.mxu0 0.0
    %6891 = vmatprep.subr.mxu0 0.0
    %6892 = vmatpush1.msra.mxu0 0.0
    %6893 = vmatprep.subr.mxu0 0.0
    %6894 = vmatpush1.msra.mxu0 0.0
    %6895 = vmatprep.subr.mxu0 0.0
    %6896 = vmatpush1.msra.mxu0 0.0
    %6897 = vmatprep.subr.mxu0 0.0
    %6898 = vmatpush1.msra.mxu0 0.0
    %6899 = vmatprep.subr.mxu0 0.0
    %6900 = vmatpush1.msra.mxu0 0.0
    %6901 = vmatprep.subr.mxu0 0.0
    %6902 = vmatpush1.msra.mxu0 0.0
    %6903 = vmatprep.subr.mxu0 0.0
    %6904 = vmatpush1.msra.mxu0 0.0
    %6905 = vmatprep.subr.mxu0 0.0
    %6906 = vmatpush1.msra.mxu0 0.0
    %6907 = vmatprep.subr.mxu0 0.0
    %6908 = vmatpush1.msra.mxu0 0.0
    %6909 = vmatprep.subr.mxu0 0.0
    %6910 = vmatpush1.msra.mxu0 0.0
    %6911 = vmatprep.subr.mxu0 0.0
    %6912 = vmatpush1.msra.mxu0 0.0
    %6913 = vmatprep.subr.mxu0 0.0
    %6914 = vmatpush1.msra.mxu0 0.0
    %6915 = vmatprep.subr.mxu0 0.0
    %6916 = vmatpush1.msra.mxu0 %v6883
    %6917 = vmatprep.subr.mxu0 0.0
    %6918 = vmatpush2.msra.mxu0 0.0
    %6919 = vmatprep.subr.mxu0 0.0
    %6920 = vmatpush2.msra.mxu0 0.0
    %6921 = vmatprep.subr.mxu0 0.0
    %6922 = vmatpush2.msra.mxu0 0.0
    %6923 = vmatprep.subr.mxu0 0.0
    %6924 = vmatpush2.msra.mxu0 0.0
    %6925 = vmatprep.subr.mxu0 0.0
    %6926 = vmatpush2.msra.mxu0 0.0
    %6927 = vmatprep.subr.mxu0 0.0
    %6928 = vmatpush2.msra.mxu0 0.0
    %6929 = vmatprep.subr.mxu0 0.0
    %6930 = vmatpush2.msra.mxu0 0.0
    %6931 = vmatprep.subr.mxu0 0.0
    %6932 = vmatpush2.msra.mxu0 0.0
    %6933 = vmatprep.subr.mxu0 0.0
    %6934 = vmatpush2.msra.mxu0 0.0
    %6935 = vmatprep.subr.mxu0 0.0
    %6936 = vmatpush2.msra.mxu0 0.0
    %6937 = vmatprep.subr.mxu0 0.0
    %6938 = vmatpush2.msra.mxu0 0.0
    %6939 = vmatprep.subr.mxu0 0.0
    %6940 = vmatpush2.msra.mxu0 0.0
    %6941 = vmatprep.subr.mxu0 0.0
    %6942 = vmatpush2.msra.mxu0 0.0
    %6943 = vmatprep.subr.mxu0 0.0
    %6944 = vmatpush2.msra.mxu0 0.0
    %6945 = vmatprep.subr.mxu0 0.0
    %6946 = vmatpush2.msra.mxu0 0.0
    %6947 = vmatprep.subr.mxu0 0.0
    %6948 = vmatpush2.msra.mxu0 0.0
    %6949 = vmatprep.mubr.f32.mxu0 0.0
    %6950 = vmatmul.mubr.f32.gmra.mxu0 %v6881
    %v6951 = vpop.f32.mrf.mxu0
    %v6952 = vadd.f32 0.0, %v6951
    %v6953 = vpop.f32.mrf.mxu0
    %6954 = vdwg.mxu0
    %6955 = vrot.lane.b32.xlu0 %v6383, 112
    %v6956 = vpop.permute.xlu0 %6955
    %v6958 = vsel %vm1361, %v6875, 0
    %v6960 = vsel %vm1365, %v6956, 0
    %6962 = vmatprep.subr.mxu0 0.0
    %6963 = vmatpush1.msra.mxu0 0.0
    %6964 = vmatprep.subr.mxu0 0.0
    %6965 = vmatpush1.msra.mxu0 0.0
    %6966 = vmatprep.subr.mxu0 0.0
    %6967 = vmatpush1.msra.mxu0 0.0
    %6968 = vmatprep.subr.mxu0 0.0
    %6969 = vmatpush1.msra.mxu0 0.0
    %6970 = vmatprep.subr.mxu0 0.0
    %6971 = vmatpush1.msra.mxu0 0.0
    %6972 = vmatprep.subr.mxu0 0.0
    %6973 = vmatpush1.msra.mxu0 0.0
    %6974 = vmatprep.subr.mxu0 0.0
    %6975 = vmatpush1.msra.mxu0 0.0
    %6976 = vmatprep.subr.mxu0 0.0
    %6977 = vmatpush1.msra.mxu0 0.0
    %6978 = vmatprep.subr.mxu0 0.0
    %6979 = vmatpush1.msra.mxu0 0.0
    %6980 = vmatprep.subr.mxu0 0.0
    %6981 = vmatpush1.msra.mxu0 0.0
    %6982 = vmatprep.subr.mxu0 0.0
    %6983 = vmatpush1.msra.mxu0 0.0
    %6984 = vmatprep.subr.mxu0 0.0
    %6985 = vmatpush1.msra.mxu0 0.0
    %6986 = vmatprep.subr.mxu0 0.0
    %6987 = vmatpush1.msra.mxu0 0.0
    %6988 = vmatprep.subr.mxu0 0.0
    %6989 = vmatpush1.msra.mxu0 0.0
    %6990 = vmatprep.subr.mxu0 0.0
    %6991 = vmatpush1.msra.mxu0 0.0
    %6992 = vmatprep.subr.mxu0 0.0
    %6993 = vmatpush1.msra.mxu0 %v6960
    %6994 = vmatprep.subr.mxu0 0.0
    %6995 = vmatpush2.msra.mxu0 0.0
    %6996 = vmatprep.subr.mxu0 0.0
    %6997 = vmatpush2.msra.mxu0 0.0
    %6998 = vmatprep.subr.mxu0 0.0
    %6999 = vmatpush2.msra.mxu0 0.0
    %7000 = vmatprep.subr.mxu0 0.0
    %7001 = vmatpush2.msra.mxu0 0.0
    %7002 = vmatprep.subr.mxu0 0.0
    %7003 = vmatpush2.msra.mxu0 0.0
    %7004 = vmatprep.subr.mxu0 0.0
    %7005 = vmatpush2.msra.mxu0 0.0
    %7006 = vmatprep.subr.mxu0 0.0
    %7007 = vmatpush2.msra.mxu0 0.0
    %7008 = vmatprep.subr.mxu0 0.0
    %7009 = vmatpush2.msra.mxu0 0.0
    %7010 = vmatprep.subr.mxu0 0.0
    %7011 = vmatpush2.msra.mxu0 0.0
    %7012 = vmatprep.subr.mxu0 0.0
    %7013 = vmatpush2.msra.mxu0 0.0
    %7014 = vmatprep.subr.mxu0 0.0
    %7015 = vmatpush2.msra.mxu0 0.0
    %7016 = vmatprep.subr.mxu0 0.0
    %7017 = vmatpush2.msra.mxu0 0.0
    %7018 = vmatprep.subr.mxu0 0.0
    %7019 = vmatpush2.msra.mxu0 0.0
    %7020 = vmatprep.subr.mxu0 0.0
    %7021 = vmatpush2.msra.mxu0 0.0
    %7022 = vmatprep.subr.mxu0 0.0
    %7023 = vmatpush2.msra.mxu0 0.0
    %7024 = vmatprep.subr.mxu0 0.0
    %7025 = vmatpush2.msra.mxu0 0.0
    %7026 = vmatprep.mubr.f32.mxu0 0.0
    %7027 = vmatmul.mubr.f32.gmra.mxu0 %v6958
    %v7028 = vpop.f32.mrf.mxu0
    %v7029 = vadd.f32 0.0, %v7028
    %v7030 = vpop.f32.mrf.mxu0
    %7031 = vdwg.mxu0
    %7032 = vrot.lane.b32.xlu0 %v6453, 112
    %v7033 = vpop.permute.xlu0 %7032
    %v7035 = vsel %vm1361, %v6876, 0
    %v7037 = vsel %vm1365, %v7033, 0
    %7039 = vmatprep.subr.mxu0 0.0
    %7040 = vmatpush1.msra.mxu0 0.0
    %7041 = vmatprep.subr.mxu0 0.0
    %7042 = vmatpush1.msra.mxu0 0.0
    %7043 = vmatprep.subr.mxu0 0.0
    %7044 = vmatpush1.msra.mxu0 0.0
    %7045 = vmatprep.subr.mxu0 0.0
    %7046 = vmatpush1.msra.mxu0 0.0
    %7047 = vmatprep.subr.mxu0 0.0
    %7048 = vmatpush1.msra.mxu0 0.0
    %7049 = vmatprep.subr.mxu0 0.0
    %7050 = vmatpush1.msra.mxu0 0.0
    %7051 = vmatprep.subr.mxu0 0.0
    %7052 = vmatpush1.msra.mxu0 0.0
    %7053 = vmatprep.subr.mxu0 0.0
    %7054 = vmatpush1.msra.mxu0 0.0
    %7055 = vmatprep.subr.mxu0 0.0
    %7056 = vmatpush1.msra.mxu0 0.0
    %7057 = vmatprep.subr.mxu0 0.0
    %7058 = vmatpush1.msra.mxu0 0.0
    %7059 = vmatprep.subr.mxu0 0.0
    %7060 = vmatpush1.msra.mxu0 0.0
    %7061 = vmatprep.subr.mxu0 0.0
    %7062 = vmatpush1.msra.mxu0 0.0
    %7063 = vmatprep.subr.mxu0 0.0
    %7064 = vmatpush1.msra.mxu0 0.0
    %7065 = vmatprep.subr.mxu0 0.0
    %7066 = vmatpush1.msra.mxu0 0.0
    %7067 = vmatprep.subr.mxu0 0.0
    %7068 = vmatpush1.msra.mxu0 0.0
    %7069 = vmatprep.subr.mxu0 0.0
    %7070 = vmatpush1.msra.mxu0 %v7037
    %7071 = vmatprep.subr.mxu0 0.0
    %7072 = vmatpush2.msra.mxu0 0.0
    %7073 = vmatprep.subr.mxu0 0.0
    %7074 = vmatpush2.msra.mxu0 0.0
    %7075 = vmatprep.subr.mxu0 0.0
    %7076 = vmatpush2.msra.mxu0 0.0
    %7077 = vmatprep.subr.mxu0 0.0
    %7078 = vmatpush2.msra.mxu0 0.0
    %7079 = vmatprep.subr.mxu0 0.0
    %7080 = vmatpush2.msra.mxu0 0.0
    %7081 = vmatprep.subr.mxu0 0.0
    %7082 = vmatpush2.msra.mxu0 0.0
    %7083 = vmatprep.subr.mxu0 0.0
    %7084 = vmatpush2.msra.mxu0 0.0
    %7085 = vmatprep.subr.mxu0 0.0
    %7086 = vmatpush2.msra.mxu0 0.0
    %7087 = vmatprep.subr.mxu0 0.0
    %7088 = vmatpush2.msra.mxu0 0.0
    %7089 = vmatprep.subr.mxu0 0.0
    %7090 = vmatpush2.msra.mxu0 0.0
    %7091 = vmatprep.subr.mxu0 0.0
    %7092 = vmatpush2.msra.mxu0 0.0
    %7093 = vmatprep.subr.mxu0 0.0
    %7094 = vmatpush2.msra.mxu0 0.0
    %7095 = vmatprep.subr.mxu0 0.0
    %7096 = vmatpush2.msra.mxu0 0.0
    %7097 = vmatprep.subr.mxu0 0.0
    %7098 = vmatpush2.msra.mxu0 0.0
    %7099 = vmatprep.subr.mxu0 0.0
    %7100 = vmatpush2.msra.mxu0 0.0
    %7101 = vmatprep.subr.mxu0 0.0
    %7102 = vmatpush2.msra.mxu0 0.0
    %7103 = vmatprep.mubr.f32.mxu0 0.0
    %7104 = vmatmul.mubr.f32.gmra.mxu0 %v7035
    %v7105 = vpop.f32.mrf.mxu0
    %v7106 = vadd.f32 0.0, %v7105
    %v7107 = vpop.f32.mrf.mxu0
    %7108 = vdwg.mxu0
    %7109 = vrot.lane.b32.xlu0 %v6523, 112
    %v7110 = vpop.permute.xlu0 %7109
    %v7112 = vsel %vm1361, %v6877, 0
    %v7114 = vsel %vm1365, %v7110, 0
    %7116 = vmatprep.subr.mxu0 0.0
    %7117 = vmatpush1.msra.mxu0 0.0
    %7118 = vmatprep.subr.mxu0 0.0
    %7119 = vmatpush1.msra.mxu0 0.0
    %7120 = vmatprep.subr.mxu0 0.0
    %7121 = vmatpush1.msra.mxu0 0.0
    %7122 = vmatprep.subr.mxu0 0.0
    %7123 = vmatpush1.msra.mxu0 0.0
    %7124 = vmatprep.subr.mxu0 0.0
    %7125 = vmatpush1.msra.mxu0 0.0
    %7126 = vmatprep.subr.mxu0 0.0
    %7127 = vmatpush1.msra.mxu0 0.0
    %7128 = vmatprep.subr.mxu0 0.0
    %7129 = vmatpush1.msra.mxu0 0.0
    %7130 = vmatprep.subr.mxu0 0.0
    %7131 = vmatpush1.msra.mxu0 0.0
    %7132 = vmatprep.subr.mxu0 0.0
    %7133 = vmatpush1.msra.mxu0 0.0
    %7134 = vmatprep.subr.mxu0 0.0
    %7135 = vmatpush1.msra.mxu0 0.0
    %7136 = vmatprep.subr.mxu0 0.0
    %7137 = vmatpush1.msra.mxu0 0.0
    %7138 = vmatprep.subr.mxu0 0.0
    %7139 = vmatpush1.msra.mxu0 0.0
    %7140 = vmatprep.subr.mxu0 0.0
    %7141 = vmatpush1.msra.mxu0 0.0
    %7142 = vmatprep.subr.mxu0 0.0
    %7143 = vmatpush1.msra.mxu0 0.0
    %7144 = vmatprep.subr.mxu0 0.0
    %7145 = vmatpush1.msra.mxu0 0.0
    %7146 = vmatprep.subr.mxu0 0.0
    %7147 = vmatpush1.msra.mxu0 %v7114
    %7148 = vmatprep.subr.mxu0 0.0
    %7149 = vmatpush2.msra.mxu0 0.0
    %7150 = vmatprep.subr.mxu0 0.0
    %7151 = vmatpush2.msra.mxu0 0.0
    %7152 = vmatprep.subr.mxu0 0.0
    %7153 = vmatpush2.msra.mxu0 0.0
    %7154 = vmatprep.subr.mxu0 0.0
    %7155 = vmatpush2.msra.mxu0 0.0
    %7156 = vmatprep.subr.mxu0 0.0
    %7157 = vmatpush2.msra.mxu0 0.0
    %7158 = vmatprep.subr.mxu0 0.0
    %7159 = vmatpush2.msra.mxu0 0.0
    %7160 = vmatprep.subr.mxu0 0.0
    %7161 = vmatpush2.msra.mxu0 0.0
    %7162 = vmatprep.subr.mxu0 0.0
    %7163 = vmatpush2.msra.mxu0 0.0
    %7164 = vmatprep.subr.mxu0 0.0
    %7165 = vmatpush2.msra.mxu0 0.0
    %7166 = vmatprep.subr.mxu0 0.0
    %7167 = vmatpush2.msra.mxu0 0.0
    %7168 = vmatprep.subr.mxu0 0.0
    %7169 = vmatpush2.msra.mxu0 0.0
    %7170 = vmatprep.subr.mxu0 0.0
    %7171 = vmatpush2.msra.mxu0 0.0
    %7172 = vmatprep.subr.mxu0 0.0
    %7173 = vmatpush2.msra.mxu0 0.0
    %7174 = vmatprep.subr.mxu0 0.0
    %7175 = vmatpush2.msra.mxu0 0.0
    %7176 = vmatprep.subr.mxu0 0.0
    %7177 = vmatpush2.msra.mxu0 0.0
    %7178 = vmatprep.subr.mxu0 0.0
    %7179 = vmatpush2.msra.mxu0 0.0
    %7180 = vmatprep.mubr.f32.mxu0 0.0
    %7181 = vmatmul.mubr.f32.gmra.mxu0 %v7112
    %v7182 = vpop.f32.mrf.mxu0
    %v7183 = vadd.f32 0.0, %v7182
    %v7184 = vpop.f32.mrf.mxu0
    %7185 = vdwg.mxu0
    %7187 = vrot.lane.b32.xlu0 %v7029, 8
    %v7188 = vpop.permute.xlu0 %7187
    %7191 = vrot.lane.b32.xlu0 %v7106, 16
    %v7192 = vpop.permute.xlu0 %7191
    %7195 = vrot.lane.b32.xlu0 %v7183, 24
    %v7196 = vpop.permute.xlu0 %7195
    %v7198 = vsel %vm1008, %v6952, %v7188
    %v7199 = vsel %vm431, %v7198, %v7192
    %v7200 = vsel %vm1683, %v7199, %v7196
    %v7202 = vsel %vm722, %v7200, 0
    %7204 = vmatprep.subr.mxu0 0.0
    %7205 = vmatpush1.msra.mxu0 0.0
    %7206 = vmatprep.subr.mxu0 0.0
    %7207 = vmatpush1.msra.mxu0 0.0
    %7208 = vmatprep.subr.mxu0 0.0
    %7209 = vmatpush1.msra.mxu0 0.0
    %7210 = vmatprep.subr.mxu0 0.0
    %7211 = vmatpush1.msra.mxu0 0.0
    %7212 = vmatprep.subr.mxu0 0.0
    %7213 = vmatpush1.msra.mxu0 0.0
    %7214 = vmatprep.subr.mxu0 0.0
    %7215 = vmatpush1.msra.mxu0 0.0
    %7216 = vmatprep.subr.mxu0 0.0
    %7217 = vmatpush1.msra.mxu0 0.0
    %7218 = vmatprep.subr.mxu0 0.0
    %7219 = vmatpush1.msra.mxu0 0.0
    %7220 = vmatprep.subr.mxu0 0.0
    %7221 = vmatpush1.msra.mxu0 0.0
    %7222 = vmatprep.subr.mxu0 0.0
    %7223 = vmatpush1.msra.mxu0 0.0
    %7224 = vmatprep.subr.mxu0 0.0
    %7225 = vmatpush1.msra.mxu0 0.0
    %7226 = vmatprep.subr.mxu0 0.0
    %7227 = vmatpush1.msra.mxu0 0.0
    %7228 = vmatprep.subr.mxu0 0.0
    %7229 = vmatpush1.msra.mxu0 %v5071
    %7230 = vmatprep.subr.mxu0 0.0
    %7231 = vmatpush1.msra.mxu0 %v5070
    %7232 = vmatprep.subr.mxu0 0.0
    %7233 = vmatpush1.msra.mxu0 %v5069
    %7234 = vmatprep.subr.mxu0 0.0
    %7235 = vmatpush1.msra.mxu0 %v5068
    %7236 = vmatprep.subr.mxu0 0.0
    %7237 = vmatpush2.msra.mxu0 0.0
    %7238 = vmatprep.subr.mxu0 0.0
    %7239 = vmatpush2.msra.mxu0 0.0
    %7240 = vmatprep.subr.mxu0 0.0
    %7241 = vmatpush2.msra.mxu0 0.0
    %7242 = vmatprep.subr.mxu0 0.0
    %7243 = vmatpush2.msra.mxu0 0.0
    %7244 = vmatprep.subr.mxu0 0.0
    %7245 = vmatpush2.msra.mxu0 0.0
    %7246 = vmatprep.subr.mxu0 0.0
    %7247 = vmatpush2.msra.mxu0 0.0
    %7248 = vmatprep.subr.mxu0 0.0
    %7249 = vmatpush2.msra.mxu0 0.0
    %7250 = vmatprep.subr.mxu0 0.0
    %7251 = vmatpush2.msra.mxu0 0.0
    %7252 = vmatprep.subr.mxu0 0.0
    %7253 = vmatpush2.msra.mxu0 0.0
    %7254 = vmatprep.subr.mxu0 0.0
    %7255 = vmatpush2.msra.mxu0 0.0
    %7256 = vmatprep.subr.mxu0 0.0
    %7257 = vmatpush2.msra.mxu0 0.0
    %7258 = vmatprep.subr.mxu0 0.0
    %7259 = vmatpush2.msra.mxu0 0.0
    %7260 = vmatprep.subr.mxu0 0.0
    %7261 = vmatpush2.msra.mxu0 0.0
    %7262 = vmatprep.subr.mxu0 0.0
    %7263 = vmatpush2.msra.mxu0 0.0
    %7264 = vmatprep.subr.mxu0 0.0
    %7265 = vmatpush2.msra.mxu0 0.0
    %7266 = vmatprep.subr.mxu0 0.0
    %7267 = vmatpush2.msra.mxu0 0.0
    %7268 = vmatprep.mubr.f32.mxu0 0.0
    %7269 = vmatmul.mubr.f32.gmra.mxu0 %v7202
    %v7270 = vpop.f32.mrf.mxu0
    %v7271 = vadd.f32 %v6114, %v7270
    %v7272 = vpop.f32.mrf.mxu0
    %7273 = vdwg.mxu0
    %v7276 = vcombine.high %v6186, %v6186
    %v7278 = vunpack.c.l.s4 1966171168
    %v7279 = vunpack.c.0.s8 %v7278
    %v7280 = vlaneseq
    %v7281 = vshrl.u32 %v7280, 7
    %v7282 = vsub.s32 %v7279, %v7281
    %v7283 = vrot.slane %v6186, %v7282
    %v7285 = vunpack.c.l.s4 1966171168
    %v7286 = vunpack.c.0.s8 %v7285
    %v7287 = vlaneseq
    %v7288 = vshrl.u32 %v7287, 7
    %v7289 = vsub.s32 %v7286, %v7288
    %v7290 = vrot.slane %v7276, %v7289
    %v7291 = vcombine.high %v7283, %v7283
    %v7292 = vcombine.high %v7290, %v7290
    %v7294 = vunpack.c.l.s4 1966171168
    %v7295 = vunpack.c.0.s8 %v7294
    %v7296 = vlaneseq
    %v7297 = vshrl.u32 %v7296, 7
    %v7298 = vsub.s32 %v7295, %v7297
    %v7299 = vrot.slane %v7283, %v7298
    %v7301 = vunpack.c.l.s4 1966171168
    %v7302 = vunpack.c.0.s8 %v7301
    %v7303 = vlaneseq
    %v7304 = vshrl.u32 %v7303, 7
    %v7305 = vsub.s32 %v7302, %v7304
    %v7306 = vrot.slane %v7290, %v7305
    %v7308 = vunpack.c.l.s4 1966171168
    %v7309 = vunpack.c.0.s8 %v7308
    %v7310 = vlaneseq
    %v7311 = vshrl.u32 %v7310, 7
    %v7312 = vsub.s32 %v7309, %v7311
    %v7313 = vrot.slane %v7291, %v7312
    %v7315 = vunpack.c.l.s4 1966171168
    %v7316 = vunpack.c.0.s8 %v7315
    %v7317 = vlaneseq
    %v7318 = vshrl.u32 %v7317, 7
    %v7319 = vsub.s32 %v7316, %v7318
    %v7320 = vrot.slane %v7292, %v7319
    %v7321 = vcombine.high %v7299, %v7299
    %v7322 = vcombine.high %v7306, %v7306
    %v7323 = vcombine.high %v7313, %v7313
    %v7324 = vcombine.high %v7271, %v7271
    %v7326 = vunpack.c.l.s4 1966171168
    %v7327 = vunpack.c.0.s8 %v7326
    %v7328 = vlaneseq
    %v7329 = vshrl.u32 %v7328, 7
    %v7330 = vsub.s32 %v7327, %v7329
    %v7331 = vrot.slane %v7271, %v7330
    %v7333 = vunpack.c.l.s4 1966171168
    %v7334 = vunpack.c.0.s8 %v7333
    %v7335 = vlaneseq
    %v7336 = vshrl.u32 %v7335, 7
    %v7337 = vsub.s32 %v7334, %v7336
    %v7338 = vrot.slane %v7324, %v7337
    %v7339 = vcombine.high %v7331, %v7331
    %v7340 = vcombine.high %v7338, %v7338
    %v7342 = vunpack.c.l.s4 1966171168
    %v7343 = vunpack.c.0.s8 %v7342
    %v7344 = vlaneseq
    %v7345 = vshrl.u32 %v7344, 7
    %v7346 = vsub.s32 %v7343, %v7345
    %v7347 = vrot.slane %v7331, %v7346
    %v7349 = vunpack.c.l.s4 1966171168
    %v7350 = vunpack.c.0.s8 %v7349
    %v7351 = vlaneseq
    %v7352 = vshrl.u32 %v7351, 7
    %v7353 = vsub.s32 %v7350, %v7352
    %v7354 = vrot.slane %v7338, %v7353
    %v7356 = vunpack.c.l.s4 1966171168
    %v7357 = vunpack.c.0.s8 %v7356
    %v7358 = vlaneseq
    %v7359 = vshrl.u32 %v7358, 7
    %v7360 = vsub.s32 %v7357, %v7359
    %v7361 = vrot.slane %v7339, %v7360
    %v7363 = vunpack.c.l.s4 1966171168
    %v7364 = vunpack.c.0.s8 %v7363
    %v7365 = vlaneseq
    %v7366 = vshrl.u32 %v7365, 7
    %v7367 = vsub.s32 %v7364, %v7366
    %v7368 = vrot.slane %v7340, %v7367
    %v7369 = vcombine.high %v7347, %v7347
    %v7370 = vcombine.high %v7354, %v7354
    %v7371 = vcombine.high %v7361, %v7361
    %v7386 = vadd.f32 %v5031, %v7299
    %v7387 = vadd.f32 %v5032, %v7313
    %v7388 = vadd.f32 %v5033, %v7321
    %v7389 = vadd.f32 %v5034, %v7323
    %v7390 = vadd.f32 %v5035, %v7306
    %v7391 = vadd.f32 %v5036, %v7320
    %v7392 = vadd.f32 %v5037, %v7322
    %v7393 = vadd.f32 %v5038, %v7347
    %v7394 = vadd.f32 %v5039, %v7361
    %v7395 = vadd.f32 %v5040, %v7369
    %v7396 = vadd.f32 %v5041, %v7371
    %v7397 = vadd.f32 %v5042, %v7354
    %v7398 = vadd.f32 %v5043, %v7368
    %v7399 = vadd.f32 %v5044, %v7370
    %v7414 = vcombine.low %v7386, %v7387
    %v7415 = vcombine.low %v7388, %v7389
    %v7416 = vcombine.low %v7390, %v7391
    %v7418 = vunpack.c.l.s4 1966171168
    %v7419 = vunpack.c.0.s8 %v7418
    %v7420 = vlaneseq
    %v7421 = vshrl.u32 %v7420, 7
    %v7422 = vsub.s32 %v7419, %v7421
    %v7423 = vrot.slane %v7414, %v7422
    %v7425 = vunpack.c.l.s4 1966171168
    %v7426 = vunpack.c.0.s8 %v7425
    %v7427 = vlaneseq
    %v7428 = vshrl.u32 %v7427, 7
    %v7429 = vsub.s32 %v7426, %v7428
    %v7430 = vrot.slane %v7415, %v7429
    %v7432 = vunpack.c.l.s4 1966171168
    %v7433 = vunpack.c.0.s8 %v7432
    %v7434 = vlaneseq
    %v7435 = vshrl.u32 %v7434, 7
    %v7436 = vsub.s32 %v7433, %v7435
    %v7437 = vrot.slane %v7416, %v7436
    %v7439 = vunpack.c.l.s4 1966171168
    %v7440 = vunpack.c.0.s8 %v7439
    %v7441 = vlaneseq
    %v7442 = vshrl.u32 %v7441, 7
    %v7443 = vsub.s32 %v7440, %v7442
    %v7444 = vrot.slane %v7392, %v7443
    %v7445 = vcombine.low %v7423, %v7430
    %v7446 = vcombine.low %v7437, %v7444
    %v7448 = vunpack.c.l.s4 1966171168
    %v7449 = vunpack.c.0.s8 %v7448
    %v7450 = vlaneseq
    %v7451 = vshrl.u32 %v7450, 7
    %v7452 = vsub.s32 %v7449, %v7451
    %v7453 = vrot.slane %v7445, %v7452
    %v7455 = vunpack.c.l.s4 1966171168
    %v7456 = vunpack.c.0.s8 %v7455
    %v7457 = vlaneseq
    %v7458 = vshrl.u32 %v7457, 7
    %v7459 = vsub.s32 %v7456, %v7458
    %v7460 = vrot.slane %v7446, %v7459
    %v7461 = vcombine.low %v7453, %v7460
    %v7462 = vcombine.low %v7393, %v7394
    %v7463 = vcombine.low %v7395, %v7396
    %v7464 = vcombine.low %v7397, %v7398
    %v7466 = vunpack.c.l.s4 1966171168
    %v7467 = vunpack.c.0.s8 %v7466
    %v7468 = vlaneseq
    %v7469 = vshrl.u32 %v7468, 7
    %v7470 = vsub.s32 %v7467, %v7469
    %v7471 = vrot.slane %v7462, %v7470
    %v7473 = vunpack.c.l.s4 1966171168
    %v7474 = vunpack.c.0.s8 %v7473
    %v7475 = vlaneseq
    %v7476 = vshrl.u32 %v7475, 7
    %v7477 = vsub.s32 %v7474, %v7476
    %v7478 = vrot.slane %v7463, %v7477
    %v7480 = vunpack.c.l.s4 1966171168
    %v7481 = vunpack.c.0.s8 %v7480
    %v7482 = vlaneseq
    %v7483 = vshrl.u32 %v7482, 7
    %v7484 = vsub.s32 %v7481, %v7483
    %v7485 = vrot.slane %v7464, %v7484
    %v7487 = vunpack.c.l.s4 1966171168
    %v7488 = vunpack.c.0.s8 %v7487
    %v7489 = vlaneseq
    %v7490 = vshrl.u32 %v7489, 7
    %v7491 = vsub.s32 %v7488, %v7490
    %v7492 = vrot.slane %v7399, %v7491
    %v7493 = vcombine.low %v7471, %v7478
    %v7494 = vcombine.low %v7485, %v7492
    %v7496 = vunpack.c.l.s4 1966171168
    %v7497 = vunpack.c.0.s8 %v7496
    %v7498 = vlaneseq
    %v7499 = vshrl.u32 %v7498, 7
    %v7500 = vsub.s32 %v7497, %v7499
    %v7501 = vrot.slane %v7493, %v7500
    %v7503 = vunpack.c.l.s4 1966171168
    %v7504 = vunpack.c.0.s8 %v7503
    %v7505 = vlaneseq
    %v7506 = vshrl.u32 %v7505, 7
    %v7507 = vsub.s32 %v7504, %v7506
    %v7508 = vrot.slane %v7494, %v7507
    %v7509 = vcombine.low %v7501, %v7508
    %v7512 = vsel %vm3080, %v7461, 0.0
    %7513 = vadd.xlane.f32.xlu0 %v7512
    %v7514 = vpop.xlane.xlu0 %7513
    %v7515 = vsel %vm3080, %v7509, 0.0
    %7516 = vadd.xlane.f32.xlu0 %v7515
    %v7517 = vpop.xlane.xlu0 %7516
    %v7518 = vmul.f32 %v7514, %v3087
    %v7519 = vmul.f32 %v7517, %v3087
    %v7522 = vlaneseq
    %v7523 = vshrl.u32 %v7522, 7
    %v7524 = vsub.s32 0, %v7523
    %v7525 = vrot.slane %v7518, %v7524
    %v7526 = vlaneseq
    %v7527 = vshrl.u32 %v7526, 7
    %v7528 = vsub.s32 1, %v7527
    %v7529 = vrot.slane %v7518, %v7528
    %v7530 = vlaneseq
    %v7531 = vshrl.u32 %v7530, 7
    %v7532 = vsub.s32 2, %v7531
    %v7533 = vrot.slane %v7518, %v7532
    %v7534 = vlaneseq
    %v7535 = vshrl.u32 %v7534, 7
    %v7536 = vsub.s32 3, %v7535
    %v7537 = vrot.slane %v7518, %v7536
    %v7538 = vlaneseq
    %v7539 = vshrl.u32 %v7538, 7
    %v7540 = vsub.s32 4, %v7539
    %v7541 = vrot.slane %v7518, %v7540
    %v7542 = vlaneseq
    %v7543 = vshrl.u32 %v7542, 7
    %v7544 = vsub.s32 5, %v7543
    %v7545 = vrot.slane %v7518, %v7544
    %v7546 = vlaneseq
    %v7547 = vshrl.u32 %v7546, 7
    %v7548 = vsub.s32 6, %v7547
    %v7549 = vrot.slane %v7518, %v7548
    %v7550 = vlaneseq
    %v7551 = vshrl.u32 %v7550, 7
    %v7552 = vsub.s32 0, %v7551
    %v7553 = vrot.slane %v7519, %v7552
    %v7554 = vlaneseq
    %v7555 = vshrl.u32 %v7554, 7
    %v7556 = vsub.s32 1, %v7555
    %v7557 = vrot.slane %v7519, %v7556
    %v7558 = vlaneseq
    %v7559 = vshrl.u32 %v7558, 7
    %v7560 = vsub.s32 2, %v7559
    %v7561 = vrot.slane %v7519, %v7560
    %v7562 = vlaneseq
    %v7563 = vshrl.u32 %v7562, 7
    %v7564 = vsub.s32 3, %v7563
    %v7565 = vrot.slane %v7519, %v7564
    %v7566 = vlaneseq
    %v7567 = vshrl.u32 %v7566, 7
    %v7568 = vsub.s32 4, %v7567
    %v7569 = vrot.slane %v7519, %v7568
    %v7570 = vlaneseq
    %v7571 = vshrl.u32 %v7570, 7
    %v7572 = vsub.s32 5, %v7571
    %v7573 = vrot.slane %v7519, %v7572
    %v7574 = vlaneseq
    %v7575 = vshrl.u32 %v7574, 7
    %v7576 = vsub.s32 6, %v7575
    %v7577 = vrot.slane %v7519, %v7576
    %v7592 = vsub.f32 %v7386, %v7525
    %v7593 = vsub.f32 %v7387, %v7529
    %v7594 = vsub.f32 %v7388, %v7533
    %v7595 = vsub.f32 %v7389, %v7537
    %v7596 = vsub.f32 %v7390, %v7541
    %v7597 = vsub.f32 %v7391, %v7545
    %v7598 = vsub.f32 %v7392, %v7549
    %v7599 = vsub.f32 %v7393, %v7553
    %v7600 = vsub.f32 %v7394, %v7557
    %v7601 = vsub.f32 %v7395, %v7561
    %v7602 = vsub.f32 %v7396, %v7565
    %v7603 = vsub.f32 %v7397, %v7569
    %v7604 = vsub.f32 %v7398, %v7573
    %v7605 = vsub.f32 %v7399, %v7577
    %v7606 = vmul.f32 %v7592, %v7592
    %v7607 = vmul.f32 %v7593, %v7593
    %v7608 = vmul.f32 %v7594, %v7594
    %v7609 = vmul.f32 %v7595, %v7595
    %v7610 = vmul.f32 %v7596, %v7596
    %v7611 = vmul.f32 %v7597, %v7597
    %v7612 = vmul.f32 %v7598, %v7598
    %v7613 = vmul.f32 %v7599, %v7599
    %v7614 = vmul.f32 %v7600, %v7600
    %v7615 = vmul.f32 %v7601, %v7601
    %v7616 = vmul.f32 %v7602, %v7602
    %v7617 = vmul.f32 %v7603, %v7603
    %v7618 = vmul.f32 %v7604, %v7604
    %v7619 = vmul.f32 %v7605, %v7605
    %v7634 = vcombine.low %v7606, %v7607
    %v7635 = vcombine.low %v7608, %v7609
    %v7636 = vcombine.low %v7610, %v7611
    %v7638 = vunpack.c.l.s4 1966171168
    %v7639 = vunpack.c.0.s8 %v7638
    %v7640 = vlaneseq
    %v7641 = vshrl.u32 %v7640, 7
    %v7642 = vsub.s32 %v7639, %v7641
    %v7643 = vrot.slane %v7634, %v7642
    %v7645 = vunpack.c.l.s4 1966171168
    %v7646 = vunpack.c.0.s8 %v7645
    %v7647 = vlaneseq
    %v7648 = vshrl.u32 %v7647, 7
    %v7649 = vsub.s32 %v7646, %v7648
    %v7650 = vrot.slane %v7635, %v7649
    %v7652 = vunpack.c.l.s4 1966171168
    %v7653 = vunpack.c.0.s8 %v7652
    %v7654 = vlaneseq
    %v7655 = vshrl.u32 %v7654, 7
    %v7656 = vsub.s32 %v7653, %v7655
    %v7657 = vrot.slane %v7636, %v7656
    %v7659 = vunpack.c.l.s4 1966171168
    %v7660 = vunpack.c.0.s8 %v7659
    %v7661 = vlaneseq
    %v7662 = vshrl.u32 %v7661, 7
    %v7663 = vsub.s32 %v7660, %v7662
    %v7664 = vrot.slane %v7612, %v7663
    %v7665 = vcombine.low %v7643, %v7650
    %v7666 = vcombine.low %v7657, %v7664
    %v7668 = vunpack.c.l.s4 1966171168
    %v7669 = vunpack.c.0.s8 %v7668
    %v7670 = vlaneseq
    %v7671 = vshrl.u32 %v7670, 7
    %v7672 = vsub.s32 %v7669, %v7671
    %v7673 = vrot.slane %v7665, %v7672
    %v7675 = vunpack.c.l.s4 1966171168
    %v7676 = vunpack.c.0.s8 %v7675
    %v7677 = vlaneseq
    %v7678 = vshrl.u32 %v7677, 7
    %v7679 = vsub.s32 %v7676, %v7678
    %v7680 = vrot.slane %v7666, %v7679
    %v7681 = vcombine.low %v7673, %v7680
    %v7682 = vcombine.low %v7613, %v7614
    %v7683 = vcombine.low %v7615, %v7616
    %v7684 = vcombine.low %v7617, %v7618
    %v7686 = vunpack.c.l.s4 1966171168
    %v7687 = vunpack.c.0.s8 %v7686
    %v7688 = vlaneseq
    %v7689 = vshrl.u32 %v7688, 7
    %v7690 = vsub.s32 %v7687, %v7689
    %v7691 = vrot.slane %v7682, %v7690
    %v7693 = vunpack.c.l.s4 1966171168
    %v7694 = vunpack.c.0.s8 %v7693
    %v7695 = vlaneseq
    %v7696 = vshrl.u32 %v7695, 7
    %v7697 = vsub.s32 %v7694, %v7696
    %v7698 = vrot.slane %v7683, %v7697
    %v7700 = vunpack.c.l.s4 1966171168
    %v7701 = vunpack.c.0.s8 %v7700
    %v7702 = vlaneseq
    %v7703 = vshrl.u32 %v7702, 7
    %v7704 = vsub.s32 %v7701, %v7703
    %v7705 = vrot.slane %v7684, %v7704
    %v7707 = vunpack.c.l.s4 1966171168
    %v7708 = vunpack.c.0.s8 %v7707
    %v7709 = vlaneseq
    %v7710 = vshrl.u32 %v7709, 7
    %v7711 = vsub.s32 %v7708, %v7710
    %v7712 = vrot.slane %v7619, %v7711
    %v7713 = vcombine.low %v7691, %v7698
    %v7714 = vcombine.low %v7705, %v7712
    %v7716 = vunpack.c.l.s4 1966171168
    %v7717 = vunpack.c.0.s8 %v7716
    %v7718 = vlaneseq
    %v7719 = vshrl.u32 %v7718, 7
    %v7720 = vsub.s32 %v7717, %v7719
    %v7721 = vrot.slane %v7713, %v7720
    %v7723 = vunpack.c.l.s4 1966171168
    %v7724 = vunpack.c.0.s8 %v7723
    %v7725 = vlaneseq
    %v7726 = vshrl.u32 %v7725, 7
    %v7727 = vsub.s32 %v7724, %v7726
    %v7728 = vrot.slane %v7714, %v7727
    %v7729 = vcombine.low %v7721, %v7728
    %v7732 = vsel %vm3080, %v7681, 0.0
    %7733 = vadd.xlane.f32.xlu0 %v7732
    %v7734 = vpop.xlane.xlu0 %7733
    %v7735 = vsel %vm3080, %v7729, 0.0
    %7736 = vadd.xlane.f32.xlu0 %v7735
    %v7737 = vpop.xlane.xlu0 %7736
    %v7738 = vmul.f32 %v7734, %v3087
    %v7739 = vmul.f32 %v7737, %v3087
    %v7740 = vadd.f32 %v7738, 1e-05
    %v7741 = vadd.f32 %v7739, 1e-05
    %v7742 = vrsqrt.pop %v7740
    %v7743 = vrsqrt.pop %v7741
    %v7746 = vlaneseq
    %v7747 = vshrl.u32 %v7746, 7
    %v7748 = vsub.s32 0, %v7747
    %v7749 = vrot.slane %v7742, %v7748
    %v7750 = vlaneseq
    %v7751 = vshrl.u32 %v7750, 7
    %v7752 = vsub.s32 1, %v7751
    %v7753 = vrot.slane %v7742, %v7752
    %v7754 = vlaneseq
    %v7755 = vshrl.u32 %v7754, 7
    %v7756 = vsub.s32 2, %v7755
    %v7757 = vrot.slane %v7742, %v7756
    %v7758 = vlaneseq
    %v7759 = vshrl.u32 %v7758, 7
    %v7760 = vsub.s32 3, %v7759
    %v7761 = vrot.slane %v7742, %v7760
    %v7762 = vlaneseq
    %v7763 = vshrl.u32 %v7762, 7
    %v7764 = vsub.s32 4, %v7763
    %v7765 = vrot.slane %v7742, %v7764
    %v7766 = vlaneseq
    %v7767 = vshrl.u32 %v7766, 7
    %v7768 = vsub.s32 5, %v7767
    %v7769 = vrot.slane %v7742, %v7768
    %v7770 = vlaneseq
    %v7771 = vshrl.u32 %v7770, 7
    %v7772 = vsub.s32 6, %v7771
    %v7773 = vrot.slane %v7742, %v7772
    %v7774 = vlaneseq
    %v7775 = vshrl.u32 %v7774, 7
    %v7776 = vsub.s32 0, %v7775
    %v7777 = vrot.slane %v7743, %v7776
    %v7778 = vlaneseq
    %v7779 = vshrl.u32 %v7778, 7
    %v7780 = vsub.s32 1, %v7779
    %v7781 = vrot.slane %v7743, %v7780
    %v7782 = vlaneseq
    %v7783 = vshrl.u32 %v7782, 7
    %v7784 = vsub.s32 2, %v7783
    %v7785 = vrot.slane %v7743, %v7784
    %v7786 = vlaneseq
    %v7787 = vshrl.u32 %v7786, 7
    %v7788 = vsub.s32 3, %v7787
    %v7789 = vrot.slane %v7743, %v7788
    %v7790 = vlaneseq
    %v7791 = vshrl.u32 %v7790, 7
    %v7792 = vsub.s32 4, %v7791
    %v7793 = vrot.slane %v7743, %v7792
    %v7794 = vlaneseq
    %v7795 = vshrl.u32 %v7794, 7
    %v7796 = vsub.s32 5, %v7795
    %v7797 = vrot.slane %v7743, %v7796
    %v7798 = vlaneseq
    %v7799 = vshrl.u32 %v7798, 7
    %v7800 = vsub.s32 6, %v7799
    %v7801 = vrot.slane %v7743, %v7800
    %v7816 = vmul.f32 %v7592, %v7749
    %v7817 = vmul.f32 %v7593, %v7753
    %v7818 = vmul.f32 %v7594, %v7757
    %v7819 = vmul.f32 %v7595, %v7761
    %v7820 = vmul.f32 %v7596, %v7765
    %v7821 = vmul.f32 %v7597, %v7769
    %v7822 = vmul.f32 %v7598, %v7773
    %v7823 = vmul.f32 %v7599, %v7777
    %v7824 = vmul.f32 %v7600, %v7781
    %v7825 = vmul.f32 %v7601, %v7785
    %v7826 = vmul.f32 %v7602, %v7789
    %v7827 = vmul.f32 %v7603, %v7793
    %v7828 = vmul.f32 %v7604, %v7797
    %v7829 = vmul.f32 %v7605, %v7801
    %v7830 = vlaneseq
    %v7831 = vshrl.u32 %v7830, 7
    %v7832 = vsub.s32 4, %v7831
    %v7833 = vrot.slane %v623, %v7832
    %v7835 = vcombine.high %v7833, %v7833
    %v7837 = vunpack.c.l.s4 1966171168
    %v7838 = vunpack.c.0.s8 %v7837
    %v7839 = vlaneseq
    %v7840 = vshrl.u32 %v7839, 7
    %v7841 = vsub.s32 %v7838, %v7840
    %v7842 = vrot.slane %v7833, %v7841
    %v7844 = vunpack.c.l.s4 1966171168
    %v7845 = vunpack.c.0.s8 %v7844
    %v7846 = vlaneseq
    %v7847 = vshrl.u32 %v7846, 7
    %v7848 = vsub.s32 %v7845, %v7847
    %v7849 = vrot.slane %v7835, %v7848
    %v7850 = vcombine.high %v7842, %v7842
    %v7851 = vcombine.high %v7849, %v7849
    %v7853 = vunpack.c.l.s4 1966171168
    %v7854 = vunpack.c.0.s8 %v7853
    %v7855 = vlaneseq
    %v7856 = vshrl.u32 %v7855, 7
    %v7857 = vsub.s32 %v7854, %v7856
    %v7858 = vrot.slane %v7842, %v7857
    %v7860 = vunpack.c.l.s4 1966171168
    %v7861 = vunpack.c.0.s8 %v7860
    %v7862 = vlaneseq
    %v7863 = vshrl.u32 %v7862, 7
    %v7864 = vsub.s32 %v7861, %v7863
    %v7865 = vrot.slane %v7849, %v7864
    %v7867 = vunpack.c.l.s4 1966171168
    %v7868 = vunpack.c.0.s8 %v7867
    %v7869 = vlaneseq
    %v7870 = vshrl.u32 %v7869, 7
    %v7871 = vsub.s32 %v7868, %v7870
    %v7872 = vrot.slane %v7850, %v7871
    %v7874 = vunpack.c.l.s4 1966171168
    %v7875 = vunpack.c.0.s8 %v7874
    %v7876 = vlaneseq
    %v7877 = vshrl.u32 %v7876, 7
    %v7878 = vsub.s32 %v7875, %v7877
    %v7879 = vrot.slane %v7851, %v7878
    %v7880 = vcombine.high %v7858, %v7858
    %v7881 = vcombine.high %v7865, %v7865
    %v7882 = vcombine.high %v7872, %v7872
    %v7890 = vmul.f32 %v7816, %v7858
    %v7891 = vmul.f32 %v7817, %v7872
    %v7892 = vmul.f32 %v7818, %v7880
    %v7893 = vmul.f32 %v7819, %v7882
    %v7894 = vmul.f32 %v7820, %v7865
    %v7895 = vmul.f32 %v7821, %v7879
    %v7896 = vmul.f32 %v7822, %v7881
    %v7897 = vmul.f32 %v7823, %v7858
    %v7898 = vmul.f32 %v7824, %v7872
    %v7899 = vmul.f32 %v7825, %v7880
    %v7900 = vmul.f32 %v7826, %v7882
    %v7901 = vmul.f32 %v7827, %v7865
    %v7902 = vmul.f32 %v7828, %v7879
    %v7903 = vmul.f32 %v7829, %v7881
    %v7904 = vlaneseq
    %v7905 = vshrl.u32 %v7904, 7
    %v7906 = vsub.s32 5, %v7905
    %v7907 = vrot.slane %v623, %v7906
    %v7909 = vcombine.high %v7907, %v7907
    %v7911 = vunpack.c.l.s4 1966171168
    %v7912 = vunpack.c.0.s8 %v7911
    %v7913 = vlaneseq
    %v7914 = vshrl.u32 %v7913, 7
    %v7915 = vsub.s32 %v7912, %v7914
    %v7916 = vrot.slane %v7907, %v7915
    %v7918 = vunpack.c.l.s4 1966171168
    %v7919 = vunpack.c.0.s8 %v7918
    %v7920 = vlaneseq
    %v7921 = vshrl.u32 %v7920, 7
    %v7922 = vsub.s32 %v7919, %v7921
    %v7923 = vrot.slane %v7909, %v7922
    %v7924 = vcombine.high %v7916, %v7916
    %v7925 = vcombine.high %v7923, %v7923
    %v7927 = vunpack.c.l.s4 1966171168
    %v7928 = vunpack.c.0.s8 %v7927
    %v7929 = vlaneseq
    %v7930 = vshrl.u32 %v7929, 7
    %v7931 = vsub.s32 %v7928, %v7930
    %v7932 = vrot.slane %v7916, %v7931
    %v7934 = vunpack.c.l.s4 1966171168
    %v7935 = vunpack.c.0.s8 %v7934
    %v7936 = vlaneseq
    %v7937 = vshrl.u32 %v7936, 7
    %v7938 = vsub.s32 %v7935, %v7937
    %v7939 = vrot.slane %v7923, %v7938
    %v7941 = vunpack.c.l.s4 1966171168
    %v7942 = vunpack.c.0.s8 %v7941
    %v7943 = vlaneseq
    %v7944 = vshrl.u32 %v7943, 7
    %v7945 = vsub.s32 %v7942, %v7944
    %v7946 = vrot.slane %v7924, %v7945
    %v7948 = vunpack.c.l.s4 1966171168
    %v7949 = vunpack.c.0.s8 %v7948
    %v7950 = vlaneseq
    %v7951 = vshrl.u32 %v7950, 7
    %v7952 = vsub.s32 %v7949, %v7951
    %v7953 = vrot.slane %v7925, %v7952
    %v7954 = vcombine.high %v7932, %v7932
    %v7955 = vcombine.high %v7939, %v7939
    %v7956 = vcombine.high %v7946, %v7946
    %v7964 = vadd.f32 %v7890, %v7932
    %v7965 = vadd.f32 %v7891, %v7946
    %v7966 = vadd.f32 %v7892, %v7954
    %v7967 = vadd.f32 %v7893, %v7956
    %v7968 = vadd.f32 %v7894, %v7939
    %v7969 = vadd.f32 %v7895, %v7953
    %v7970 = vadd.f32 %v7896, %v7955
    %v7971 = vadd.f32 %v7897, %v7932
    %v7972 = vadd.f32 %v7898, %v7946
    %v7973 = vadd.f32 %v7899, %v7954
    %v7974 = vadd.f32 %v7900, %v7956
    %v7975 = vadd.f32 %v7901, %v7939
    %v7976 = vadd.f32 %v7902, %v7953
    %v7977 = vadd.f32 %v7903, %v7955
    %s7978 = scalar_lea.vmem %s7, 32
    %v7979 = vld [vmem:[%s7978] sm:$0xff]
    %v7980 = vld [vmem:[%s7978 + $0x8] sm:$0xff]
    %v7981 = vld [vmem:[%s7978 + $0x10] sm:$0xff]
    %v7982 = vld [vmem:[%s7978 + $0x18] sm:$0xff]
    %s7983 = scalar_lea.vmem %s8, 1
    %v7984 = vld [vmem:[%s7983] sm:$0x1]
    %v7986 = vlaneseq
    %v7987 = vshrl.u32 %v7986, 7
    %v7988 = vsub.s32 0, %v7987
    %v7989 = vrot.slane %v7984, %v7988
    %v7990 = vcombine.high %v7989, %v7989
    %v7992 = vunpack.c.l.s4 1966171168
    %v7993 = vunpack.c.0.s8 %v7992
    %v7994 = vlaneseq
    %v7995 = vshrl.u32 %v7994, 7
    %v7996 = vsub.s32 %v7993, %v7995
    %v7997 = vrot.slane %v7989, %v7996
    %v7999 = vunpack.c.l.s4 1966171168
    %v8000 = vunpack.c.0.s8 %v7999
    %v8001 = vlaneseq
    %v8002 = vshrl.u32 %v8001, 7
    %v8003 = vsub.s32 %v8000, %v8002
    %v8004 = vrot.slane %v7990, %v8003
    %v8005 = vcombine.high %v7997, %v7997
    %v8006 = vcombine.high %v8004, %v8004
    %v8008 = vunpack.c.l.s4 1966171168
    %v8009 = vunpack.c.0.s8 %v8008
    %v8010 = vlaneseq
    %v8011 = vshrl.u32 %v8010, 7
    %v8012 = vsub.s32 %v8009, %v8011
    %v8013 = vrot.slane %v7997, %v8012
    %v8015 = vunpack.c.l.s4 1966171168
    %v8016 = vunpack.c.0.s8 %v8015
    %v8017 = vlaneseq
    %v8018 = vshrl.u32 %v8017, 7
    %v8019 = vsub.s32 %v8016, %v8018
    %v8020 = vrot.slane %v8004, %v8019
    %v8022 = vunpack.c.l.s4 1966171168
    %v8023 = vunpack.c.0.s8 %v8022
    %v8024 = vlaneseq
    %v8025 = vshrl.u32 %v8024, 7
    %v8026 = vsub.s32 %v8023, %v8025
    %v8027 = vrot.slane %v8005, %v8026
    %v8029 = vunpack.c.l.s4 1966171168
    %v8030 = vunpack.c.0.s8 %v8029
    %v8031 = vlaneseq
    %v8032 = vshrl.u32 %v8031, 7
    %v8033 = vsub.s32 %v8030, %v8032
    %v8034 = vrot.slane %v8006, %v8033
    %v8035 = vcombine.high %v8013, %v8013
    %v8036 = vcombine.high %v8020, %v8020
    %v8037 = vcombine.high %v8027, %v8027
    %v8052 = vcombine.low %v7964, %v7965
    %v8053 = vcombine.low %v7966, %v7967
    %v8054 = vcombine.low %v7968, %v7969
    %v8055 = vcombine.low %v7970, %v7971
    %v8057 = vunpack.c.l.s4 1966171168
    %v8058 = vunpack.c.0.s8 %v8057
    %v8059 = vlaneseq
    %v8060 = vshrl.u32 %v8059, 7
    %v8061 = vsub.s32 %v8058, %v8060
    %v8062 = vrot.slane %v8052, %v8061
    %v8064 = vunpack.c.l.s4 1966171168
    %v8065 = vunpack.c.0.s8 %v8064
    %v8066 = vlaneseq
    %v8067 = vshrl.u32 %v8066, 7
    %v8068 = vsub.s32 %v8065, %v8067
    %v8069 = vrot.slane %v8053, %v8068
    %v8071 = vunpack.c.l.s4 1966171168
    %v8072 = vunpack.c.0.s8 %v8071
    %v8073 = vlaneseq
    %v8074 = vshrl.u32 %v8073, 7
    %v8075 = vsub.s32 %v8072, %v8074
    %v8076 = vrot.slane %v8054, %v8075
    %v8078 = vunpack.c.l.s4 1966171168
    %v8079 = vunpack.c.0.s8 %v8078
    %v8080 = vlaneseq
    %v8081 = vshrl.u32 %v8080, 7
    %v8082 = vsub.s32 %v8079, %v8081
    %v8083 = vrot.slane %v8055, %v8082
    %v8084 = vcombine.low %v8062, %v8069
    %v8085 = vcombine.low %v8076, %v8083
    %v8087 = vunpack.c.l.s4 1966171168
    %v8088 = vunpack.c.0.s8 %v8087
    %v8089 = vlaneseq
    %v8090 = vshrl.u32 %v8089, 7
    %v8091 = vsub.s32 %v8088, %v8090
    %v8092 = vrot.slane %v8084, %v8091
    %v8094 = vunpack.c.l.s4 1966171168
    %v8095 = vunpack.c.0.s8 %v8094
    %v8096 = vlaneseq
    %v8097 = vshrl.u32 %v8096, 7
    %v8098 = vsub.s32 %v8095, %v8097
    %v8099 = vrot.slane %v8085, %v8098
    %v8100 = vcombine.low %v8092, %v8099
    %v8101 = vcombine.low %v7972, %v7973
    %v8102 = vcombine.low %v7974, %v7975
    %v8103 = vcombine.low %v7976, %v7977
    %v8105 = vunpack.c.l.s4 1966171168
    %v8106 = vunpack.c.0.s8 %v8105
    %v8107 = vlaneseq
    %v8108 = vshrl.u32 %v8107, 7
    %v8109 = vsub.s32 %v8106, %v8108
    %v8110 = vrot.slane %v8101, %v8109
    %v8112 = vunpack.c.l.s4 1966171168
    %v8113 = vunpack.c.0.s8 %v8112
    %v8114 = vlaneseq
    %v8115 = vshrl.u32 %v8114, 7
    %v8116 = vsub.s32 %v8113, %v8115
    %v8117 = vrot.slane %v8102, %v8116
    %v8119 = vunpack.c.l.s4 1966171168
    %v8120 = vunpack.c.0.s8 %v8119
    %v8121 = vlaneseq
    %v8122 = vshrl.u32 %v8121, 7
    %v8123 = vsub.s32 %v8120, %v8122
    %v8124 = vrot.slane %v8103, %v8123
    %v8125 = vcombine.low %v8110, %v8117
    %v8127 = vunpack.c.l.s4 1966171168
    %v8128 = vunpack.c.0.s8 %v8127
    %v8129 = vlaneseq
    %v8130 = vshrl.u32 %v8129, 7
    %v8131 = vsub.s32 %v8128, %v8130
    %v8132 = vrot.slane %v8125, %v8131
    %v8134 = vunpack.c.l.s4 1966171168
    %v8135 = vunpack.c.0.s8 %v8134
    %v8136 = vlaneseq
    %v8137 = vshrl.u32 %v8136, 7
    %v8138 = vsub.s32 %v8135, %v8137
    %v8139 = vrot.slane %v8124, %v8138
    %v8140 = vcombine.low %v8132, %v8139
    %v8141 = vcombine.low %v8013, %v8027
    %v8142 = vcombine.low %v8035, %v8037
    %v8143 = vcombine.low %v8020, %v8034
    %v8144 = vcombine.low %v8036, %v8013
    %v8146 = vunpack.c.l.s4 1966171168
    %v8147 = vunpack.c.0.s8 %v8146
    %v8148 = vlaneseq
    %v8149 = vshrl.u32 %v8148, 7
    %v8150 = vsub.s32 %v8147, %v8149
    %v8151 = vrot.slane %v8141, %v8150
    %v8153 = vunpack.c.l.s4 1966171168
    %v8154 = vunpack.c.0.s8 %v8153
    %v8155 = vlaneseq
    %v8156 = vshrl.u32 %v8155, 7
    %v8157 = vsub.s32 %v8154, %v8156
    %v8158 = vrot.slane %v8142, %v8157
    %v8160 = vunpack.c.l.s4 1966171168
    %v8161 = vunpack.c.0.s8 %v8160
    %v8162 = vlaneseq
    %v8163 = vshrl.u32 %v8162, 7
    %v8164 = vsub.s32 %v8161, %v8163
    %v8165 = vrot.slane %v8143, %v8164
    %v8167 = vunpack.c.l.s4 1966171168
    %v8168 = vunpack.c.0.s8 %v8167
    %v8169 = vlaneseq
    %v8170 = vshrl.u32 %v8169, 7
    %v8171 = vsub.s32 %v8168, %v8170
    %v8172 = vrot.slane %v8144, %v8171
    %v8173 = vcombine.low %v8151, %v8158
    %v8174 = vcombine.low %v8165, %v8172
    %v8176 = vunpack.c.l.s4 1966171168
    %v8177 = vunpack.c.0.s8 %v8176
    %v8178 = vlaneseq
    %v8179 = vshrl.u32 %v8178, 7
    %v8180 = vsub.s32 %v8177, %v8179
    %v8181 = vrot.slane %v8173, %v8180
    %v8183 = vunpack.c.l.s4 1966171168
    %v8184 = vunpack.c.0.s8 %v8183
    %v8185 = vlaneseq
    %v8186 = vshrl.u32 %v8185, 7
    %v8187 = vsub.s32 %v8184, %v8186
    %v8188 = vrot.slane %v8174, %v8187
    %v8189 = vcombine.low %v8181, %v8188
    %v8190 = vcombine.low %v8027, %v8035
    %v8191 = vcombine.low %v8037, %v8020
    %v8192 = vcombine.low %v8034, %v8036
    %v8194 = vunpack.c.l.s4 1966171168
    %v8195 = vunpack.c.0.s8 %v8194
    %v8196 = vlaneseq
    %v8197 = vshrl.u32 %v8196, 7
    %v8198 = vsub.s32 %v8195, %v8197
    %v8199 = vrot.slane %v8190, %v8198
    %v8201 = vunpack.c.l.s4 1966171168
    %v8202 = vunpack.c.0.s8 %v8201
    %v8203 = vlaneseq
    %v8204 = vshrl.u32 %v8203, 7
    %v8205 = vsub.s32 %v8202, %v8204
    %v8206 = vrot.slane %v8191, %v8205
    %v8208 = vunpack.c.l.s4 1966171168
    %v8209 = vunpack.c.0.s8 %v8208
    %v8210 = vlaneseq
    %v8211 = vshrl.u32 %v8210, 7
    %v8212 = vsub.s32 %v8209, %v8211
    %v8213 = vrot.slane %v8192, %v8212
    %v8214 = vcombine.low %v8199, %v8206
    %v8216 = vunpack.c.l.s4 1966171168
    %v8217 = vunpack.c.0.s8 %v8216
    %v8218 = vlaneseq
    %v8219 = vshrl.u32 %v8218, 7
    %v8220 = vsub.s32 %v8217, %v8219
    %v8221 = vrot.slane %v8214, %v8220
    %v8223 = vunpack.c.l.s4 1966171168
    %v8224 = vunpack.c.0.s8 %v8223
    %v8225 = vlaneseq
    %v8226 = vshrl.u32 %v8225, 7
    %v8227 = vsub.s32 %v8224, %v8226
    %v8228 = vrot.slane %v8213, %v8227
    %v8229 = vcombine.low %v8221, %v8228
    %v8232 = vsel %vm722, %v8100, 0
    %v8234 = vsel %vm722, %v8140, 0
    %8236 = vmatprep.subr.mxu0 0.0
    %8237 = vmatpush1.msra.mxu0 0.0
    %8238 = vmatprep.subr.mxu0 0.0
    %8239 = vmatpush1.msra.mxu0 0.0
    %8240 = vmatprep.subr.mxu0 0.0
    %8241 = vmatpush1.msra.mxu0 0.0
    %8242 = vmatprep.subr.mxu0 0.0
    %8243 = vmatpush1.msra.mxu0 0.0
    %8244 = vmatprep.subr.mxu0 0.0
    %8245 = vmatpush1.msra.mxu0 0.0
    %8246 = vmatprep.subr.mxu0 0.0
    %8247 = vmatpush1.msra.mxu0 0.0
    %8248 = vmatprep.subr.mxu0 0.0
    %8249 = vmatpush1.msra.mxu0 0.0
    %8250 = vmatprep.subr.mxu0 0.0
    %8251 = vmatpush1.msra.mxu0 0.0
    %8252 = vmatprep.subr.mxu0 0.0
    %8253 = vmatpush1.msra.mxu0 0.0
    %8254 = vmatprep.subr.mxu0 0.0
    %8255 = vmatpush1.msra.mxu0 0.0
    %8256 = vmatprep.subr.mxu0 0.0
    %8257 = vmatpush1.msra.mxu0 0.0
    %8258 = vmatprep.subr.mxu0 0.0
    %8259 = vmatpush1.msra.mxu0 0.0
    %8260 = vmatprep.subr.mxu0 0.0
    %8261 = vmatpush1.msra.mxu0 %v7982
    %8262 = vmatprep.subr.mxu0 0.0
    %8263 = vmatpush1.msra.mxu0 %v7981
    %8264 = vmatprep.subr.mxu0 0.0
    %8265 = vmatpush1.msra.mxu0 %v7980
    %8266 = vmatprep.subr.mxu0 0.0
    %8267 = vmatpush1.msra.mxu0 %v7979
    %8268 = vmatprep.subr.mxu0 0.0
    %8269 = vmatpush2.msra.mxu0 0.0
    %8270 = vmatprep.subr.mxu0 0.0
    %8271 = vmatpush2.msra.mxu0 0.0
    %8272 = vmatprep.subr.mxu0 0.0
    %8273 = vmatpush2.msra.mxu0 0.0
    %8274 = vmatprep.subr.mxu0 0.0
    %8275 = vmatpush2.msra.mxu0 0.0
    %8276 = vmatprep.subr.mxu0 0.0
    %8277 = vmatpush2.msra.mxu0 0.0
    %8278 = vmatprep.subr.mxu0 0.0
    %8279 = vmatpush2.msra.mxu0 0.0
    %8280 = vmatprep.subr.mxu0 0.0
    %8281 = vmatpush2.msra.mxu0 0.0
    %8282 = vmatprep.subr.mxu0 0.0
    %8283 = vmatpush2.msra.mxu0 0.0
    %8284 = vmatprep.subr.mxu0 0.0
    %8285 = vmatpush2.msra.mxu0 0.0
    %8286 = vmatprep.subr.mxu0 0.0
    %8287 = vmatpush2.msra.mxu0 0.0
    %8288 = vmatprep.subr.mxu0 0.0
    %8289 = vmatpush2.msra.mxu0 0.0
    %8290 = vmatprep.subr.mxu0 0.0
    %8291 = vmatpush2.msra.mxu0 0.0
    %8292 = vmatprep.subr.mxu0 0.0
    %8293 = vmatpush2.msra.mxu0 0.0
    %8294 = vmatprep.subr.mxu0 0.0
    %8295 = vmatpush2.msra.mxu0 0.0
    %8296 = vmatprep.subr.mxu0 0.0
    %8297 = vmatpush2.msra.mxu0 0.0
    %8298 = vmatprep.subr.mxu0 0.0
    %8299 = vmatpush2.msra.mxu0 0.0
    %8300 = vmatprep.mubr.f32.mxu0 0.0
    %8301 = vmatmul.mubr.f32.gmra.mxu0 %v8232
    %v8302 = vpop.f32.mrf.mxu0
    %v8303 = vadd.f32 %v8189, %v8302
    %v8304 = vpop.f32.mrf.mxu0
    %8305 = vmatprep.mubr.f32.mxu0 0.0
    %8306 = vmatmul.mubr.f32.gmra.mxu0 %v8234
    %v8307 = vpop.f32.mrf.mxu0
    %v8308 = vadd.f32 %v8229, %v8307
    %v8309 = vpop.f32.mrf.mxu0
    %8310 = vdwg.mxu0
    %v8313 = vcombine.high %v8303, %v8303
    %v8315 = vunpack.c.l.s4 1966171168
    %v8316 = vunpack.c.0.s8 %v8315
    %v8317 = vlaneseq
    %v8318 = vshrl.u32 %v8317, 7
    %v8319 = vsub.s32 %v8316, %v8318
    %v8320 = vrot.slane %v8303, %v8319
    %v8322 = vunpack.c.l.s4 1966171168
    %v8323 = vunpack.c.0.s8 %v8322
    %v8324 = vlaneseq
    %v8325 = vshrl.u32 %v8324, 7
    %v8326 = vsub.s32 %v8323, %v8325
    %v8327 = vrot.slane %v8313, %v8326
    %v8328 = vcombine.high %v8320, %v8320
    %v8329 = vcombine.high %v8327, %v8327
    %v8331 = vunpack.c.l.s4 1966171168
    %v8332 = vunpack.c.0.s8 %v8331
    %v8333 = vlaneseq
    %v8334 = vshrl.u32 %v8333, 7
    %v8335 = vsub.s32 %v8332, %v8334
    %v8336 = vrot.slane %v8320, %v8335
    %v8338 = vunpack.c.l.s4 1966171168
    %v8339 = vunpack.c.0.s8 %v8338
    %v8340 = vlaneseq
    %v8341 = vshrl.u32 %v8340, 7
    %v8342 = vsub.s32 %v8339, %v8341
    %v8343 = vrot.slane %v8327, %v8342
    %v8345 = vunpack.c.l.s4 1966171168
    %v8346 = vunpack.c.0.s8 %v8345
    %v8347 = vlaneseq
    %v8348 = vshrl.u32 %v8347, 7
    %v8349 = vsub.s32 %v8346, %v8348
    %v8350 = vrot.slane %v8328, %v8349
    %v8352 = vunpack.c.l.s4 1966171168
    %v8353 = vunpack.c.0.s8 %v8352
    %v8354 = vlaneseq
    %v8355 = vshrl.u32 %v8354, 7
    %v8356 = vsub.s32 %v8353, %v8355
    %v8357 = vrot.slane %v8329, %v8356
    %v8358 = vcombine.high %v8336, %v8336
    %v8359 = vcombine.high %v8343, %v8343
    %v8360 = vcombine.high %v8350, %v8350
    %v8361 = vcombine.high %v8357, %v8357
    %v8362 = vcombine.high %v8308, %v8308
    %v8364 = vunpack.c.l.s4 1966171168
    %v8365 = vunpack.c.0.s8 %v8364
    %v8366 = vlaneseq
    %v8367 = vshrl.u32 %v8366, 7
    %v8368 = vsub.s32 %v8365, %v8367
    %v8369 = vrot.slane %v8308, %v8368
    %v8371 = vunpack.c.l.s4 1966171168
    %v8372 = vunpack.c.0.s8 %v8371
    %v8373 = vlaneseq
    %v8374 = vshrl.u32 %v8373, 7
    %v8375 = vsub.s32 %v8372, %v8374
    %v8376 = vrot.slane %v8362, %v8375
    %v8377 = vcombine.high %v8369, %v8369
    %v8378 = vcombine.high %v8376, %v8376
    %v8380 = vunpack.c.l.s4 1966171168
    %v8381 = vunpack.c.0.s8 %v8380
    %v8382 = vlaneseq
    %v8383 = vshrl.u32 %v8382, 7
    %v8384 = vsub.s32 %v8381, %v8383
    %v8385 = vrot.slane %v8369, %v8384
    %v8387 = vunpack.c.l.s4 1966171168
    %v8388 = vunpack.c.0.s8 %v8387
    %v8389 = vlaneseq
    %v8390 = vshrl.u32 %v8389, 7
    %v8391 = vsub.s32 %v8388, %v8390
    %v8392 = vrot.slane %v8376, %v8391
    %v8394 = vunpack.c.l.s4 1966171168
    %v8395 = vunpack.c.0.s8 %v8394
    %v8396 = vlaneseq
    %v8397 = vshrl.u32 %v8396, 7
    %v8398 = vsub.s32 %v8395, %v8397
    %v8399 = vrot.slane %v8377, %v8398
    %v8401 = vunpack.c.l.s4 1966171168
    %v8402 = vunpack.c.0.s8 %v8401
    %v8403 = vlaneseq
    %v8404 = vshrl.u32 %v8403, 7
    %v8405 = vsub.s32 %v8402, %v8404
    %v8406 = vrot.slane %v8378, %v8405
    %v8407 = vcombine.high %v8385, %v8385
    %v8408 = vcombine.high %v8399, %v8399
    %v8423 = vmax.f32 %v8336, 0.0
    %v8424 = vmax.f32 %v8350, 0.0
    %v8425 = vmax.f32 %v8358, 0.0
    %v8426 = vmax.f32 %v8360, 0.0
    %v8427 = vmax.f32 %v8343, 0.0
    %v8428 = vmax.f32 %v8357, 0.0
    %v8429 = vmax.f32 %v8359, 0.0
    %v8430 = vmax.f32 %v8361, 0.0
    %v8431 = vmax.f32 %v8385, 0.0
    %v8432 = vmax.f32 %v8399, 0.0
    %v8433 = vmax.f32 %v8407, 0.0
    %v8434 = vmax.f32 %v8408, 0.0
    %v8435 = vmax.f32 %v8392, 0.0
    %v8436 = vmax.f32 %v8406, 0.0
    %s8437 = scalar_lea.vmem %s9, 64
    %v8438 = vld [vmem:[%s8437] sm:$0xff]
    %v8439 = vld [vmem:[%s8437 + $0x8] sm:$0xff]
    %v8440 = vld [vmem:[%s8437 + $0x10] sm:$0xff]
    %v8441 = vld [vmem:[%s8437 + $0x18] sm:$0xff]
    %v8442 = vld [vmem:[%s8437 + $0x20] sm:$0xff]
    %v8443 = vld [vmem:[%s8437 + $0x28] sm:$0xff]
    %v8444 = vld [vmem:[%s8437 + $0x30] sm:$0xff]
    %v8445 = vld [vmem:[%s8437 + $0x38] sm:$0xff]
    %s8446 = scalar_lea.vmem %s10, 1
    %v8447 = vld [vmem:[%s8446] sm:$0x1]
    %v8449 = vlaneseq
    %v8450 = vshrl.u32 %v8449, 7
    %v8451 = vsub.s32 0, %v8450
    %v8452 = vrot.slane %v8447, %v8451
    %v8453 = vcombine.high %v8452, %v8452
    %v8455 = vunpack.c.l.s4 1966171168
    %v8456 = vunpack.c.0.s8 %v8455
    %v8457 = vlaneseq
    %v8458 = vshrl.u32 %v8457, 7
    %v8459 = vsub.s32 %v8456, %v8458
    %v8460 = vrot.slane %v8452, %v8459
    %v8462 = vunpack.c.l.s4 1966171168
    %v8463 = vunpack.c.0.s8 %v8462
    %v8464 = vlaneseq
    %v8465 = vshrl.u32 %v8464, 7
    %v8466 = vsub.s32 %v8463, %v8465
    %v8467 = vrot.slane %v8453, %v8466
    %v8468 = vcombine.high %v8460, %v8460
    %v8469 = vcombine.high %v8467, %v8467
    %v8471 = vunpack.c.l.s4 1966171168
    %v8472 = vunpack.c.0.s8 %v8471
    %v8473 = vlaneseq
    %v8474 = vshrl.u32 %v8473, 7
    %v8475 = vsub.s32 %v8472, %v8474
    %v8476 = vrot.slane %v8460, %v8475
    %v8478 = vunpack.c.l.s4 1966171168
    %v8479 = vunpack.c.0.s8 %v8478
    %v8480 = vlaneseq
    %v8481 = vshrl.u32 %v8480, 7
    %v8482 = vsub.s32 %v8479, %v8481
    %v8483 = vrot.slane %v8467, %v8482
    %v8485 = vunpack.c.l.s4 1966171168
    %v8486 = vunpack.c.0.s8 %v8485
    %v8487 = vlaneseq
    %v8488 = vshrl.u32 %v8487, 7
    %v8489 = vsub.s32 %v8486, %v8488
    %v8490 = vrot.slane %v8468, %v8489
    %v8492 = vunpack.c.l.s4 1966171168
    %v8493 = vunpack.c.0.s8 %v8492
    %v8494 = vlaneseq
    %v8495 = vshrl.u32 %v8494, 7
    %v8496 = vsub.s32 %v8493, %v8495
    %v8497 = vrot.slane %v8469, %v8496
    %v8498 = vcombine.high %v8476, %v8476
    %v8499 = vcombine.high %v8483, %v8483
    %v8500 = vcombine.high %v8490, %v8490
    %v8515 = vcombine.low %v8423, %v8424
    %v8516 = vcombine.low %v8425, %v8426
    %v8517 = vcombine.low %v8427, %v8428
    %v8518 = vcombine.low %v8429, %v8430
    %v8520 = vunpack.c.l.s4 1966171168
    %v8521 = vunpack.c.0.s8 %v8520
    %v8522 = vlaneseq
    %v8523 = vshrl.u32 %v8522, 7
    %v8524 = vsub.s32 %v8521, %v8523
    %v8525 = vrot.slane %v8515, %v8524
    %v8527 = vunpack.c.l.s4 1966171168
    %v8528 = vunpack.c.0.s8 %v8527
    %v8529 = vlaneseq
    %v8530 = vshrl.u32 %v8529, 7
    %v8531 = vsub.s32 %v8528, %v8530
    %v8532 = vrot.slane %v8516, %v8531
    %v8534 = vunpack.c.l.s4 1966171168
    %v8535 = vunpack.c.0.s8 %v8534
    %v8536 = vlaneseq
    %v8537 = vshrl.u32 %v8536, 7
    %v8538 = vsub.s32 %v8535, %v8537
    %v8539 = vrot.slane %v8517, %v8538
    %v8541 = vunpack.c.l.s4 1966171168
    %v8542 = vunpack.c.0.s8 %v8541
    %v8543 = vlaneseq
    %v8544 = vshrl.u32 %v8543, 7
    %v8545 = vsub.s32 %v8542, %v8544
    %v8546 = vrot.slane %v8518, %v8545
    %v8547 = vcombine.low %v8525, %v8532
    %v8548 = vcombine.low %v8539, %v8546
    %v8550 = vunpack.c.l.s4 1966171168
    %v8551 = vunpack.c.0.s8 %v8550
    %v8552 = vlaneseq
    %v8553 = vshrl.u32 %v8552, 7
    %v8554 = vsub.s32 %v8551, %v8553
    %v8555 = vrot.slane %v8547, %v8554
    %v8557 = vunpack.c.l.s4 1966171168
    %v8558 = vunpack.c.0.s8 %v8557
    %v8559 = vlaneseq
    %v8560 = vshrl.u32 %v8559, 7
    %v8561 = vsub.s32 %v8558, %v8560
    %v8562 = vrot.slane %v8548, %v8561
    %v8563 = vcombine.low %v8555, %v8562
    %v8564 = vcombine.low %v8431, %v8432
    %v8565 = vcombine.low %v8433, %v8434
    %v8566 = vcombine.low %v8435, %v8436
    %v8568 = vunpack.c.l.s4 1966171168
    %v8569 = vunpack.c.0.s8 %v8568
    %v8570 = vlaneseq
    %v8571 = vshrl.u32 %v8570, 7
    %v8572 = vsub.s32 %v8569, %v8571
    %v8573 = vrot.slane %v8564, %v8572
    %v8575 = vunpack.c.l.s4 1966171168
    %v8576 = vunpack.c.0.s8 %v8575
    %v8577 = vlaneseq
    %v8578 = vshrl.u32 %v8577, 7
    %v8579 = vsub.s32 %v8576, %v8578
    %v8580 = vrot.slane %v8565, %v8579
    %v8582 = vunpack.c.l.s4 1966171168
    %v8583 = vunpack.c.0.s8 %v8582
    %v8584 = vlaneseq
    %v8585 = vshrl.u32 %v8584, 7
    %v8586 = vsub.s32 %v8583, %v8585
    %v8587 = vrot.slane %v8566, %v8586
    %v8588 = vcombine.low %v8573, %v8580
    %v8590 = vunpack.c.l.s4 1966171168
    %v8591 = vunpack.c.0.s8 %v8590
    %v8592 = vlaneseq
    %v8593 = vshrl.u32 %v8592, 7
    %v8594 = vsub.s32 %v8591, %v8593
    %v8595 = vrot.slane %v8588, %v8594
    %v8597 = vunpack.c.l.s4 1966171168
    %v8598 = vunpack.c.0.s8 %v8597
    %v8599 = vlaneseq
    %v8600 = vshrl.u32 %v8599, 7
    %v8601 = vsub.s32 %v8598, %v8600
    %v8602 = vrot.slane %v8587, %v8601
    %v8603 = vcombine.low %v8595, %v8602
    %v8604 = vcombine.low %v8476, %v8490
    %v8605 = vcombine.low %v8498, %v8500
    %v8606 = vcombine.low %v8483, %v8497
    %v8607 = vcombine.low %v8499, %v8476
    %v8609 = vunpack.c.l.s4 1966171168
    %v8610 = vunpack.c.0.s8 %v8609
    %v8611 = vlaneseq
    %v8612 = vshrl.u32 %v8611, 7
    %v8613 = vsub.s32 %v8610, %v8612
    %v8614 = vrot.slane %v8604, %v8613
    %v8616 = vunpack.c.l.s4 1966171168
    %v8617 = vunpack.c.0.s8 %v8616
    %v8618 = vlaneseq
    %v8619 = vshrl.u32 %v8618, 7
    %v8620 = vsub.s32 %v8617, %v8619
    %v8621 = vrot.slane %v8605, %v8620
    %v8623 = vunpack.c.l.s4 1966171168
    %v8624 = vunpack.c.0.s8 %v8623
    %v8625 = vlaneseq
    %v8626 = vshrl.u32 %v8625, 7
    %v8627 = vsub.s32 %v8624, %v8626
    %v8628 = vrot.slane %v8606, %v8627
    %v8630 = vunpack.c.l.s4 1966171168
    %v8631 = vunpack.c.0.s8 %v8630
    %v8632 = vlaneseq
    %v8633 = vshrl.u32 %v8632, 7
    %v8634 = vsub.s32 %v8631, %v8633
    %v8635 = vrot.slane %v8607, %v8634
    %v8636 = vcombine.low %v8614, %v8621
    %v8637 = vcombine.low %v8628, %v8635
    %v8639 = vunpack.c.l.s4 1966171168
    %v8640 = vunpack.c.0.s8 %v8639
    %v8641 = vlaneseq
    %v8642 = vshrl.u32 %v8641, 7
    %v8643 = vsub.s32 %v8640, %v8642
    %v8644 = vrot.slane %v8636, %v8643
    %v8646 = vunpack.c.l.s4 1966171168
    %v8647 = vunpack.c.0.s8 %v8646
    %v8648 = vlaneseq
    %v8649 = vshrl.u32 %v8648, 7
    %v8650 = vsub.s32 %v8647, %v8649
    %v8651 = vrot.slane %v8637, %v8650
    %v8652 = vcombine.low %v8644, %v8651
    %v8653 = vcombine.low %v8490, %v8498
    %v8654 = vcombine.low %v8500, %v8483
    %v8655 = vcombine.low %v8497, %v8499
    %v8657 = vunpack.c.l.s4 1966171168
    %v8658 = vunpack.c.0.s8 %v8657
    %v8659 = vlaneseq
    %v8660 = vshrl.u32 %v8659, 7
    %v8661 = vsub.s32 %v8658, %v8660
    %v8662 = vrot.slane %v8653, %v8661
    %v8664 = vunpack.c.l.s4 1966171168
    %v8665 = vunpack.c.0.s8 %v8664
    %v8666 = vlaneseq
    %v8667 = vshrl.u32 %v8666, 7
    %v8668 = vsub.s32 %v8665, %v8667
    %v8669 = vrot.slane %v8654, %v8668
    %v8671 = vunpack.c.l.s4 1966171168
    %v8672 = vunpack.c.0.s8 %v8671
    %v8673 = vlaneseq
    %v8674 = vshrl.u32 %v8673, 7
    %v8675 = vsub.s32 %v8672, %v8674
    %v8676 = vrot.slane %v8655, %v8675
    %v8677 = vcombine.low %v8662, %v8669
    %v8679 = vunpack.c.l.s4 1966171168
    %v8680 = vunpack.c.0.s8 %v8679
    %v8681 = vlaneseq
    %v8682 = vshrl.u32 %v8681, 7
    %v8683 = vsub.s32 %v8680, %v8682
    %v8684 = vrot.slane %v8677, %v8683
    %v8686 = vunpack.c.l.s4 1966171168
    %v8687 = vunpack.c.0.s8 %v8686
    %v8688 = vlaneseq
    %v8689 = vshrl.u32 %v8688, 7
    %v8690 = vsub.s32 %v8687, %v8689
    %v8691 = vrot.slane %v8676, %v8690
    %v8692 = vcombine.low %v8684, %v8691
    %v8695 = vsel %vm4261, %v8563, 0
    %v8697 = vsel %vm4261, %v8603, 0
    %8699 = vmatprep.subr.mxu0 0.0
    %8700 = vmatpush1.msra.mxu0 0.0
    %8701 = vmatprep.subr.mxu0 0.0
    %8702 = vmatpush1.msra.mxu0 0.0
    %8703 = vmatprep.subr.mxu0 0.0
    %8704 = vmatpush1.msra.mxu0 0.0
    %8705 = vmatprep.subr.mxu0 0.0
    %8706 = vmatpush1.msra.mxu0 0.0
    %8707 = vmatprep.subr.mxu0 0.0
    %8708 = vmatpush1.msra.mxu0 0.0
    %8709 = vmatprep.subr.mxu0 0.0
    %8710 = vmatpush1.msra.mxu0 0.0
    %8711 = vmatprep.subr.mxu0 0.0
    %8712 = vmatpush1.msra.mxu0 0.0
    %8713 = vmatprep.subr.mxu0 0.0
    %8714 = vmatpush1.msra.mxu0 0.0
    %8715 = vmatprep.subr.mxu0 0.0
    %8716 = vmatpush1.msra.mxu0 %v8445
    %8717 = vmatprep.subr.mxu0 0.0
    %8718 = vmatpush1.msra.mxu0 %v8444
    %8719 = vmatprep.subr.mxu0 0.0
    %8720 = vmatpush1.msra.mxu0 %v8443
    %8721 = vmatprep.subr.mxu0 0.0
    %8722 = vmatpush1.msra.mxu0 %v8442
    %8723 = vmatprep.subr.mxu0 0.0
    %8724 = vmatpush1.msra.mxu0 %v8441
    %8725 = vmatprep.subr.mxu0 0.0
    %8726 = vmatpush1.msra.mxu0 %v8440
    %8727 = vmatprep.subr.mxu0 0.0
    %8728 = vmatpush1.msra.mxu0 %v8439
    %8729 = vmatprep.subr.mxu0 0.0
    %8730 = vmatpush1.msra.mxu0 %v8438
    %8731 = vmatprep.subr.mxu0 0.0
    %8732 = vmatpush2.msra.mxu0 0.0
    %8733 = vmatprep.subr.mxu0 0.0
    %8734 = vmatpush2.msra.mxu0 0.0
    %8735 = vmatprep.subr.mxu0 0.0
    %8736 = vmatpush2.msra.mxu0 0.0
    %8737 = vmatprep.subr.mxu0 0.0
    %8738 = vmatpush2.msra.mxu0 0.0
    %8739 = vmatprep.subr.mxu0 0.0
    %8740 = vmatpush2.msra.mxu0 0.0
    %8741 = vmatprep.subr.mxu0 0.0
    %8742 = vmatpush2.msra.mxu0 0.0
    %8743 = vmatprep.subr.mxu0 0.0
    %8744 = vmatpush2.msra.mxu0 0.0
    %8745 = vmatprep.subr.mxu0 0.0
    %8746 = vmatpush2.msra.mxu0 0.0
    %8747 = vmatprep.subr.mxu0 0.0
    %8748 = vmatpush2.msra.mxu0 0.0
    %8749 = vmatprep.subr.mxu0 0.0
    %8750 = vmatpush2.msra.mxu0 0.0
    %8751 = vmatprep.subr.mxu0 0.0
    %8752 = vmatpush2.msra.mxu0 0.0
    %8753 = vmatprep.subr.mxu0 0.0
    %8754 = vmatpush2.msra.mxu0 0.0
    %8755 = vmatprep.subr.mxu0 0.0
    %8756 = vmatpush2.msra.mxu0 0.0
    %8757 = vmatprep.subr.mxu0 0.0
    %8758 = vmatpush2.msra.mxu0 0.0
    %8759 = vmatprep.subr.mxu0 0.0
    %8760 = vmatpush2.msra.mxu0 0.0
    %8761 = vmatprep.subr.mxu0 0.0
    %8762 = vmatpush2.msra.mxu0 0.0
    %8763 = vmatprep.mubr.f32.mxu0 0.0
    %8764 = vmatmul.mubr.f32.gmra.mxu0 %v8695
    %v8765 = vpop.f32.mrf.mxu0
    %v8766 = vadd.f32 %v8652, %v8765
    %v8767 = vpop.f32.mrf.mxu0
    %8768 = vmatprep.mubr.f32.mxu0 0.0
    %8769 = vmatmul.mubr.f32.gmra.mxu0 %v8697
    %v8770 = vpop.f32.mrf.mxu0
    %v8771 = vadd.f32 %v8692, %v8770
    %v8772 = vpop.f32.mrf.mxu0
    %8773 = vdwg.mxu0
    %v8776 = vcombine.high %v8766, %v8766
    %v8778 = vunpack.c.l.s4 1966171168
    %v8779 = vunpack.c.0.s8 %v8778
    %v8780 = vlaneseq
    %v8781 = vshrl.u32 %v8780, 7
    %v8782 = vsub.s32 %v8779, %v8781
    %v8783 = vrot.slane %v8766, %v8782
    %v8785 = vunpack.c.l.s4 1966171168
    %v8786 = vunpack.c.0.s8 %v8785
    %v8787 = vlaneseq
    %v8788 = vshrl.u32 %v8787, 7
    %v8789 = vsub.s32 %v8786, %v8788
    %v8790 = vrot.slane %v8776, %v8789
    %v8791 = vcombine.high %v8783, %v8783
    %v8792 = vcombine.high %v8790, %v8790
    %v8794 = vunpack.c.l.s4 1966171168
    %v8795 = vunpack.c.0.s8 %v8794
    %v8796 = vlaneseq
    %v8797 = vshrl.u32 %v8796, 7
    %v8798 = vsub.s32 %v8795, %v8797
    %v8799 = vrot.slane %v8783, %v8798
    %v8801 = vunpack.c.l.s4 1966171168
    %v8802 = vunpack.c.0.s8 %v8801
    %v8803 = vlaneseq
    %v8804 = vshrl.u32 %v8803, 7
    %v8805 = vsub.s32 %v8802, %v8804
    %v8806 = vrot.slane %v8790, %v8805
    %v8808 = vunpack.c.l.s4 1966171168
    %v8809 = vunpack.c.0.s8 %v8808
    %v8810 = vlaneseq
    %v8811 = vshrl.u32 %v8810, 7
    %v8812 = vsub.s32 %v8809, %v8811
    %v8813 = vrot.slane %v8791, %v8812
    %v8815 = vunpack.c.l.s4 1966171168
    %v8816 = vunpack.c.0.s8 %v8815
    %v8817 = vlaneseq
    %v8818 = vshrl.u32 %v8817, 7
    %v8819 = vsub.s32 %v8816, %v8818
    %v8820 = vrot.slane %v8792, %v8819
    %v8821 = vcombine.high %v8799, %v8799
    %v8822 = vcombine.high %v8806, %v8806
    %v8823 = vcombine.high %v8813, %v8813
    %v8824 = vcombine.high %v8820, %v8820
    %v8825 = vcombine.high %v8771, %v8771
    %v8827 = vunpack.c.l.s4 1966171168
    %v8828 = vunpack.c.0.s8 %v8827
    %v8829 = vlaneseq
    %v8830 = vshrl.u32 %v8829, 7
    %v8831 = vsub.s32 %v8828, %v8830
    %v8832 = vrot.slane %v8771, %v8831
    %v8834 = vunpack.c.l.s4 1966171168
    %v8835 = vunpack.c.0.s8 %v8834
    %v8836 = vlaneseq
    %v8837 = vshrl.u32 %v8836, 7
    %v8838 = vsub.s32 %v8835, %v8837
    %v8839 = vrot.slane %v8825, %v8838
    %v8840 = vcombine.high %v8832, %v8832
    %v8841 = vcombine.high %v8839, %v8839
    %v8843 = vunpack.c.l.s4 1966171168
    %v8844 = vunpack.c.0.s8 %v8843
    %v8845 = vlaneseq
    %v8846 = vshrl.u32 %v8845, 7
    %v8847 = vsub.s32 %v8844, %v8846
    %v8848 = vrot.slane %v8832, %v8847
    %v8850 = vunpack.c.l.s4 1966171168
    %v8851 = vunpack.c.0.s8 %v8850
    %v8852 = vlaneseq
    %v8853 = vshrl.u32 %v8852, 7
    %v8854 = vsub.s32 %v8851, %v8853
    %v8855 = vrot.slane %v8839, %v8854
    %v8857 = vunpack.c.l.s4 1966171168
    %v8858 = vunpack.c.0.s8 %v8857
    %v8859 = vlaneseq
    %v8860 = vshrl.u32 %v8859, 7
    %v8861 = vsub.s32 %v8858, %v8860
    %v8862 = vrot.slane %v8840, %v8861
    %v8864 = vunpack.c.l.s4 1966171168
    %v8865 = vunpack.c.0.s8 %v8864
    %v8866 = vlaneseq
    %v8867 = vshrl.u32 %v8866, 7
    %v8868 = vsub.s32 %v8865, %v8867
    %v8869 = vrot.slane %v8841, %v8868
    %v8870 = vcombine.high %v8848, %v8848
    %v8871 = vcombine.high %v8862, %v8862
    %v8886 = vadd.f32 %v7964, %v8799
    %v8887 = vadd.f32 %v7965, %v8813
    %v8888 = vadd.f32 %v7966, %v8821
    %v8889 = vadd.f32 %v7967, %v8823
    %v8890 = vadd.f32 %v7968, %v8806
    %v8891 = vadd.f32 %v7969, %v8820
    %v8892 = vadd.f32 %v7970, %v8822
    %v8893 = vadd.f32 %v7971, %v8824
    %v8894 = vadd.f32 %v7972, %v8848
    %v8895 = vadd.f32 %v7973, %v8862
    %v8896 = vadd.f32 %v7974, %v8870
    %v8897 = vadd.f32 %v7975, %v8871
    %v8898 = vadd.f32 %v7976, %v8855
    %v8899 = vadd.f32 %v7977, %v8869
    %v8914 = vcombine.low %v8886, %v8887
    %v8915 = vcombine.low %v8888, %v8889
    %v8916 = vcombine.low %v8890, %v8891
    %v8918 = vunpack.c.l.s4 1966171168
    %v8919 = vunpack.c.0.s8 %v8918
    %v8920 = vlaneseq
    %v8921 = vshrl.u32 %v8920, 7
    %v8922 = vsub.s32 %v8919, %v8921
    %v8923 = vrot.slane %v8914, %v8922
    %v8925 = vunpack.c.l.s4 1966171168
    %v8926 = vunpack.c.0.s8 %v8925
    %v8927 = vlaneseq
    %v8928 = vshrl.u32 %v8927, 7
    %v8929 = vsub.s32 %v8926, %v8928
    %v8930 = vrot.slane %v8915, %v8929
    %v8932 = vunpack.c.l.s4 1966171168
    %v8933 = vunpack.c.0.s8 %v8932
    %v8934 = vlaneseq
    %v8935 = vshrl.u32 %v8934, 7
    %v8936 = vsub.s32 %v8933, %v8935
    %v8937 = vrot.slane %v8916, %v8936
    %v8939 = vunpack.c.l.s4 1966171168
    %v8940 = vunpack.c.0.s8 %v8939
    %v8941 = vlaneseq
    %v8942 = vshrl.u32 %v8941, 7
    %v8943 = vsub.s32 %v8940, %v8942
    %v8944 = vrot.slane %v8892, %v8943
    %v8945 = vcombine.low %v8923, %v8930
    %v8946 = vcombine.low %v8937, %v8944
    %v8948 = vunpack.c.l.s4 1966171168
    %v8949 = vunpack.c.0.s8 %v8948
    %v8950 = vlaneseq
    %v8951 = vshrl.u32 %v8950, 7
    %v8952 = vsub.s32 %v8949, %v8951
    %v8953 = vrot.slane %v8945, %v8952
    %v8955 = vunpack.c.l.s4 1966171168
    %v8956 = vunpack.c.0.s8 %v8955
    %v8957 = vlaneseq
    %v8958 = vshrl.u32 %v8957, 7
    %v8959 = vsub.s32 %v8956, %v8958
    %v8960 = vrot.slane %v8946, %v8959
    %v8961 = vcombine.low %v8953, %v8960
    %v8962 = vcombine.low %v8893, %v8894
    %v8963 = vcombine.low %v8895, %v8896
    %v8964 = vcombine.low %v8897, %v8898
    %v8966 = vunpack.c.l.s4 1966171168
    %v8967 = vunpack.c.0.s8 %v8966
    %v8968 = vlaneseq
    %v8969 = vshrl.u32 %v8968, 7
    %v8970 = vsub.s32 %v8967, %v8969
    %v8971 = vrot.slane %v8962, %v8970
    %v8973 = vunpack.c.l.s4 1966171168
    %v8974 = vunpack.c.0.s8 %v8973
    %v8975 = vlaneseq
    %v8976 = vshrl.u32 %v8975, 7
    %v8977 = vsub.s32 %v8974, %v8976
    %v8978 = vrot.slane %v8963, %v8977
    %v8980 = vunpack.c.l.s4 1966171168
    %v8981 = vunpack.c.0.s8 %v8980
    %v8982 = vlaneseq
    %v8983 = vshrl.u32 %v8982, 7
    %v8984 = vsub.s32 %v8981, %v8983
    %v8985 = vrot.slane %v8964, %v8984
    %v8987 = vunpack.c.l.s4 1966171168
    %v8988 = vunpack.c.0.s8 %v8987
    %v8989 = vlaneseq
    %v8990 = vshrl.u32 %v8989, 7
    %v8991 = vsub.s32 %v8988, %v8990
    %v8992 = vrot.slane %v8899, %v8991
    %v8993 = vcombine.low %v8971, %v8978
    %v8994 = vcombine.low %v8985, %v8992
    %v8996 = vunpack.c.l.s4 1966171168
    %v8997 = vunpack.c.0.s8 %v8996
    %v8998 = vlaneseq
    %v8999 = vshrl.u32 %v8998, 7
    %v9000 = vsub.s32 %v8997, %v8999
    %v9001 = vrot.slane %v8993, %v9000
    %v9003 = vunpack.c.l.s4 1966171168
    %v9004 = vunpack.c.0.s8 %v9003
    %v9005 = vlaneseq
    %v9006 = vshrl.u32 %v9005, 7
    %v9007 = vsub.s32 %v9004, %v9006
    %v9008 = vrot.slane %v8994, %v9007
    %v9009 = vcombine.low %v9001, %v9008
    %v9012 = vsel %vm3080, %v8961, 0.0
    %9013 = vadd.xlane.f32.xlu0 %v9012
    %v9014 = vpop.xlane.xlu0 %9013
    %v9015 = vsel %vm3080, %v9009, 0.0
    %9016 = vadd.xlane.f32.xlu0 %v9015
    %v9017 = vpop.xlane.xlu0 %9016
    %v9018 = vmul.f32 %v9014, %v3087
    %v9019 = vmul.f32 %v9017, %v3087
    %v9022 = vlaneseq
    %v9023 = vshrl.u32 %v9022, 7
    %v9024 = vsub.s32 0, %v9023
    %v9025 = vrot.slane %v9018, %v9024
    %v9026 = vlaneseq
    %v9027 = vshrl.u32 %v9026, 7
    %v9028 = vsub.s32 1, %v9027
    %v9029 = vrot.slane %v9018, %v9028
    %v9030 = vlaneseq
    %v9031 = vshrl.u32 %v9030, 7
    %v9032 = vsub.s32 2, %v9031
    %v9033 = vrot.slane %v9018, %v9032
    %v9034 = vlaneseq
    %v9035 = vshrl.u32 %v9034, 7
    %v9036 = vsub.s32 3, %v9035
    %v9037 = vrot.slane %v9018, %v9036
    %v9038 = vlaneseq
    %v9039 = vshrl.u32 %v9038, 7
    %v9040 = vsub.s32 4, %v9039
    %v9041 = vrot.slane %v9018, %v9040
    %v9042 = vlaneseq
    %v9043 = vshrl.u32 %v9042, 7
    %v9044 = vsub.s32 5, %v9043
    %v9045 = vrot.slane %v9018, %v9044
    %v9046 = vlaneseq
    %v9047 = vshrl.u32 %v9046, 7
    %v9048 = vsub.s32 6, %v9047
    %v9049 = vrot.slane %v9018, %v9048
    %v9050 = vlaneseq
    %v9051 = vshrl.u32 %v9050, 7
    %v9052 = vsub.s32 0, %v9051
    %v9053 = vrot.slane %v9019, %v9052
    %v9054 = vlaneseq
    %v9055 = vshrl.u32 %v9054, 7
    %v9056 = vsub.s32 1, %v9055
    %v9057 = vrot.slane %v9019, %v9056
    %v9058 = vlaneseq
    %v9059 = vshrl.u32 %v9058, 7
    %v9060 = vsub.s32 2, %v9059
    %v9061 = vrot.slane %v9019, %v9060
    %v9062 = vlaneseq
    %v9063 = vshrl.u32 %v9062, 7
    %v9064 = vsub.s32 3, %v9063
    %v9065 = vrot.slane %v9019, %v9064
    %v9066 = vlaneseq
    %v9067 = vshrl.u32 %v9066, 7
    %v9068 = vsub.s32 4, %v9067
    %v9069 = vrot.slane %v9019, %v9068
    %v9070 = vlaneseq
    %v9071 = vshrl.u32 %v9070, 7
    %v9072 = vsub.s32 5, %v9071
    %v9073 = vrot.slane %v9019, %v9072
    %v9074 = vlaneseq
    %v9075 = vshrl.u32 %v9074, 7
    %v9076 = vsub.s32 6, %v9075
    %v9077 = vrot.slane %v9019, %v9076
    %v9092 = vsub.f32 %v8886, %v9025
    %v9093 = vsub.f32 %v8887, %v9029
    %v9094 = vsub.f32 %v8888, %v9033
    %v9095 = vsub.f32 %v8889, %v9037
    %v9096 = vsub.f32 %v8890, %v9041
    %v9097 = vsub.f32 %v8891, %v9045
    %v9098 = vsub.f32 %v8892, %v9049
    %v9099 = vsub.f32 %v8893, %v9053
    %v9100 = vsub.f32 %v8894, %v9057
    %v9101 = vsub.f32 %v8895, %v9061
    %v9102 = vsub.f32 %v8896, %v9065
    %v9103 = vsub.f32 %v8897, %v9069
    %v9104 = vsub.f32 %v8898, %v9073
    %v9105 = vsub.f32 %v8899, %v9077
    %v9106 = vmul.f32 %v9092, %v9092
    %v9107 = vmul.f32 %v9093, %v9093
    %v9108 = vmul.f32 %v9094, %v9094
    %v9109 = vmul.f32 %v9095, %v9095
    %v9110 = vmul.f32 %v9096, %v9096
    %v9111 = vmul.f32 %v9097, %v9097
    %v9112 = vmul.f32 %v9098, %v9098
    %v9113 = vmul.f32 %v9099, %v9099
    %v9114 = vmul.f32 %v9100, %v9100
    %v9115 = vmul.f32 %v9101, %v9101
    %v9116 = vmul.f32 %v9102, %v9102
    %v9117 = vmul.f32 %v9103, %v9103
    %v9118 = vmul.f32 %v9104, %v9104
    %v9119 = vmul.f32 %v9105, %v9105
    %v9134 = vcombine.low %v9106, %v9107
    %v9135 = vcombine.low %v9108, %v9109
    %v9136 = vcombine.low %v9110, %v9111
    %v9138 = vunpack.c.l.s4 1966171168
    %v9139 = vunpack.c.0.s8 %v9138
    %v9140 = vlaneseq
    %v9141 = vshrl.u32 %v9140, 7
    %v9142 = vsub.s32 %v9139, %v9141
    %v9143 = vrot.slane %v9134, %v9142
    %v9145 = vunpack.c.l.s4 1966171168
    %v9146 = vunpack.c.0.s8 %v9145
    %v9147 = vlaneseq
    %v9148 = vshrl.u32 %v9147, 7
    %v9149 = vsub.s32 %v9146, %v9148
    %v9150 = vrot.slane %v9135, %v9149
    %v9152 = vunpack.c.l.s4 1966171168
    %v9153 = vunpack.c.0.s8 %v9152
    %v9154 = vlaneseq
    %v9155 = vshrl.u32 %v9154, 7
    %v9156 = vsub.s32 %v9153, %v9155
    %v9157 = vrot.slane %v9136, %v9156
    %v9159 = vunpack.c.l.s4 1966171168
    %v9160 = vunpack.c.0.s8 %v9159
    %v9161 = vlaneseq
    %v9162 = vshrl.u32 %v9161, 7
    %v9163 = vsub.s32 %v9160, %v9162
    %v9164 = vrot.slane %v9112, %v9163
    %v9165 = vcombine.low %v9143, %v9150
    %v9166 = vcombine.low %v9157, %v9164
    %v9168 = vunpack.c.l.s4 1966171168
    %v9169 = vunpack.c.0.s8 %v9168
    %v9170 = vlaneseq
    %v9171 = vshrl.u32 %v9170, 7
    %v9172 = vsub.s32 %v9169, %v9171
    %v9173 = vrot.slane %v9165, %v9172
    %v9175 = vunpack.c.l.s4 1966171168
    %v9176 = vunpack.c.0.s8 %v9175
    %v9177 = vlaneseq
    %v9178 = vshrl.u32 %v9177, 7
    %v9179 = vsub.s32 %v9176, %v9178
    %v9180 = vrot.slane %v9166, %v9179
    %v9181 = vcombine.low %v9173, %v9180
    %v9182 = vcombine.low %v9113, %v9114
    %v9183 = vcombine.low %v9115, %v9116
    %v9184 = vcombine.low %v9117, %v9118
    %v9186 = vunpack.c.l.s4 1966171168
    %v9187 = vunpack.c.0.s8 %v9186
    %v9188 = vlaneseq
    %v9189 = vshrl.u32 %v9188, 7
    %v9190 = vsub.s32 %v9187, %v9189
    %v9191 = vrot.slane %v9182, %v9190
    %v9193 = vunpack.c.l.s4 1966171168
    %v9194 = vunpack.c.0.s8 %v9193
    %v9195 = vlaneseq
    %v9196 = vshrl.u32 %v9195, 7
    %v9197 = vsub.s32 %v9194, %v9196
    %v9198 = vrot.slane %v9183, %v9197
    %v9200 = vunpack.c.l.s4 1966171168
    %v9201 = vunpack.c.0.s8 %v9200
    %v9202 = vlaneseq
    %v9203 = vshrl.u32 %v9202, 7
    %v9204 = vsub.s32 %v9201, %v9203
    %v9205 = vrot.slane %v9184, %v9204
    %v9207 = vunpack.c.l.s4 1966171168
    %v9208 = vunpack.c.0.s8 %v9207
    %v9209 = vlaneseq
    %v9210 = vshrl.u32 %v9209, 7
    %v9211 = vsub.s32 %v9208, %v9210
    %v9212 = vrot.slane %v9119, %v9211
    %v9213 = vcombine.low %v9191, %v9198
    %v9214 = vcombine.low %v9205, %v9212
    %v9216 = vunpack.c.l.s4 1966171168
    %v9217 = vunpack.c.0.s8 %v9216
    %v9218 = vlaneseq
    %v9219 = vshrl.u32 %v9218, 7
    %v9220 = vsub.s32 %v9217, %v9219
    %v9221 = vrot.slane %v9213, %v9220
    %v9223 = vunpack.c.l.s4 1966171168
    %v9224 = vunpack.c.0.s8 %v9223
    %v9225 = vlaneseq
    %v9226 = vshrl.u32 %v9225, 7
    %v9227 = vsub.s32 %v9224, %v9226
    %v9228 = vrot.slane %v9214, %v9227
    %v9229 = vcombine.low %v9221, %v9228
    %v9232 = vsel %vm3080, %v9181, 0.0
    %9233 = vadd.xlane.f32.xlu0 %v9232
    %v9234 = vpop.xlane.xlu0 %9233
    %v9235 = vsel %vm3080, %v9229, 0.0
    %9236 = vadd.xlane.f32.xlu0 %v9235
    %v9237 = vpop.xlane.xlu0 %9236
    %v9238 = vmul.f32 %v9234, %v3087
    %v9239 = vmul.f32 %v9237, %v3087
    %v9240 = vadd.f32 %v9238, 1e-05
    %v9241 = vadd.f32 %v9239, 1e-05
    %v9242 = vrsqrt.pop %v9240
    %v9243 = vrsqrt.pop %v9241
    %v9246 = vlaneseq
    %v9247 = vshrl.u32 %v9246, 7
    %v9248 = vsub.s32 0, %v9247
    %v9249 = vrot.slane %v9242, %v9248
    %v9250 = vlaneseq
    %v9251 = vshrl.u32 %v9250, 7
    %v9252 = vsub.s32 1, %v9251
    %v9253 = vrot.slane %v9242, %v9252
    %v9254 = vlaneseq
    %v9255 = vshrl.u32 %v9254, 7
    %v9256 = vsub.s32 2, %v9255
    %v9257 = vrot.slane %v9242, %v9256
    %v9258 = vlaneseq
    %v9259 = vshrl.u32 %v9258, 7
    %v9260 = vsub.s32 3, %v9259
    %v9261 = vrot.slane %v9242, %v9260
    %v9262 = vlaneseq
    %v9263 = vshrl.u32 %v9262, 7
    %v9264 = vsub.s32 4, %v9263
    %v9265 = vrot.slane %v9242, %v9264
    %v9266 = vlaneseq
    %v9267 = vshrl.u32 %v9266, 7
    %v9268 = vsub.s32 5, %v9267
    %v9269 = vrot.slane %v9242, %v9268
    %v9270 = vlaneseq
    %v9271 = vshrl.u32 %v9270, 7
    %v9272 = vsub.s32 6, %v9271
    %v9273 = vrot.slane %v9242, %v9272
    %v9274 = vlaneseq
    %v9275 = vshrl.u32 %v9274, 7
    %v9276 = vsub.s32 0, %v9275
    %v9277 = vrot.slane %v9243, %v9276
    %v9278 = vlaneseq
    %v9279 = vshrl.u32 %v9278, 7
    %v9280 = vsub.s32 1, %v9279
    %v9281 = vrot.slane %v9243, %v9280
    %v9282 = vlaneseq
    %v9283 = vshrl.u32 %v9282, 7
    %v9284 = vsub.s32 2, %v9283
    %v9285 = vrot.slane %v9243, %v9284
    %v9286 = vlaneseq
    %v9287 = vshrl.u32 %v9286, 7
    %v9288 = vsub.s32 3, %v9287
    %v9289 = vrot.slane %v9243, %v9288
    %v9290 = vlaneseq
    %v9291 = vshrl.u32 %v9290, 7
    %v9292 = vsub.s32 4, %v9291
    %v9293 = vrot.slane %v9243, %v9292
    %v9294 = vlaneseq
    %v9295 = vshrl.u32 %v9294, 7
    %v9296 = vsub.s32 5, %v9295
    %v9297 = vrot.slane %v9243, %v9296
    %v9298 = vlaneseq
    %v9299 = vshrl.u32 %v9298, 7
    %v9300 = vsub.s32 6, %v9299
    %v9301 = vrot.slane %v9243, %v9300
    %v9316 = vmul.f32 %v9092, %v9249
    %v9317 = vmul.f32 %v9093, %v9253
    %v9318 = vmul.f32 %v9094, %v9257
    %v9319 = vmul.f32 %v9095, %v9261
    %v9320 = vmul.f32 %v9096, %v9265
    %v9321 = vmul.f32 %v9097, %v9269
    %v9322 = vmul.f32 %v9098, %v9273
    %v9323 = vmul.f32 %v9099, %v9277
    %v9324 = vmul.f32 %v9100, %v9281
    %v9325 = vmul.f32 %v9101, %v9285
    %v9326 = vmul.f32 %v9102, %v9289
    %v9327 = vmul.f32 %v9103, %v9293
    %v9328 = vmul.f32 %v9104, %v9297
    %v9329 = vmul.f32 %v9105, %v9301
    %v9330 = vlaneseq
    %v9331 = vshrl.u32 %v9330, 7
    %v9332 = vsub.s32 6, %v9331
    %v9333 = vrot.slane %v623, %v9332
    %v9335 = vcombine.high %v9333, %v9333
    %v9337 = vunpack.c.l.s4 1966171168
    %v9338 = vunpack.c.0.s8 %v9337
    %v9339 = vlaneseq
    %v9340 = vshrl.u32 %v9339, 7
    %v9341 = vsub.s32 %v9338, %v9340
    %v9342 = vrot.slane %v9333, %v9341
    %v9344 = vunpack.c.l.s4 1966171168
    %v9345 = vunpack.c.0.s8 %v9344
    %v9346 = vlaneseq
    %v9347 = vshrl.u32 %v9346, 7
    %v9348 = vsub.s32 %v9345, %v9347
    %v9349 = vrot.slane %v9335, %v9348
    %v9350 = vcombine.high %v9342, %v9342
    %v9351 = vcombine.high %v9349, %v9349
    %v9353 = vunpack.c.l.s4 1966171168
    %v9354 = vunpack.c.0.s8 %v9353
    %v9355 = vlaneseq
    %v9356 = vshrl.u32 %v9355, 7
    %v9357 = vsub.s32 %v9354, %v9356
    %v9358 = vrot.slane %v9342, %v9357
    %v9360 = vunpack.c.l.s4 1966171168
    %v9361 = vunpack.c.0.s8 %v9360
    %v9362 = vlaneseq
    %v9363 = vshrl.u32 %v9362, 7
    %v9364 = vsub.s32 %v9361, %v9363
    %v9365 = vrot.slane %v9349, %v9364
    %v9367 = vunpack.c.l.s4 1966171168
    %v9368 = vunpack.c.0.s8 %v9367
    %v9369 = vlaneseq
    %v9370 = vshrl.u32 %v9369, 7
    %v9371 = vsub.s32 %v9368, %v9370
    %v9372 = vrot.slane %v9350, %v9371
    %v9374 = vunpack.c.l.s4 1966171168
    %v9375 = vunpack.c.0.s8 %v9374
    %v9376 = vlaneseq
    %v9377 = vshrl.u32 %v9376, 7
    %v9378 = vsub.s32 %v9375, %v9377
    %v9379 = vrot.slane %v9351, %v9378
    %v9380 = vcombine.high %v9358, %v9358
    %v9381 = vcombine.high %v9365, %v9365
    %v9382 = vcombine.high %v9372, %v9372
    %v9390 = vmul.f32 %v9316, %v9358
    %v9391 = vmul.f32 %v9317, %v9372
    %v9392 = vmul.f32 %v9318, %v9380
    %v9393 = vmul.f32 %v9319, %v9382
    %v9394 = vmul.f32 %v9320, %v9365
    %v9395 = vmul.f32 %v9321, %v9379
    %v9396 = vmul.f32 %v9322, %v9381
    %v9397 = vmul.f32 %v9323, %v9358
    %v9398 = vmul.f32 %v9324, %v9372
    %v9399 = vmul.f32 %v9325, %v9380
    %v9400 = vmul.f32 %v9326, %v9382
    %v9401 = vmul.f32 %v9327, %v9365
    %v9402 = vmul.f32 %v9328, %v9379
    %v9403 = vmul.f32 %v9329, %v9381
    %v9404 = vlaneseq
    %v9405 = vshrl.u32 %v9404, 7
    %v9406 = vsub.s32 7, %v9405
    %v9407 = vrot.slane %v623, %v9406
    %v9409 = vcombine.high %v9407, %v9407
    %v9411 = vunpack.c.l.s4 1966171168
    %v9412 = vunpack.c.0.s8 %v9411
    %v9413 = vlaneseq
    %v9414 = vshrl.u32 %v9413, 7
    %v9415 = vsub.s32 %v9412, %v9414
    %v9416 = vrot.slane %v9407, %v9415
    %v9418 = vunpack.c.l.s4 1966171168
    %v9419 = vunpack.c.0.s8 %v9418
    %v9420 = vlaneseq
    %v9421 = vshrl.u32 %v9420, 7
    %v9422 = vsub.s32 %v9419, %v9421
    %v9423 = vrot.slane %v9409, %v9422
    %v9424 = vcombine.high %v9416, %v9416
    %v9425 = vcombine.high %v9423, %v9423
    %v9427 = vunpack.c.l.s4 1966171168
    %v9428 = vunpack.c.0.s8 %v9427
    %v9429 = vlaneseq
    %v9430 = vshrl.u32 %v9429, 7
    %v9431 = vsub.s32 %v9428, %v9430
    %v9432 = vrot.slane %v9416, %v9431
    %v9434 = vunpack.c.l.s4 1966171168
    %v9435 = vunpack.c.0.s8 %v9434
    %v9436 = vlaneseq
    %v9437 = vshrl.u32 %v9436, 7
    %v9438 = vsub.s32 %v9435, %v9437
    %v9439 = vrot.slane %v9423, %v9438
    %v9441 = vunpack.c.l.s4 1966171168
    %v9442 = vunpack.c.0.s8 %v9441
    %v9443 = vlaneseq
    %v9444 = vshrl.u32 %v9443, 7
    %v9445 = vsub.s32 %v9442, %v9444
    %v9446 = vrot.slane %v9424, %v9445
    %v9448 = vunpack.c.l.s4 1966171168
    %v9449 = vunpack.c.0.s8 %v9448
    %v9450 = vlaneseq
    %v9451 = vshrl.u32 %v9450, 7
    %v9452 = vsub.s32 %v9449, %v9451
    %v9453 = vrot.slane %v9425, %v9452
    %v9454 = vcombine.high %v9432, %v9432
    %v9455 = vcombine.high %v9439, %v9439
    %v9456 = vcombine.high %v9446, %v9446
    %v9464 = vadd.f32 %v9390, %v9432
    %v9465 = vadd.f32 %v9391, %v9446
    %v9466 = vadd.f32 %v9392, %v9454
    %v9467 = vadd.f32 %v9393, %v9456
    %v9468 = vadd.f32 %v9394, %v9439
    %v9469 = vadd.f32 %v9395, %v9453
    %v9470 = vadd.f32 %v9396, %v9455
    %v9471 = vadd.f32 %v9397, %v9432
    %v9472 = vadd.f32 %v9398, %v9446
    %v9473 = vadd.f32 %v9399, %v9454
    %v9474 = vadd.f32 %v9400, %v9456
    %v9475 = vadd.f32 %v9401, %v9439
    %v9476 = vadd.f32 %v9402, %v9453
    %v9477 = vadd.f32 %v9403, %v9455
    %v9492 = vcombine.low %v9464, %v9465
    %v9493 = vcombine.low %v9466, %v9467
    %v9494 = vcombine.low %v9468, %v9469
    %v9496 = vunpack.c.l.s4 1966171168
    %v9497 = vunpack.c.0.s8 %v9496
    %v9498 = vlaneseq
    %v9499 = vshrl.u32 %v9498, 7
    %v9500 = vsub.s32 %v9497, %v9499
    %v9501 = vrot.slane %v9492, %v9500
    %v9503 = vunpack.c.l.s4 1966171168
    %v9504 = vunpack.c.0.s8 %v9503
    %v9505 = vlaneseq
    %v9506 = vshrl.u32 %v9505, 7
    %v9507 = vsub.s32 %v9504, %v9506
    %v9508 = vrot.slane %v9493, %v9507
    %v9510 = vunpack.c.l.s4 1966171168
    %v9511 = vunpack.c.0.s8 %v9510
    %v9512 = vlaneseq
    %v9513 = vshrl.u32 %v9512, 7
    %v9514 = vsub.s32 %v9511, %v9513
    %v9515 = vrot.slane %v9494, %v9514
    %v9517 = vunpack.c.l.s4 1966171168
    %v9518 = vunpack.c.0.s8 %v9517
    %v9519 = vlaneseq
    %v9520 = vshrl.u32 %v9519, 7
    %v9521 = vsub.s32 %v9518, %v9520
    %v9522 = vrot.slane %v9470, %v9521
    %v9523 = vcombine.low %v9501, %v9508
    %v9524 = vcombine.low %v9515, %v9522
    %v9526 = vunpack.c.l.s4 1966171168
    %v9527 = vunpack.c.0.s8 %v9526
    %v9528 = vlaneseq
    %v9529 = vshrl.u32 %v9528, 7
    %v9530 = vsub.s32 %v9527, %v9529
    %v9531 = vrot.slane %v9523, %v9530
    %v9533 = vunpack.c.l.s4 1966171168
    %v9534 = vunpack.c.0.s8 %v9533
    %v9535 = vlaneseq
    %v9536 = vshrl.u32 %v9535, 7
    %v9537 = vsub.s32 %v9534, %v9536
    %v9538 = vrot.slane %v9524, %v9537
    %v9539 = vcombine.low %v9531, %v9538
    %v9540 = vcombine.low %v9471, %v9472
    %v9541 = vcombine.low %v9473, %v9474
    %v9542 = vcombine.low %v9475, %v9476
    %v9544 = vunpack.c.l.s4 1966171168
    %v9545 = vunpack.c.0.s8 %v9544
    %v9546 = vlaneseq
    %v9547 = vshrl.u32 %v9546, 7
    %v9548 = vsub.s32 %v9545, %v9547
    %v9549 = vrot.slane %v9540, %v9548
    %v9551 = vunpack.c.l.s4 1966171168
    %v9552 = vunpack.c.0.s8 %v9551
    %v9553 = vlaneseq
    %v9554 = vshrl.u32 %v9553, 7
    %v9555 = vsub.s32 %v9552, %v9554
    %v9556 = vrot.slane %v9541, %v9555
    %v9558 = vunpack.c.l.s4 1966171168
    %v9559 = vunpack.c.0.s8 %v9558
    %v9560 = vlaneseq
    %v9561 = vshrl.u32 %v9560, 7
    %v9562 = vsub.s32 %v9559, %v9561
    %v9563 = vrot.slane %v9542, %v9562
    %v9565 = vunpack.c.l.s4 1966171168
    %v9566 = vunpack.c.0.s8 %v9565
    %v9567 = vlaneseq
    %v9568 = vshrl.u32 %v9567, 7
    %v9569 = vsub.s32 %v9566, %v9568
    %v9570 = vrot.slane %v9477, %v9569
    %v9571 = vcombine.low %v9549, %v9556
    %v9572 = vcombine.low %v9563, %v9570
    %v9574 = vunpack.c.l.s4 1966171168
    %v9575 = vunpack.c.0.s8 %v9574
    %v9576 = vlaneseq
    %v9577 = vshrl.u32 %v9576, 7
    %v9578 = vsub.s32 %v9575, %v9577
    %v9579 = vrot.slane %v9571, %v9578
    %v9581 = vunpack.c.l.s4 1966171168
    %v9582 = vunpack.c.0.s8 %v9581
    %v9583 = vlaneseq
    %v9584 = vshrl.u32 %v9583, 7
    %v9585 = vsub.s32 %v9582, %v9584
    %v9586 = vrot.slane %v9572, %v9585
    %v9587 = vcombine.low %v9579, %v9586
    %v9590 = vsel %vm3080, %v9539, 0.0
    %9591 = vadd.xlane.f32.xlu0 %v9590
    %v9592 = vpop.xlane.xlu0 %9591
    %v9593 = vsel %vm3080, %v9587, 0.0
    %9594 = vadd.xlane.f32.xlu0 %v9593
    %v9595 = vpop.xlane.xlu0 %9594
    %v9596 = vmul.f32 %v9592, %v3087
    %v9597 = vmul.f32 %v9595, %v3087
    %v9600 = vlaneseq
    %v9601 = vshrl.u32 %v9600, 7
    %v9602 = vsub.s32 0, %v9601
    %v9603 = vrot.slane %v9596, %v9602
    %v9604 = vlaneseq
    %v9605 = vshrl.u32 %v9604, 7
    %v9606 = vsub.s32 1, %v9605
    %v9607 = vrot.slane %v9596, %v9606
    %v9608 = vlaneseq
    %v9609 = vshrl.u32 %v9608, 7
    %v9610 = vsub.s32 2, %v9609
    %v9611 = vrot.slane %v9596, %v9610
    %v9612 = vlaneseq
    %v9613 = vshrl.u32 %v9612, 7
    %v9614 = vsub.s32 3, %v9613
    %v9615 = vrot.slane %v9596, %v9614
    %v9616 = vlaneseq
    %v9617 = vshrl.u32 %v9616, 7
    %v9618 = vsub.s32 4, %v9617
    %v9619 = vrot.slane %v9596, %v9618
    %v9620 = vlaneseq
    %v9621 = vshrl.u32 %v9620, 7
    %v9622 = vsub.s32 5, %v9621
    %v9623 = vrot.slane %v9596, %v9622
    %v9624 = vlaneseq
    %v9625 = vshrl.u32 %v9624, 7
    %v9626 = vsub.s32 6, %v9625
    %v9627 = vrot.slane %v9596, %v9626
    %v9628 = vlaneseq
    %v9629 = vshrl.u32 %v9628, 7
    %v9630 = vsub.s32 0, %v9629
    %v9631 = vrot.slane %v9597, %v9630
    %v9632 = vlaneseq
    %v9633 = vshrl.u32 %v9632, 7
    %v9634 = vsub.s32 1, %v9633
    %v9635 = vrot.slane %v9597, %v9634
    %v9636 = vlaneseq
    %v9637 = vshrl.u32 %v9636, 7
    %v9638 = vsub.s32 2, %v9637
    %v9639 = vrot.slane %v9597, %v9638
    %v9640 = vlaneseq
    %v9641 = vshrl.u32 %v9640, 7
    %v9642 = vsub.s32 3, %v9641
    %v9643 = vrot.slane %v9597, %v9642
    %v9644 = vlaneseq
    %v9645 = vshrl.u32 %v9644, 7
    %v9646 = vsub.s32 4, %v9645
    %v9647 = vrot.slane %v9597, %v9646
    %v9648 = vlaneseq
    %v9649 = vshrl.u32 %v9648, 7
    %v9650 = vsub.s32 5, %v9649
    %v9651 = vrot.slane %v9597, %v9650
    %v9652 = vlaneseq
    %v9653 = vshrl.u32 %v9652, 7
    %v9654 = vsub.s32 6, %v9653
    %v9655 = vrot.slane %v9597, %v9654
    %v9670 = vsub.f32 %v9464, %v9603
    %v9671 = vsub.f32 %v9465, %v9607
    %v9672 = vsub.f32 %v9466, %v9611
    %v9673 = vsub.f32 %v9467, %v9615
    %v9674 = vsub.f32 %v9468, %v9619
    %v9675 = vsub.f32 %v9469, %v9623
    %v9676 = vsub.f32 %v9470, %v9627
    %v9677 = vsub.f32 %v9471, %v9631
    %v9678 = vsub.f32 %v9472, %v9635
    %v9679 = vsub.f32 %v9473, %v9639
    %v9680 = vsub.f32 %v9474, %v9643
    %v9681 = vsub.f32 %v9475, %v9647
    %v9682 = vsub.f32 %v9476, %v9651
    %v9683 = vsub.f32 %v9477, %v9655
    %v9684 = vmul.f32 %v9670, %v9670
    %v9685 = vmul.f32 %v9671, %v9671
    %v9686 = vmul.f32 %v9672, %v9672
    %v9687 = vmul.f32 %v9673, %v9673
    %v9688 = vmul.f32 %v9674, %v9674
    %v9689 = vmul.f32 %v9675, %v9675
    %v9690 = vmul.f32 %v9676, %v9676
    %v9691 = vmul.f32 %v9677, %v9677
    %v9692 = vmul.f32 %v9678, %v9678
    %v9693 = vmul.f32 %v9679, %v9679
    %v9694 = vmul.f32 %v9680, %v9680
    %v9695 = vmul.f32 %v9681, %v9681
    %v9696 = vmul.f32 %v9682, %v9682
    %v9697 = vmul.f32 %v9683, %v9683
    %v9712 = vcombine.low %v9684, %v9685
    %v9713 = vcombine.low %v9686, %v9687
    %v9714 = vcombine.low %v9688, %v9689
    %v9716 = vunpack.c.l.s4 1966171168
    %v9717 = vunpack.c.0.s8 %v9716
    %v9718 = vlaneseq
    %v9719 = vshrl.u32 %v9718, 7
    %v9720 = vsub.s32 %v9717, %v9719
    %v9721 = vrot.slane %v9712, %v9720
    %v9723 = vunpack.c.l.s4 1966171168
    %v9724 = vunpack.c.0.s8 %v9723
    %v9725 = vlaneseq
    %v9726 = vshrl.u32 %v9725, 7
    %v9727 = vsub.s32 %v9724, %v9726
    %v9728 = vrot.slane %v9713, %v9727
    %v9730 = vunpack.c.l.s4 1966171168
    %v9731 = vunpack.c.0.s8 %v9730
    %v9732 = vlaneseq
    %v9733 = vshrl.u32 %v9732, 7
    %v9734 = vsub.s32 %v9731, %v9733
    %v9735 = vrot.slane %v9714, %v9734
    %v9737 = vunpack.c.l.s4 1966171168
    %v9738 = vunpack.c.0.s8 %v9737
    %v9739 = vlaneseq
    %v9740 = vshrl.u32 %v9739, 7
    %v9741 = vsub.s32 %v9738, %v9740
    %v9742 = vrot.slane %v9690, %v9741
    %v9743 = vcombine.low %v9721, %v9728
    %v9744 = vcombine.low %v9735, %v9742
    %v9746 = vunpack.c.l.s4 1966171168
    %v9747 = vunpack.c.0.s8 %v9746
    %v9748 = vlaneseq
    %v9749 = vshrl.u32 %v9748, 7
    %v9750 = vsub.s32 %v9747, %v9749
    %v9751 = vrot.slane %v9743, %v9750
    %v9753 = vunpack.c.l.s4 1966171168
    %v9754 = vunpack.c.0.s8 %v9753
    %v9755 = vlaneseq
    %v9756 = vshrl.u32 %v9755, 7
    %v9757 = vsub.s32 %v9754, %v9756
    %v9758 = vrot.slane %v9744, %v9757
    %v9759 = vcombine.low %v9751, %v9758
    %v9760 = vcombine.low %v9691, %v9692
    %v9761 = vcombine.low %v9693, %v9694
    %v9762 = vcombine.low %v9695, %v9696
    %v9764 = vunpack.c.l.s4 1966171168
    %v9765 = vunpack.c.0.s8 %v9764
    %v9766 = vlaneseq
    %v9767 = vshrl.u32 %v9766, 7
    %v9768 = vsub.s32 %v9765, %v9767
    %v9769 = vrot.slane %v9760, %v9768
    %v9771 = vunpack.c.l.s4 1966171168
    %v9772 = vunpack.c.0.s8 %v9771
    %v9773 = vlaneseq
    %v9774 = vshrl.u32 %v9773, 7
    %v9775 = vsub.s32 %v9772, %v9774
    %v9776 = vrot.slane %v9761, %v9775
    %v9778 = vunpack.c.l.s4 1966171168
    %v9779 = vunpack.c.0.s8 %v9778
    %v9780 = vlaneseq
    %v9781 = vshrl.u32 %v9780, 7
    %v9782 = vsub.s32 %v9779, %v9781
    %v9783 = vrot.slane %v9762, %v9782
    %v9785 = vunpack.c.l.s4 1966171168
    %v9786 = vunpack.c.0.s8 %v9785
    %v9787 = vlaneseq
    %v9788 = vshrl.u32 %v9787, 7
    %v9789 = vsub.s32 %v9786, %v9788
    %v9790 = vrot.slane %v9697, %v9789
    %v9791 = vcombine.low %v9769, %v9776
    %v9792 = vcombine.low %v9783, %v9790
    %v9794 = vunpack.c.l.s4 1966171168
    %v9795 = vunpack.c.0.s8 %v9794
    %v9796 = vlaneseq
    %v9797 = vshrl.u32 %v9796, 7
    %v9798 = vsub.s32 %v9795, %v9797
    %v9799 = vrot.slane %v9791, %v9798
    %v9801 = vunpack.c.l.s4 1966171168
    %v9802 = vunpack.c.0.s8 %v9801
    %v9803 = vlaneseq
    %v9804 = vshrl.u32 %v9803, 7
    %v9805 = vsub.s32 %v9802, %v9804
    %v9806 = vrot.slane %v9792, %v9805
    %v9807 = vcombine.low %v9799, %v9806
    %v9810 = vsel %vm3080, %v9759, 0.0
    %9811 = vadd.xlane.f32.xlu0 %v9810
    %v9812 = vpop.xlane.xlu0 %9811
    %v9813 = vsel %vm3080, %v9807, 0.0
    %9814 = vadd.xlane.f32.xlu0 %v9813
    %v9815 = vpop.xlane.xlu0 %9814
    %v9816 = vmul.f32 %v9812, %v3087
    %v9817 = vmul.f32 %v9815, %v3087
    %v9818 = vadd.f32 %v9816, 1e-05
    %v9819 = vadd.f32 %v9817, 1e-05
    %v9820 = vrsqrt.pop %v9818
    %v9821 = vrsqrt.pop %v9819
    %v9824 = vlaneseq
    %v9825 = vshrl.u32 %v9824, 7
    %v9826 = vsub.s32 0, %v9825
    %v9827 = vrot.slane %v9820, %v9826
    %v9828 = vlaneseq
    %v9829 = vshrl.u32 %v9828, 7
    %v9830 = vsub.s32 1, %v9829
    %v9831 = vrot.slane %v9820, %v9830
    %v9832 = vlaneseq
    %v9833 = vshrl.u32 %v9832, 7
    %v9834 = vsub.s32 2, %v9833
    %v9835 = vrot.slane %v9820, %v9834
    %v9836 = vlaneseq
    %v9837 = vshrl.u32 %v9836, 7
    %v9838 = vsub.s32 3, %v9837
    %v9839 = vrot.slane %v9820, %v9838
    %v9840 = vlaneseq
    %v9841 = vshrl.u32 %v9840, 7
    %v9842 = vsub.s32 0, %v9841
    %v9843 = vrot.slane %v9821, %v9842
    %v9844 = vlaneseq
    %v9845 = vshrl.u32 %v9844, 7
    %v9846 = vsub.s32 1, %v9845
    %v9847 = vrot.slane %v9821, %v9846
    %v9848 = vlaneseq
    %v9849 = vshrl.u32 %v9848, 7
    %v9850 = vsub.s32 2, %v9849
    %v9851 = vrot.slane %v9821, %v9850
    %v9852 = vlaneseq
    %v9853 = vshrl.u32 %v9852, 7
    %v9854 = vsub.s32 3, %v9853
    %v9855 = vrot.slane %v9821, %v9854
    %v9864 = vmul.f32 %v9670, %v9827
    %v9865 = vmul.f32 %v9671, %v9831
    %v9866 = vmul.f32 %v9672, %v9835
    %v9867 = vmul.f32 %v9673, %v9839
    %v9868 = vmul.f32 %v9677, %v9843
    %v9869 = vmul.f32 %v9678, %v9847
    %v9870 = vmul.f32 %v9679, %v9851
    %v9871 = vmul.f32 %v9680, %v9855
    %v9872 = vlaneseq
    %v9873 = vshrl.u32 %v9872, 7
    %v9874 = vsub.s32 0, %v9873
    %v9875 = vrot.slane %v624, %v9874
    %v9878 = vunpack.c.l.s4 1966171168
    %v9879 = vunpack.c.0.s8 %v9878
    %v9880 = vlaneseq
    %v9881 = vshrl.u32 %v9880, 7
    %v9882 = vsub.s32 %v9879, %v9881
    %v9883 = vrot.slane %v9875, %v9882
    %v9884 = vcombine.high %v9883, %v9883
    %v9886 = vunpack.c.l.s4 1966171168
    %v9887 = vunpack.c.0.s8 %v9886
    %v9888 = vlaneseq
    %v9889 = vshrl.u32 %v9888, 7
    %v9890 = vsub.s32 %v9887, %v9889
    %v9891 = vrot.slane %v9883, %v9890
    %v9893 = vunpack.c.l.s4 1966171168
    %v9894 = vunpack.c.0.s8 %v9893
    %v9895 = vlaneseq
    %v9896 = vshrl.u32 %v9895, 7
    %v9897 = vsub.s32 %v9894, %v9896
    %v9898 = vrot.slane %v9884, %v9897
    %v9899 = vcombine.high %v9891, %v9891
    %v9900 = vcombine.high %v9898, %v9898
    %v9905 = vmul.f32 %v9864, %v9891
    %v9906 = vmul.f32 %v9865, %v9898
    %v9907 = vmul.f32 %v9866, %v9899
    %v9908 = vmul.f32 %v9867, %v9900
    %v9909 = vmul.f32 %v9868, %v9891
    %v9910 = vmul.f32 %v9869, %v9898
    %v9911 = vmul.f32 %v9870, %v9899
    %v9912 = vmul.f32 %v9871, %v9900
    %v9913 = vlaneseq
    %v9914 = vshrl.u32 %v9913, 7
    %v9915 = vsub.s32 1, %v9914
    %v9916 = vrot.slane %v624, %v9915
    %v9919 = vunpack.c.l.s4 1966171168
    %v9920 = vunpack.c.0.s8 %v9919
    %v9921 = vlaneseq
    %v9922 = vshrl.u32 %v9921, 7
    %v9923 = vsub.s32 %v9920, %v9922
    %v9924 = vrot.slane %v9916, %v9923
    %v9925 = vcombine.high %v9924, %v9924
    %v9927 = vunpack.c.l.s4 1966171168
    %v9928 = vunpack.c.0.s8 %v9927
    %v9929 = vlaneseq
    %v9930 = vshrl.u32 %v9929, 7
    %v9931 = vsub.s32 %v9928, %v9930
    %v9932 = vrot.slane %v9924, %v9931
    %v9934 = vunpack.c.l.s4 1966171168
    %v9935 = vunpack.c.0.s8 %v9934
    %v9936 = vlaneseq
    %v9937 = vshrl.u32 %v9936, 7
    %v9938 = vsub.s32 %v9935, %v9937
    %v9939 = vrot.slane %v9925, %v9938
    %v9940 = vcombine.high %v9932, %v9932
    %v9941 = vcombine.high %v9939, %v9939
    %v9946 = vadd.f32 %v9905, %v9932
    %v9947 = vadd.f32 %v9906, %v9939
    %v9948 = vadd.f32 %v9907, %v9940
    %v9949 = vadd.f32 %v9908, %v9941
    %v9950 = vadd.f32 %v9909, %v9932
    %v9951 = vadd.f32 %v9910, %v9939
    %v9952 = vadd.f32 %v9911, %v9940
    %v9953 = vadd.f32 %v9912, %v9941
    %v9954 = vld [vmem:[%s12] sm:$0xff]
    %v9955 = vld [vmem:[%s12 + $0x8] sm:$0xff]
    %v9956 = vld [vmem:[%s12 + $0x10] sm:$0xff]
    %v9957 = vld [vmem:[%s12 + $0x18] sm:$0xff]
    %v9958 = vld [vmem:[%s13] sm:$0x1]
    %v9960 = vlaneseq
    %v9961 = vshrl.u32 %v9960, 7
    %v9962 = vsub.s32 0, %v9961
    %v9963 = vrot.slane %v9958, %v9962
    %v9972 = vcombine.low %v9946, %v9947
    %v9973 = vcombine.low %v9948, %v9949
    %v9974 = vcombine.low %v9950, %v9951
    %v9975 = vcombine.low %v9952, %v9953
    %v9977 = vunpack.c.l.s4 1966171168
    %v9978 = vunpack.c.0.s8 %v9977
    %v9979 = vlaneseq
    %v9980 = vshrl.u32 %v9979, 7
    %v9981 = vsub.s32 %v9978, %v9980
    %v9982 = vrot.slane %v9972, %v9981
    %v9984 = vunpack.c.l.s4 1966171168
    %v9985 = vunpack.c.0.s8 %v9984
    %v9986 = vlaneseq
    %v9987 = vshrl.u32 %v9986, 7
    %v9988 = vsub.s32 %v9985, %v9987
    %v9989 = vrot.slane %v9973, %v9988
    %v9991 = vunpack.c.l.s4 1966171168
    %v9992 = vunpack.c.0.s8 %v9991
    %v9993 = vlaneseq
    %v9994 = vshrl.u32 %v9993, 7
    %v9995 = vsub.s32 %v9992, %v9994
    %v9996 = vrot.slane %v9974, %v9995
    %v9998 = vunpack.c.l.s4 1966171168
    %v9999 = vunpack.c.0.s8 %v9998
    %v10000 = vlaneseq
    %v10001 = vshrl.u32 %v10000, 7
    %v10002 = vsub.s32 %v9999, %v10001
    %v10003 = vrot.slane %v9975, %v10002
    %v10004 = vcombine.low %v9982, %v9989
    %v10005 = vcombine.low %v9996, %v10003
    %v10007 = vunpack.c.l.s4 1966171168
    %v10008 = vunpack.c.0.s8 %v10007
    %v10009 = vlaneseq
    %v10010 = vshrl.u32 %v10009, 7
    %v10011 = vsub.s32 %v10008, %v10010
    %v10012 = vrot.slane %v10004, %v10011
    %v10014 = vunpack.c.l.s4 1966171168
    %v10015 = vunpack.c.0.s8 %v10014
    %v10016 = vlaneseq
    %v10017 = vshrl.u32 %v10016, 7
    %v10018 = vsub.s32 %v10015, %v10017
    %v10019 = vrot.slane %v10005, %v10018
    %v10020 = vcombine.low %v10012, %v10019
    %v10021 = vcombine.low %v9963, %v9963
    %v10023 = vsel %vm722, %v10020, 0
    %10025 = vmatprep.subr.mxu0 0.0
    %10026 = vmatpush1.msra.mxu0 0.0
    %10027 = vmatprep.subr.mxu0 0.0
    %10028 = vmatpush1.msra.mxu0 0.0
    %10029 = vmatprep.subr.mxu0 0.0
    %10030 = vmatpush1.msra.mxu0 0.0
    %10031 = vmatprep.subr.mxu0 0.0
    %10032 = vmatpush1.msra.mxu0 0.0
    %10033 = vmatprep.subr.mxu0 0.0
    %10034 = vmatpush1.msra.mxu0 0.0
    %10035 = vmatprep.subr.mxu0 0.0
    %10036 = vmatpush1.msra.mxu0 0.0
    %10037 = vmatprep.subr.mxu0 0.0
    %10038 = vmatpush1.msra.mxu0 0.0
    %10039 = vmatprep.subr.mxu0 0.0
    %10040 = vmatpush1.msra.mxu0 0.0
    %10041 = vmatprep.subr.mxu0 0.0
    %10042 = vmatpush1.msra.mxu0 0.0
    %10043 = vmatprep.subr.mxu0 0.0
    %10044 = vmatpush1.msra.mxu0 0.0
    %10045 = vmatprep.subr.mxu0 0.0
    %10046 = vmatpush1.msra.mxu0 0.0
    %10047 = vmatprep.subr.mxu0 0.0
    %10048 = vmatpush1.msra.mxu0 0.0
    %10049 = vmatprep.subr.mxu0 0.0
    %v10050 = vand.u32 %v9957, 4294901760
    %10051 = vmatpush1.msra.mxu0 %v10050
    %10052 = vmatprep.subr.mxu0 0.0
    %v10053 = vand.u32 %v9956, 4294901760
    %10054 = vmatpush1.msra.mxu0 %v10053
    %10055 = vmatprep.subr.mxu0 0.0
    %v10056 = vand.u32 %v9955, 4294901760
    %10057 = vmatpush1.msra.mxu0 %v10056
    %10058 = vmatprep.subr.mxu0 0.0
    %v10059 = vand.u32 %v9954, 4294901760
    %10060 = vmatpush1.msra.mxu0 %v10059
    %10061 = vmatprep.subr.mxu0 0.0
    %10062 = vmatpush2.msra.mxu0 0.0
    %10063 = vmatprep.subr.mxu0 0.0
    %10064 = vmatpush2.msra.mxu0 0.0
    %10065 = vmatprep.subr.mxu0 0.0
    %10066 = vmatpush2.msra.mxu0 0.0
    %10067 = vmatprep.subr.mxu0 0.0
    %10068 = vmatpush2.msra.mxu0 0.0
    %10069 = vmatprep.subr.mxu0 0.0
    %10070 = vmatpush2.msra.mxu0 0.0
    %10071 = vmatprep.subr.mxu0 0.0
    %10072 = vmatpush2.msra.mxu0 0.0
    %10073 = vmatprep.subr.mxu0 0.0
    %10074 = vmatpush2.msra.mxu0 0.0
    %10075 = vmatprep.subr.mxu0 0.0
    %10076 = vmatpush2.msra.mxu0 0.0
    %10077 = vmatprep.subr.mxu0 0.0
    %10078 = vmatpush2.msra.mxu0 0.0
    %10079 = vmatprep.subr.mxu0 0.0
    %10080 = vmatpush2.msra.mxu0 0.0
    %10081 = vmatprep.subr.mxu0 0.0
    %10082 = vmatpush2.msra.mxu0 0.0
    %10083 = vmatprep.subr.mxu0 0.0
    %10084 = vmatpush2.msra.mxu0 0.0
    %10085 = vmatprep.subr.mxu0 0.0
    %10086 = vmatpush2.msra.mxu0 0.0
    %10087 = vmatprep.subr.mxu0 0.0
    %10088 = vmatpush2.msra.mxu0 0.0
    %10089 = vmatprep.subr.mxu0 0.0
    %10090 = vmatpush2.msra.mxu0 0.0
    %10091 = vmatprep.subr.mxu0 0.0
    %10092 = vmatpush2.msra.mxu0 0.0
    %10093 = vmatprep.mubr.f32.mxu0 0.0
    %v10094 = vand.u32 %v10023, 4294901760
    %v10095 = vsub.f32 %v10023, %v10094
    %v10096 = vand.u32 %v10095, 4294901760
    %v10097 = vsub.f32 %v10095, %v10096
    %v10098 = vand.u32 %v10097, 4294901760
    %10099 = vmatmul.mubr.f32.gmra.mxu0 %v10098
    %v10100 = vpop.f32.mrf.mxu0
    %v10101 = vadd.f32 %v10021, %v10100
    %v10102 = vpop.f32.mrf.mxu0
    %10103 = vdwg.mxu0
    %10104 = vmatprep.subr.mxu0 0.0
    %10105 = vmatpush1.msra.mxu0 0.0
    %10106 = vmatprep.subr.mxu0 0.0
    %10107 = vmatpush1.msra.mxu0 0.0
    %10108 = vmatprep.subr.mxu0 0.0
    %10109 = vmatpush1.msra.mxu0 0.0
    %10110 = vmatprep.subr.mxu0 0.0
    %10111 = vmatpush1.msra.mxu0 0.0
    %10112 = vmatprep.subr.mxu0 0.0
    %10113 = vmatpush1.msra.mxu0 0.0
    %10114 = vmatprep.subr.mxu0 0.0
    %10115 = vmatpush1.msra.mxu0 0.0
    %10116 = vmatprep.subr.mxu0 0.0
    %10117 = vmatpush1.msra.mxu0 0.0
    %10118 = vmatprep.subr.mxu0 0.0
    %10119 = vmatpush1.msra.mxu0 0.0
    %10120 = vmatprep.subr.mxu0 0.0
    %10121 = vmatpush1.msra.mxu0 0.0
    %10122 = vmatprep.subr.mxu0 0.0
    %10123 = vmatpush1.msra.mxu0 0.0
    %10124 = vmatprep.subr.mxu0 0.0
    %10125 = vmatpush1.msra.mxu0 0.0
    %10126 = vmatprep.subr.mxu0 0.0
    %10127 = vmatpush1.msra.mxu0 0.0
    %10128 = vmatprep.subr.mxu0 0.0
    %v10129 = vand.u32 %v9957, 4294901760
    %v10130 = vsub.f32 %v9957, %v10129
    %v10131 = vand.u32 %v10130, 4294901760
    %v10132 = vsub.f32 %v10130, %v10131
    %v10133 = vand.u32 %v10132, 4294901760
    %10134 = vmatpush1.msra.mxu0 %v10133
    %10135 = vmatprep.subr.mxu0 0.0
    %v10136 = vand.u32 %v9956, 4294901760
    %v10137 = vsub.f32 %v9956, %v10136
    %v10138 = vand.u32 %v10137, 4294901760
    %v10139 = vsub.f32 %v10137, %v10138
    %v10140 = vand.u32 %v10139, 4294901760
    %10141 = vmatpush1.msra.mxu0 %v10140
    %10142 = vmatprep.subr.mxu0 0.0
    %v10143 = vand.u32 %v9955, 4294901760
    %v10144 = vsub.f32 %v9955, %v10143
    %v10145 = vand.u32 %v10144, 4294901760
    %v10146 = vsub.f32 %v10144, %v10145
    %v10147 = vand.u32 %v10146, 4294901760
    %10148 = vmatpush1.msra.mxu0 %v10147
    %10149 = vmatprep.subr.mxu0 0.0
    %v10150 = vand.u32 %v9954, 4294901760
    %v10151 = vsub.f32 %v9954, %v10150
    %v10152 = vand.u32 %v10151, 4294901760
    %v10153 = vsub.f32 %v10151, %v10152
    %v10154 = vand.u32 %v10153, 4294901760
    %10155 = vmatpush1.msra.mxu0 %v10154
    %10156 = vmatprep.subr.mxu0 0.0
    %10157 = vmatpush2.msra.mxu0 0.0
    %10158 = vmatprep.subr.mxu0 0.0
    %10159 = vmatpush2.msra.mxu0 0.0
    %10160 = vmatprep.subr.mxu0 0.0
    %10161 = vmatpush2.msra.mxu0 0.0
    %10162 = vmatprep.subr.mxu0 0.0
    %10163 = vmatpush2.msra.mxu0 0.0
    %10164 = vmatprep.subr.mxu0 0.0
    %10165 = vmatpush2.msra.mxu0 0.0
    %10166 = vmatprep.subr.mxu0 0.0
    %10167 = vmatpush2.msra.mxu0 0.0
    %10168 = vmatprep.subr.mxu0 0.0
    %10169 = vmatpush2.msra.mxu0 0.0
    %10170 = vmatprep.subr.mxu0 0.0
    %10171 = vmatpush2.msra.mxu0 0.0
    %10172 = vmatprep.subr.mxu0 0.0
    %10173 = vmatpush2.msra.mxu0 0.0
    %10174 = vmatprep.subr.mxu0 0.0
    %10175 = vmatpush2.msra.mxu0 0.0
    %10176 = vmatprep.subr.mxu0 0.0
    %10177 = vmatpush2.msra.mxu0 0.0
    %10178 = vmatprep.subr.mxu0 0.0
    %10179 = vmatpush2.msra.mxu0 0.0
    %10180 = vmatprep.subr.mxu0 0.0
    %10181 = vmatpush2.msra.mxu0 0.0
    %10182 = vmatprep.subr.mxu0 0.0
    %10183 = vmatpush2.msra.mxu0 0.0
    %10184 = vmatprep.subr.mxu0 0.0
    %10185 = vmatpush2.msra.mxu0 0.0
    %10186 = vmatprep.subr.mxu0 0.0
    %10187 = vmatpush2.msra.mxu0 0.0
    %10188 = vmatprep.mubr.f32.mxu0 0.0
    %v10189 = vand.u32 %v10023, 4294901760
    %10190 = vmatmul.mubr.f32.gmra.mxu0 %v10189
    %v10191 = vpop.f32.mrf.mxu0
    %v10192 = vadd.f32 %v10101, %v10191
    %v10193 = vpop.f32.mrf.mxu0
    %10194 = vdwg.mxu0
    %10195 = vmatprep.subr.mxu0 0.0
    %10196 = vmatpush1.msra.mxu0 0.0
    %10197 = vmatprep.subr.mxu0 0.0
    %10198 = vmatpush1.msra.mxu0 0.0
    %10199 = vmatprep.subr.mxu0 0.0
    %10200 = vmatpush1.msra.mxu0 0.0
    %10201 = vmatprep.subr.mxu0 0.0
    %10202 = vmatpush1.msra.mxu0 0.0
    %10203 = vmatprep.subr.mxu0 0.0
    %10204 = vmatpush1.msra.mxu0 0.0
    %10205 = vmatprep.subr.mxu0 0.0
    %10206 = vmatpush1.msra.mxu0 0.0
    %10207 = vmatprep.subr.mxu0 0.0
    %10208 = vmatpush1.msra.mxu0 0.0
    %10209 = vmatprep.subr.mxu0 0.0
    %10210 = vmatpush1.msra.mxu0 0.0
    %10211 = vmatprep.subr.mxu0 0.0
    %10212 = vmatpush1.msra.mxu0 0.0
    %10213 = vmatprep.subr.mxu0 0.0
    %10214 = vmatpush1.msra.mxu0 0.0
    %10215 = vmatprep.subr.mxu0 0.0
    %10216 = vmatpush1.msra.mxu0 0.0
    %10217 = vmatprep.subr.mxu0 0.0
    %10218 = vmatpush1.msra.mxu0 0.0
    %10219 = vmatprep.subr.mxu0 0.0
    %v10220 = vand.u32 %v9957, 4294901760
    %v10221 = vsub.f32 %v9957, %v10220
    %10222 = vmatpush1.msra.mxu0 %v10221
    %10223 = vmatprep.subr.mxu0 0.0
    %v10224 = vand.u32 %v9956, 4294901760
    %v10225 = vsub.f32 %v9956, %v10224
    %10226 = vmatpush1.msra.mxu0 %v10225
    %10227 = vmatprep.subr.mxu0 0.0
    %v10228 = vand.u32 %v9955, 4294901760
    %v10229 = vsub.f32 %v9955, %v10228
    %10230 = vmatpush1.msra.mxu0 %v10229
    %10231 = vmatprep.subr.mxu0 0.0
    %v10232 = vand.u32 %v9954, 4294901760
    %v10233 = vsub.f32 %v9954, %v10232
    %10234 = vmatpush1.msra.mxu0 %v10233
    %10235 = vmatprep.subr.mxu0 0.0
    %10236 = vmatpush2.msra.mxu0 0.0
    %10237 = vmatprep.subr.mxu0 0.0
    %10238 = vmatpush2.msra.mxu0 0.0
    %10239 = vmatprep.subr.mxu0 0.0
    %10240 = vmatpush2.msra.mxu0 0.0
    %10241 = vmatprep.subr.mxu0 0.0
    %10242 = vmatpush2.msra.mxu0 0.0
    %10243 = vmatprep.subr.mxu0 0.0
    %10244 = vmatpush2.msra.mxu0 0.0
    %10245 = vmatprep.subr.mxu0 0.0
    %10246 = vmatpush2.msra.mxu0 0.0
    %10247 = vmatprep.subr.mxu0 0.0
    %10248 = vmatpush2.msra.mxu0 0.0
    %10249 = vmatprep.subr.mxu0 0.0
    %10250 = vmatpush2.msra.mxu0 0.0
    %10251 = vmatprep.subr.mxu0 0.0
    %10252 = vmatpush2.msra.mxu0 0.0
    %10253 = vmatprep.subr.mxu0 0.0
    %10254 = vmatpush2.msra.mxu0 0.0
    %10255 = vmatprep.subr.mxu0 0.0
    %10256 = vmatpush2.msra.mxu0 0.0
    %10257 = vmatprep.subr.mxu0 0.0
    %10258 = vmatpush2.msra.mxu0 0.0
    %10259 = vmatprep.subr.mxu0 0.0
    %10260 = vmatpush2.msra.mxu0 0.0
    %10261 = vmatprep.subr.mxu0 0.0
    %10262 = vmatpush2.msra.mxu0 0.0
    %10263 = vmatprep.subr.mxu0 0.0
    %10264 = vmatpush2.msra.mxu0 0.0
    %10265 = vmatprep.subr.mxu0 0.0
    %10266 = vmatpush2.msra.mxu0 0.0
    %10267 = vmatprep.mubr.f32.mxu0 0.0
    %v10268 = vand.u32 %v10023, 4294901760
    %v10269 = vsub.f32 %v10023, %v10268
    %10270 = vmatmul.mubr.f32.gmra.mxu0 %v10269
    %v10271 = vpop.f32.mrf.mxu0
    %v10272 = vadd.f32 %v10192, %v10271
    %v10273 = vpop.f32.mrf.mxu0
    %10274 = vdwg.mxu0
    %10275 = vmatprep.subr.mxu0 0.0
    %10276 = vmatpush1.msra.mxu0 0.0
    %10277 = vmatprep.subr.mxu0 0.0
    %10278 = vmatpush1.msra.mxu0 0.0
    %10279 = vmatprep.subr.mxu0 0.0
    %10280 = vmatpush1.msra.mxu0 0.0
    %10281 = vmatprep.subr.mxu0 0.0
    %10282 = vmatpush1.msra.mxu0 0.0
    %10283 = vmatprep.subr.mxu0 0.0
    %10284 = vmatpush1.msra.mxu0 0.0
    %10285 = vmatprep.subr.mxu0 0.0
    %10286 = vmatpush1.msra.mxu0 0.0
    %10287 = vmatprep.subr.mxu0 0.0
    %10288 = vmatpush1.msra.mxu0 0.0
    %10289 = vmatprep.subr.mxu0 0.0
    %10290 = vmatpush1.msra.mxu0 0.0
    %10291 = vmatprep.subr.mxu0 0.0
    %10292 = vmatpush1.msra.mxu0 0.0
    %10293 = vmatprep.subr.mxu0 0.0
    %10294 = vmatpush1.msra.mxu0 0.0
    %10295 = vmatprep.subr.mxu0 0.0
    %10296 = vmatpush1.msra.mxu0 0.0
    %10297 = vmatprep.subr.mxu0 0.0
    %10298 = vmatpush1.msra.mxu0 0.0
    %10299 = vmatprep.subr.mxu0 0.0
    %v10300 = vand.u32 %v9957, 4294901760
    %10301 = vmatpush1.msra.mxu0 %v10300
    %10302 = vmatprep.subr.mxu0 0.0
    %v10303 = vand.u32 %v9956, 4294901760
    %10304 = vmatpush1.msra.mxu0 %v10303
    %10305 = vmatprep.subr.mxu0 0.0
    %v10306 = vand.u32 %v9955, 4294901760
    %10307 = vmatpush1.msra.mxu0 %v10306
    %10308 = vmatprep.subr.mxu0 0.0
    %v10309 = vand.u32 %v9954, 4294901760
    %10310 = vmatpush1.msra.mxu0 %v10309
    %10311 = vmatprep.subr.mxu0 0.0
    %10312 = vmatpush2.msra.mxu0 0.0
    %10313 = vmatprep.subr.mxu0 0.0
    %10314 = vmatpush2.msra.mxu0 0.0
    %10315 = vmatprep.subr.mxu0 0.0
    %10316 = vmatpush2.msra.mxu0 0.0
    %10317 = vmatprep.subr.mxu0 0.0
    %10318 = vmatpush2.msra.mxu0 0.0
    %10319 = vmatprep.subr.mxu0 0.0
    %10320 = vmatpush2.msra.mxu0 0.0
    %10321 = vmatprep.subr.mxu0 0.0
    %10322 = vmatpush2.msra.mxu0 0.0
    %10323 = vmatprep.subr.mxu0 0.0
    %10324 = vmatpush2.msra.mxu0 0.0
    %10325 = vmatprep.subr.mxu0 0.0
    %10326 = vmatpush2.msra.mxu0 0.0
    %10327 = vmatprep.subr.mxu0 0.0
    %10328 = vmatpush2.msra.mxu0 0.0
    %10329 = vmatprep.subr.mxu0 0.0
    %10330 = vmatpush2.msra.mxu0 0.0
    %10331 = vmatprep.subr.mxu0 0.0
    %10332 = vmatpush2.msra.mxu0 0.0
    %10333 = vmatprep.subr.mxu0 0.0
    %10334 = vmatpush2.msra.mxu0 0.0
    %10335 = vmatprep.subr.mxu0 0.0
    %10336 = vmatpush2.msra.mxu0 0.0
    %10337 = vmatprep.subr.mxu0 0.0
    %10338 = vmatpush2.msra.mxu0 0.0
    %10339 = vmatprep.subr.mxu0 0.0
    %10340 = vmatpush2.msra.mxu0 0.0
    %10341 = vmatprep.subr.mxu0 0.0
    %10342 = vmatpush2.msra.mxu0 0.0
    %10343 = vmatprep.mubr.f32.mxu0 0.0
    %v10344 = vand.u32 %v10023, 4294901760
    %v10345 = vsub.f32 %v10023, %v10344
    %v10346 = vand.u32 %v10345, 4294901760
    %10347 = vmatmul.mubr.f32.gmra.mxu0 %v10346
    %v10348 = vpop.f32.mrf.mxu0
    %v10349 = vadd.f32 %v10272, %v10348
    %v10350 = vpop.f32.mrf.mxu0
    %10351 = vdwg.mxu0
    %10352 = vmatprep.subr.mxu0 0.0
    %10353 = vmatpush1.msra.mxu0 0.0
    %10354 = vmatprep.subr.mxu0 0.0
    %10355 = vmatpush1.msra.mxu0 0.0
    %10356 = vmatprep.subr.mxu0 0.0
    %10357 = vmatpush1.msra.mxu0 0.0
    %10358 = vmatprep.subr.mxu0 0.0
    %10359 = vmatpush1.msra.mxu0 0.0
    %10360 = vmatprep.subr.mxu0 0.0
    %10361 = vmatpush1.msra.mxu0 0.0
    %10362 = vmatprep.subr.mxu0 0.0
    %10363 = vmatpush1.msra.mxu0 0.0
    %10364 = vmatprep.subr.mxu0 0.0
    %10365 = vmatpush1.msra.mxu0 0.0
    %10366 = vmatprep.subr.mxu0 0.0
    %10367 = vmatpush1.msra.mxu0 0.0
    %10368 = vmatprep.subr.mxu0 0.0
    %10369 = vmatpush1.msra.mxu0 0.0
    %10370 = vmatprep.subr.mxu0 0.0
    %10371 = vmatpush1.msra.mxu0 0.0
    %10372 = vmatprep.subr.mxu0 0.0
    %10373 = vmatpush1.msra.mxu0 0.0
    %10374 = vmatprep.subr.mxu0 0.0
    %10375 = vmatpush1.msra.mxu0 0.0
    %10376 = vmatprep.subr.mxu0 0.0
    %v10377 = vand.u32 %v9957, 4294901760
    %v10378 = vsub.f32 %v9957, %v10377
    %v10379 = vand.u32 %v10378, 4294901760
    %10380 = vmatpush1.msra.mxu0 %v10379
    %10381 = vmatprep.subr.mxu0 0.0
    %v10382 = vand.u32 %v9956, 4294901760
    %v10383 = vsub.f32 %v9956, %v10382
    %v10384 = vand.u32 %v10383, 4294901760
    %10385 = vmatpush1.msra.mxu0 %v10384
    %10386 = vmatprep.subr.mxu0 0.0
    %v10387 = vand.u32 %v9955, 4294901760
    %v10388 = vsub.f32 %v9955, %v10387
    %v10389 = vand.u32 %v10388, 4294901760
    %10390 = vmatpush1.msra.mxu0 %v10389
    %10391 = vmatprep.subr.mxu0 0.0
    %v10392 = vand.u32 %v9954, 4294901760
    %v10393 = vsub.f32 %v9954, %v10392
    %v10394 = vand.u32 %v10393, 4294901760
    %10395 = vmatpush1.msra.mxu0 %v10394
    %10396 = vmatprep.subr.mxu0 0.0
    %10397 = vmatpush2.msra.mxu0 0.0
    %10398 = vmatprep.subr.mxu0 0.0
    %10399 = vmatpush2.msra.mxu0 0.0
    %10400 = vmatprep.subr.mxu0 0.0
    %10401 = vmatpush2.msra.mxu0 0.0
    %10402 = vmatprep.subr.mxu0 0.0
    %10403 = vmatpush2.msra.mxu0 0.0
    %10404 = vmatprep.subr.mxu0 0.0
    %10405 = vmatpush2.msra.mxu0 0.0
    %10406 = vmatprep.subr.mxu0 0.0
    %10407 = vmatpush2.msra.mxu0 0.0
    %10408 = vmatprep.subr.mxu0 0.0
    %10409 = vmatpush2.msra.mxu0 0.0
    %10410 = vmatprep.subr.mxu0 0.0
    %10411 = vmatpush2.msra.mxu0 0.0
    %10412 = vmatprep.subr.mxu0 0.0
    %10413 = vmatpush2.msra.mxu0 0.0
    %10414 = vmatprep.subr.mxu0 0.0
    %10415 = vmatpush2.msra.mxu0 0.0
    %10416 = vmatprep.subr.mxu0 0.0
    %10417 = vmatpush2.msra.mxu0 0.0
    %10418 = vmatprep.subr.mxu0 0.0
    %10419 = vmatpush2.msra.mxu0 0.0
    %10420 = vmatprep.subr.mxu0 0.0
    %10421 = vmatpush2.msra.mxu0 0.0
    %10422 = vmatprep.subr.mxu0 0.0
    %10423 = vmatpush2.msra.mxu0 0.0
    %10424 = vmatprep.subr.mxu0 0.0
    %10425 = vmatpush2.msra.mxu0 0.0
    %10426 = vmatprep.subr.mxu0 0.0
    %10427 = vmatpush2.msra.mxu0 0.0
    %10428 = vmatprep.mubr.f32.mxu0 0.0
    %v10429 = vand.u32 %v10023, 4294901760
    %10430 = vmatmul.mubr.f32.gmra.mxu0 %v10429
    %v10431 = vpop.f32.mrf.mxu0
    %v10432 = vadd.f32 %v10349, %v10431
    %v10433 = vpop.f32.mrf.mxu0
    %10434 = vdwg.mxu0
    %10435 = vmatprep.subr.mxu0 0.0
    %10436 = vmatpush1.msra.mxu0 0.0
    %10437 = vmatprep.subr.mxu0 0.0
    %10438 = vmatpush1.msra.mxu0 0.0
    %10439 = vmatprep.subr.mxu0 0.0
    %10440 = vmatpush1.msra.mxu0 0.0
    %10441 = vmatprep.subr.mxu0 0.0
    %10442 = vmatpush1.msra.mxu0 0.0
    %10443 = vmatprep.subr.mxu0 0.0
    %10444 = vmatpush1.msra.mxu0 0.0
    %10445 = vmatprep.subr.mxu0 0.0
    %10446 = vmatpush1.msra.mxu0 0.0
    %10447 = vmatprep.subr.mxu0 0.0
    %10448 = vmatpush1.msra.mxu0 0.0
    %10449 = vmatprep.subr.mxu0 0.0
    %10450 = vmatpush1.msra.mxu0 0.0
    %10451 = vmatprep.subr.mxu0 0.0
    %10452 = vmatpush1.msra.mxu0 0.0
    %10453 = vmatprep.subr.mxu0 0.0
    %10454 = vmatpush1.msra.mxu0 0.0
    %10455 = vmatprep.subr.mxu0 0.0
    %10456 = vmatpush1.msra.mxu0 0.0
    %10457 = vmatprep.subr.mxu0 0.0
    %10458 = vmatpush1.msra.mxu0 0.0
    %10459 = vmatprep.subr.mxu0 0.0
    %v10460 = vand.u32 %v9957, 4294901760
    %10461 = vmatpush1.msra.mxu0 %v10460
    %10462 = vmatprep.subr.mxu0 0.0
    %v10463 = vand.u32 %v9956, 4294901760
    %10464 = vmatpush1.msra.mxu0 %v10463
    %10465 = vmatprep.subr.mxu0 0.0
    %v10466 = vand.u32 %v9955, 4294901760
    %10467 = vmatpush1.msra.mxu0 %v10466
    %10468 = vmatprep.subr.mxu0 0.0
    %v10469 = vand.u32 %v9954, 4294901760
    %10470 = vmatpush1.msra.mxu0 %v10469
    %10471 = vmatprep.subr.mxu0 0.0
    %10472 = vmatpush2.msra.mxu0 0.0
    %10473 = vmatprep.subr.mxu0 0.0
    %10474 = vmatpush2.msra.mxu0 0.0
    %10475 = vmatprep.subr.mxu0 0.0
    %10476 = vmatpush2.msra.mxu0 0.0
    %10477 = vmatprep.subr.mxu0 0.0
    %10478 = vmatpush2.msra.mxu0 0.0
    %10479 = vmatprep.subr.mxu0 0.0
    %10480 = vmatpush2.msra.mxu0 0.0
    %10481 = vmatprep.subr.mxu0 0.0
    %10482 = vmatpush2.msra.mxu0 0.0
    %10483 = vmatprep.subr.mxu0 0.0
    %10484 = vmatpush2.msra.mxu0 0.0
    %10485 = vmatprep.subr.mxu0 0.0
    %10486 = vmatpush2.msra.mxu0 0.0
    %10487 = vmatprep.subr.mxu0 0.0
    %10488 = vmatpush2.msra.mxu0 0.0
    %10489 = vmatprep.subr.mxu0 0.0
    %10490 = vmatpush2.msra.mxu0 0.0
    %10491 = vmatprep.subr.mxu0 0.0
    %10492 = vmatpush2.msra.mxu0 0.0
    %10493 = vmatprep.subr.mxu0 0.0
    %10494 = vmatpush2.msra.mxu0 0.0
    %10495 = vmatprep.subr.mxu0 0.0
    %10496 = vmatpush2.msra.mxu0 0.0
    %10497 = vmatprep.subr.mxu0 0.0
    %10498 = vmatpush2.msra.mxu0 0.0
    %10499 = vmatprep.subr.mxu0 0.0
    %10500 = vmatpush2.msra.mxu0 0.0
    %10501 = vmatprep.subr.mxu0 0.0
    %10502 = vmatpush2.msra.mxu0 0.0
    %10503 = vmatprep.mubr.f32.mxu0 0.0
    %v10504 = vand.u32 %v10023, 4294901760
    %10505 = vmatmul.mubr.f32.gmra.mxu0 %v10504
    %v10506 = vpop.f32.mrf.mxu0
    %v10507 = vadd.f32 %v10432, %v10506
    %v10508 = vpop.f32.mrf.mxu0
    %10509 = vdwg.mxu0
    %v10511 = vcombine.high %v10507, %v10507
    %v10513 = vmul.f32 %v10507, %v80
    %v10514 = vmul.f32 %v10511, %v87
    %v10515 = vadd.f32 %v10513, %v58
    %v10516 = vadd.f32 %v10514, %v59
    %vm10517 = vcmask 60416
    %10518 = vst.msk [vmem:[#allocation2] sm:$0xf] %vm10517, %v10515
    %10519 = vst.msk [vmem:[#allocation2 + $0x4] sm:$0xf] %vm10517, %v10516
    // Predicated region
    $region58: #{itransformer_forward.1} parent=1 // pred_check
      _
    $region59: #{itransformer_forward.1} parent=1 // pred_check_branch
      %10521 = sbr.rel (0) target = $region61
    $region60: #{itransformer_forward.1} parent=1 // pred_region
      %s10523 = ssub.s32 128, 128
      %10524 = vsyncadd [#allocation3], %s10523
      %s10525 = sshll.u32 [#allocation2], 4
      %s10526 = int_to_ptr.vmem [resolvable:$true] %s10525
      %10531 = dma.vmem_to_hbm [thread:$0]  %s10526, 128, %s14, [#allocation3], 64, 64, 4
    $region61: #{itransformer_forward.1} parent=1 // pred_fallthru
      _
    // Predicated region
    $region62: #{itransformer_forward.1} parent=1 // pred_check
      _
    $region63: #{itransformer_forward.1} parent=1 // pred_check_branch
      %10533 = sbr.rel (0) target = $region65
    $region64: #{itransformer_forward.1} parent=1 // pred_region
      %10534 = dma.done [#allocation3], 128
    $region65: #{itransformer_forward.1} parent=1 // pred_fallthru
      _
    %10535 = vsyncpa [#allocation3], 1

</llo_original>
